<compile_context>
chip_gen: v7x
topology: tpu7x:2x2x1
jax: 0.10.0
libtpu: 0.0.40
codegen_flags: <defaults>
</compile_context>

<pallas_src>
import numpy as np
import jax
import jax.numpy as jnp
from jax.experimental import pallas as pl
from jax.experimental.pallas import tpu as pltpu

# ---- model configuration (sizes = [C_IN, _, W_IN]) ----
C_IN   = 4             # sizes[0] = input channels
W_IN   = 8             # sizes[2] = input width = conv2 kernel width = #classes
H_IN   = 124           # forced by fc.in_features = 7440 = 120 * 62
N_CH   = 120           # conv2..conv4 channel count
N_CHP  = 128           # N_CH padded to a full lane width
H_HALF = H_IN // 2     # 62  (conv3 stride-2 output height)
K4     = 10            # conv4 kernel height
PAD_TOP, PAD_BOT = 4, 5    # PyTorch padding='same' for even kernel 10 -> (4, 5) along H
CW     = C_IN * W_IN   # 32 packed input features per row
K      = W_IN          # number of classes
B_TILE = 32            # samples per grid step
R      = B_TILE * H_HALF   # 1984 matmul rows per grid step (h-major: row = h*B_TILE + b)


def dnn_kernel(x_ref, weo_ref, bf_ref, weff_ref, beff_ref, out_ref):
    # x_ref:    (1, R, 2*CW)       bf16, h-major packed input rows (even|odd row features)
    # weo_ref:  (2*CW, N_CHP)      bf16, conv1+conv2+conv3 fused weight (channel-padded)
    # bf_ref:   (1, N_CHP)         f32,  conv2+conv3 fused bias
    # weff_ref: (H_HALF, N_CHP, K) bf16, conv4 folded into fc (NOT tiled across the batch)
    # beff_ref: (1, K)             f32,  fc bias + conv4-bias contribution
    # out_ref:  (1, B_TILE, K)     f32,  softmax probabilities
    x = x_ref[0]                                                       # (R, 64) bf16

    # conv1 + conv2 + conv3 (+ biases) as one MXU matmul (f32 accumulate), then ReLU.
    z3 = jnp.dot(x, weo_ref[...], preferred_element_type=jnp.float32)  # (R, 128)
    z3 = jnp.maximum(z3 + bf_ref[...], 0.0)

    # conv4 + fc fused: batched MXU matmul over h (rows are h-major so the reshape is free),
    # then a cheap VPU sum over the 62 h-slices.
    z3h = z3.astype(jnp.bfloat16).reshape(H_HALF, B_TILE, N_CHP)       # (62, B, 128)
    u = jnp.einsum('hbc,hck->hbk', z3h, weff_ref[...],
                   preferred_element_type=jnp.float32)                 # (62, B, K)
    logits = jnp.sum(u, axis=0) + beff_ref[...]                        # (B, K)

    # Softmax over the K lanes (f32).
    m = jnp.max(logits, axis=1, keepdims=True)
    e = jnp.exp(logits - m)
    out_ref[0, :, :] = e / jnp.sum(e, axis=1, keepdims=True)


def init_params(key):
    ks = jax.random.split(key, 9)
    s = 0.1
    return {
        "conv1_w": jax.random.normal(ks[0], (1, C_IN, 1, 1), jnp.float32) * s,
        "conv2_w": jax.random.normal(ks[1], (N_CH, 1, 1, W_IN), jnp.float32) * s,
        "conv2_b": jax.random.normal(ks[2], (N_CH,), jnp.float32) * s,
        "conv3_w": jax.random.normal(ks[3], (N_CH, N_CH, 2, 1), jnp.float32) * s,
        "conv3_b": jax.random.normal(ks[4], (N_CH,), jnp.float32) * s,
        "conv4_w": jax.random.normal(ks[5], (N_CH, N_CH, K4, 1), jnp.float32) * s,
        "conv4_b": jax.random.normal(ks[6], (N_CH,), jnp.float32) * s,
        "fc_w":    jax.random.normal(ks[7], (W_IN, N_CH * H_HALF), jnp.float32) * s,
        "fc_b":    jax.random.normal(ks[8], (W_IN,), jnp.float32) * s,
    }


def _fold_params(p):
    """Glue: fold conv1+conv2+conv3 -> one matmul; fold conv4 (+bias) into the fc."""
    hp = jax.lax.Precision.HIGHEST

    # conv1 (1x1, no bias) folded into conv2 (kernel spans full width).
    w1 = p["conv1_w"][0, :, 0, 0]                                     # (C_IN,)
    w2 = p["conv2_w"][:, 0, 0, :]                                     # (N_CH, W_IN)
    wc = jnp.einsum('c,ow->cwo', w1, w2, precision=hp).reshape(CW, N_CH)
    b2 = p["conv2_b"].reshape(1, N_CH)

    # conv3 (kernel (2,1), stride 2): even/odd row weights; fuse through conv2 (linear chain).
    w3a = p["conv3_w"][:, :, 0, 0].T                                  # (in, out), even rows
    w3b = p["conv3_w"][:, :, 1, 0].T                                  # (in, out), odd rows
    b3 = p["conv3_b"].reshape(1, N_CH)
    w_eo = jnp.concatenate([jnp.dot(wc, w3a, precision=hp),
                            jnp.dot(wc, w3b, precision=hp)], axis=0)  # (2*CW, N_CH)
    b_fused = (jnp.dot(b2, w3a, precision=hp)
               + jnp.dot(b2, w3b, precision=hp) + b3)                 # (1, N_CH)

    # conv4 ('same' pad (4,5)) folded into fc:
    #   logits[n,k] = sum_{c,j} W_eff[k,c,j] * z3[n,c,j] + b_eff[k]
    wfc = p["fc_w"].reshape(K, N_CH, H_HALF)                          # [k, o, h] torch view order
    w4 = p["conv4_w"][:, :, :, 0]                                     # [o, c, dh]
    w_eff = jnp.zeros((K, N_CH, H_HALF), jnp.float32)                 # [k, c, j]
    for dh in range(K4):
        t = jnp.einsum('koh,oc->kch', wfc, w4[:, :, dh], precision=hp)
        s = PAD_TOP - dh
        if s >= 0:
            w_eff = w_eff.at[:, :, :H_HALF - s].add(t[:, :, s:])
        else:
            w_eff = w_eff.at[:, :, -s:].add(t[:, :, :H_HALF + s])
    b_eff = (p["fc_b"]
             + jnp.einsum('koh,o->k', wfc, p["conv4_b"], precision=hp)).reshape(1, K)

    # Kernel layout: pad channels 120 -> 128 (lane-full), weights as bf16 MXU operands.
    w_eo_p = jnp.pad(w_eo, ((0, 0), (0, N_CHP - N_CH))).astype(jnp.bfloat16)      # (64, 128)
    b_fused_p = jnp.pad(b_fused, ((0, 0), (0, N_CHP - N_CH)))                     # (1, 128)
    w_eff_hck = jnp.transpose(w_eff, (2, 1, 0))                                   # (62, N_CH, K)
    w_eff_p = jnp.pad(w_eff_hck,
                      ((0, 0), (0, N_CHP - N_CH), (0, 0))).astype(jnp.bfloat16)   # (62, 128, 8)
    return w_eo_p, b_fused_p, w_eff_p, b_eff


def dnn_forward_pallas(x, p):
    """x: NCHW float32 (N, C_IN, 124, W_IN) -> (N, W_IN) softmax probs (eval mode)."""
    N = x.shape[0]
    w_eo, b_fused, w_eff, b_eff = _fold_params(p)

    G = (N + B_TILE - 1) // B_TILE
    n_pad = G * B_TILE
    xp = x if n_pad == N else jnp.pad(x, ((0, n_pad - N), (0, 0), (0, 0), (0, 0)))

    # Pack NCHW -> (G, R, 2*CW): rows h-major within each tile (row = h*B_TILE + b),
    # lanes = [even-row feats | odd-row feats] with feature index c*W + w.  One fused
    # 6-D transpose in XLA; input shipped to the kernel as bf16 (halves HBM read bytes).
    x6 = xp.astype(jnp.bfloat16).reshape(G, B_TILE, C_IN, H_HALF, 2, W_IN)
    x_packed = jnp.transpose(x6, (0, 3, 1, 4, 2, 5)).reshape(G, R, 2 * CW)

    out = pl.pallas_call(
        dnn_kernel,
        out_shape=jax.ShapeDtypeStruct((G, B_TILE, K), jnp.float32),
        grid=(G,),
        in_specs=[
            pl.BlockSpec((1, R, 2 * CW), lambda g: (g, 0, 0)),         # packed input tile
            pl.BlockSpec((2 * CW, N_CHP), lambda g: (0, 0)),           # fused conv1-3 weight
            pl.BlockSpec((1, N_CHP), lambda g: (0, 0)),                # fused conv2/3 bias
            pl.BlockSpec((H_HALF, N_CHP, K), lambda g: (0, 0, 0)),     # conv4+fc weight (un-tiled)
            pl.BlockSpec((1, K), lambda g: (0, 0)),                    # fused fc bias
        ],
        out_specs=pl.BlockSpec((1, B_TILE, K), lambda g: (g, 0, 0)),
        compiler_params=pltpu.CompilerParams(dimension_semantics=("parallel",)),
    )(x_packed, w_eo, b_fused, w_eff, b_eff)
    return out.reshape(n_pad, K)[:N]


def dnn_reference(x, p):
    """Pure-JAX f32 reference of the PyTorch forward (eval mode), NCHW semantics."""
    w1 = p["conv1_w"][0, :, 0, 0]
    z1 = jnp.einsum('nchw,c->nhw', x, w1)                                    # conv1 (no bias)
    w2 = p["conv2_w"][:, 0, 0, :]
    z2 = jnp.einsum('nhw,ow->noh', z1, w2) + p["conv2_b"][None, :, None]     # conv2 -> (N,120,H)
    w3 = p["conv3_w"][:, :, :, 0]
    z3 = (jnp.einsum('nch,oc->noh', z2[:, :, 0::2], w3[:, :, 0])
          + jnp.einsum('nch,oc->noh', z2[:, :, 1::2], w3[:, :, 1])
          + p["conv3_b"][None, :, None])
    z3 = jnp.maximum(z3, 0.0)                                                # (N,120,62)
    z3p = jnp.pad(z3, ((0, 0), (0, 0), (PAD_TOP, PAD_BOT)))
    w4 = p["conv4_w"][:, :, :, 0]
    z4 = p["conv4_b"][None, :, None]
    for dh in range(K4):
        z4 = z4 + jnp.einsum('nch,oc->noh', z3p[:, :, dh:dh + H_HALF], w4[:, :, dh])
    f = z4.reshape(x.shape[0], N_CH * H_HALF)                                # torch view order
    logits = f @ p["fc_w"].T + p["fc_b"][None, :]
    return jax.nn.softmax(logits, axis=1)


if __name__ == "__main__":
    key = jax.random.PRNGKey(0)
    kx, kp = jax.random.split(key)
    N = 40                      # 2 grid steps (G=2, good for v7x megacore) + batch-padding path
    x = jax.random.normal(kx, (N, C_IN, H_IN, W_IN), jnp.float32)   # NCHW, like torch
    params = init_params(kp)

    fwd = jax.jit(dnn_forward_pallas)
    out = jax.block_until_ready(fwd(x, params))
    ref = jax.block_until_ready(dnn_reference(x, params))

    assert out.shape == (N, W_IN), out.shape
    np.testing.assert_allclose(np.asarray(out), np.asarray(ref), rtol=5e-2, atol=5e-3)
    np.testing.assert_allclose(np.asarray(out).sum(axis=1), np.ones(N), rtol=1e-4, atol=1e-4)
    print("KERNEL_OK")
</pallas_src>

<mosaic_0001>
module attributes {stable_mosaic.version = 11 : i64} {
  func.func @dnn_kernel(%arg0: i32, %arg1: memref<1x1984x64xbf16, #tpu.memory_space<vmem>>, %arg2: memref<64x128xbf16, #tpu.memory_space<vmem>>, %arg3: memref<1x128xf32, #tpu.memory_space<vmem>>, %arg4: memref<62x128x8xbf16, #tpu.memory_space<vmem>>, %arg5: memref<1x8xf32, #tpu.memory_space<vmem>>, %arg6: memref<1x32x8xf32, #tpu.memory_space<vmem>>) attributes {dimension_semantics = [#tpu.dimension_semantics<parallel>], iteration_bounds = array<i64: 2>, scalar_prefetch = 0 : i64, scratch_operands = 0 : i64, tpu.core_type = #tpu.core_type<tc>, window_params = [{transform_indices = @transform_0, window_bounds = array<i64: 1, 1984, 64>}, {pipeline_mode = #tpu.pipeline_mode<synchronous>, transform_indices = @transform_1, window_bounds = array<i64: 64, 128>}, {pipeline_mode = #tpu.pipeline_mode<synchronous>, transform_indices = @transform_2, window_bounds = array<i64: 1, 128>}, {pipeline_mode = #tpu.pipeline_mode<synchronous>, transform_indices = @transform_3, window_bounds = array<i64: 62, 128, 8>}, {pipeline_mode = #tpu.pipeline_mode<synchronous>, transform_indices = @transform_4, window_bounds = array<i64: 1, 8>}, {transform_indices = @transform_5, window_bounds = array<i64: 1, 32, 8>}]} {
    %c0 = arith.constant 0 : index
    %c0_0 = arith.constant 0 : index
    %c0_1 = arith.constant 0 : index
    %0 = vector.load %arg1[%c0, %c0_0, %c0_1] : memref<1x1984x64xbf16, #tpu.memory_space<vmem>>, vector<1x1984x64xbf16>
    %1 = vector.shape_cast %0 : vector<1x1984x64xbf16> to vector<1984x64xbf16>
    %c0_2 = arith.constant 0 : index
    %c0_3 = arith.constant 0 : index
    %2 = vector.load %arg2[%c0_2, %c0_3] : memref<64x128xbf16, #tpu.memory_space<vmem>>, vector<64x128xbf16>
    %cst = arith.constant dense<0.000000e+00> : vector<1984x128xf32>
    %3 = tpu.matmul %1, %2, %cst {dimension_numbers = #tpu.dot_dimension_numbers<[1], [0], [0], [1], [0, 0, 1, 1], [], []>} : vector<1984x64xbf16>, vector<64x128xbf16>, vector<1984x128xf32> -> vector<1984x128xf32>
    %c0_4 = arith.constant 0 : index
    %c0_5 = arith.constant 0 : index
    %4 = vector.load %arg3[%c0_4, %c0_5] : memref<1x128xf32, #tpu.memory_space<vmem>>, vector<1x128xf32>
    %5 = vector.broadcast %4 : vector<1x128xf32> to vector<1984x128xf32>
    %6 = arith.addf %3, %5 : vector<1984x128xf32>
    %cst_6 = arith.constant 0.000000e+00 : f32
    %7 = vector.broadcast %cst_6 : f32 to vector<1984x128xf32>
    %8 = arith.maximumf %6, %7 : vector<1984x128xf32>
    %9 = arith.truncf %8 : vector<1984x128xf32> to vector<1984x128xbf16>
    %10 = vector.shape_cast %9 : vector<1984x128xbf16> to vector<62x32x128xbf16>
    %c0_7 = arith.constant 0 : index
    %c0_8 = arith.constant 0 : index
    %c0_9 = arith.constant 0 : index
    %11 = vector.load %arg4[%c0_7, %c0_8, %c0_9] : memref<62x128x8xbf16, #tpu.memory_space<vmem>>, vector<62x128x8xbf16>
    "tpu.trace_start"() <{level = 10 : i32, message = "hbc,hck->hbk"}> : () -> ()
    %cst_10 = arith.constant dense<0.000000e+00> : vector<62x32x8xf32>
    %12 = tpu.matmul %10, %11, %cst_10 {dimension_numbers = #tpu.dot_dimension_numbers<[2], [1], [1], [2], [0, 0, 0, 1, 1, 2], [0], [0]>} : vector<62x32x128xbf16>, vector<62x128x8xbf16>, vector<62x32x8xf32> -> vector<62x32x8xf32>
    "tpu.trace_stop"() : () -> ()
    %cst_11 = arith.constant dense<0.000000e+00> : vector<32x8xf32>
    %13 = vector.multi_reduction <add>, %12, %cst_11 [0] : vector<62x32x8xf32> to vector<32x8xf32>
    %c0_12 = arith.constant 0 : index
    %c0_13 = arith.constant 0 : index
    %14 = vector.load %arg5[%c0_12, %c0_13] : memref<1x8xf32, #tpu.memory_space<vmem>>, vector<1x8xf32>
    %15 = vector.broadcast %14 : vector<1x8xf32> to vector<32x8xf32>
    %16 = arith.addf %13, %15 : vector<32x8xf32>
    %cst_14 = arith.constant dense<0xFF800000> : vector<32xf32>
    %17 = vector.multi_reduction <maximumf>, %16, %cst_14 [1] : vector<32x8xf32> to vector<32xf32>
    %18 = vector.shape_cast %17 : vector<32xf32> to vector<32x1xf32>
    %19 = vector.broadcast %18 : vector<32x1xf32> to vector<32x8xf32>
    %20 = arith.subf %16, %19 : vector<32x8xf32>
    %21 = math.exp %20 : vector<32x8xf32>
    %cst_15 = arith.constant dense<0.000000e+00> : vector<32xf32>
    %22 = vector.multi_reduction <add>, %21, %cst_15 [1] : vector<32x8xf32> to vector<32xf32>
    %23 = vector.shape_cast %22 : vector<32xf32> to vector<32x1xf32>
    %24 = vector.broadcast %23 : vector<32x1xf32> to vector<32x8xf32>
    %25 = arith.divf %21, %24 : vector<32x8xf32>
    %c0_16 = arith.constant 0 : index
    %c0_17 = arith.constant 0 : index
    %c0_18 = arith.constant 0 : index
    %26 = vector.load %arg6[%c0_16, %c0_17, %c0_18] : memref<1x32x8xf32, #tpu.memory_space<vmem>>, vector<1x32x8xf32>
    %27 = vector.shape_cast %26 : vector<1x32x8xf32> to vector<32x8xf32>
    %28 = vector.shape_cast %25 : vector<32x8xf32> to vector<1x32x8xf32>
    tpu.vector_store %arg6[%c0_16, %c0_17, %c0_18], %28 {strides = array<i32>} : memref<1x32x8xf32, #tpu.memory_space<vmem>>, vector<1x32x8xf32>,
    return
  }
  func.func @transform_0(%arg0: i32) -> (i32, i32, i32) {
    %c0_i32 = arith.constant 0 : i32
    %c0_i32_0 = arith.constant 0 : i32
    %c0_i32_1 = arith.constant 0 : i32
    return %arg0, %c0_i32, %c0_i32_0 : i32, i32, i32
  }
  func.func @transform_1(%arg0: i32) -> (i32, i32) {
    %c0_i32 = arith.constant 0 : i32
    %c0_i32_0 = arith.constant 0 : i32
    %c0_i32_1 = arith.constant 0 : i32
    return %c0_i32, %c0_i32_0 : i32, i32
  }
  func.func @transform_2(%arg0: i32) -> (i32, i32) {
    %c0_i32 = arith.constant 0 : i32
    %c0_i32_0 = arith.constant 0 : i32
    %c0_i32_1 = arith.constant 0 : i32
    return %c0_i32, %c0_i32_0 : i32, i32
  }
  func.func @transform_3(%arg0: i32) -> (i32, i32, i32) {
    %c0_i32 = arith.constant 0 : i32
    %c0_i32_0 = arith.constant 0 : i32
    %c0_i32_1 = arith.constant 0 : i32
    %c0_i32_2 = arith.constant 0 : i32
    return %c0_i32, %c0_i32_0, %c0_i32_1 : i32, i32, i32
  }
  func.func @transform_4(%arg0: i32) -> (i32, i32) {
    %c0_i32 = arith.constant 0 : i32
    %c0_i32_0 = arith.constant 0 : i32
    %c0_i32_1 = arith.constant 0 : i32
    return %c0_i32, %c0_i32_0 : i32, i32
  }
  func.func @transform_5(%arg0: i32) -> (i32, i32, i32) {
    %c0_i32 = arith.constant 0 : i32
    %c0_i32_0 = arith.constant 0 : i32
    %c0_i32_1 = arith.constant 0 : i32
    return %arg0, %c0_i32, %c0_i32_0 : i32, i32, i32
  }
}

</mosaic_0001>

<llo_original>
// kernel: dnn_forward_pallas.1
$region0: #{dnn_forward_pallas.1}
  #allocation0 [shape = 'u32[]', space=smem, size = 0x4, offset = 0x4, fixed_abs, tag = 'smem constant byte address 0x4 - core index']
  #allocation1 [shape = 'u32[144,128]{1,0:T(1,128)}', space=vmem, size = 0x12000, scoped, tag = 'internal scratch']
  %s0 = inlined_call_operand.vmem [shape: bf16[2,1984,64], index: 0, kind: input, shape index: {}]
  %s1 = inlined_call_operand.vmem [shape: bf16[64,128], index: 1, kind: input, shape index: {}]
  %s2 = inlined_call_operand.vmem [shape: f32[1,128], index: 2, kind: input, shape index: {}]
  %s3 = inlined_call_operand.vmem [shape: bf16[62,128,8], index: 3, kind: input, shape index: {}]
  %s4 = inlined_call_operand.vmem [shape: f32[1,8], index: 4, kind: input, shape index: {}]
  %s5 = inlined_call_operand.vmem [shape: f32[2,32,8], index: 5, kind: output, shape index: {}]
  %s6 = sld [smem:[#allocation0]]
  $region53: #{dnn_forward_pallas.1} parent=0
    _
  %s8 = ssub.s32 1, %s6
  %s9 = scalar_select 0, %s8, %s6
  loop: start=0, step=1, limit=4
  $region2: #{dnn_forward_pallas.1} parent=0 // loop_pre_header
    _
  $region3: #{dnn_forward_pallas.1} parent=0 // loop_header
    %s11 = sphi 0, %s15
    %p12 = scmp.ge.s32.totalorder %s11, 4
    %s21 = sphi 0, %s23
    %s24 = sphi 0, %s21
    %s25 = sphi 0, %s24
    %s41 = sphi 0, %s25
    %s45 = sphi 0, %s45
    %s47 = sphi 0, %s45
    %s48 = sphi 0, %s47
    %s62 = sphi 0, %s48
    %s66 = sphi 0, %s66
    %s68 = sphi 0, %s66
    %s69 = sphi 0, %s68
    %s83 = sphi 0, %s69
    %s87 = sphi 0, %s87
    %s89 = sphi 0, %s87
    %s90 = sphi 0, %s89
    %s104 = sphi 0, %s90
    %s108 = sphi 0, %s108
    %s110 = sphi 0, %s108
    %s111 = sphi 0, %s110
    %s125 = sphi 0, %s111
    %s131 = sphi 0, %s133
    %s134 = sphi 0, %s131
    %s135 = sphi 0, %s134
    %s151 = sphi 0, %s135
  $region4: #{dnn_forward_pallas.1} parent=0 // loop_header_branch
    %14 = sbr.rel (%p12) target = $region8
  $region5: #{dnn_forward_pallas.1} parent=0 // loop_body
    %s16 = ssub.s32 %s11, 1
    %s17 = ssub.s32 %s11, 2
    %s18 = sadd.s32 %s11, 1
    %s19 = ssub.s32 %s11, %s18
    %p20 = scmp.eq.s32.totalorder %s19, 0
    %s22 = sadd.s32 %s21, 1
    %s23 = scalar_select %p20, %s21, %s22
    %p26 = pneg %p20
    %p27 = scmp.eq.s32.totalorder %s11, 1
    %p28 = por %p26, %p27
    %p29 = scmp.ne.s32.totalorder %s21, %s24
    %p30 = scmp.eq.s32.totalorder %s11, 0
    %p31 = por %p29, %p30
    %p32 = scmp.ne.s32.totalorder %s21, %s24
    %p33 = scmp.eq.s32.totalorder %s16, 1
    %p34 = por %p32, %p33
    %p35 = scmp.ne.s32.totalorder %s24, %s25
    %p36 = scmp.eq.s32.totalorder %s16, 0
    %p37 = por %p35, %p36
    %p38 = scmp.ne.s32.totalorder %s24, %s25
    %p39 = scmp.eq.s32.totalorder %s17, 1
    %p40 = por %p38, %p39
    %p42 = scmp.ne.s32.totalorder %s25, %s41
    %p43 = scmp.eq.s32.totalorder %s17, 0
    %p44 = por %p42, %p43
    %s46 = sadd.s32 %s45, 1
    %p49 = scmp.eq.s32.totalorder %s11, 1
    %p50 = scmp.ne.s32.totalorder %s45, %s47
    %p51 = scmp.eq.s32.totalorder %s11, 0
    %p52 = por %p50, %p51
    %p53 = scmp.ne.s32.totalorder %s45, %s47
    %p54 = scmp.eq.s32.totalorder %s16, 1
    %p55 = por %p53, %p54
    %p56 = scmp.ne.s32.totalorder %s47, %s48
    %p57 = scmp.eq.s32.totalorder %s16, 0
    %p58 = por %p56, %p57
    %p59 = scmp.ne.s32.totalorder %s47, %s48
    %p60 = scmp.eq.s32.totalorder %s17, 1
    %p61 = por %p59, %p60
    %p63 = scmp.ne.s32.totalorder %s48, %s62
    %p64 = scmp.eq.s32.totalorder %s17, 0
    %p65 = por %p63, %p64
    %s67 = sadd.s32 %s66, 1
    %p70 = scmp.eq.s32.totalorder %s11, 1
    %p71 = scmp.ne.s32.totalorder %s66, %s68
    %p72 = scmp.eq.s32.totalorder %s11, 0
    %p73 = por %p71, %p72
    %p74 = scmp.ne.s32.totalorder %s66, %s68
    %p75 = scmp.eq.s32.totalorder %s16, 1
    %p76 = por %p74, %p75
    %p77 = scmp.ne.s32.totalorder %s68, %s69
    %p78 = scmp.eq.s32.totalorder %s16, 0
    %p79 = por %p77, %p78
    %p80 = scmp.ne.s32.totalorder %s68, %s69
    %p81 = scmp.eq.s32.totalorder %s17, 1
    %p82 = por %p80, %p81
    %p84 = scmp.ne.s32.totalorder %s69, %s83
    %p85 = scmp.eq.s32.totalorder %s17, 0
    %p86 = por %p84, %p85
    %s88 = sadd.s32 %s87, 1
    %p91 = scmp.eq.s32.totalorder %s11, 1
    %p92 = scmp.ne.s32.totalorder %s87, %s89
    %p93 = scmp.eq.s32.totalorder %s11, 0
    %p94 = por %p92, %p93
    %p95 = scmp.ne.s32.totalorder %s87, %s89
    %p96 = scmp.eq.s32.totalorder %s16, 1
    %p97 = por %p95, %p96
    %p98 = scmp.ne.s32.totalorder %s89, %s90
    %p99 = scmp.eq.s32.totalorder %s16, 0
    %p100 = por %p98, %p99
    %p101 = scmp.ne.s32.totalorder %s89, %s90
    %p102 = scmp.eq.s32.totalorder %s17, 1
    %p103 = por %p101, %p102
    %p105 = scmp.ne.s32.totalorder %s90, %s104
    %p106 = scmp.eq.s32.totalorder %s17, 0
    %p107 = por %p105, %p106
    %s109 = sadd.s32 %s108, 1
    %p112 = scmp.eq.s32.totalorder %s11, 1
    %p113 = scmp.ne.s32.totalorder %s108, %s110
    %p114 = scmp.eq.s32.totalorder %s11, 0
    %p115 = por %p113, %p114
    %p116 = scmp.ne.s32.totalorder %s108, %s110
    %p117 = scmp.eq.s32.totalorder %s16, 1
    %p118 = por %p116, %p117
    %p119 = scmp.ne.s32.totalorder %s110, %s111
    %p120 = scmp.eq.s32.totalorder %s16, 0
    %p121 = por %p119, %p120
    %p122 = scmp.ne.s32.totalorder %s110, %s111
    %p123 = scmp.eq.s32.totalorder %s17, 1
    %p124 = por %p122, %p123
    %p126 = scmp.ne.s32.totalorder %s111, %s125
    %p127 = scmp.eq.s32.totalorder %s17, 0
    %p128 = por %p126, %p127
    %s129 = ssub.s32 %s11, %s18
    %p130 = scmp.eq.s32.totalorder %s129, 0
    %s132 = sadd.s32 %s131, 1
    %s133 = scalar_select %p130, %s131, %s132
    %p136 = pneg %p130
    %p137 = scmp.eq.s32.totalorder %s11, 1
    %p138 = por %p136, %p137
    %p139 = scmp.ne.s32.totalorder %s131, %s134
    %p140 = scmp.eq.s32.totalorder %s11, 0
    %p141 = por %p139, %p140
    %p142 = scmp.ne.s32.totalorder %s131, %s134
    %p143 = scmp.eq.s32.totalorder %s16, 1
    %p144 = por %p142, %p143
    %p145 = scmp.ne.s32.totalorder %s134, %s135
    %p146 = scmp.eq.s32.totalorder %s16, 0
    %p147 = por %p145, %p146
    %p148 = scmp.ne.s32.totalorder %s134, %s135
    %p149 = scmp.eq.s32.totalorder %s17, 1
    %p150 = por %p148, %p149
    %p152 = scmp.ne.s32.totalorder %s135, %s151
    %p153 = scmp.eq.s32.totalorder %s17, 0
    %p154 = por %p152, %p153
    %p155 = scmp.le.s32.totalorder 1, %s11
    %p156 = scmp.lt.s32.totalorder %s11, 3
    %p157 = pnand %p155, %p156
    %p158 = pneg %p157
    // Predicated region
    $region9: #{dnn_forward_pallas.1} parent=5 // pred_check
      _
    $region10: #{dnn_forward_pallas.1} parent=5 // pred_check_branch
      %160 = sbr.rel (%p157) target = $region12
    $region11: #{dnn_forward_pallas.1} parent=5 // pred_region
      %s161 = ssub.s32 %s11, 1
      // Predicated region
      $region13: #{dnn_forward_pallas.1} parent=11 // pred_check
        %p162 = pneg %p58
      $region14: #{dnn_forward_pallas.1} parent=11 // pred_check_branch
        %164 = sbr.rel (%p162) target = $region16
      $region15: #{dnn_forward_pallas.1} parent=11 // pred_region
        _
      $region16: #{dnn_forward_pallas.1} parent=11 // pred_fallthru
        _
      // Predicated region
      $region17: #{dnn_forward_pallas.1} parent=11 // pred_check
        %p165 = pneg %p79
      $region18: #{dnn_forward_pallas.1} parent=11 // pred_check_branch
        %167 = sbr.rel (%p165) target = $region20
      $region19: #{dnn_forward_pallas.1} parent=11 // pred_region
        _
      $region20: #{dnn_forward_pallas.1} parent=11 // pred_fallthru
        _
      // Predicated region
      $region21: #{dnn_forward_pallas.1} parent=11 // pred_check
        %p168 = pneg %p100
      $region22: #{dnn_forward_pallas.1} parent=11 // pred_check_branch
        %170 = sbr.rel (%p168) target = $region24
      $region23: #{dnn_forward_pallas.1} parent=11 // pred_region
        _
      $region24: #{dnn_forward_pallas.1} parent=11 // pred_fallthru
        _
      // Predicated region
      $region25: #{dnn_forward_pallas.1} parent=11 // pred_check
        %p171 = pneg %p121
      $region26: #{dnn_forward_pallas.1} parent=11 // pred_check_branch
        %173 = sbr.rel (%p171) target = $region28
      $region27: #{dnn_forward_pallas.1} parent=11 // pred_region
        _
      $region28: #{dnn_forward_pallas.1} parent=11 // pred_fallthru
        _
    $region12: #{dnn_forward_pallas.1} parent=5 // pred_fallthru
      _
    %p174 = scmp.lt.s32.totalorder %s11, 2
    // Predicated region
    $region29: #{dnn_forward_pallas.1} parent=5 // pred_check
      %p175 = pneg %p174
    $region30: #{dnn_forward_pallas.1} parent=5 // pred_check_branch
      %177 = sbr.rel (%p175) target = $region32
    $region31: #{dnn_forward_pallas.1} parent=5 // pred_region
      // Predicated region
      $region33: #{dnn_forward_pallas.1} parent=31 // pred_check
        %p178 = pneg %p31
      $region34: #{dnn_forward_pallas.1} parent=31 // pred_check_branch
        %180 = sbr.rel (%p178) target = $region36
      $region35: #{dnn_forward_pallas.1} parent=31 // pred_region
        %p181 = scmp.lt.s32.totalorder %s11, 1
        %s182 = scalar_select %p181, %s11, 1
        %s183 = smul.addr %s182, 248
        %s184 = smul.addr %s183, 4
        %s185 = scalar_lea.vmem %s0, %s184
      $region36: #{dnn_forward_pallas.1} parent=31 // pred_fallthru
        _
    $region32: #{dnn_forward_pallas.1} parent=5 // pred_fallthru
      _
    %p186 = scmp.le.s32.totalorder 1, %s11
    %p187 = scmp.lt.s32.totalorder %s11, 3
    %p188 = pnand %p186, %p187
    %p189 = pneg %p188
    // Predicated region
    $region37: #{dnn_forward_pallas.1} parent=5 // pred_check
      _
    $region38: #{dnn_forward_pallas.1} parent=5 // pred_check_branch
      %191 = sbr.rel (%p188) target = $region40
    $region39: #{dnn_forward_pallas.1} parent=5 // pred_region
      %s192 = ssub.s32 %s11, 1
      %p193 = scmp.lt.s32.totalorder %s16, 1
      %s194 = scalar_select %p193, %s16, 1
      %s195 = smul.addr %s194, 248
      %s196 = smul.addr %s195, 4
      %s197 = scalar_lea.vmem %s0, %s196
      %p198 = pneg %p37
      %p199 = pneg %p34
      %p200 = pneg %p58
      %p201 = pneg %p55
      %p202 = pneg %p79
      %p203 = pneg %p76
      %p204 = pneg %p100
      %p205 = pneg %p97
      %p206 = pneg %p121
      %p207 = pneg %p118
      %p208 = pneg %p147
      %p209 = pneg %p144
      %p210 = scmp.lt.s32.totalorder %s16, 1
      %s211 = scalar_select %p210, %s16, 1
      %s212 = smul.addr %s211, 4
      %s213 = smul.addr %s212, 8
      %s214 = scalar_lea.vmem %s5, %s213
      %p215 = scmp.lt.s32.totalorder %s16, 1
      %s216 = scalar_select %p215, %s16, 1
      %s217 = smul.addr %s216, 248
      %s218 = smul.addr %s217, 4
      %s219 = scalar_lea.vmem %s0, %s218
      %p220 = scmp.lt.s32.totalorder %s16, 1
      %s221 = scalar_select %p220, %s16, 1
      %s222 = smul.addr %s221, 4
      %s223 = smul.addr %s222, 8
      %s224 = scalar_lea.vmem %s5, %s223
      %v226 = vld [vmem:[%s219] sm:$0xf]
      %v227 = vld [vmem:[%s219 + $0x4] sm:$0xf]
      %v228 = vld [vmem:[%s219 + $0x8] sm:$0xf]
      %v229 = vld [vmem:[%s219 + $0xc] sm:$0xf]
      %v230 = vld [vmem:[%s219 + $0x10] sm:$0xf]
      %v231 = vld [vmem:[%s219 + $0x14] sm:$0xf]
      %v232 = vld [vmem:[%s219 + $0x18] sm:$0xf]
      %v233 = vld [vmem:[%s219 + $0x1c] sm:$0xf]
      %v234 = vld [vmem:[%s219 + $0x20] sm:$0xf]
      %v235 = vld [vmem:[%s219 + $0x24] sm:$0xf]
      %v236 = vld [vmem:[%s219 + $0x28] sm:$0xf]
      %v237 = vld [vmem:[%s219 + $0x2c] sm:$0xf]
      %v238 = vld [vmem:[%s219 + $0x30] sm:$0xf]
      %v239 = vld [vmem:[%s219 + $0x34] sm:$0xf]
      %v240 = vld [vmem:[%s219 + $0x38] sm:$0xf]
      %v241 = vld [vmem:[%s219 + $0x3c] sm:$0xf]
      %v242 = vld [vmem:[%s219 + $0x40] sm:$0xf]
      %v243 = vld [vmem:[%s219 + $0x44] sm:$0xf]
      %v244 = vld [vmem:[%s219 + $0x48] sm:$0xf]
      %v245 = vld [vmem:[%s219 + $0x4c] sm:$0xf]
      %v246 = vld [vmem:[%s219 + $0x50] sm:$0xf]
      %v247 = vld [vmem:[%s219 + $0x54] sm:$0xf]
      %v248 = vld [vmem:[%s219 + $0x58] sm:$0xf]
      %v249 = vld [vmem:[%s219 + $0x5c] sm:$0xf]
      %v250 = vld [vmem:[%s219 + $0x60] sm:$0xf]
      %v251 = vld [vmem:[%s219 + $0x64] sm:$0xf]
      %v252 = vld [vmem:[%s219 + $0x68] sm:$0xf]
      %v253 = vld [vmem:[%s219 + $0x6c] sm:$0xf]
      %v254 = vld [vmem:[%s219 + $0x70] sm:$0xf]
      %v255 = vld [vmem:[%s219 + $0x74] sm:$0xf]
      %v256 = vld [vmem:[%s219 + $0x78] sm:$0xf]
      %v257 = vld [vmem:[%s219 + $0x7c] sm:$0xf]
      %v258 = vld [vmem:[%s219 + $0x80] sm:$0xf]
      %v259 = vld [vmem:[%s219 + $0x84] sm:$0xf]
      %v260 = vld [vmem:[%s219 + $0x88] sm:$0xf]
      %v261 = vld [vmem:[%s219 + $0x8c] sm:$0xf]
      %v262 = vld [vmem:[%s219 + $0x90] sm:$0xf]
      %v263 = vld [vmem:[%s219 + $0x94] sm:$0xf]
      %v264 = vld [vmem:[%s219 + $0x98] sm:$0xf]
      %v265 = vld [vmem:[%s219 + $0x9c] sm:$0xf]
      %v266 = vld [vmem:[%s219 + $0xa0] sm:$0xf]
      %v267 = vld [vmem:[%s219 + $0xa4] sm:$0xf]
      %v268 = vld [vmem:[%s219 + $0xa8] sm:$0xf]
      %v269 = vld [vmem:[%s219 + $0xac] sm:$0xf]
      %v270 = vld [vmem:[%s219 + $0xb0] sm:$0xf]
      %v271 = vld [vmem:[%s219 + $0xb4] sm:$0xf]
      %v272 = vld [vmem:[%s219 + $0xb8] sm:$0xf]
      %v273 = vld [vmem:[%s219 + $0xbc] sm:$0xf]
      %v274 = vld [vmem:[%s219 + $0xc0] sm:$0xf]
      %v275 = vld [vmem:[%s219 + $0xc4] sm:$0xf]
      %v276 = vld [vmem:[%s219 + $0xc8] sm:$0xf]
      %v277 = vld [vmem:[%s219 + $0xcc] sm:$0xf]
      %v278 = vld [vmem:[%s219 + $0xd0] sm:$0xf]
      %v279 = vld [vmem:[%s219 + $0xd4] sm:$0xf]
      %v280 = vld [vmem:[%s219 + $0xd8] sm:$0xf]
      %v281 = vld [vmem:[%s219 + $0xdc] sm:$0xf]
      %v282 = vld [vmem:[%s219 + $0xe0] sm:$0xf]
      %v283 = vld [vmem:[%s219 + $0xe4] sm:$0xf]
      %v284 = vld [vmem:[%s219 + $0xe8] sm:$0xf]
      %v285 = vld [vmem:[%s219 + $0xec] sm:$0xf]
      %v286 = vld [vmem:[%s219 + $0xf0] sm:$0xf]
      %v287 = vld [vmem:[%s219 + $0xf4] sm:$0xf]
      %v288 = vld [vmem:[%s219 + $0xf8] sm:$0xf]
      %v289 = vld [vmem:[%s219 + $0xfc] sm:$0xf]
      %v290 = vld [vmem:[%s219 + $0x100] sm:$0xf]
      %v291 = vld [vmem:[%s219 + $0x104] sm:$0xf]
      %v292 = vld [vmem:[%s219 + $0x108] sm:$0xf]
      %v293 = vld [vmem:[%s219 + $0x10c] sm:$0xf]
      %v294 = vld [vmem:[%s219 + $0x110] sm:$0xf]
      %v295 = vld [vmem:[%s219 + $0x114] sm:$0xf]
      %v296 = vld [vmem:[%s219 + $0x118] sm:$0xf]
      %v297 = vld [vmem:[%s219 + $0x11c] sm:$0xf]
      %v298 = vld [vmem:[%s219 + $0x120] sm:$0xf]
      %v299 = vld [vmem:[%s219 + $0x124] sm:$0xf]
      %v300 = vld [vmem:[%s219 + $0x128] sm:$0xf]
      %v301 = vld [vmem:[%s219 + $0x12c] sm:$0xf]
      %v302 = vld [vmem:[%s219 + $0x130] sm:$0xf]
      %v303 = vld [vmem:[%s219 + $0x134] sm:$0xf]
      %v304 = vld [vmem:[%s219 + $0x138] sm:$0xf]
      %v305 = vld [vmem:[%s219 + $0x13c] sm:$0xf]
      %v306 = vld [vmem:[%s219 + $0x140] sm:$0xf]
      %v307 = vld [vmem:[%s219 + $0x144] sm:$0xf]
      %v308 = vld [vmem:[%s219 + $0x148] sm:$0xf]
      %v309 = vld [vmem:[%s219 + $0x14c] sm:$0xf]
      %v310 = vld [vmem:[%s219 + $0x150] sm:$0xf]
      %v311 = vld [vmem:[%s219 + $0x154] sm:$0xf]
      %v312 = vld [vmem:[%s219 + $0x158] sm:$0xf]
      %v313 = vld [vmem:[%s219 + $0x15c] sm:$0xf]
      %v314 = vld [vmem:[%s219 + $0x160] sm:$0xf]
      %v315 = vld [vmem:[%s219 + $0x164] sm:$0xf]
      %v316 = vld [vmem:[%s219 + $0x168] sm:$0xf]
      %v317 = vld [vmem:[%s219 + $0x16c] sm:$0xf]
      %v318 = vld [vmem:[%s219 + $0x170] sm:$0xf]
      %v319 = vld [vmem:[%s219 + $0x174] sm:$0xf]
      %v320 = vld [vmem:[%s219 + $0x178] sm:$0xf]
      %v321 = vld [vmem:[%s219 + $0x17c] sm:$0xf]
      %v322 = vld [vmem:[%s219 + $0x180] sm:$0xf]
      %v323 = vld [vmem:[%s219 + $0x184] sm:$0xf]
      %v324 = vld [vmem:[%s219 + $0x188] sm:$0xf]
      %v325 = vld [vmem:[%s219 + $0x18c] sm:$0xf]
      %v326 = vld [vmem:[%s219 + $0x190] sm:$0xf]
      %v327 = vld [vmem:[%s219 + $0x194] sm:$0xf]
      %v328 = vld [vmem:[%s219 + $0x198] sm:$0xf]
      %v329 = vld [vmem:[%s219 + $0x19c] sm:$0xf]
      %v330 = vld [vmem:[%s219 + $0x1a0] sm:$0xf]
      %v331 = vld [vmem:[%s219 + $0x1a4] sm:$0xf]
      %v332 = vld [vmem:[%s219 + $0x1a8] sm:$0xf]
      %v333 = vld [vmem:[%s219 + $0x1ac] sm:$0xf]
      %v334 = vld [vmem:[%s219 + $0x1b0] sm:$0xf]
      %v335 = vld [vmem:[%s219 + $0x1b4] sm:$0xf]
      %v336 = vld [vmem:[%s219 + $0x1b8] sm:$0xf]
      %v337 = vld [vmem:[%s219 + $0x1bc] sm:$0xf]
      %v338 = vld [vmem:[%s219 + $0x1c0] sm:$0xf]
      %v339 = vld [vmem:[%s219 + $0x1c4] sm:$0xf]
      %v340 = vld [vmem:[%s219 + $0x1c8] sm:$0xf]
      %v341 = vld [vmem:[%s219 + $0x1cc] sm:$0xf]
      %v342 = vld [vmem:[%s219 + $0x1d0] sm:$0xf]
      %v343 = vld [vmem:[%s219 + $0x1d4] sm:$0xf]
      %v344 = vld [vmem:[%s219 + $0x1d8] sm:$0xf]
      %v345 = vld [vmem:[%s219 + $0x1dc] sm:$0xf]
      %v346 = vld [vmem:[%s219 + $0x1e0] sm:$0xf]
      %v347 = vld [vmem:[%s219 + $0x1e4] sm:$0xf]
      %v348 = vld [vmem:[%s219 + $0x1e8] sm:$0xf]
      %v349 = vld [vmem:[%s219 + $0x1ec] sm:$0xf]
      %v350 = vld [vmem:[%s219 + $0x1f0] sm:$0xf]
      %v351 = vld [vmem:[%s219 + $0x1f4] sm:$0xf]
      %v352 = vld [vmem:[%s219 + $0x1f8] sm:$0xf]
      %v353 = vld [vmem:[%s219 + $0x1fc] sm:$0xf]
      %v354 = vld [vmem:[%s219 + $0x200] sm:$0xf]
      %v355 = vld [vmem:[%s219 + $0x204] sm:$0xf]
      %v356 = vld [vmem:[%s219 + $0x208] sm:$0xf]
      %v357 = vld [vmem:[%s219 + $0x20c] sm:$0xf]
      %v358 = vld [vmem:[%s219 + $0x210] sm:$0xf]
      %v359 = vld [vmem:[%s219 + $0x214] sm:$0xf]
      %v360 = vld [vmem:[%s219 + $0x218] sm:$0xf]
      %v361 = vld [vmem:[%s219 + $0x21c] sm:$0xf]
      %v362 = vld [vmem:[%s219 + $0x220] sm:$0xf]
      %v363 = vld [vmem:[%s219 + $0x224] sm:$0xf]
      %v364 = vld [vmem:[%s219 + $0x228] sm:$0xf]
      %v365 = vld [vmem:[%s219 + $0x22c] sm:$0xf]
      %v366 = vld [vmem:[%s219 + $0x230] sm:$0xf]
      %v367 = vld [vmem:[%s219 + $0x234] sm:$0xf]
      %v368 = vld [vmem:[%s219 + $0x238] sm:$0xf]
      %v369 = vld [vmem:[%s219 + $0x23c] sm:$0xf]
      %v370 = vld [vmem:[%s219 + $0x240] sm:$0xf]
      %v371 = vld [vmem:[%s219 + $0x244] sm:$0xf]
      %v372 = vld [vmem:[%s219 + $0x248] sm:$0xf]
      %v373 = vld [vmem:[%s219 + $0x24c] sm:$0xf]
      %v374 = vld [vmem:[%s219 + $0x250] sm:$0xf]
      %v375 = vld [vmem:[%s219 + $0x254] sm:$0xf]
      %v376 = vld [vmem:[%s219 + $0x258] sm:$0xf]
      %v377 = vld [vmem:[%s219 + $0x25c] sm:$0xf]
      %v378 = vld [vmem:[%s219 + $0x260] sm:$0xf]
      %v379 = vld [vmem:[%s219 + $0x264] sm:$0xf]
      %v380 = vld [vmem:[%s219 + $0x268] sm:$0xf]
      %v381 = vld [vmem:[%s219 + $0x26c] sm:$0xf]
      %v382 = vld [vmem:[%s219 + $0x270] sm:$0xf]
      %v383 = vld [vmem:[%s219 + $0x274] sm:$0xf]
      %v384 = vld [vmem:[%s219 + $0x278] sm:$0xf]
      %v385 = vld [vmem:[%s219 + $0x27c] sm:$0xf]
      %v386 = vld [vmem:[%s219 + $0x280] sm:$0xf]
      %v387 = vld [vmem:[%s219 + $0x284] sm:$0xf]
      %v388 = vld [vmem:[%s219 + $0x288] sm:$0xf]
      %v389 = vld [vmem:[%s219 + $0x28c] sm:$0xf]
      %v390 = vld [vmem:[%s219 + $0x290] sm:$0xf]
      %v391 = vld [vmem:[%s219 + $0x294] sm:$0xf]
      %v392 = vld [vmem:[%s219 + $0x298] sm:$0xf]
      %v393 = vld [vmem:[%s219 + $0x29c] sm:$0xf]
      %v394 = vld [vmem:[%s219 + $0x2a0] sm:$0xf]
      %v395 = vld [vmem:[%s219 + $0x2a4] sm:$0xf]
      %v396 = vld [vmem:[%s219 + $0x2a8] sm:$0xf]
      %v397 = vld [vmem:[%s219 + $0x2ac] sm:$0xf]
      %v398 = vld [vmem:[%s219 + $0x2b0] sm:$0xf]
      %v399 = vld [vmem:[%s219 + $0x2b4] sm:$0xf]
      %v400 = vld [vmem:[%s219 + $0x2b8] sm:$0xf]
      %v401 = vld [vmem:[%s219 + $0x2bc] sm:$0xf]
      %v402 = vld [vmem:[%s219 + $0x2c0] sm:$0xf]
      %v403 = vld [vmem:[%s219 + $0x2c4] sm:$0xf]
      %v404 = vld [vmem:[%s219 + $0x2c8] sm:$0xf]
      %v405 = vld [vmem:[%s219 + $0x2cc] sm:$0xf]
      %v406 = vld [vmem:[%s219 + $0x2d0] sm:$0xf]
      %v407 = vld [vmem:[%s219 + $0x2d4] sm:$0xf]
      %v408 = vld [vmem:[%s219 + $0x2d8] sm:$0xf]
      %v409 = vld [vmem:[%s219 + $0x2dc] sm:$0xf]
      %v410 = vld [vmem:[%s219 + $0x2e0] sm:$0xf]
      %v411 = vld [vmem:[%s219 + $0x2e4] sm:$0xf]
      %v412 = vld [vmem:[%s219 + $0x2e8] sm:$0xf]
      %v413 = vld [vmem:[%s219 + $0x2ec] sm:$0xf]
      %v414 = vld [vmem:[%s219 + $0x2f0] sm:$0xf]
      %v415 = vld [vmem:[%s219 + $0x2f4] sm:$0xf]
      %v416 = vld [vmem:[%s219 + $0x2f8] sm:$0xf]
      %v417 = vld [vmem:[%s219 + $0x2fc] sm:$0xf]
      %v418 = vld [vmem:[%s219 + $0x300] sm:$0xf]
      %v419 = vld [vmem:[%s219 + $0x304] sm:$0xf]
      %v420 = vld [vmem:[%s219 + $0x308] sm:$0xf]
      %v421 = vld [vmem:[%s219 + $0x30c] sm:$0xf]
      %v422 = vld [vmem:[%s219 + $0x310] sm:$0xf]
      %v423 = vld [vmem:[%s219 + $0x314] sm:$0xf]
      %v424 = vld [vmem:[%s219 + $0x318] sm:$0xf]
      %v425 = vld [vmem:[%s219 + $0x31c] sm:$0xf]
      %v426 = vld [vmem:[%s219 + $0x320] sm:$0xf]
      %v427 = vld [vmem:[%s219 + $0x324] sm:$0xf]
      %v428 = vld [vmem:[%s219 + $0x328] sm:$0xf]
      %v429 = vld [vmem:[%s219 + $0x32c] sm:$0xf]
      %v430 = vld [vmem:[%s219 + $0x330] sm:$0xf]
      %v431 = vld [vmem:[%s219 + $0x334] sm:$0xf]
      %v432 = vld [vmem:[%s219 + $0x338] sm:$0xf]
      %v433 = vld [vmem:[%s219 + $0x33c] sm:$0xf]
      %v434 = vld [vmem:[%s219 + $0x340] sm:$0xf]
      %v435 = vld [vmem:[%s219 + $0x344] sm:$0xf]
      %v436 = vld [vmem:[%s219 + $0x348] sm:$0xf]
      %v437 = vld [vmem:[%s219 + $0x34c] sm:$0xf]
      %v438 = vld [vmem:[%s219 + $0x350] sm:$0xf]
      %v439 = vld [vmem:[%s219 + $0x354] sm:$0xf]
      %v440 = vld [vmem:[%s219 + $0x358] sm:$0xf]
      %v441 = vld [vmem:[%s219 + $0x35c] sm:$0xf]
      %v442 = vld [vmem:[%s219 + $0x360] sm:$0xf]
      %v443 = vld [vmem:[%s219 + $0x364] sm:$0xf]
      %v444 = vld [vmem:[%s219 + $0x368] sm:$0xf]
      %v445 = vld [vmem:[%s219 + $0x36c] sm:$0xf]
      %v446 = vld [vmem:[%s219 + $0x370] sm:$0xf]
      %v447 = vld [vmem:[%s219 + $0x374] sm:$0xf]
      %v448 = vld [vmem:[%s219 + $0x378] sm:$0xf]
      %v449 = vld [vmem:[%s219 + $0x37c] sm:$0xf]
      %v450 = vld [vmem:[%s219 + $0x380] sm:$0xf]
      %v451 = vld [vmem:[%s219 + $0x384] sm:$0xf]
      %v452 = vld [vmem:[%s219 + $0x388] sm:$0xf]
      %v453 = vld [vmem:[%s219 + $0x38c] sm:$0xf]
      %v454 = vld [vmem:[%s219 + $0x390] sm:$0xf]
      %v455 = vld [vmem:[%s219 + $0x394] sm:$0xf]
      %v456 = vld [vmem:[%s219 + $0x398] sm:$0xf]
      %v457 = vld [vmem:[%s219 + $0x39c] sm:$0xf]
      %v458 = vld [vmem:[%s219 + $0x3a0] sm:$0xf]
      %v459 = vld [vmem:[%s219 + $0x3a4] sm:$0xf]
      %v460 = vld [vmem:[%s219 + $0x3a8] sm:$0xf]
      %v461 = vld [vmem:[%s219 + $0x3ac] sm:$0xf]
      %v462 = vld [vmem:[%s219 + $0x3b0] sm:$0xf]
      %v463 = vld [vmem:[%s219 + $0x3b4] sm:$0xf]
      %v464 = vld [vmem:[%s219 + $0x3b8] sm:$0xf]
      %v465 = vld [vmem:[%s219 + $0x3bc] sm:$0xf]
      %v466 = vld [vmem:[%s219 + $0x3c0] sm:$0xf]
      %v467 = vld [vmem:[%s219 + $0x3c4] sm:$0xf]
      %v468 = vld [vmem:[%s219 + $0x3c8] sm:$0xf]
      %v469 = vld [vmem:[%s219 + $0x3cc] sm:$0xf]
      %v470 = vld [vmem:[%s219 + $0x3d0] sm:$0xf]
      %v471 = vld [vmem:[%s219 + $0x3d4] sm:$0xf]
      %v472 = vld [vmem:[%s219 + $0x3d8] sm:$0xf]
      %v473 = vld [vmem:[%s219 + $0x3dc] sm:$0xf]
      %v474 = vld [vmem:[%s1] sm:$0xf]
      %v475 = vld [vmem:[%s1 + $0x4] sm:$0xf]
      %v476 = vld [vmem:[%s1 + $0x8] sm:$0xf]
      %v477 = vld [vmem:[%s1 + $0xc] sm:$0xf]
      %v478 = vld [vmem:[%s1 + $0x10] sm:$0xf]
      %v479 = vld [vmem:[%s1 + $0x14] sm:$0xf]
      %v480 = vld [vmem:[%s1 + $0x18] sm:$0xf]
      %v481 = vld [vmem:[%s1 + $0x1c] sm:$0xf]
      %v482 = vld [vmem:[%s2] sm:$0x1]
      %v484 = vlaneseq
      %v485 = vshrl.u32 %v484, 7
      %v486 = vsub.s32 0, %v485
      %v487 = vrot.slane %v482, %v486
      %v737 = vunpack.c.l.b16 %v226
      %v738 = vunpack.c.l.b16 %v227
      %v739 = vunpack.c.l.b16 %v228
      %v740 = vunpack.c.l.b16 %v229
      %v741 = vunpack.c.l.b16 %v230
      %v742 = vunpack.c.l.b16 %v231
      %v743 = vunpack.c.l.b16 %v232
      %v744 = vunpack.c.l.b16 %v233
      %v745 = vunpack.c.l.b16 %v234
      %v746 = vunpack.c.l.b16 %v235
      %v747 = vunpack.c.l.b16 %v236
      %v748 = vunpack.c.l.b16 %v237
      %v749 = vunpack.c.l.b16 %v238
      %v750 = vunpack.c.l.b16 %v239
      %v751 = vunpack.c.l.b16 %v240
      %v752 = vunpack.c.l.b16 %v241
      %v753 = vunpack.c.l.b16 %v242
      %v754 = vunpack.c.l.b16 %v243
      %v755 = vunpack.c.l.b16 %v244
      %v756 = vunpack.c.l.b16 %v245
      %v757 = vunpack.c.l.b16 %v246
      %v758 = vunpack.c.l.b16 %v247
      %v759 = vunpack.c.l.b16 %v248
      %v760 = vunpack.c.l.b16 %v249
      %v761 = vunpack.c.l.b16 %v250
      %v762 = vunpack.c.l.b16 %v251
      %v763 = vunpack.c.l.b16 %v252
      %v764 = vunpack.c.l.b16 %v253
      %v765 = vunpack.c.l.b16 %v254
      %v766 = vunpack.c.l.b16 %v255
      %v767 = vunpack.c.l.b16 %v256
      %v768 = vunpack.c.l.b16 %v257
      %v769 = vunpack.c.l.b16 %v258
      %v770 = vunpack.c.l.b16 %v259
      %v771 = vunpack.c.l.b16 %v260
      %v772 = vunpack.c.l.b16 %v261
      %v773 = vunpack.c.l.b16 %v262
      %v774 = vunpack.c.l.b16 %v263
      %v775 = vunpack.c.l.b16 %v264
      %v776 = vunpack.c.l.b16 %v265
      %v777 = vunpack.c.l.b16 %v266
      %v778 = vunpack.c.l.b16 %v267
      %v779 = vunpack.c.l.b16 %v268
      %v780 = vunpack.c.l.b16 %v269
      %v781 = vunpack.c.l.b16 %v270
      %v782 = vunpack.c.l.b16 %v271
      %v783 = vunpack.c.l.b16 %v272
      %v784 = vunpack.c.l.b16 %v273
      %v785 = vunpack.c.l.b16 %v274
      %v786 = vunpack.c.l.b16 %v275
      %v787 = vunpack.c.l.b16 %v276
      %v788 = vunpack.c.l.b16 %v277
      %v789 = vunpack.c.l.b16 %v278
      %v790 = vunpack.c.l.b16 %v279
      %v791 = vunpack.c.l.b16 %v280
      %v792 = vunpack.c.l.b16 %v281
      %v793 = vunpack.c.l.b16 %v282
      %v794 = vunpack.c.l.b16 %v283
      %v795 = vunpack.c.l.b16 %v284
      %v796 = vunpack.c.l.b16 %v285
      %v797 = vunpack.c.l.b16 %v286
      %v798 = vunpack.c.l.b16 %v287
      %v799 = vunpack.c.l.b16 %v288
      %v800 = vunpack.c.l.b16 %v289
      %v801 = vunpack.c.l.b16 %v290
      %v802 = vunpack.c.l.b16 %v291
      %v803 = vunpack.c.l.b16 %v292
      %v804 = vunpack.c.l.b16 %v293
      %v805 = vunpack.c.l.b16 %v294
      %v806 = vunpack.c.l.b16 %v295
      %v807 = vunpack.c.l.b16 %v296
      %v808 = vunpack.c.l.b16 %v297
      %v809 = vunpack.c.l.b16 %v298
      %v810 = vunpack.c.l.b16 %v299
      %v811 = vunpack.c.l.b16 %v300
      %v812 = vunpack.c.l.b16 %v301
      %v813 = vunpack.c.l.b16 %v302
      %v814 = vunpack.c.l.b16 %v303
      %v815 = vunpack.c.l.b16 %v304
      %v816 = vunpack.c.l.b16 %v305
      %v817 = vunpack.c.l.b16 %v306
      %v818 = vunpack.c.l.b16 %v307
      %v819 = vunpack.c.l.b16 %v308
      %v820 = vunpack.c.l.b16 %v309
      %v821 = vunpack.c.l.b16 %v310
      %v822 = vunpack.c.l.b16 %v311
      %v823 = vunpack.c.l.b16 %v312
      %v824 = vunpack.c.l.b16 %v313
      %v825 = vunpack.c.l.b16 %v314
      %v826 = vunpack.c.l.b16 %v315
      %v827 = vunpack.c.l.b16 %v316
      %v828 = vunpack.c.l.b16 %v317
      %v829 = vunpack.c.l.b16 %v318
      %v830 = vunpack.c.l.b16 %v319
      %v831 = vunpack.c.l.b16 %v320
      %v832 = vunpack.c.l.b16 %v321
      %v833 = vunpack.c.l.b16 %v322
      %v834 = vunpack.c.l.b16 %v323
      %v835 = vunpack.c.l.b16 %v324
      %v836 = vunpack.c.l.b16 %v325
      %v837 = vunpack.c.l.b16 %v326
      %v838 = vunpack.c.l.b16 %v327
      %v839 = vunpack.c.l.b16 %v328
      %v840 = vunpack.c.l.b16 %v329
      %v841 = vunpack.c.l.b16 %v330
      %v842 = vunpack.c.l.b16 %v331
      %v843 = vunpack.c.l.b16 %v332
      %v844 = vunpack.c.l.b16 %v333
      %v845 = vunpack.c.l.b16 %v334
      %v846 = vunpack.c.l.b16 %v335
      %v847 = vunpack.c.l.b16 %v336
      %v848 = vunpack.c.l.b16 %v337
      %v849 = vunpack.c.l.b16 %v338
      %v850 = vunpack.c.l.b16 %v339
      %v851 = vunpack.c.l.b16 %v340
      %v852 = vunpack.c.l.b16 %v341
      %v853 = vunpack.c.l.b16 %v342
      %v854 = vunpack.c.l.b16 %v343
      %v855 = vunpack.c.l.b16 %v344
      %v856 = vunpack.c.l.b16 %v345
      %v857 = vunpack.c.l.b16 %v346
      %v858 = vunpack.c.l.b16 %v347
      %v859 = vunpack.c.l.b16 %v348
      %v860 = vunpack.c.l.b16 %v349
      %v861 = vunpack.c.l.b16 %v350
      %v862 = vunpack.c.l.b16 %v351
      %v863 = vunpack.c.l.b16 %v352
      %v864 = vunpack.c.l.b16 %v353
      %v865 = vunpack.c.l.b16 %v354
      %v866 = vunpack.c.l.b16 %v355
      %v867 = vunpack.c.l.b16 %v356
      %v868 = vunpack.c.l.b16 %v357
      %v869 = vunpack.c.l.b16 %v358
      %v870 = vunpack.c.l.b16 %v359
      %v871 = vunpack.c.l.b16 %v360
      %v872 = vunpack.c.l.b16 %v361
      %v873 = vunpack.c.l.b16 %v362
      %v874 = vunpack.c.l.b16 %v363
      %v875 = vunpack.c.l.b16 %v364
      %v876 = vunpack.c.l.b16 %v365
      %v877 = vunpack.c.l.b16 %v366
      %v878 = vunpack.c.l.b16 %v367
      %v879 = vunpack.c.l.b16 %v368
      %v880 = vunpack.c.l.b16 %v369
      %v881 = vunpack.c.l.b16 %v370
      %v882 = vunpack.c.l.b16 %v371
      %v883 = vunpack.c.l.b16 %v372
      %v884 = vunpack.c.l.b16 %v373
      %v885 = vunpack.c.l.b16 %v374
      %v886 = vunpack.c.l.b16 %v375
      %v887 = vunpack.c.l.b16 %v376
      %v888 = vunpack.c.l.b16 %v377
      %v889 = vunpack.c.l.b16 %v378
      %v890 = vunpack.c.l.b16 %v379
      %v891 = vunpack.c.l.b16 %v380
      %v892 = vunpack.c.l.b16 %v381
      %v893 = vunpack.c.l.b16 %v382
      %v894 = vunpack.c.l.b16 %v383
      %v895 = vunpack.c.l.b16 %v384
      %v896 = vunpack.c.l.b16 %v385
      %v897 = vunpack.c.l.b16 %v386
      %v898 = vunpack.c.l.b16 %v387
      %v899 = vunpack.c.l.b16 %v388
      %v900 = vunpack.c.l.b16 %v389
      %v901 = vunpack.c.l.b16 %v390
      %v902 = vunpack.c.l.b16 %v391
      %v903 = vunpack.c.l.b16 %v392
      %v904 = vunpack.c.l.b16 %v393
      %v905 = vunpack.c.l.b16 %v394
      %v906 = vunpack.c.l.b16 %v395
      %v907 = vunpack.c.l.b16 %v396
      %v908 = vunpack.c.l.b16 %v397
      %v909 = vunpack.c.l.b16 %v398
      %v910 = vunpack.c.l.b16 %v399
      %v911 = vunpack.c.l.b16 %v400
      %v912 = vunpack.c.l.b16 %v401
      %v913 = vunpack.c.l.b16 %v402
      %v914 = vunpack.c.l.b16 %v403
      %v915 = vunpack.c.l.b16 %v404
      %v916 = vunpack.c.l.b16 %v405
      %v917 = vunpack.c.l.b16 %v406
      %v918 = vunpack.c.l.b16 %v407
      %v919 = vunpack.c.l.b16 %v408
      %v920 = vunpack.c.l.b16 %v409
      %v921 = vunpack.c.l.b16 %v410
      %v922 = vunpack.c.l.b16 %v411
      %v923 = vunpack.c.l.b16 %v412
      %v924 = vunpack.c.l.b16 %v413
      %v925 = vunpack.c.l.b16 %v414
      %v926 = vunpack.c.l.b16 %v415
      %v927 = vunpack.c.l.b16 %v416
      %v928 = vunpack.c.l.b16 %v417
      %v929 = vunpack.c.l.b16 %v418
      %v930 = vunpack.c.l.b16 %v419
      %v931 = vunpack.c.l.b16 %v420
      %v932 = vunpack.c.l.b16 %v421
      %v933 = vunpack.c.l.b16 %v422
      %v934 = vunpack.c.l.b16 %v423
      %v935 = vunpack.c.l.b16 %v424
      %v936 = vunpack.c.l.b16 %v425
      %v937 = vunpack.c.l.b16 %v426
      %v938 = vunpack.c.l.b16 %v427
      %v939 = vunpack.c.l.b16 %v428
      %v940 = vunpack.c.l.b16 %v429
      %v941 = vunpack.c.l.b16 %v430
      %v942 = vunpack.c.l.b16 %v431
      %v943 = vunpack.c.l.b16 %v432
      %v944 = vunpack.c.l.b16 %v433
      %v945 = vunpack.c.l.b16 %v434
      %v946 = vunpack.c.l.b16 %v435
      %v947 = vunpack.c.l.b16 %v436
      %v948 = vunpack.c.l.b16 %v437
      %v949 = vunpack.c.l.b16 %v438
      %v950 = vunpack.c.l.b16 %v439
      %v951 = vunpack.c.l.b16 %v440
      %v952 = vunpack.c.l.b16 %v441
      %v953 = vunpack.c.l.b16 %v442
      %v954 = vunpack.c.l.b16 %v443
      %v955 = vunpack.c.l.b16 %v444
      %v956 = vunpack.c.l.b16 %v445
      %v957 = vunpack.c.l.b16 %v446
      %v958 = vunpack.c.l.b16 %v447
      %v959 = vunpack.c.l.b16 %v448
      %v960 = vunpack.c.l.b16 %v449
      %v961 = vunpack.c.l.b16 %v450
      %v962 = vunpack.c.l.b16 %v451
      %v963 = vunpack.c.l.b16 %v452
      %v964 = vunpack.c.l.b16 %v453
      %v965 = vunpack.c.l.b16 %v454
      %v966 = vunpack.c.l.b16 %v455
      %v967 = vunpack.c.l.b16 %v456
      %v968 = vunpack.c.l.b16 %v457
      %v969 = vunpack.c.l.b16 %v458
      %v970 = vunpack.c.l.b16 %v459
      %v971 = vunpack.c.l.b16 %v460
      %v972 = vunpack.c.l.b16 %v461
      %v973 = vunpack.c.l.b16 %v462
      %v974 = vunpack.c.l.b16 %v463
      %v975 = vunpack.c.l.b16 %v464
      %v976 = vunpack.c.l.b16 %v465
      %v977 = vunpack.c.l.b16 %v466
      %v978 = vunpack.c.l.b16 %v467
      %v979 = vunpack.c.l.b16 %v468
      %v980 = vunpack.c.l.b16 %v469
      %v981 = vunpack.c.l.b16 %v470
      %v982 = vunpack.c.l.b16 %v471
      %v983 = vunpack.c.l.b16 %v472
      %v984 = vunpack.c.l.b16 %v473
      %v985 = vpack.c.b16 %v738, %v737
      %v986 = vpack.c.b16 %v740, %v739
      %v987 = vpack.c.b16 %v742, %v741
      %v988 = vpack.c.b16 %v744, %v743
      %v989 = vpack.c.b16 %v746, %v745
      %v990 = vpack.c.b16 %v748, %v747
      %v991 = vpack.c.b16 %v750, %v749
      %v992 = vpack.c.b16 %v752, %v751
      %v993 = vpack.c.b16 %v754, %v753
      %v994 = vpack.c.b16 %v756, %v755
      %v995 = vpack.c.b16 %v758, %v757
      %v996 = vpack.c.b16 %v760, %v759
      %v997 = vpack.c.b16 %v762, %v761
      %v998 = vpack.c.b16 %v764, %v763
      %v999 = vpack.c.b16 %v766, %v765
      %v1000 = vpack.c.b16 %v768, %v767
      %v1001 = vpack.c.b16 %v770, %v769
      %v1002 = vpack.c.b16 %v772, %v771
      %v1003 = vpack.c.b16 %v774, %v773
      %v1004 = vpack.c.b16 %v776, %v775
      %v1005 = vpack.c.b16 %v778, %v777
      %v1006 = vpack.c.b16 %v780, %v779
      %v1007 = vpack.c.b16 %v782, %v781
      %v1008 = vpack.c.b16 %v784, %v783
      %v1009 = vpack.c.b16 %v786, %v785
      %v1010 = vpack.c.b16 %v788, %v787
      %v1011 = vpack.c.b16 %v790, %v789
      %v1012 = vpack.c.b16 %v792, %v791
      %v1013 = vpack.c.b16 %v794, %v793
      %v1014 = vpack.c.b16 %v796, %v795
      %v1015 = vpack.c.b16 %v798, %v797
      %v1016 = vpack.c.b16 %v800, %v799
      %v1017 = vpack.c.b16 %v802, %v801
      %v1018 = vpack.c.b16 %v804, %v803
      %v1019 = vpack.c.b16 %v806, %v805
      %v1020 = vpack.c.b16 %v808, %v807
      %v1021 = vpack.c.b16 %v810, %v809
      %v1022 = vpack.c.b16 %v812, %v811
      %v1023 = vpack.c.b16 %v814, %v813
      %v1024 = vpack.c.b16 %v816, %v815
      %v1025 = vpack.c.b16 %v818, %v817
      %v1026 = vpack.c.b16 %v820, %v819
      %v1027 = vpack.c.b16 %v822, %v821
      %v1028 = vpack.c.b16 %v824, %v823
      %v1029 = vpack.c.b16 %v826, %v825
      %v1030 = vpack.c.b16 %v828, %v827
      %v1031 = vpack.c.b16 %v830, %v829
      %v1032 = vpack.c.b16 %v832, %v831
      %v1033 = vpack.c.b16 %v834, %v833
      %v1034 = vpack.c.b16 %v836, %v835
      %v1035 = vpack.c.b16 %v838, %v837
      %v1036 = vpack.c.b16 %v840, %v839
      %v1037 = vpack.c.b16 %v842, %v841
      %v1038 = vpack.c.b16 %v844, %v843
      %v1039 = vpack.c.b16 %v846, %v845
      %v1040 = vpack.c.b16 %v848, %v847
      %v1041 = vpack.c.b16 %v850, %v849
      %v1042 = vpack.c.b16 %v852, %v851
      %v1043 = vpack.c.b16 %v854, %v853
      %v1044 = vpack.c.b16 %v856, %v855
      %v1045 = vpack.c.b16 %v858, %v857
      %v1046 = vpack.c.b16 %v860, %v859
      %v1047 = vpack.c.b16 %v862, %v861
      %v1048 = vpack.c.b16 %v864, %v863
      %v1049 = vpack.c.b16 %v866, %v865
      %v1050 = vpack.c.b16 %v868, %v867
      %v1051 = vpack.c.b16 %v870, %v869
      %v1052 = vpack.c.b16 %v872, %v871
      %v1053 = vpack.c.b16 %v874, %v873
      %v1054 = vpack.c.b16 %v876, %v875
      %v1055 = vpack.c.b16 %v878, %v877
      %v1056 = vpack.c.b16 %v880, %v879
      %v1057 = vpack.c.b16 %v882, %v881
      %v1058 = vpack.c.b16 %v884, %v883
      %v1059 = vpack.c.b16 %v886, %v885
      %v1060 = vpack.c.b16 %v888, %v887
      %v1061 = vpack.c.b16 %v890, %v889
      %v1062 = vpack.c.b16 %v892, %v891
      %v1063 = vpack.c.b16 %v894, %v893
      %v1064 = vpack.c.b16 %v896, %v895
      %v1065 = vpack.c.b16 %v898, %v897
      %v1066 = vpack.c.b16 %v900, %v899
      %v1067 = vpack.c.b16 %v902, %v901
      %v1068 = vpack.c.b16 %v904, %v903
      %v1069 = vpack.c.b16 %v906, %v905
      %v1070 = vpack.c.b16 %v908, %v907
      %v1071 = vpack.c.b16 %v910, %v909
      %v1072 = vpack.c.b16 %v912, %v911
      %v1073 = vpack.c.b16 %v914, %v913
      %v1074 = vpack.c.b16 %v916, %v915
      %v1075 = vpack.c.b16 %v918, %v917
      %v1076 = vpack.c.b16 %v920, %v919
      %v1077 = vpack.c.b16 %v922, %v921
      %v1078 = vpack.c.b16 %v924, %v923
      %v1079 = vpack.c.b16 %v926, %v925
      %v1080 = vpack.c.b16 %v928, %v927
      %v1081 = vpack.c.b16 %v930, %v929
      %v1082 = vpack.c.b16 %v932, %v931
      %v1083 = vpack.c.b16 %v934, %v933
      %v1084 = vpack.c.b16 %v936, %v935
      %v1085 = vpack.c.b16 %v938, %v937
      %v1086 = vpack.c.b16 %v940, %v939
      %v1087 = vpack.c.b16 %v942, %v941
      %v1088 = vpack.c.b16 %v944, %v943
      %v1089 = vpack.c.b16 %v946, %v945
      %v1090 = vpack.c.b16 %v948, %v947
      %v1091 = vpack.c.b16 %v950, %v949
      %v1092 = vpack.c.b16 %v952, %v951
      %v1093 = vpack.c.b16 %v954, %v953
      %v1094 = vpack.c.b16 %v956, %v955
      %v1095 = vpack.c.b16 %v958, %v957
      %v1096 = vpack.c.b16 %v960, %v959
      %v1097 = vpack.c.b16 %v962, %v961
      %v1098 = vpack.c.b16 %v964, %v963
      %v1099 = vpack.c.b16 %v966, %v965
      %v1100 = vpack.c.b16 %v968, %v967
      %v1101 = vpack.c.b16 %v970, %v969
      %v1102 = vpack.c.b16 %v972, %v971
      %v1103 = vpack.c.b16 %v974, %v973
      %v1104 = vpack.c.b16 %v976, %v975
      %v1105 = vpack.c.b16 %v978, %v977
      %v1106 = vpack.c.b16 %v980, %v979
      %v1107 = vpack.c.b16 %v982, %v981
      %v1108 = vpack.c.b16 %v984, %v983
      %v1117 = vunpack.c.l.b16 %v474
      %v1118 = vunpack.c.l.b16 %v475
      %v1119 = vunpack.c.l.b16 %v476
      %v1120 = vunpack.c.l.b16 %v477
      %v1121 = vunpack.c.l.b16 %v478
      %v1122 = vunpack.c.l.b16 %v479
      %v1123 = vunpack.c.l.b16 %v480
      %v1124 = vunpack.c.l.b16 %v481
      %v1125 = vpack.c.b16 %v1118, %v1117
      %v1126 = vpack.c.b16 %v1120, %v1119
      %v1127 = vpack.c.b16 %v1122, %v1121
      %v1128 = vpack.c.b16 %v1124, %v1123
      %vm1133 = vcmask 523264
      %v1135 = vsel %vm1133, %v985, 0
      %v1138 = vsel %vm1133, %v986, 0
      %v1141 = vsel %vm1133, %v987, 0
      %v1144 = vsel %vm1133, %v988, 0
      %v1147 = vsel %vm1133, %v989, 0
      %v1150 = vsel %vm1133, %v990, 0
      %v1153 = vsel %vm1133, %v991, 0
      %v1156 = vsel %vm1133, %v992, 0
      %v1159 = vsel %vm1133, %v993, 0
      %v1162 = vsel %vm1133, %v994, 0
      %v1165 = vsel %vm1133, %v995, 0
      %v1168 = vsel %vm1133, %v996, 0
      %v1171 = vsel %vm1133, %v997, 0
      %v1174 = vsel %vm1133, %v998, 0
      %v1177 = vsel %vm1133, %v999, 0
      %v1180 = vsel %vm1133, %v1000, 0
      %v1183 = vsel %vm1133, %v1001, 0
      %v1186 = vsel %vm1133, %v1002, 0
      %v1189 = vsel %vm1133, %v1003, 0
      %v1192 = vsel %vm1133, %v1004, 0
      %v1195 = vsel %vm1133, %v1005, 0
      %v1198 = vsel %vm1133, %v1006, 0
      %v1201 = vsel %vm1133, %v1007, 0
      %v1204 = vsel %vm1133, %v1008, 0
      %v1207 = vsel %vm1133, %v1009, 0
      %v1210 = vsel %vm1133, %v1010, 0
      %v1213 = vsel %vm1133, %v1011, 0
      %v1216 = vsel %vm1133, %v1012, 0
      %v1219 = vsel %vm1133, %v1013, 0
      %v1222 = vsel %vm1133, %v1014, 0
      %v1225 = vsel %vm1133, %v1015, 0
      %v1228 = vsel %vm1133, %v1016, 0
      %v1231 = vsel %vm1133, %v1017, 0
      %v1234 = vsel %vm1133, %v1018, 0
      %v1237 = vsel %vm1133, %v1019, 0
      %v1240 = vsel %vm1133, %v1020, 0
      %v1243 = vsel %vm1133, %v1021, 0
      %v1246 = vsel %vm1133, %v1022, 0
      %v1249 = vsel %vm1133, %v1023, 0
      %v1252 = vsel %vm1133, %v1024, 0
      %v1255 = vsel %vm1133, %v1025, 0
      %v1258 = vsel %vm1133, %v1026, 0
      %v1261 = vsel %vm1133, %v1027, 0
      %v1264 = vsel %vm1133, %v1028, 0
      %v1267 = vsel %vm1133, %v1029, 0
      %v1270 = vsel %vm1133, %v1030, 0
      %v1273 = vsel %vm1133, %v1031, 0
      %v1276 = vsel %vm1133, %v1032, 0
      %v1279 = vsel %vm1133, %v1033, 0
      %v1282 = vsel %vm1133, %v1034, 0
      %v1285 = vsel %vm1133, %v1035, 0
      %v1288 = vsel %vm1133, %v1036, 0
      %v1291 = vsel %vm1133, %v1037, 0
      %v1294 = vsel %vm1133, %v1038, 0
      %v1297 = vsel %vm1133, %v1039, 0
      %v1300 = vsel %vm1133, %v1040, 0
      %v1303 = vsel %vm1133, %v1041, 0
      %v1306 = vsel %vm1133, %v1042, 0
      %v1309 = vsel %vm1133, %v1043, 0
      %v1312 = vsel %vm1133, %v1044, 0
      %v1315 = vsel %vm1133, %v1045, 0
      %v1318 = vsel %vm1133, %v1046, 0
      %v1321 = vsel %vm1133, %v1047, 0
      %v1324 = vsel %vm1133, %v1048, 0
      %v1327 = vsel %vm1133, %v1049, 0
      %v1330 = vsel %vm1133, %v1050, 0
      %v1333 = vsel %vm1133, %v1051, 0
      %v1336 = vsel %vm1133, %v1052, 0
      %v1339 = vsel %vm1133, %v1053, 0
      %v1342 = vsel %vm1133, %v1054, 0
      %v1345 = vsel %vm1133, %v1055, 0
      %v1348 = vsel %vm1133, %v1056, 0
      %v1351 = vsel %vm1133, %v1057, 0
      %v1354 = vsel %vm1133, %v1058, 0
      %v1357 = vsel %vm1133, %v1059, 0
      %v1360 = vsel %vm1133, %v1060, 0
      %v1363 = vsel %vm1133, %v1061, 0
      %v1366 = vsel %vm1133, %v1062, 0
      %v1369 = vsel %vm1133, %v1063, 0
      %v1372 = vsel %vm1133, %v1064, 0
      %v1375 = vsel %vm1133, %v1065, 0
      %v1378 = vsel %vm1133, %v1066, 0
      %v1381 = vsel %vm1133, %v1067, 0
      %v1384 = vsel %vm1133, %v1068, 0
      %v1387 = vsel %vm1133, %v1069, 0
      %v1390 = vsel %vm1133, %v1070, 0
      %v1393 = vsel %vm1133, %v1071, 0
      %v1396 = vsel %vm1133, %v1072, 0
      %v1399 = vsel %vm1133, %v1073, 0
      %v1402 = vsel %vm1133, %v1074, 0
      %v1405 = vsel %vm1133, %v1075, 0
      %v1408 = vsel %vm1133, %v1076, 0
      %v1411 = vsel %vm1133, %v1077, 0
      %v1414 = vsel %vm1133, %v1078, 0
      %v1417 = vsel %vm1133, %v1079, 0
      %v1420 = vsel %vm1133, %v1080, 0
      %v1423 = vsel %vm1133, %v1081, 0
      %v1426 = vsel %vm1133, %v1082, 0
      %v1429 = vsel %vm1133, %v1083, 0
      %v1432 = vsel %vm1133, %v1084, 0
      %v1435 = vsel %vm1133, %v1085, 0
      %v1438 = vsel %vm1133, %v1086, 0
      %v1441 = vsel %vm1133, %v1087, 0
      %v1444 = vsel %vm1133, %v1088, 0
      %v1447 = vsel %vm1133, %v1089, 0
      %v1450 = vsel %vm1133, %v1090, 0
      %v1453 = vsel %vm1133, %v1091, 0
      %v1456 = vsel %vm1133, %v1092, 0
      %v1459 = vsel %vm1133, %v1093, 0
      %v1462 = vsel %vm1133, %v1094, 0
      %v1465 = vsel %vm1133, %v1095, 0
      %v1468 = vsel %vm1133, %v1096, 0
      %v1471 = vsel %vm1133, %v1097, 0
      %v1474 = vsel %vm1133, %v1098, 0
      %v1477 = vsel %vm1133, %v1099, 0
      %v1480 = vsel %vm1133, %v1100, 0
      %v1483 = vsel %vm1133, %v1101, 0
      %v1486 = vsel %vm1133, %v1102, 0
      %v1489 = vsel %vm1133, %v1103, 0
      %v1492 = vsel %vm1133, %v1104, 0
      %v1495 = vsel %vm1133, %v1105, 0
      %v1498 = vsel %vm1133, %v1106, 0
      %v1501 = vsel %vm1133, %v1107, 0
      %v1504 = vsel %vm1133, %v1108, 0
      %1506 = vmatprep.subr.bf16.mxu0 0
      %1507 = vmatpush1.bf16.msra.mxu0 %v1125
      %1508 = vmatprep.subr.bf16.mxu0 0
      %1509 = vmatpush1.bf16.msra.mxu0 %v1126
      %1510 = vmatprep.subr.bf16.mxu0 0
      %1511 = vmatpush1.bf16.msra.mxu0 %v1127
      %1512 = vmatprep.subr.bf16.mxu0 0
      %1513 = vmatpush1.bf16.msra.mxu0 %v1128
      %1514 = vmatprep.subr.bf16.mxu0 0
      %1515 = vmatpush1.bf16.msra.mxu0 0
      %1516 = vmatprep.subr.bf16.mxu0 0
      %1517 = vmatpush1.bf16.msra.mxu0 0
      %1518 = vmatprep.subr.bf16.mxu0 0
      %1519 = vmatpush1.bf16.msra.mxu0 0
      %1520 = vmatprep.subr.bf16.mxu0 0
      %1521 = vmatpush1.bf16.msra.mxu0 0
      %1522 = vmatprep.subr.bf16.mxu0 0
      %1523 = vmatpush1.bf16.msra.mxu0 0
      %1524 = vmatprep.subr.bf16.mxu0 0
      %1525 = vmatpush1.bf16.msra.mxu0 0
      %1526 = vmatprep.subr.bf16.mxu0 0
      %1527 = vmatpush1.bf16.msra.mxu0 0
      %1528 = vmatprep.subr.bf16.mxu0 0
      %1529 = vmatpush1.bf16.msra.mxu0 0
      %1530 = vmatprep.subr.bf16.mxu0 0
      %1531 = vmatpush1.bf16.msra.mxu0 0
      %1532 = vmatprep.subr.bf16.mxu0 0
      %1533 = vmatpush1.bf16.msra.mxu0 0
      %1534 = vmatprep.subr.bf16.mxu0 0
      %1535 = vmatpush1.bf16.msra.mxu0 0
      %1536 = vmatprep.subr.bf16.mxu0 0
      %1537 = vmatpush1.bf16.msra.mxu0 0
      %1538 = vmatprep.mubr.bf16.mxu0 0
      %1539 = vmatmul.mubr.bf16.gmra.mrb[0].mxu0 %v1135
      %v1540 = vpop.f32.mrb[0].mxu0
      %v1541 = vadd.f32 %v487, %v1540
      %v1542 = vpop.f32.mrb[0].mxu0
      %v1543 = vpop.f32.mrb[0].mxu0
      %v1544 = vadd.f32 %v487, %v1543
      %v1545 = vpop.f32.mrb[0].mxu0
      %1546 = vmatprep.mubr.bf16.mxu0 0
      %1547 = vmatmul.mubr.bf16.gmra.mrb[0].mxu0 %v1138
      %v1548 = vpop.f32.mrb[0].mxu0
      %v1549 = vadd.f32 %v487, %v1548
      %v1550 = vpop.f32.mrb[0].mxu0
      %v1551 = vpop.f32.mrb[0].mxu0
      %v1552 = vadd.f32 %v487, %v1551
      %v1553 = vpop.f32.mrb[0].mxu0
      %1554 = vmatprep.mubr.bf16.mxu0 0
      %1555 = vmatmul.mubr.bf16.gmra.mrb[0].mxu0 %v1141
      %v1556 = vpop.f32.mrb[0].mxu0
      %v1557 = vadd.f32 %v487, %v1556
      %v1558 = vpop.f32.mrb[0].mxu0
      %v1559 = vpop.f32.mrb[0].mxu0
      %v1560 = vadd.f32 %v487, %v1559
      %v1561 = vpop.f32.mrb[0].mxu0
      %1562 = vmatprep.mubr.bf16.mxu0 0
      %1563 = vmatmul.mubr.bf16.gmra.mrb[0].mxu0 %v1144
      %v1564 = vpop.f32.mrb[0].mxu0
      %v1565 = vadd.f32 %v487, %v1564
      %v1566 = vpop.f32.mrb[0].mxu0
      %v1567 = vpop.f32.mrb[0].mxu0
      %v1568 = vadd.f32 %v487, %v1567
      %v1569 = vpop.f32.mrb[0].mxu0
      %1570 = vmatprep.mubr.bf16.mxu0 0
      %1571 = vmatmul.mubr.bf16.gmra.mrb[0].mxu0 %v1147
      %v1572 = vpop.f32.mrb[0].mxu0
      %v1573 = vadd.f32 %v487, %v1572
      %v1574 = vpop.f32.mrb[0].mxu0
      %v1575 = vpop.f32.mrb[0].mxu0
      %v1576 = vadd.f32 %v487, %v1575
      %v1577 = vpop.f32.mrb[0].mxu0
      %1578 = vmatprep.mubr.bf16.mxu0 0
      %1579 = vmatmul.mubr.bf16.gmra.mrb[0].mxu0 %v1150
      %v1580 = vpop.f32.mrb[0].mxu0
      %v1581 = vadd.f32 %v487, %v1580
      %v1582 = vpop.f32.mrb[0].mxu0
      %v1583 = vpop.f32.mrb[0].mxu0
      %v1584 = vadd.f32 %v487, %v1583
      %v1585 = vpop.f32.mrb[0].mxu0
      %1586 = vmatprep.mubr.bf16.mxu0 0
      %1587 = vmatmul.mubr.bf16.gmra.mrb[0].mxu0 %v1153
      %v1588 = vpop.f32.mrb[0].mxu0
      %v1589 = vadd.f32 %v487, %v1588
      %v1590 = vpop.f32.mrb[0].mxu0
      %v1591 = vpop.f32.mrb[0].mxu0
      %v1592 = vadd.f32 %v487, %v1591
      %v1593 = vpop.f32.mrb[0].mxu0
      %1594 = vmatprep.mubr.bf16.mxu0 0
      %1595 = vmatmul.mubr.bf16.gmra.mrb[0].mxu0 %v1156
      %v1596 = vpop.f32.mrb[0].mxu0
      %v1597 = vadd.f32 %v487, %v1596
      %v1598 = vpop.f32.mrb[0].mxu0
      %v1599 = vpop.f32.mrb[0].mxu0
      %v1600 = vadd.f32 %v487, %v1599
      %v1601 = vpop.f32.mrb[0].mxu0
      %1602 = vmatprep.mubr.bf16.mxu0 0
      %1603 = vmatmul.mubr.bf16.gmra.mrb[0].mxu0 %v1159
      %v1604 = vpop.f32.mrb[0].mxu0
      %v1605 = vadd.f32 %v487, %v1604
      %v1606 = vpop.f32.mrb[0].mxu0
      %v1607 = vpop.f32.mrb[0].mxu0
      %v1608 = vadd.f32 %v487, %v1607
      %v1609 = vpop.f32.mrb[0].mxu0
      %1610 = vmatprep.mubr.bf16.mxu0 0
      %1611 = vmatmul.mubr.bf16.gmra.mrb[0].mxu0 %v1162
      %v1612 = vpop.f32.mrb[0].mxu0
      %v1613 = vadd.f32 %v487, %v1612
      %v1614 = vpop.f32.mrb[0].mxu0
      %v1615 = vpop.f32.mrb[0].mxu0
      %v1616 = vadd.f32 %v487, %v1615
      %v1617 = vpop.f32.mrb[0].mxu0
      %1618 = vmatprep.mubr.bf16.mxu0 0
      %1619 = vmatmul.mubr.bf16.gmra.mrb[0].mxu0 %v1165
      %v1620 = vpop.f32.mrb[0].mxu0
      %v1621 = vadd.f32 %v487, %v1620
      %v1622 = vpop.f32.mrb[0].mxu0
      %v1623 = vpop.f32.mrb[0].mxu0
      %v1624 = vadd.f32 %v487, %v1623
      %v1625 = vpop.f32.mrb[0].mxu0
      %1626 = vmatprep.mubr.bf16.mxu0 0
      %1627 = vmatmul.mubr.bf16.gmra.mrb[0].mxu0 %v1168
      %v1628 = vpop.f32.mrb[0].mxu0
      %v1629 = vadd.f32 %v487, %v1628
      %v1630 = vpop.f32.mrb[0].mxu0
      %v1631 = vpop.f32.mrb[0].mxu0
      %v1632 = vadd.f32 %v487, %v1631
      %v1633 = vpop.f32.mrb[0].mxu0
      %1634 = vmatprep.mubr.bf16.mxu0 0
      %1635 = vmatmul.mubr.bf16.gmra.mrb[0].mxu0 %v1171
      %v1636 = vpop.f32.mrb[0].mxu0
      %v1637 = vadd.f32 %v487, %v1636
      %v1638 = vpop.f32.mrb[0].mxu0
      %v1639 = vpop.f32.mrb[0].mxu0
      %v1640 = vadd.f32 %v487, %v1639
      %v1641 = vpop.f32.mrb[0].mxu0
      %1642 = vmatprep.mubr.bf16.mxu0 0
      %1643 = vmatmul.mubr.bf16.gmra.mrb[0].mxu0 %v1174
      %v1644 = vpop.f32.mrb[0].mxu0
      %v1645 = vadd.f32 %v487, %v1644
      %v1646 = vpop.f32.mrb[0].mxu0
      %v1647 = vpop.f32.mrb[0].mxu0
      %v1648 = vadd.f32 %v487, %v1647
      %v1649 = vpop.f32.mrb[0].mxu0
      %1650 = vmatprep.mubr.bf16.mxu0 0
      %1651 = vmatmul.mubr.bf16.gmra.mrb[0].mxu0 %v1177
      %v1652 = vpop.f32.mrb[0].mxu0
      %v1653 = vadd.f32 %v487, %v1652
      %v1654 = vpop.f32.mrb[0].mxu0
      %v1655 = vpop.f32.mrb[0].mxu0
      %v1656 = vadd.f32 %v487, %v1655
      %v1657 = vpop.f32.mrb[0].mxu0
      %1658 = vmatprep.mubr.bf16.mxu0 0
      %1659 = vmatmul.mubr.bf16.gmra.mrb[0].mxu0 %v1180
      %v1660 = vpop.f32.mrb[0].mxu0
      %v1661 = vadd.f32 %v487, %v1660
      %v1662 = vpop.f32.mrb[0].mxu0
      %v1663 = vpop.f32.mrb[0].mxu0
      %v1664 = vadd.f32 %v487, %v1663
      %v1665 = vpop.f32.mrb[0].mxu0
      %1666 = vmatprep.mubr.bf16.mxu0 0
      %1667 = vmatmul.mubr.bf16.gmra.mrb[0].mxu0 %v1183
      %v1668 = vpop.f32.mrb[0].mxu0
      %v1669 = vadd.f32 %v487, %v1668
      %v1670 = vpop.f32.mrb[0].mxu0
      %v1671 = vpop.f32.mrb[0].mxu0
      %v1672 = vadd.f32 %v487, %v1671
      %v1673 = vpop.f32.mrb[0].mxu0
      %1674 = vmatprep.mubr.bf16.mxu0 0
      %1675 = vmatmul.mubr.bf16.gmra.mrb[0].mxu0 %v1186
      %v1676 = vpop.f32.mrb[0].mxu0
      %v1677 = vadd.f32 %v487, %v1676
      %v1678 = vpop.f32.mrb[0].mxu0
      %v1679 = vpop.f32.mrb[0].mxu0
      %v1680 = vadd.f32 %v487, %v1679
      %v1681 = vpop.f32.mrb[0].mxu0
      %1682 = vmatprep.mubr.bf16.mxu0 0
      %1683 = vmatmul.mubr.bf16.gmra.mrb[0].mxu0 %v1189
      %v1684 = vpop.f32.mrb[0].mxu0
      %v1685 = vadd.f32 %v487, %v1684
      %v1686 = vpop.f32.mrb[0].mxu0
      %v1687 = vpop.f32.mrb[0].mxu0
      %v1688 = vadd.f32 %v487, %v1687
      %v1689 = vpop.f32.mrb[0].mxu0
      %1690 = vmatprep.mubr.bf16.mxu0 0
      %1691 = vmatmul.mubr.bf16.gmra.mrb[0].mxu0 %v1192
      %v1692 = vpop.f32.mrb[0].mxu0
      %v1693 = vadd.f32 %v487, %v1692
      %v1694 = vpop.f32.mrb[0].mxu0
      %v1695 = vpop.f32.mrb[0].mxu0
      %v1696 = vadd.f32 %v487, %v1695
      %v1697 = vpop.f32.mrb[0].mxu0
      %1698 = vmatprep.mubr.bf16.mxu0 0
      %1699 = vmatmul.mubr.bf16.gmra.mrb[0].mxu0 %v1195
      %v1700 = vpop.f32.mrb[0].mxu0
      %v1701 = vadd.f32 %v487, %v1700
      %v1702 = vpop.f32.mrb[0].mxu0
      %v1703 = vpop.f32.mrb[0].mxu0
      %v1704 = vadd.f32 %v487, %v1703
      %v1705 = vpop.f32.mrb[0].mxu0
      %1706 = vmatprep.mubr.bf16.mxu0 0
      %1707 = vmatmul.mubr.bf16.gmra.mrb[0].mxu0 %v1198
      %v1708 = vpop.f32.mrb[0].mxu0
      %v1709 = vadd.f32 %v487, %v1708
      %v1710 = vpop.f32.mrb[0].mxu0
      %v1711 = vpop.f32.mrb[0].mxu0
      %v1712 = vadd.f32 %v487, %v1711
      %v1713 = vpop.f32.mrb[0].mxu0
      %1714 = vmatprep.mubr.bf16.mxu0 0
      %1715 = vmatmul.mubr.bf16.gmra.mrb[0].mxu0 %v1201
      %v1716 = vpop.f32.mrb[0].mxu0
      %v1717 = vadd.f32 %v487, %v1716
      %v1718 = vpop.f32.mrb[0].mxu0
      %v1719 = vpop.f32.mrb[0].mxu0
      %v1720 = vadd.f32 %v487, %v1719
      %v1721 = vpop.f32.mrb[0].mxu0
      %1722 = vmatprep.mubr.bf16.mxu0 0
      %1723 = vmatmul.mubr.bf16.gmra.mrb[0].mxu0 %v1204
      %v1724 = vpop.f32.mrb[0].mxu0
      %v1725 = vadd.f32 %v487, %v1724
      %v1726 = vpop.f32.mrb[0].mxu0
      %v1727 = vpop.f32.mrb[0].mxu0
      %v1728 = vadd.f32 %v487, %v1727
      %v1729 = vpop.f32.mrb[0].mxu0
      %1730 = vmatprep.mubr.bf16.mxu0 0
      %1731 = vmatmul.mubr.bf16.gmra.mrb[0].mxu0 %v1207
      %v1732 = vpop.f32.mrb[0].mxu0
      %v1733 = vadd.f32 %v487, %v1732
      %v1734 = vpop.f32.mrb[0].mxu0
      %v1735 = vpop.f32.mrb[0].mxu0
      %v1736 = vadd.f32 %v487, %v1735
      %v1737 = vpop.f32.mrb[0].mxu0
      %1738 = vmatprep.mubr.bf16.mxu0 0
      %1739 = vmatmul.mubr.bf16.gmra.mrb[0].mxu0 %v1210
      %v1740 = vpop.f32.mrb[0].mxu0
      %v1741 = vadd.f32 %v487, %v1740
      %v1742 = vpop.f32.mrb[0].mxu0
      %v1743 = vpop.f32.mrb[0].mxu0
      %v1744 = vadd.f32 %v487, %v1743
      %v1745 = vpop.f32.mrb[0].mxu0
      %1746 = vmatprep.mubr.bf16.mxu0 0
      %1747 = vmatmul.mubr.bf16.gmra.mrb[0].mxu0 %v1213
      %v1748 = vpop.f32.mrb[0].mxu0
      %v1749 = vadd.f32 %v487, %v1748
      %v1750 = vpop.f32.mrb[0].mxu0
      %v1751 = vpop.f32.mrb[0].mxu0
      %v1752 = vadd.f32 %v487, %v1751
      %v1753 = vpop.f32.mrb[0].mxu0
      %1754 = vmatprep.mubr.bf16.mxu0 0
      %1755 = vmatmul.mubr.bf16.gmra.mrb[0].mxu0 %v1216
      %v1756 = vpop.f32.mrb[0].mxu0
      %v1757 = vadd.f32 %v487, %v1756
      %v1758 = vpop.f32.mrb[0].mxu0
      %v1759 = vpop.f32.mrb[0].mxu0
      %v1760 = vadd.f32 %v487, %v1759
      %v1761 = vpop.f32.mrb[0].mxu0
      %1762 = vmatprep.mubr.bf16.mxu0 0
      %1763 = vmatmul.mubr.bf16.gmra.mrb[0].mxu0 %v1219
      %v1764 = vpop.f32.mrb[0].mxu0
      %v1765 = vadd.f32 %v487, %v1764
      %v1766 = vpop.f32.mrb[0].mxu0
      %v1767 = vpop.f32.mrb[0].mxu0
      %v1768 = vadd.f32 %v487, %v1767
      %v1769 = vpop.f32.mrb[0].mxu0
      %1770 = vmatprep.mubr.bf16.mxu0 0
      %1771 = vmatmul.mubr.bf16.gmra.mrb[0].mxu0 %v1222
      %v1772 = vpop.f32.mrb[0].mxu0
      %v1773 = vadd.f32 %v487, %v1772
      %v1774 = vpop.f32.mrb[0].mxu0
      %v1775 = vpop.f32.mrb[0].mxu0
      %v1776 = vadd.f32 %v487, %v1775
      %v1777 = vpop.f32.mrb[0].mxu0
      %1778 = vmatprep.mubr.bf16.mxu0 0
      %1779 = vmatmul.mubr.bf16.gmra.mrb[0].mxu0 %v1225
      %v1780 = vpop.f32.mrb[0].mxu0
      %v1781 = vadd.f32 %v487, %v1780
      %v1782 = vpop.f32.mrb[0].mxu0
      %v1783 = vpop.f32.mrb[0].mxu0
      %v1784 = vadd.f32 %v487, %v1783
      %v1785 = vpop.f32.mrb[0].mxu0
      %1786 = vmatprep.mubr.bf16.mxu0 0
      %1787 = vmatmul.mubr.bf16.gmra.mrb[0].mxu0 %v1228
      %v1788 = vpop.f32.mrb[0].mxu0
      %v1789 = vadd.f32 %v487, %v1788
      %v1790 = vpop.f32.mrb[0].mxu0
      %v1791 = vpop.f32.mrb[0].mxu0
      %v1792 = vadd.f32 %v487, %v1791
      %v1793 = vpop.f32.mrb[0].mxu0
      %1794 = vmatprep.mubr.bf16.mxu0 0
      %1795 = vmatmul.mubr.bf16.gmra.mrb[0].mxu0 %v1231
      %v1796 = vpop.f32.mrb[0].mxu0
      %v1797 = vadd.f32 %v487, %v1796
      %v1798 = vpop.f32.mrb[0].mxu0
      %v1799 = vpop.f32.mrb[0].mxu0
      %v1800 = vadd.f32 %v487, %v1799
      %v1801 = vpop.f32.mrb[0].mxu0
      %1802 = vmatprep.mubr.bf16.mxu0 0
      %1803 = vmatmul.mubr.bf16.gmra.mrb[0].mxu0 %v1234
      %v1804 = vpop.f32.mrb[0].mxu0
      %v1805 = vadd.f32 %v487, %v1804
      %v1806 = vpop.f32.mrb[0].mxu0
      %v1807 = vpop.f32.mrb[0].mxu0
      %v1808 = vadd.f32 %v487, %v1807
      %v1809 = vpop.f32.mrb[0].mxu0
      %1810 = vmatprep.mubr.bf16.mxu0 0
      %1811 = vmatmul.mubr.bf16.gmra.mrb[0].mxu0 %v1237
      %v1812 = vpop.f32.mrb[0].mxu0
      %v1813 = vadd.f32 %v487, %v1812
      %v1814 = vpop.f32.mrb[0].mxu0
      %v1815 = vpop.f32.mrb[0].mxu0
      %v1816 = vadd.f32 %v487, %v1815
      %v1817 = vpop.f32.mrb[0].mxu0
      %1818 = vmatprep.mubr.bf16.mxu0 0
      %1819 = vmatmul.mubr.bf16.gmra.mrb[0].mxu0 %v1240
      %v1820 = vpop.f32.mrb[0].mxu0
      %v1821 = vadd.f32 %v487, %v1820
      %v1822 = vpop.f32.mrb[0].mxu0
      %v1823 = vpop.f32.mrb[0].mxu0
      %v1824 = vadd.f32 %v487, %v1823
      %v1825 = vpop.f32.mrb[0].mxu0
      %1826 = vmatprep.mubr.bf16.mxu0 0
      %1827 = vmatmul.mubr.bf16.gmra.mrb[0].mxu0 %v1243
      %v1828 = vpop.f32.mrb[0].mxu0
      %v1829 = vadd.f32 %v487, %v1828
      %v1830 = vpop.f32.mrb[0].mxu0
      %v1831 = vpop.f32.mrb[0].mxu0
      %v1832 = vadd.f32 %v487, %v1831
      %v1833 = vpop.f32.mrb[0].mxu0
      %1834 = vmatprep.mubr.bf16.mxu0 0
      %1835 = vmatmul.mubr.bf16.gmra.mrb[0].mxu0 %v1246
      %v1836 = vpop.f32.mrb[0].mxu0
      %v1837 = vadd.f32 %v487, %v1836
      %v1838 = vpop.f32.mrb[0].mxu0
      %v1839 = vpop.f32.mrb[0].mxu0
      %v1840 = vadd.f32 %v487, %v1839
      %v1841 = vpop.f32.mrb[0].mxu0
      %1842 = vmatprep.mubr.bf16.mxu0 0
      %1843 = vmatmul.mubr.bf16.gmra.mrb[0].mxu0 %v1249
      %v1844 = vpop.f32.mrb[0].mxu0
      %v1845 = vadd.f32 %v487, %v1844
      %v1846 = vpop.f32.mrb[0].mxu0
      %v1847 = vpop.f32.mrb[0].mxu0
      %v1848 = vadd.f32 %v487, %v1847
      %v1849 = vpop.f32.mrb[0].mxu0
      %1850 = vmatprep.mubr.bf16.mxu0 0
      %1851 = vmatmul.mubr.bf16.gmra.mrb[0].mxu0 %v1252
      %v1852 = vpop.f32.mrb[0].mxu0
      %v1853 = vadd.f32 %v487, %v1852
      %v1854 = vpop.f32.mrb[0].mxu0
      %v1855 = vpop.f32.mrb[0].mxu0
      %v1856 = vadd.f32 %v487, %v1855
      %v1857 = vpop.f32.mrb[0].mxu0
      %1858 = vmatprep.mubr.bf16.mxu0 0
      %1859 = vmatmul.mubr.bf16.gmra.mrb[0].mxu0 %v1255
      %v1860 = vpop.f32.mrb[0].mxu0
      %v1861 = vadd.f32 %v487, %v1860
      %v1862 = vpop.f32.mrb[0].mxu0
      %v1863 = vpop.f32.mrb[0].mxu0
      %v1864 = vadd.f32 %v487, %v1863
      %v1865 = vpop.f32.mrb[0].mxu0
      %1866 = vmatprep.mubr.bf16.mxu0 0
      %1867 = vmatmul.mubr.bf16.gmra.mrb[0].mxu0 %v1258
      %v1868 = vpop.f32.mrb[0].mxu0
      %v1869 = vadd.f32 %v487, %v1868
      %v1870 = vpop.f32.mrb[0].mxu0
      %v1871 = vpop.f32.mrb[0].mxu0
      %v1872 = vadd.f32 %v487, %v1871
      %v1873 = vpop.f32.mrb[0].mxu0
      %1874 = vmatprep.mubr.bf16.mxu0 0
      %1875 = vmatmul.mubr.bf16.gmra.mrb[0].mxu0 %v1261
      %v1876 = vpop.f32.mrb[0].mxu0
      %v1877 = vadd.f32 %v487, %v1876
      %v1878 = vpop.f32.mrb[0].mxu0
      %v1879 = vpop.f32.mrb[0].mxu0
      %v1880 = vadd.f32 %v487, %v1879
      %v1881 = vpop.f32.mrb[0].mxu0
      %1882 = vmatprep.mubr.bf16.mxu0 0
      %1883 = vmatmul.mubr.bf16.gmra.mrb[0].mxu0 %v1264
      %v1884 = vpop.f32.mrb[0].mxu0
      %v1885 = vadd.f32 %v487, %v1884
      %v1886 = vpop.f32.mrb[0].mxu0
      %v1887 = vpop.f32.mrb[0].mxu0
      %v1888 = vadd.f32 %v487, %v1887
      %v1889 = vpop.f32.mrb[0].mxu0
      %1890 = vmatprep.mubr.bf16.mxu0 0
      %1891 = vmatmul.mubr.bf16.gmra.mrb[0].mxu0 %v1267
      %v1892 = vpop.f32.mrb[0].mxu0
      %v1893 = vadd.f32 %v487, %v1892
      %v1894 = vpop.f32.mrb[0].mxu0
      %v1895 = vpop.f32.mrb[0].mxu0
      %v1896 = vadd.f32 %v487, %v1895
      %v1897 = vpop.f32.mrb[0].mxu0
      %1898 = vmatprep.mubr.bf16.mxu0 0
      %1899 = vmatmul.mubr.bf16.gmra.mrb[0].mxu0 %v1270
      %v1900 = vpop.f32.mrb[0].mxu0
      %v1901 = vadd.f32 %v487, %v1900
      %v1902 = vpop.f32.mrb[0].mxu0
      %v1903 = vpop.f32.mrb[0].mxu0
      %v1904 = vadd.f32 %v487, %v1903
      %v1905 = vpop.f32.mrb[0].mxu0
      %1906 = vmatprep.mubr.bf16.mxu0 0
      %1907 = vmatmul.mubr.bf16.gmra.mrb[0].mxu0 %v1273
      %v1908 = vpop.f32.mrb[0].mxu0
      %v1909 = vadd.f32 %v487, %v1908
      %v1910 = vpop.f32.mrb[0].mxu0
      %v1911 = vpop.f32.mrb[0].mxu0
      %v1912 = vadd.f32 %v487, %v1911
      %v1913 = vpop.f32.mrb[0].mxu0
      %1914 = vmatprep.mubr.bf16.mxu0 0
      %1915 = vmatmul.mubr.bf16.gmra.mrb[0].mxu0 %v1276
      %v1916 = vpop.f32.mrb[0].mxu0
      %v1917 = vadd.f32 %v487, %v1916
      %v1918 = vpop.f32.mrb[0].mxu0
      %v1919 = vpop.f32.mrb[0].mxu0
      %v1920 = vadd.f32 %v487, %v1919
      %v1921 = vpop.f32.mrb[0].mxu0
      %1922 = vmatprep.mubr.bf16.mxu0 0
      %1923 = vmatmul.mubr.bf16.gmra.mrb[0].mxu0 %v1279
      %v1924 = vpop.f32.mrb[0].mxu0
      %v1925 = vadd.f32 %v487, %v1924
      %v1926 = vpop.f32.mrb[0].mxu0
      %v1927 = vpop.f32.mrb[0].mxu0
      %v1928 = vadd.f32 %v487, %v1927
      %v1929 = vpop.f32.mrb[0].mxu0
      %1930 = vmatprep.mubr.bf16.mxu0 0
      %1931 = vmatmul.mubr.bf16.gmra.mrb[0].mxu0 %v1282
      %v1932 = vpop.f32.mrb[0].mxu0
      %v1933 = vadd.f32 %v487, %v1932
      %v1934 = vpop.f32.mrb[0].mxu0
      %v1935 = vpop.f32.mrb[0].mxu0
      %v1936 = vadd.f32 %v487, %v1935
      %v1937 = vpop.f32.mrb[0].mxu0
      %1938 = vmatprep.mubr.bf16.mxu0 0
      %1939 = vmatmul.mubr.bf16.gmra.mrb[0].mxu0 %v1285
      %v1940 = vpop.f32.mrb[0].mxu0
      %v1941 = vadd.f32 %v487, %v1940
      %v1942 = vpop.f32.mrb[0].mxu0
      %v1943 = vpop.f32.mrb[0].mxu0
      %v1944 = vadd.f32 %v487, %v1943
      %v1945 = vpop.f32.mrb[0].mxu0
      %1946 = vmatprep.mubr.bf16.mxu0 0
      %1947 = vmatmul.mubr.bf16.gmra.mrb[0].mxu0 %v1288
      %v1948 = vpop.f32.mrb[0].mxu0
      %v1949 = vadd.f32 %v487, %v1948
      %v1950 = vpop.f32.mrb[0].mxu0
      %v1951 = vpop.f32.mrb[0].mxu0
      %v1952 = vadd.f32 %v487, %v1951
      %v1953 = vpop.f32.mrb[0].mxu0
      %1954 = vmatprep.mubr.bf16.mxu0 0
      %1955 = vmatmul.mubr.bf16.gmra.mrb[0].mxu0 %v1291
      %v1956 = vpop.f32.mrb[0].mxu0
      %v1957 = vadd.f32 %v487, %v1956
      %v1958 = vpop.f32.mrb[0].mxu0
      %v1959 = vpop.f32.mrb[0].mxu0
      %v1960 = vadd.f32 %v487, %v1959
      %v1961 = vpop.f32.mrb[0].mxu0
      %1962 = vmatprep.mubr.bf16.mxu0 0
      %1963 = vmatmul.mubr.bf16.gmra.mrb[0].mxu0 %v1294
      %v1964 = vpop.f32.mrb[0].mxu0
      %v1965 = vadd.f32 %v487, %v1964
      %v1966 = vpop.f32.mrb[0].mxu0
      %v1967 = vpop.f32.mrb[0].mxu0
      %v1968 = vadd.f32 %v487, %v1967
      %v1969 = vpop.f32.mrb[0].mxu0
      %1970 = vmatprep.mubr.bf16.mxu0 0
      %1971 = vmatmul.mubr.bf16.gmra.mrb[0].mxu0 %v1297
      %v1972 = vpop.f32.mrb[0].mxu0
      %v1973 = vadd.f32 %v487, %v1972
      %v1974 = vpop.f32.mrb[0].mxu0
      %v1975 = vpop.f32.mrb[0].mxu0
      %v1976 = vadd.f32 %v487, %v1975
      %v1977 = vpop.f32.mrb[0].mxu0
      %1978 = vmatprep.mubr.bf16.mxu0 0
      %1979 = vmatmul.mubr.bf16.gmra.mrb[0].mxu0 %v1300
      %v1980 = vpop.f32.mrb[0].mxu0
      %v1981 = vadd.f32 %v487, %v1980
      %v1982 = vpop.f32.mrb[0].mxu0
      %v1983 = vpop.f32.mrb[0].mxu0
      %v1984 = vadd.f32 %v487, %v1983
      %v1985 = vpop.f32.mrb[0].mxu0
      %1986 = vmatprep.mubr.bf16.mxu0 0
      %1987 = vmatmul.mubr.bf16.gmra.mrb[0].mxu0 %v1303
      %v1988 = vpop.f32.mrb[0].mxu0
      %v1989 = vadd.f32 %v487, %v1988
      %v1990 = vpop.f32.mrb[0].mxu0
      %v1991 = vpop.f32.mrb[0].mxu0
      %v1992 = vadd.f32 %v487, %v1991
      %v1993 = vpop.f32.mrb[0].mxu0
      %1994 = vmatprep.mubr.bf16.mxu0 0
      %1995 = vmatmul.mubr.bf16.gmra.mrb[0].mxu0 %v1306
      %v1996 = vpop.f32.mrb[0].mxu0
      %v1997 = vadd.f32 %v487, %v1996
      %v1998 = vpop.f32.mrb[0].mxu0
      %v1999 = vpop.f32.mrb[0].mxu0
      %v2000 = vadd.f32 %v487, %v1999
      %v2001 = vpop.f32.mrb[0].mxu0
      %2002 = vmatprep.mubr.bf16.mxu0 0
      %2003 = vmatmul.mubr.bf16.gmra.mrb[0].mxu0 %v1309
      %v2004 = vpop.f32.mrb[0].mxu0
      %v2005 = vadd.f32 %v487, %v2004
      %v2006 = vpop.f32.mrb[0].mxu0
      %v2007 = vpop.f32.mrb[0].mxu0
      %v2008 = vadd.f32 %v487, %v2007
      %v2009 = vpop.f32.mrb[0].mxu0
      %2010 = vmatprep.mubr.bf16.mxu0 0
      %2011 = vmatmul.mubr.bf16.gmra.mrb[0].mxu0 %v1312
      %v2012 = vpop.f32.mrb[0].mxu0
      %v2013 = vadd.f32 %v487, %v2012
      %v2014 = vpop.f32.mrb[0].mxu0
      %v2015 = vpop.f32.mrb[0].mxu0
      %v2016 = vadd.f32 %v487, %v2015
      %v2017 = vpop.f32.mrb[0].mxu0
      %2018 = vmatprep.mubr.bf16.mxu0 0
      %2019 = vmatmul.mubr.bf16.gmra.mrb[0].mxu0 %v1315
      %v2020 = vpop.f32.mrb[0].mxu0
      %v2021 = vadd.f32 %v487, %v2020
      %v2022 = vpop.f32.mrb[0].mxu0
      %v2023 = vpop.f32.mrb[0].mxu0
      %v2024 = vadd.f32 %v487, %v2023
      %v2025 = vpop.f32.mrb[0].mxu0
      %2026 = vmatprep.mubr.bf16.mxu0 0
      %2027 = vmatmul.mubr.bf16.gmra.mrb[0].mxu0 %v1318
      %v2028 = vpop.f32.mrb[0].mxu0
      %v2029 = vadd.f32 %v487, %v2028
      %v2030 = vpop.f32.mrb[0].mxu0
      %v2031 = vpop.f32.mrb[0].mxu0
      %v2032 = vadd.f32 %v487, %v2031
      %v2033 = vpop.f32.mrb[0].mxu0
      %2034 = vmatprep.mubr.bf16.mxu0 0
      %2035 = vmatmul.mubr.bf16.gmra.mrb[0].mxu0 %v1321
      %v2036 = vpop.f32.mrb[0].mxu0
      %v2037 = vadd.f32 %v487, %v2036
      %v2038 = vpop.f32.mrb[0].mxu0
      %v2039 = vpop.f32.mrb[0].mxu0
      %v2040 = vadd.f32 %v487, %v2039
      %v2041 = vpop.f32.mrb[0].mxu0
      %2042 = vmatprep.mubr.bf16.mxu0 0
      %2043 = vmatmul.mubr.bf16.gmra.mrb[0].mxu0 %v1324
      %v2044 = vpop.f32.mrb[0].mxu0
      %v2045 = vadd.f32 %v487, %v2044
      %v2046 = vpop.f32.mrb[0].mxu0
      %v2047 = vpop.f32.mrb[0].mxu0
      %v2048 = vadd.f32 %v487, %v2047
      %v2049 = vpop.f32.mrb[0].mxu0
      %2050 = vmatprep.mubr.bf16.mxu0 0
      %2051 = vmatmul.mubr.bf16.gmra.mrb[0].mxu0 %v1327
      %v2052 = vpop.f32.mrb[0].mxu0
      %v2053 = vadd.f32 %v487, %v2052
      %v2054 = vpop.f32.mrb[0].mxu0
      %v2055 = vpop.f32.mrb[0].mxu0
      %v2056 = vadd.f32 %v487, %v2055
      %v2057 = vpop.f32.mrb[0].mxu0
      %2058 = vmatprep.mubr.bf16.mxu0 0
      %2059 = vmatmul.mubr.bf16.gmra.mrb[0].mxu0 %v1330
      %v2060 = vpop.f32.mrb[0].mxu0
      %v2061 = vadd.f32 %v487, %v2060
      %v2062 = vpop.f32.mrb[0].mxu0
      %v2063 = vpop.f32.mrb[0].mxu0
      %v2064 = vadd.f32 %v487, %v2063
      %v2065 = vpop.f32.mrb[0].mxu0
      %2066 = vmatprep.mubr.bf16.mxu0 0
      %2067 = vmatmul.mubr.bf16.gmra.mrb[0].mxu0 %v1333
      %v2068 = vpop.f32.mrb[0].mxu0
      %v2069 = vadd.f32 %v487, %v2068
      %v2070 = vpop.f32.mrb[0].mxu0
      %v2071 = vpop.f32.mrb[0].mxu0
      %v2072 = vadd.f32 %v487, %v2071
      %v2073 = vpop.f32.mrb[0].mxu0
      %2074 = vmatprep.mubr.bf16.mxu0 0
      %2075 = vmatmul.mubr.bf16.gmra.mrb[0].mxu0 %v1336
      %v2076 = vpop.f32.mrb[0].mxu0
      %v2077 = vadd.f32 %v487, %v2076
      %v2078 = vpop.f32.mrb[0].mxu0
      %v2079 = vpop.f32.mrb[0].mxu0
      %v2080 = vadd.f32 %v487, %v2079
      %v2081 = vpop.f32.mrb[0].mxu0
      %2082 = vmatprep.mubr.bf16.mxu0 0
      %2083 = vmatmul.mubr.bf16.gmra.mrb[0].mxu0 %v1339
      %v2084 = vpop.f32.mrb[0].mxu0
      %v2085 = vadd.f32 %v487, %v2084
      %v2086 = vpop.f32.mrb[0].mxu0
      %v2087 = vpop.f32.mrb[0].mxu0
      %v2088 = vadd.f32 %v487, %v2087
      %v2089 = vpop.f32.mrb[0].mxu0
      %2090 = vmatprep.mubr.bf16.mxu0 0
      %2091 = vmatmul.mubr.bf16.gmra.mrb[0].mxu0 %v1342
      %v2092 = vpop.f32.mrb[0].mxu0
      %v2093 = vadd.f32 %v487, %v2092
      %v2094 = vpop.f32.mrb[0].mxu0
      %v2095 = vpop.f32.mrb[0].mxu0
      %v2096 = vadd.f32 %v487, %v2095
      %v2097 = vpop.f32.mrb[0].mxu0
      %2098 = vmatprep.mubr.bf16.mxu0 0
      %2099 = vmatmul.mubr.bf16.gmra.mrb[0].mxu0 %v1345
      %v2100 = vpop.f32.mrb[0].mxu0
      %v2101 = vadd.f32 %v487, %v2100
      %v2102 = vpop.f32.mrb[0].mxu0
      %v2103 = vpop.f32.mrb[0].mxu0
      %v2104 = vadd.f32 %v487, %v2103
      %v2105 = vpop.f32.mrb[0].mxu0
      %2106 = vmatprep.mubr.bf16.mxu0 0
      %2107 = vmatmul.mubr.bf16.gmra.mrb[0].mxu0 %v1348
      %v2108 = vpop.f32.mrb[0].mxu0
      %v2109 = vadd.f32 %v487, %v2108
      %v2110 = vpop.f32.mrb[0].mxu0
      %v2111 = vpop.f32.mrb[0].mxu0
      %v2112 = vadd.f32 %v487, %v2111
      %v2113 = vpop.f32.mrb[0].mxu0
      %2114 = vmatprep.mubr.bf16.mxu0 0
      %2115 = vmatmul.mubr.bf16.gmra.mrb[0].mxu0 %v1351
      %v2116 = vpop.f32.mrb[0].mxu0
      %v2117 = vadd.f32 %v487, %v2116
      %v2118 = vpop.f32.mrb[0].mxu0
      %v2119 = vpop.f32.mrb[0].mxu0
      %v2120 = vadd.f32 %v487, %v2119
      %v2121 = vpop.f32.mrb[0].mxu0
      %2122 = vmatprep.mubr.bf16.mxu0 0
      %2123 = vmatmul.mubr.bf16.gmra.mrb[0].mxu0 %v1354
      %v2124 = vpop.f32.mrb[0].mxu0
      %v2125 = vadd.f32 %v487, %v2124
      %v2126 = vpop.f32.mrb[0].mxu0
      %v2127 = vpop.f32.mrb[0].mxu0
      %v2128 = vadd.f32 %v487, %v2127
      %v2129 = vpop.f32.mrb[0].mxu0
      %2130 = vmatprep.mubr.bf16.mxu0 0
      %2131 = vmatmul.mubr.bf16.gmra.mrb[0].mxu0 %v1357
      %v2132 = vpop.f32.mrb[0].mxu0
      %v2133 = vadd.f32 %v487, %v2132
      %v2134 = vpop.f32.mrb[0].mxu0
      %v2135 = vpop.f32.mrb[0].mxu0
      %v2136 = vadd.f32 %v487, %v2135
      %v2137 = vpop.f32.mrb[0].mxu0
      %2138 = vmatprep.mubr.bf16.mxu0 0
      %2139 = vmatmul.mubr.bf16.gmra.mrb[0].mxu0 %v1360
      %v2140 = vpop.f32.mrb[0].mxu0
      %v2141 = vadd.f32 %v487, %v2140
      %v2142 = vpop.f32.mrb[0].mxu0
      %v2143 = vpop.f32.mrb[0].mxu0
      %v2144 = vadd.f32 %v487, %v2143
      %v2145 = vpop.f32.mrb[0].mxu0
      %2146 = vmatprep.mubr.bf16.mxu0 0
      %2147 = vmatmul.mubr.bf16.gmra.mrb[0].mxu0 %v1363
      %v2148 = vpop.f32.mrb[0].mxu0
      %v2149 = vadd.f32 %v487, %v2148
      %v2150 = vpop.f32.mrb[0].mxu0
      %v2151 = vpop.f32.mrb[0].mxu0
      %v2152 = vadd.f32 %v487, %v2151
      %v2153 = vpop.f32.mrb[0].mxu0
      %2154 = vmatprep.mubr.bf16.mxu0 0
      %2155 = vmatmul.mubr.bf16.gmra.mrb[0].mxu0 %v1366
      %v2156 = vpop.f32.mrb[0].mxu0
      %v2157 = vadd.f32 %v487, %v2156
      %v2158 = vpop.f32.mrb[0].mxu0
      %v2159 = vpop.f32.mrb[0].mxu0
      %v2160 = vadd.f32 %v487, %v2159
      %v2161 = vpop.f32.mrb[0].mxu0
      %2162 = vmatprep.mubr.bf16.mxu0 0
      %2163 = vmatmul.mubr.bf16.gmra.mrb[0].mxu0 %v1369
      %v2164 = vpop.f32.mrb[0].mxu0
      %v2165 = vadd.f32 %v487, %v2164
      %v2166 = vpop.f32.mrb[0].mxu0
      %v2167 = vpop.f32.mrb[0].mxu0
      %v2168 = vadd.f32 %v487, %v2167
      %v2169 = vpop.f32.mrb[0].mxu0
      %2170 = vmatprep.mubr.bf16.mxu0 0
      %2171 = vmatmul.mubr.bf16.gmra.mrb[0].mxu0 %v1372
      %v2172 = vpop.f32.mrb[0].mxu0
      %v2173 = vadd.f32 %v487, %v2172
      %v2174 = vpop.f32.mrb[0].mxu0
      %v2175 = vpop.f32.mrb[0].mxu0
      %v2176 = vadd.f32 %v487, %v2175
      %v2177 = vpop.f32.mrb[0].mxu0
      %2178 = vmatprep.mubr.bf16.mxu0 0
      %2179 = vmatmul.mubr.bf16.gmra.mrb[0].mxu0 %v1375
      %v2180 = vpop.f32.mrb[0].mxu0
      %v2181 = vadd.f32 %v487, %v2180
      %v2182 = vpop.f32.mrb[0].mxu0
      %v2183 = vpop.f32.mrb[0].mxu0
      %v2184 = vadd.f32 %v487, %v2183
      %v2185 = vpop.f32.mrb[0].mxu0
      %2186 = vmatprep.mubr.bf16.mxu0 0
      %2187 = vmatmul.mubr.bf16.gmra.mrb[0].mxu0 %v1378
      %v2188 = vpop.f32.mrb[0].mxu0
      %v2189 = vadd.f32 %v487, %v2188
      %v2190 = vpop.f32.mrb[0].mxu0
      %v2191 = vpop.f32.mrb[0].mxu0
      %v2192 = vadd.f32 %v487, %v2191
      %v2193 = vpop.f32.mrb[0].mxu0
      %2194 = vmatprep.mubr.bf16.mxu0 0
      %2195 = vmatmul.mubr.bf16.gmra.mrb[0].mxu0 %v1381
      %v2196 = vpop.f32.mrb[0].mxu0
      %v2197 = vadd.f32 %v487, %v2196
      %v2198 = vpop.f32.mrb[0].mxu0
      %v2199 = vpop.f32.mrb[0].mxu0
      %v2200 = vadd.f32 %v487, %v2199
      %v2201 = vpop.f32.mrb[0].mxu0
      %2202 = vmatprep.mubr.bf16.mxu0 0
      %2203 = vmatmul.mubr.bf16.gmra.mrb[0].mxu0 %v1384
      %v2204 = vpop.f32.mrb[0].mxu0
      %v2205 = vadd.f32 %v487, %v2204
      %v2206 = vpop.f32.mrb[0].mxu0
      %v2207 = vpop.f32.mrb[0].mxu0
      %v2208 = vadd.f32 %v487, %v2207
      %v2209 = vpop.f32.mrb[0].mxu0
      %2210 = vmatprep.mubr.bf16.mxu0 0
      %2211 = vmatmul.mubr.bf16.gmra.mrb[0].mxu0 %v1387
      %v2212 = vpop.f32.mrb[0].mxu0
      %v2213 = vadd.f32 %v487, %v2212
      %v2214 = vpop.f32.mrb[0].mxu0
      %v2215 = vpop.f32.mrb[0].mxu0
      %v2216 = vadd.f32 %v487, %v2215
      %v2217 = vpop.f32.mrb[0].mxu0
      %2218 = vmatprep.mubr.bf16.mxu0 0
      %2219 = vmatmul.mubr.bf16.gmra.mrb[0].mxu0 %v1390
      %v2220 = vpop.f32.mrb[0].mxu0
      %v2221 = vadd.f32 %v487, %v2220
      %v2222 = vpop.f32.mrb[0].mxu0
      %v2223 = vpop.f32.mrb[0].mxu0
      %v2224 = vadd.f32 %v487, %v2223
      %v2225 = vpop.f32.mrb[0].mxu0
      %2226 = vmatprep.mubr.bf16.mxu0 0
      %2227 = vmatmul.mubr.bf16.gmra.mrb[0].mxu0 %v1393
      %v2228 = vpop.f32.mrb[0].mxu0
      %v2229 = vadd.f32 %v487, %v2228
      %v2230 = vpop.f32.mrb[0].mxu0
      %v2231 = vpop.f32.mrb[0].mxu0
      %v2232 = vadd.f32 %v487, %v2231
      %v2233 = vpop.f32.mrb[0].mxu0
      %2234 = vmatprep.mubr.bf16.mxu0 0
      %2235 = vmatmul.mubr.bf16.gmra.mrb[0].mxu0 %v1396
      %v2236 = vpop.f32.mrb[0].mxu0
      %v2237 = vadd.f32 %v487, %v2236
      %v2238 = vpop.f32.mrb[0].mxu0
      %v2239 = vpop.f32.mrb[0].mxu0
      %v2240 = vadd.f32 %v487, %v2239
      %v2241 = vpop.f32.mrb[0].mxu0
      %2242 = vmatprep.mubr.bf16.mxu0 0
      %2243 = vmatmul.mubr.bf16.gmra.mrb[0].mxu0 %v1399
      %v2244 = vpop.f32.mrb[0].mxu0
      %v2245 = vadd.f32 %v487, %v2244
      %v2246 = vpop.f32.mrb[0].mxu0
      %v2247 = vpop.f32.mrb[0].mxu0
      %v2248 = vadd.f32 %v487, %v2247
      %v2249 = vpop.f32.mrb[0].mxu0
      %2250 = vmatprep.mubr.bf16.mxu0 0
      %2251 = vmatmul.mubr.bf16.gmra.mrb[0].mxu0 %v1402
      %v2252 = vpop.f32.mrb[0].mxu0
      %v2253 = vadd.f32 %v487, %v2252
      %v2254 = vpop.f32.mrb[0].mxu0
      %v2255 = vpop.f32.mrb[0].mxu0
      %v2256 = vadd.f32 %v487, %v2255
      %v2257 = vpop.f32.mrb[0].mxu0
      %2258 = vmatprep.mubr.bf16.mxu0 0
      %2259 = vmatmul.mubr.bf16.gmra.mrb[0].mxu0 %v1405
      %v2260 = vpop.f32.mrb[0].mxu0
      %v2261 = vadd.f32 %v487, %v2260
      %v2262 = vpop.f32.mrb[0].mxu0
      %v2263 = vpop.f32.mrb[0].mxu0
      %v2264 = vadd.f32 %v487, %v2263
      %v2265 = vpop.f32.mrb[0].mxu0
      %2266 = vmatprep.mubr.bf16.mxu0 0
      %2267 = vmatmul.mubr.bf16.gmra.mrb[0].mxu0 %v1408
      %v2268 = vpop.f32.mrb[0].mxu0
      %v2269 = vadd.f32 %v487, %v2268
      %v2270 = vpop.f32.mrb[0].mxu0
      %v2271 = vpop.f32.mrb[0].mxu0
      %v2272 = vadd.f32 %v487, %v2271
      %v2273 = vpop.f32.mrb[0].mxu0
      %2274 = vmatprep.mubr.bf16.mxu0 0
      %2275 = vmatmul.mubr.bf16.gmra.mrb[0].mxu0 %v1411
      %v2276 = vpop.f32.mrb[0].mxu0
      %v2277 = vadd.f32 %v487, %v2276
      %v2278 = vpop.f32.mrb[0].mxu0
      %v2279 = vpop.f32.mrb[0].mxu0
      %v2280 = vadd.f32 %v487, %v2279
      %v2281 = vpop.f32.mrb[0].mxu0
      %2282 = vmatprep.mubr.bf16.mxu0 0
      %2283 = vmatmul.mubr.bf16.gmra.mrb[0].mxu0 %v1414
      %v2284 = vpop.f32.mrb[0].mxu0
      %v2285 = vadd.f32 %v487, %v2284
      %v2286 = vpop.f32.mrb[0].mxu0
      %v2287 = vpop.f32.mrb[0].mxu0
      %v2288 = vadd.f32 %v487, %v2287
      %v2289 = vpop.f32.mrb[0].mxu0
      %2290 = vmatprep.mubr.bf16.mxu0 0
      %2291 = vmatmul.mubr.bf16.gmra.mrb[0].mxu0 %v1417
      %v2292 = vpop.f32.mrb[0].mxu0
      %v2293 = vadd.f32 %v487, %v2292
      %v2294 = vpop.f32.mrb[0].mxu0
      %v2295 = vpop.f32.mrb[0].mxu0
      %v2296 = vadd.f32 %v487, %v2295
      %v2297 = vpop.f32.mrb[0].mxu0
      %2298 = vmatprep.mubr.bf16.mxu0 0
      %2299 = vmatmul.mubr.bf16.gmra.mrb[0].mxu0 %v1420
      %v2300 = vpop.f32.mrb[0].mxu0
      %v2301 = vadd.f32 %v487, %v2300
      %v2302 = vpop.f32.mrb[0].mxu0
      %v2303 = vpop.f32.mrb[0].mxu0
      %v2304 = vadd.f32 %v487, %v2303
      %v2305 = vpop.f32.mrb[0].mxu0
      %2306 = vmatprep.mubr.bf16.mxu0 0
      %2307 = vmatmul.mubr.bf16.gmra.mrb[0].mxu0 %v1423
      %v2308 = vpop.f32.mrb[0].mxu0
      %v2309 = vadd.f32 %v487, %v2308
      %v2310 = vpop.f32.mrb[0].mxu0
      %v2311 = vpop.f32.mrb[0].mxu0
      %v2312 = vadd.f32 %v487, %v2311
      %v2313 = vpop.f32.mrb[0].mxu0
      %2314 = vmatprep.mubr.bf16.mxu0 0
      %2315 = vmatmul.mubr.bf16.gmra.mrb[0].mxu0 %v1426
      %v2316 = vpop.f32.mrb[0].mxu0
      %v2317 = vadd.f32 %v487, %v2316
      %v2318 = vpop.f32.mrb[0].mxu0
      %v2319 = vpop.f32.mrb[0].mxu0
      %v2320 = vadd.f32 %v487, %v2319
      %v2321 = vpop.f32.mrb[0].mxu0
      %2322 = vmatprep.mubr.bf16.mxu0 0
      %2323 = vmatmul.mubr.bf16.gmra.mrb[0].mxu0 %v1429
      %v2324 = vpop.f32.mrb[0].mxu0
      %v2325 = vadd.f32 %v487, %v2324
      %v2326 = vpop.f32.mrb[0].mxu0
      %v2327 = vpop.f32.mrb[0].mxu0
      %v2328 = vadd.f32 %v487, %v2327
      %v2329 = vpop.f32.mrb[0].mxu0
      %2330 = vmatprep.mubr.bf16.mxu0 0
      %2331 = vmatmul.mubr.bf16.gmra.mrb[0].mxu0 %v1432
      %v2332 = vpop.f32.mrb[0].mxu0
      %v2333 = vadd.f32 %v487, %v2332
      %v2334 = vpop.f32.mrb[0].mxu0
      %v2335 = vpop.f32.mrb[0].mxu0
      %v2336 = vadd.f32 %v487, %v2335
      %v2337 = vpop.f32.mrb[0].mxu0
      %2338 = vmatprep.mubr.bf16.mxu0 0
      %2339 = vmatmul.mubr.bf16.gmra.mrb[0].mxu0 %v1435
      %v2340 = vpop.f32.mrb[0].mxu0
      %v2341 = vadd.f32 %v487, %v2340
      %v2342 = vpop.f32.mrb[0].mxu0
      %v2343 = vpop.f32.mrb[0].mxu0
      %v2344 = vadd.f32 %v487, %v2343
      %v2345 = vpop.f32.mrb[0].mxu0
      %2346 = vmatprep.mubr.bf16.mxu0 0
      %2347 = vmatmul.mubr.bf16.gmra.mrb[0].mxu0 %v1438
      %v2348 = vpop.f32.mrb[0].mxu0
      %v2349 = vadd.f32 %v487, %v2348
      %v2350 = vpop.f32.mrb[0].mxu0
      %v2351 = vpop.f32.mrb[0].mxu0
      %v2352 = vadd.f32 %v487, %v2351
      %v2353 = vpop.f32.mrb[0].mxu0
      %2354 = vmatprep.mubr.bf16.mxu0 0
      %2355 = vmatmul.mubr.bf16.gmra.mrb[0].mxu0 %v1441
      %v2356 = vpop.f32.mrb[0].mxu0
      %v2357 = vadd.f32 %v487, %v2356
      %v2358 = vpop.f32.mrb[0].mxu0
      %v2359 = vpop.f32.mrb[0].mxu0
      %v2360 = vadd.f32 %v487, %v2359
      %v2361 = vpop.f32.mrb[0].mxu0
      %2362 = vmatprep.mubr.bf16.mxu0 0
      %2363 = vmatmul.mubr.bf16.gmra.mrb[0].mxu0 %v1444
      %v2364 = vpop.f32.mrb[0].mxu0
      %v2365 = vadd.f32 %v487, %v2364
      %v2366 = vpop.f32.mrb[0].mxu0
      %v2367 = vpop.f32.mrb[0].mxu0
      %v2368 = vadd.f32 %v487, %v2367
      %v2369 = vpop.f32.mrb[0].mxu0
      %2370 = vmatprep.mubr.bf16.mxu0 0
      %2371 = vmatmul.mubr.bf16.gmra.mrb[0].mxu0 %v1447
      %v2372 = vpop.f32.mrb[0].mxu0
      %v2373 = vadd.f32 %v487, %v2372
      %v2374 = vpop.f32.mrb[0].mxu0
      %v2375 = vpop.f32.mrb[0].mxu0
      %v2376 = vadd.f32 %v487, %v2375
      %v2377 = vpop.f32.mrb[0].mxu0
      %2378 = vmatprep.mubr.bf16.mxu0 0
      %2379 = vmatmul.mubr.bf16.gmra.mrb[0].mxu0 %v1450
      %v2380 = vpop.f32.mrb[0].mxu0
      %v2381 = vadd.f32 %v487, %v2380
      %v2382 = vpop.f32.mrb[0].mxu0
      %v2383 = vpop.f32.mrb[0].mxu0
      %v2384 = vadd.f32 %v487, %v2383
      %v2385 = vpop.f32.mrb[0].mxu0
      %2386 = vmatprep.mubr.bf16.mxu0 0
      %2387 = vmatmul.mubr.bf16.gmra.mrb[0].mxu0 %v1453
      %v2388 = vpop.f32.mrb[0].mxu0
      %v2389 = vadd.f32 %v487, %v2388
      %v2390 = vpop.f32.mrb[0].mxu0
      %v2391 = vpop.f32.mrb[0].mxu0
      %v2392 = vadd.f32 %v487, %v2391
      %v2393 = vpop.f32.mrb[0].mxu0
      %2394 = vmatprep.mubr.bf16.mxu0 0
      %2395 = vmatmul.mubr.bf16.gmra.mrb[0].mxu0 %v1456
      %v2396 = vpop.f32.mrb[0].mxu0
      %v2397 = vadd.f32 %v487, %v2396
      %v2398 = vpop.f32.mrb[0].mxu0
      %v2399 = vpop.f32.mrb[0].mxu0
      %v2400 = vadd.f32 %v487, %v2399
      %v2401 = vpop.f32.mrb[0].mxu0
      %2402 = vmatprep.mubr.bf16.mxu0 0
      %2403 = vmatmul.mubr.bf16.gmra.mrb[0].mxu0 %v1459
      %v2404 = vpop.f32.mrb[0].mxu0
      %v2405 = vadd.f32 %v487, %v2404
      %v2406 = vpop.f32.mrb[0].mxu0
      %v2407 = vpop.f32.mrb[0].mxu0
      %v2408 = vadd.f32 %v487, %v2407
      %v2409 = vpop.f32.mrb[0].mxu0
      %2410 = vmatprep.mubr.bf16.mxu0 0
      %2411 = vmatmul.mubr.bf16.gmra.mrb[0].mxu0 %v1462
      %v2412 = vpop.f32.mrb[0].mxu0
      %v2413 = vadd.f32 %v487, %v2412
      %v2414 = vpop.f32.mrb[0].mxu0
      %v2415 = vpop.f32.mrb[0].mxu0
      %v2416 = vadd.f32 %v487, %v2415
      %v2417 = vpop.f32.mrb[0].mxu0
      %2418 = vmatprep.mubr.bf16.mxu0 0
      %2419 = vmatmul.mubr.bf16.gmra.mrb[0].mxu0 %v1465
      %v2420 = vpop.f32.mrb[0].mxu0
      %v2421 = vadd.f32 %v487, %v2420
      %v2422 = vpop.f32.mrb[0].mxu0
      %v2423 = vpop.f32.mrb[0].mxu0
      %v2424 = vadd.f32 %v487, %v2423
      %v2425 = vpop.f32.mrb[0].mxu0
      %2426 = vmatprep.mubr.bf16.mxu0 0
      %2427 = vmatmul.mubr.bf16.gmra.mrb[0].mxu0 %v1468
      %v2428 = vpop.f32.mrb[0].mxu0
      %v2429 = vadd.f32 %v487, %v2428
      %v2430 = vpop.f32.mrb[0].mxu0
      %v2431 = vpop.f32.mrb[0].mxu0
      %v2432 = vadd.f32 %v487, %v2431
      %v2433 = vpop.f32.mrb[0].mxu0
      %2434 = vmatprep.mubr.bf16.mxu0 0
      %2435 = vmatmul.mubr.bf16.gmra.mrb[0].mxu0 %v1471
      %v2436 = vpop.f32.mrb[0].mxu0
      %v2437 = vadd.f32 %v487, %v2436
      %v2438 = vpop.f32.mrb[0].mxu0
      %v2439 = vpop.f32.mrb[0].mxu0
      %v2440 = vadd.f32 %v487, %v2439
      %v2441 = vpop.f32.mrb[0].mxu0
      %2442 = vmatprep.mubr.bf16.mxu0 0
      %2443 = vmatmul.mubr.bf16.gmra.mrb[0].mxu0 %v1474
      %v2444 = vpop.f32.mrb[0].mxu0
      %v2445 = vadd.f32 %v487, %v2444
      %v2446 = vpop.f32.mrb[0].mxu0
      %v2447 = vpop.f32.mrb[0].mxu0
      %v2448 = vadd.f32 %v487, %v2447
      %v2449 = vpop.f32.mrb[0].mxu0
      %2450 = vmatprep.mubr.bf16.mxu0 0
      %2451 = vmatmul.mubr.bf16.gmra.mrb[0].mxu0 %v1477
      %v2452 = vpop.f32.mrb[0].mxu0
      %v2453 = vadd.f32 %v487, %v2452
      %v2454 = vpop.f32.mrb[0].mxu0
      %v2455 = vpop.f32.mrb[0].mxu0
      %v2456 = vadd.f32 %v487, %v2455
      %v2457 = vpop.f32.mrb[0].mxu0
      %2458 = vmatprep.mubr.bf16.mxu0 0
      %2459 = vmatmul.mubr.bf16.gmra.mrb[0].mxu0 %v1480
      %v2460 = vpop.f32.mrb[0].mxu0
      %v2461 = vadd.f32 %v487, %v2460
      %v2462 = vpop.f32.mrb[0].mxu0
      %v2463 = vpop.f32.mrb[0].mxu0
      %v2464 = vadd.f32 %v487, %v2463
      %v2465 = vpop.f32.mrb[0].mxu0
      %2466 = vmatprep.mubr.bf16.mxu0 0
      %2467 = vmatmul.mubr.bf16.gmra.mrb[0].mxu0 %v1483
      %v2468 = vpop.f32.mrb[0].mxu0
      %v2469 = vadd.f32 %v487, %v2468
      %v2470 = vpop.f32.mrb[0].mxu0
      %v2471 = vpop.f32.mrb[0].mxu0
      %v2472 = vadd.f32 %v487, %v2471
      %v2473 = vpop.f32.mrb[0].mxu0
      %2474 = vmatprep.mubr.bf16.mxu0 0
      %2475 = vmatmul.mubr.bf16.gmra.mrb[0].mxu0 %v1486
      %v2476 = vpop.f32.mrb[0].mxu0
      %v2477 = vadd.f32 %v487, %v2476
      %v2478 = vpop.f32.mrb[0].mxu0
      %v2479 = vpop.f32.mrb[0].mxu0
      %v2480 = vadd.f32 %v487, %v2479
      %v2481 = vpop.f32.mrb[0].mxu0
      %2482 = vmatprep.mubr.bf16.mxu0 0
      %2483 = vmatmul.mubr.bf16.gmra.mrb[0].mxu0 %v1489
      %v2484 = vpop.f32.mrb[0].mxu0
      %v2485 = vadd.f32 %v487, %v2484
      %v2486 = vpop.f32.mrb[0].mxu0
      %v2487 = vpop.f32.mrb[0].mxu0
      %v2488 = vadd.f32 %v487, %v2487
      %v2489 = vpop.f32.mrb[0].mxu0
      %2490 = vmatprep.mubr.bf16.mxu0 0
      %2491 = vmatmul.mubr.bf16.gmra.mrb[0].mxu0 %v1492
      %v2492 = vpop.f32.mrb[0].mxu0
      %v2493 = vadd.f32 %v487, %v2492
      %v2494 = vpop.f32.mrb[0].mxu0
      %v2495 = vpop.f32.mrb[0].mxu0
      %v2496 = vadd.f32 %v487, %v2495
      %v2497 = vpop.f32.mrb[0].mxu0
      %2498 = vmatprep.mubr.bf16.mxu0 0
      %2499 = vmatmul.mubr.bf16.gmra.mrb[0].mxu0 %v1495
      %v2500 = vpop.f32.mrb[0].mxu0
      %v2501 = vadd.f32 %v487, %v2500
      %v2502 = vpop.f32.mrb[0].mxu0
      %v2503 = vpop.f32.mrb[0].mxu0
      %v2504 = vadd.f32 %v487, %v2503
      %v2505 = vpop.f32.mrb[0].mxu0
      %2506 = vmatprep.mubr.bf16.mxu0 0
      %2507 = vmatmul.mubr.bf16.gmra.mrb[0].mxu0 %v1498
      %v2508 = vpop.f32.mrb[0].mxu0
      %v2509 = vadd.f32 %v487, %v2508
      %v2510 = vpop.f32.mrb[0].mxu0
      %v2511 = vpop.f32.mrb[0].mxu0
      %v2512 = vadd.f32 %v487, %v2511
      %v2513 = vpop.f32.mrb[0].mxu0
      %2514 = vmatprep.mubr.bf16.mxu0 0
      %2515 = vmatmul.mubr.bf16.gmra.mrb[0].mxu0 %v1501
      %v2516 = vpop.f32.mrb[0].mxu0
      %v2517 = vadd.f32 %v487, %v2516
      %v2518 = vpop.f32.mrb[0].mxu0
      %v2519 = vpop.f32.mrb[0].mxu0
      %v2520 = vadd.f32 %v487, %v2519
      %v2521 = vpop.f32.mrb[0].mxu0
      %2522 = vmatprep.mubr.bf16.mxu0 0
      %2523 = vmatmul.mubr.bf16.gmra.mrb[0].mxu0 %v1504
      %v2524 = vpop.f32.mrb[0].mxu0
      %v2525 = vadd.f32 %v487, %v2524
      %v2526 = vpop.f32.mrb[0].mxu0
      %v2527 = vpop.f32.mrb[0].mxu0
      %v2528 = vadd.f32 %v487, %v2527
      %v2529 = vpop.f32.mrb[0].mxu0
      %2530 = vdwg.mxu0
      %v2531 = vmax.f32 %v1541, 0.0
      %v2532 = vmax.f32 %v1544, 0.0
      %v2533 = vmax.f32 %v1549, 0.0
      %v2534 = vmax.f32 %v1552, 0.0
      %v2535 = vmax.f32 %v1557, 0.0
      %v2536 = vmax.f32 %v1560, 0.0
      %v2537 = vmax.f32 %v1565, 0.0
      %v2538 = vmax.f32 %v1568, 0.0
      %v2539 = vmax.f32 %v1573, 0.0
      %v2540 = vmax.f32 %v1576, 0.0
      %v2541 = vmax.f32 %v1581, 0.0
      %v2542 = vmax.f32 %v1584, 0.0
      %v2543 = vmax.f32 %v1589, 0.0
      %v2544 = vmax.f32 %v1592, 0.0
      %v2545 = vmax.f32 %v1597, 0.0
      %v2546 = vmax.f32 %v1600, 0.0
      %v2547 = vmax.f32 %v1605, 0.0
      %v2548 = vmax.f32 %v1608, 0.0
      %v2549 = vmax.f32 %v1613, 0.0
      %v2550 = vmax.f32 %v1616, 0.0
      %v2551 = vmax.f32 %v1621, 0.0
      %v2552 = vmax.f32 %v1624, 0.0
      %v2553 = vmax.f32 %v1629, 0.0
      %v2554 = vmax.f32 %v1632, 0.0
      %v2555 = vmax.f32 %v1637, 0.0
      %v2556 = vmax.f32 %v1640, 0.0
      %v2557 = vmax.f32 %v1645, 0.0
      %v2558 = vmax.f32 %v1648, 0.0
      %v2559 = vmax.f32 %v1653, 0.0
      %v2560 = vmax.f32 %v1656, 0.0
      %v2561 = vmax.f32 %v1661, 0.0
      %v2562 = vmax.f32 %v1664, 0.0
      %v2563 = vmax.f32 %v1669, 0.0
      %v2564 = vmax.f32 %v1672, 0.0
      %v2565 = vmax.f32 %v1677, 0.0
      %v2566 = vmax.f32 %v1680, 0.0
      %v2567 = vmax.f32 %v1685, 0.0
      %v2568 = vmax.f32 %v1688, 0.0
      %v2569 = vmax.f32 %v1693, 0.0
      %v2570 = vmax.f32 %v1696, 0.0
      %v2571 = vmax.f32 %v1701, 0.0
      %v2572 = vmax.f32 %v1704, 0.0
      %v2573 = vmax.f32 %v1709, 0.0
      %v2574 = vmax.f32 %v1712, 0.0
      %v2575 = vmax.f32 %v1717, 0.0
      %v2576 = vmax.f32 %v1720, 0.0
      %v2577 = vmax.f32 %v1725, 0.0
      %v2578 = vmax.f32 %v1728, 0.0
      %v2579 = vmax.f32 %v1733, 0.0
      %v2580 = vmax.f32 %v1736, 0.0
      %v2581 = vmax.f32 %v1741, 0.0
      %v2582 = vmax.f32 %v1744, 0.0
      %v2583 = vmax.f32 %v1749, 0.0
      %v2584 = vmax.f32 %v1752, 0.0
      %v2585 = vmax.f32 %v1757, 0.0
      %v2586 = vmax.f32 %v1760, 0.0
      %v2587 = vmax.f32 %v1765, 0.0
      %v2588 = vmax.f32 %v1768, 0.0
      %v2589 = vmax.f32 %v1773, 0.0
      %v2590 = vmax.f32 %v1776, 0.0
      %v2591 = vmax.f32 %v1781, 0.0
      %v2592 = vmax.f32 %v1784, 0.0
      %v2593 = vmax.f32 %v1789, 0.0
      %v2594 = vmax.f32 %v1792, 0.0
      %v2595 = vmax.f32 %v1797, 0.0
      %v2596 = vmax.f32 %v1800, 0.0
      %v2597 = vmax.f32 %v1805, 0.0
      %v2598 = vmax.f32 %v1808, 0.0
      %v2599 = vmax.f32 %v1813, 0.0
      %v2600 = vmax.f32 %v1816, 0.0
      %v2601 = vmax.f32 %v1821, 0.0
      %v2602 = vmax.f32 %v1824, 0.0
      %v2603 = vmax.f32 %v1829, 0.0
      %v2604 = vmax.f32 %v1832, 0.0
      %v2605 = vmax.f32 %v1837, 0.0
      %v2606 = vmax.f32 %v1840, 0.0
      %v2607 = vmax.f32 %v1845, 0.0
      %v2608 = vmax.f32 %v1848, 0.0
      %v2609 = vmax.f32 %v1853, 0.0
      %v2610 = vmax.f32 %v1856, 0.0
      %v2611 = vmax.f32 %v1861, 0.0
      %v2612 = vmax.f32 %v1864, 0.0
      %v2613 = vmax.f32 %v1869, 0.0
      %v2614 = vmax.f32 %v1872, 0.0
      %v2615 = vmax.f32 %v1877, 0.0
      %v2616 = vmax.f32 %v1880, 0.0
      %v2617 = vmax.f32 %v1885, 0.0
      %v2618 = vmax.f32 %v1888, 0.0
      %v2619 = vmax.f32 %v1893, 0.0
      %v2620 = vmax.f32 %v1896, 0.0
      %v2621 = vmax.f32 %v1901, 0.0
      %v2622 = vmax.f32 %v1904, 0.0
      %v2623 = vmax.f32 %v1909, 0.0
      %v2624 = vmax.f32 %v1912, 0.0
      %v2625 = vmax.f32 %v1917, 0.0
      %v2626 = vmax.f32 %v1920, 0.0
      %v2627 = vmax.f32 %v1925, 0.0
      %v2628 = vmax.f32 %v1928, 0.0
      %v2629 = vmax.f32 %v1933, 0.0
      %v2630 = vmax.f32 %v1936, 0.0
      %v2631 = vmax.f32 %v1941, 0.0
      %v2632 = vmax.f32 %v1944, 0.0
      %v2633 = vmax.f32 %v1949, 0.0
      %v2634 = vmax.f32 %v1952, 0.0
      %v2635 = vmax.f32 %v1957, 0.0
      %v2636 = vmax.f32 %v1960, 0.0
      %v2637 = vmax.f32 %v1965, 0.0
      %v2638 = vmax.f32 %v1968, 0.0
      %v2639 = vmax.f32 %v1973, 0.0
      %v2640 = vmax.f32 %v1976, 0.0
      %v2641 = vmax.f32 %v1981, 0.0
      %v2642 = vmax.f32 %v1984, 0.0
      %v2643 = vmax.f32 %v1989, 0.0
      %v2644 = vmax.f32 %v1992, 0.0
      %v2645 = vmax.f32 %v1997, 0.0
      %v2646 = vmax.f32 %v2000, 0.0
      %v2647 = vmax.f32 %v2005, 0.0
      %v2648 = vmax.f32 %v2008, 0.0
      %v2649 = vmax.f32 %v2013, 0.0
      %v2650 = vmax.f32 %v2016, 0.0
      %v2651 = vmax.f32 %v2021, 0.0
      %v2652 = vmax.f32 %v2024, 0.0
      %v2653 = vmax.f32 %v2029, 0.0
      %v2654 = vmax.f32 %v2032, 0.0
      %v2655 = vmax.f32 %v2037, 0.0
      %v2656 = vmax.f32 %v2040, 0.0
      %v2657 = vmax.f32 %v2045, 0.0
      %v2658 = vmax.f32 %v2048, 0.0
      %v2659 = vmax.f32 %v2053, 0.0
      %v2660 = vmax.f32 %v2056, 0.0
      %v2661 = vmax.f32 %v2061, 0.0
      %v2662 = vmax.f32 %v2064, 0.0
      %v2663 = vmax.f32 %v2069, 0.0
      %v2664 = vmax.f32 %v2072, 0.0
      %v2665 = vmax.f32 %v2077, 0.0
      %v2666 = vmax.f32 %v2080, 0.0
      %v2667 = vmax.f32 %v2085, 0.0
      %v2668 = vmax.f32 %v2088, 0.0
      %v2669 = vmax.f32 %v2093, 0.0
      %v2670 = vmax.f32 %v2096, 0.0
      %v2671 = vmax.f32 %v2101, 0.0
      %v2672 = vmax.f32 %v2104, 0.0
      %v2673 = vmax.f32 %v2109, 0.0
      %v2674 = vmax.f32 %v2112, 0.0
      %v2675 = vmax.f32 %v2117, 0.0
      %v2676 = vmax.f32 %v2120, 0.0
      %v2677 = vmax.f32 %v2125, 0.0
      %v2678 = vmax.f32 %v2128, 0.0
      %v2679 = vmax.f32 %v2133, 0.0
      %v2680 = vmax.f32 %v2136, 0.0
      %v2681 = vmax.f32 %v2141, 0.0
      %v2682 = vmax.f32 %v2144, 0.0
      %v2683 = vmax.f32 %v2149, 0.0
      %v2684 = vmax.f32 %v2152, 0.0
      %v2685 = vmax.f32 %v2157, 0.0
      %v2686 = vmax.f32 %v2160, 0.0
      %v2687 = vmax.f32 %v2165, 0.0
      %v2688 = vmax.f32 %v2168, 0.0
      %v2689 = vmax.f32 %v2173, 0.0
      %v2690 = vmax.f32 %v2176, 0.0
      %v2691 = vmax.f32 %v2181, 0.0
      %v2692 = vmax.f32 %v2184, 0.0
      %v2693 = vmax.f32 %v2189, 0.0
      %v2694 = vmax.f32 %v2192, 0.0
      %v2695 = vmax.f32 %v2197, 0.0
      %v2696 = vmax.f32 %v2200, 0.0
      %v2697 = vmax.f32 %v2205, 0.0
      %v2698 = vmax.f32 %v2208, 0.0
      %v2699 = vmax.f32 %v2213, 0.0
      %v2700 = vmax.f32 %v2216, 0.0
      %v2701 = vmax.f32 %v2221, 0.0
      %v2702 = vmax.f32 %v2224, 0.0
      %v2703 = vmax.f32 %v2229, 0.0
      %v2704 = vmax.f32 %v2232, 0.0
      %v2705 = vmax.f32 %v2237, 0.0
      %v2706 = vmax.f32 %v2240, 0.0
      %v2707 = vmax.f32 %v2245, 0.0
      %v2708 = vmax.f32 %v2248, 0.0
      %v2709 = vmax.f32 %v2253, 0.0
      %v2710 = vmax.f32 %v2256, 0.0
      %v2711 = vmax.f32 %v2261, 0.0
      %v2712 = vmax.f32 %v2264, 0.0
      %v2713 = vmax.f32 %v2269, 0.0
      %v2714 = vmax.f32 %v2272, 0.0
      %v2715 = vmax.f32 %v2277, 0.0
      %v2716 = vmax.f32 %v2280, 0.0
      %v2717 = vmax.f32 %v2285, 0.0
      %v2718 = vmax.f32 %v2288, 0.0
      %v2719 = vmax.f32 %v2293, 0.0
      %v2720 = vmax.f32 %v2296, 0.0
      %v2721 = vmax.f32 %v2301, 0.0
      %v2722 = vmax.f32 %v2304, 0.0
      %v2723 = vmax.f32 %v2309, 0.0
      %v2724 = vmax.f32 %v2312, 0.0
      %v2725 = vmax.f32 %v2317, 0.0
      %v2726 = vmax.f32 %v2320, 0.0
      %v2727 = vmax.f32 %v2325, 0.0
      %v2728 = vmax.f32 %v2328, 0.0
      %v2729 = vmax.f32 %v2333, 0.0
      %v2730 = vmax.f32 %v2336, 0.0
      %v2731 = vmax.f32 %v2341, 0.0
      %v2732 = vmax.f32 %v2344, 0.0
      %v2733 = vmax.f32 %v2349, 0.0
      %v2734 = vmax.f32 %v2352, 0.0
      %v2735 = vmax.f32 %v2357, 0.0
      %v2736 = vmax.f32 %v2360, 0.0
      %v2737 = vmax.f32 %v2365, 0.0
      %v2738 = vmax.f32 %v2368, 0.0
      %v2739 = vmax.f32 %v2373, 0.0
      %v2740 = vmax.f32 %v2376, 0.0
      %v2741 = vmax.f32 %v2381, 0.0
      %v2742 = vmax.f32 %v2384, 0.0
      %v2743 = vmax.f32 %v2389, 0.0
      %v2744 = vmax.f32 %v2392, 0.0
      %v2745 = vmax.f32 %v2397, 0.0
      %v2746 = vmax.f32 %v2400, 0.0
      %v2747 = vmax.f32 %v2405, 0.0
      %v2748 = vmax.f32 %v2408, 0.0
      %v2749 = vmax.f32 %v2413, 0.0
      %v2750 = vmax.f32 %v2416, 0.0
      %v2751 = vmax.f32 %v2421, 0.0
      %v2752 = vmax.f32 %v2424, 0.0
      %v2753 = vmax.f32 %v2429, 0.0
      %v2754 = vmax.f32 %v2432, 0.0
      %v2755 = vmax.f32 %v2437, 0.0
      %v2756 = vmax.f32 %v2440, 0.0
      %v2757 = vmax.f32 %v2445, 0.0
      %v2758 = vmax.f32 %v2448, 0.0
      %v2759 = vmax.f32 %v2453, 0.0
      %v2760 = vmax.f32 %v2456, 0.0
      %v2761 = vmax.f32 %v2461, 0.0
      %v2762 = vmax.f32 %v2464, 0.0
      %v2763 = vmax.f32 %v2469, 0.0
      %v2764 = vmax.f32 %v2472, 0.0
      %v2765 = vmax.f32 %v2477, 0.0
      %v2766 = vmax.f32 %v2480, 0.0
      %v2767 = vmax.f32 %v2485, 0.0
      %v2768 = vmax.f32 %v2488, 0.0
      %v2769 = vmax.f32 %v2493, 0.0
      %v2770 = vmax.f32 %v2496, 0.0
      %v2771 = vmax.f32 %v2501, 0.0
      %v2772 = vmax.f32 %v2504, 0.0
      %v2773 = vmax.f32 %v2509, 0.0
      %v2774 = vmax.f32 %v2512, 0.0
      %v2775 = vmax.f32 %v2517, 0.0
      %v2776 = vmax.f32 %v2520, 0.0
      %v2777 = vmax.f32 %v2525, 0.0
      %v2778 = vmax.f32 %v2528, 0.0
      %v2779 = vpack.c.bf16 %v2532, %v2531
      %v2780 = vpack.c.bf16 %v2534, %v2533
      %v2781 = vpack.c.bf16 %v2536, %v2535
      %v2782 = vpack.c.bf16 %v2538, %v2537
      %v2783 = vpack.c.bf16 %v2540, %v2539
      %v2784 = vpack.c.bf16 %v2542, %v2541
      %v2785 = vpack.c.bf16 %v2544, %v2543
      %v2786 = vpack.c.bf16 %v2546, %v2545
      %v2787 = vpack.c.bf16 %v2548, %v2547
      %v2788 = vpack.c.bf16 %v2550, %v2549
      %v2789 = vpack.c.bf16 %v2552, %v2551
      %v2790 = vpack.c.bf16 %v2554, %v2553
      %v2791 = vpack.c.bf16 %v2556, %v2555
      %v2792 = vpack.c.bf16 %v2558, %v2557
      %v2793 = vpack.c.bf16 %v2560, %v2559
      %v2794 = vpack.c.bf16 %v2562, %v2561
      %v2795 = vpack.c.bf16 %v2564, %v2563
      %v2796 = vpack.c.bf16 %v2566, %v2565
      %v2797 = vpack.c.bf16 %v2568, %v2567
      %v2798 = vpack.c.bf16 %v2570, %v2569
      %v2799 = vpack.c.bf16 %v2572, %v2571
      %v2800 = vpack.c.bf16 %v2574, %v2573
      %v2801 = vpack.c.bf16 %v2576, %v2575
      %v2802 = vpack.c.bf16 %v2578, %v2577
      %v2803 = vpack.c.bf16 %v2580, %v2579
      %v2804 = vpack.c.bf16 %v2582, %v2581
      %v2805 = vpack.c.bf16 %v2584, %v2583
      %v2806 = vpack.c.bf16 %v2586, %v2585
      %v2807 = vpack.c.bf16 %v2588, %v2587
      %v2808 = vpack.c.bf16 %v2590, %v2589
      %v2809 = vpack.c.bf16 %v2592, %v2591
      %v2810 = vpack.c.bf16 %v2594, %v2593
      %v2811 = vpack.c.bf16 %v2596, %v2595
      %v2812 = vpack.c.bf16 %v2598, %v2597
      %v2813 = vpack.c.bf16 %v2600, %v2599
      %v2814 = vpack.c.bf16 %v2602, %v2601
      %v2815 = vpack.c.bf16 %v2604, %v2603
      %v2816 = vpack.c.bf16 %v2606, %v2605
      %v2817 = vpack.c.bf16 %v2608, %v2607
      %v2818 = vpack.c.bf16 %v2610, %v2609
      %v2819 = vpack.c.bf16 %v2612, %v2611
      %v2820 = vpack.c.bf16 %v2614, %v2613
      %v2821 = vpack.c.bf16 %v2616, %v2615
      %v2822 = vpack.c.bf16 %v2618, %v2617
      %v2823 = vpack.c.bf16 %v2620, %v2619
      %v2824 = vpack.c.bf16 %v2622, %v2621
      %v2825 = vpack.c.bf16 %v2624, %v2623
      %v2826 = vpack.c.bf16 %v2626, %v2625
      %v2827 = vpack.c.bf16 %v2628, %v2627
      %v2828 = vpack.c.bf16 %v2630, %v2629
      %v2829 = vpack.c.bf16 %v2632, %v2631
      %v2830 = vpack.c.bf16 %v2634, %v2633
      %v2831 = vpack.c.bf16 %v2636, %v2635
      %v2832 = vpack.c.bf16 %v2638, %v2637
      %v2833 = vpack.c.bf16 %v2640, %v2639
      %v2834 = vpack.c.bf16 %v2642, %v2641
      %v2835 = vpack.c.bf16 %v2644, %v2643
      %v2836 = vpack.c.bf16 %v2646, %v2645
      %v2837 = vpack.c.bf16 %v2648, %v2647
      %v2838 = vpack.c.bf16 %v2650, %v2649
      %v2839 = vpack.c.bf16 %v2652, %v2651
      %v2840 = vpack.c.bf16 %v2654, %v2653
      %v2841 = vpack.c.bf16 %v2656, %v2655
      %v2842 = vpack.c.bf16 %v2658, %v2657
      %v2843 = vpack.c.bf16 %v2660, %v2659
      %v2844 = vpack.c.bf16 %v2662, %v2661
      %v2845 = vpack.c.bf16 %v2664, %v2663
      %v2846 = vpack.c.bf16 %v2666, %v2665
      %v2847 = vpack.c.bf16 %v2668, %v2667
      %v2848 = vpack.c.bf16 %v2670, %v2669
      %v2849 = vpack.c.bf16 %v2672, %v2671
      %v2850 = vpack.c.bf16 %v2674, %v2673
      %v2851 = vpack.c.bf16 %v2676, %v2675
      %v2852 = vpack.c.bf16 %v2678, %v2677
      %v2853 = vpack.c.bf16 %v2680, %v2679
      %v2854 = vpack.c.bf16 %v2682, %v2681
      %v2855 = vpack.c.bf16 %v2684, %v2683
      %v2856 = vpack.c.bf16 %v2686, %v2685
      %v2857 = vpack.c.bf16 %v2688, %v2687
      %v2858 = vpack.c.bf16 %v2690, %v2689
      %v2859 = vpack.c.bf16 %v2692, %v2691
      %v2860 = vpack.c.bf16 %v2694, %v2693
      %v2861 = vpack.c.bf16 %v2696, %v2695
      %v2862 = vpack.c.bf16 %v2698, %v2697
      %v2863 = vpack.c.bf16 %v2700, %v2699
      %v2864 = vpack.c.bf16 %v2702, %v2701
      %v2865 = vpack.c.bf16 %v2704, %v2703
      %v2866 = vpack.c.bf16 %v2706, %v2705
      %v2867 = vpack.c.bf16 %v2708, %v2707
      %v2868 = vpack.c.bf16 %v2710, %v2709
      %v2869 = vpack.c.bf16 %v2712, %v2711
      %v2870 = vpack.c.bf16 %v2714, %v2713
      %v2871 = vpack.c.bf16 %v2716, %v2715
      %v2872 = vpack.c.bf16 %v2718, %v2717
      %v2873 = vpack.c.bf16 %v2720, %v2719
      %v2874 = vpack.c.bf16 %v2722, %v2721
      %v2875 = vpack.c.bf16 %v2724, %v2723
      %v2876 = vpack.c.bf16 %v2726, %v2725
      %v2877 = vpack.c.bf16 %v2728, %v2727
      %v2878 = vpack.c.bf16 %v2730, %v2729
      %v2879 = vpack.c.bf16 %v2732, %v2731
      %v2880 = vpack.c.bf16 %v2734, %v2733
      %v2881 = vpack.c.bf16 %v2736, %v2735
      %v2882 = vpack.c.bf16 %v2738, %v2737
      %v2883 = vpack.c.bf16 %v2740, %v2739
      %v2884 = vpack.c.bf16 %v2742, %v2741
      %v2885 = vpack.c.bf16 %v2744, %v2743
      %v2886 = vpack.c.bf16 %v2746, %v2745
      %v2887 = vpack.c.bf16 %v2748, %v2747
      %v2888 = vpack.c.bf16 %v2750, %v2749
      %v2889 = vpack.c.bf16 %v2752, %v2751
      %v2890 = vpack.c.bf16 %v2754, %v2753
      %v2891 = vpack.c.bf16 %v2756, %v2755
      %v2892 = vpack.c.bf16 %v2758, %v2757
      %v2893 = vpack.c.bf16 %v2760, %v2759
      %v2894 = vpack.c.bf16 %v2762, %v2761
      %v2895 = vpack.c.bf16 %v2764, %v2763
      %v2896 = vpack.c.bf16 %v2766, %v2765
      %v2897 = vpack.c.bf16 %v2768, %v2767
      %v2898 = vpack.c.bf16 %v2770, %v2769
      %v2899 = vpack.c.bf16 %v2772, %v2771
      %v2900 = vpack.c.bf16 %v2774, %v2773
      %v2901 = vpack.c.bf16 %v2776, %v2775
      %v2902 = vpack.c.bf16 %v2778, %v2777
      %v2903 = vld [vmem:[%s3] sm:$0xf]
      %v2904 = vld [vmem:[%s3 + $0x4] sm:$0xf]
      %v2905 = vld [vmem:[%s3 + $0x8] sm:$0xf]
      %v2906 = vld [vmem:[%s3 + $0xc] sm:$0xf]
      %v2907 = vld [vmem:[%s3 + $0x10] sm:$0xf]
      %v2908 = vld [vmem:[%s3 + $0x14] sm:$0xf]
      %v2909 = vld [vmem:[%s3 + $0x18] sm:$0xf]
      %v2910 = vld [vmem:[%s3 + $0x1c] sm:$0xf]
      %v2911 = vld [vmem:[%s3 + $0x20] sm:$0xf]
      %v2912 = vld [vmem:[%s3 + $0x24] sm:$0xf]
      %v2913 = vld [vmem:[%s3 + $0x28] sm:$0xf]
      %v2914 = vld [vmem:[%s3 + $0x2c] sm:$0xf]
      %v2915 = vld [vmem:[%s3 + $0x30] sm:$0xf]
      %v2916 = vld [vmem:[%s3 + $0x34] sm:$0xf]
      %v2917 = vld [vmem:[%s3 + $0x38] sm:$0xf]
      %v2918 = vld [vmem:[%s3 + $0x3c] sm:$0xf]
      %v2919 = vld [vmem:[%s3 + $0x40] sm:$0xf]
      %v2920 = vld [vmem:[%s3 + $0x44] sm:$0xf]
      %v2921 = vld [vmem:[%s3 + $0x48] sm:$0xf]
      %v2922 = vld [vmem:[%s3 + $0x4c] sm:$0xf]
      %v2923 = vld [vmem:[%s3 + $0x50] sm:$0xf]
      %v2924 = vld [vmem:[%s3 + $0x54] sm:$0xf]
      %v2925 = vld [vmem:[%s3 + $0x58] sm:$0xf]
      %v2926 = vld [vmem:[%s3 + $0x5c] sm:$0xf]
      %v2927 = vld [vmem:[%s3 + $0x60] sm:$0xf]
      %v2928 = vld [vmem:[%s3 + $0x64] sm:$0xf]
      %v2929 = vld [vmem:[%s3 + $0x68] sm:$0xf]
      %v2930 = vld [vmem:[%s3 + $0x6c] sm:$0xf]
      %v2931 = vld [vmem:[%s3 + $0x70] sm:$0xf]
      %v2932 = vld [vmem:[%s3 + $0x74] sm:$0xf]
      %v2933 = vld [vmem:[%s3 + $0x78] sm:$0xf]
      %v2934 = vld [vmem:[%s3 + $0x7c] sm:$0xf]
      %v2935 = vld [vmem:[%s3 + $0x80] sm:$0xf]
      %v2936 = vld [vmem:[%s3 + $0x84] sm:$0xf]
      %v2937 = vld [vmem:[%s3 + $0x88] sm:$0xf]
      %v2938 = vld [vmem:[%s3 + $0x8c] sm:$0xf]
      %v2939 = vld [vmem:[%s3 + $0x90] sm:$0xf]
      %v2940 = vld [vmem:[%s3 + $0x94] sm:$0xf]
      %v2941 = vld [vmem:[%s3 + $0x98] sm:$0xf]
      %v2942 = vld [vmem:[%s3 + $0x9c] sm:$0xf]
      %v2943 = vld [vmem:[%s3 + $0xa0] sm:$0xf]
      %v2944 = vld [vmem:[%s3 + $0xa4] sm:$0xf]
      %v2945 = vld [vmem:[%s3 + $0xa8] sm:$0xf]
      %v2946 = vld [vmem:[%s3 + $0xac] sm:$0xf]
      %v2947 = vld [vmem:[%s3 + $0xb0] sm:$0xf]
      %v2948 = vld [vmem:[%s3 + $0xb4] sm:$0xf]
      %v2949 = vld [vmem:[%s3 + $0xb8] sm:$0xf]
      %v2950 = vld [vmem:[%s3 + $0xbc] sm:$0xf]
      %v2951 = vld [vmem:[%s3 + $0xc0] sm:$0xf]
      %v2952 = vld [vmem:[%s3 + $0xc4] sm:$0xf]
      %v2953 = vld [vmem:[%s3 + $0xc8] sm:$0xf]
      %v2954 = vld [vmem:[%s3 + $0xcc] sm:$0xf]
      %v2955 = vld [vmem:[%s3 + $0xd0] sm:$0xf]
      %v2956 = vld [vmem:[%s3 + $0xd4] sm:$0xf]
      %v2957 = vld [vmem:[%s3 + $0xd8] sm:$0xf]
      %v2958 = vld [vmem:[%s3 + $0xdc] sm:$0xf]
      %v2959 = vld [vmem:[%s3 + $0xe0] sm:$0xf]
      %v2960 = vld [vmem:[%s3 + $0xe4] sm:$0xf]
      %v2961 = vld [vmem:[%s3 + $0xe8] sm:$0xf]
      %v2962 = vld [vmem:[%s3 + $0xec] sm:$0xf]
      %v2963 = vld [vmem:[%s3 + $0xf0] sm:$0xf]
      %v2964 = vld [vmem:[%s3 + $0xf4] sm:$0xf]
      %v2965 = vld [vmem:[%s3 + $0xf8] sm:$0xf]
      %v2966 = vld [vmem:[%s3 + $0xfc] sm:$0xf]
      %v2967 = vld [vmem:[%s3 + $0x100] sm:$0xf]
      %v2968 = vld [vmem:[%s3 + $0x104] sm:$0xf]
      %v2969 = vld [vmem:[%s3 + $0x108] sm:$0xf]
      %v2970 = vld [vmem:[%s3 + $0x10c] sm:$0xf]
      %v2971 = vld [vmem:[%s3 + $0x110] sm:$0xf]
      %v2972 = vld [vmem:[%s3 + $0x114] sm:$0xf]
      %v2973 = vld [vmem:[%s3 + $0x118] sm:$0xf]
      %v2974 = vld [vmem:[%s3 + $0x11c] sm:$0xf]
      %v2975 = vld [vmem:[%s3 + $0x120] sm:$0xf]
      %v2976 = vld [vmem:[%s3 + $0x124] sm:$0xf]
      %v2977 = vld [vmem:[%s3 + $0x128] sm:$0xf]
      %v2978 = vld [vmem:[%s3 + $0x12c] sm:$0xf]
      %v2979 = vld [vmem:[%s3 + $0x130] sm:$0xf]
      %v2980 = vld [vmem:[%s3 + $0x134] sm:$0xf]
      %v2981 = vld [vmem:[%s3 + $0x138] sm:$0xf]
      %v2982 = vld [vmem:[%s3 + $0x13c] sm:$0xf]
      %v2983 = vld [vmem:[%s3 + $0x140] sm:$0xf]
      %v2984 = vld [vmem:[%s3 + $0x144] sm:$0xf]
      %v2985 = vld [vmem:[%s3 + $0x148] sm:$0xf]
      %v2986 = vld [vmem:[%s3 + $0x14c] sm:$0xf]
      %v2987 = vld [vmem:[%s3 + $0x150] sm:$0xf]
      %v2988 = vld [vmem:[%s3 + $0x154] sm:$0xf]
      %v2989 = vld [vmem:[%s3 + $0x158] sm:$0xf]
      %v2990 = vld [vmem:[%s3 + $0x15c] sm:$0xf]
      %v2991 = vld [vmem:[%s3 + $0x160] sm:$0xf]
      %v2992 = vld [vmem:[%s3 + $0x164] sm:$0xf]
      %v2993 = vld [vmem:[%s3 + $0x168] sm:$0xf]
      %v2994 = vld [vmem:[%s3 + $0x16c] sm:$0xf]
      %v2995 = vld [vmem:[%s3 + $0x170] sm:$0xf]
      %v2996 = vld [vmem:[%s3 + $0x174] sm:$0xf]
      %v2997 = vld [vmem:[%s3 + $0x178] sm:$0xf]
      %v2998 = vld [vmem:[%s3 + $0x17c] sm:$0xf]
      %v2999 = vld [vmem:[%s3 + $0x180] sm:$0xf]
      %v3000 = vld [vmem:[%s3 + $0x184] sm:$0xf]
      %v3001 = vld [vmem:[%s3 + $0x188] sm:$0xf]
      %v3002 = vld [vmem:[%s3 + $0x18c] sm:$0xf]
      %v3003 = vld [vmem:[%s3 + $0x190] sm:$0xf]
      %v3004 = vld [vmem:[%s3 + $0x194] sm:$0xf]
      %v3005 = vld [vmem:[%s3 + $0x198] sm:$0xf]
      %v3006 = vld [vmem:[%s3 + $0x19c] sm:$0xf]
      %v3007 = vld [vmem:[%s3 + $0x1a0] sm:$0xf]
      %v3008 = vld [vmem:[%s3 + $0x1a4] sm:$0xf]
      %v3009 = vld [vmem:[%s3 + $0x1a8] sm:$0xf]
      %v3010 = vld [vmem:[%s3 + $0x1ac] sm:$0xf]
      %v3011 = vld [vmem:[%s3 + $0x1b0] sm:$0xf]
      %v3012 = vld [vmem:[%s3 + $0x1b4] sm:$0xf]
      %v3013 = vld [vmem:[%s3 + $0x1b8] sm:$0xf]
      %v3014 = vld [vmem:[%s3 + $0x1bc] sm:$0xf]
      %v3015 = vld [vmem:[%s3 + $0x1c0] sm:$0xf]
      %v3016 = vld [vmem:[%s3 + $0x1c4] sm:$0xf]
      %v3017 = vld [vmem:[%s3 + $0x1c8] sm:$0xf]
      %v3018 = vld [vmem:[%s3 + $0x1cc] sm:$0xf]
      %v3019 = vld [vmem:[%s3 + $0x1d0] sm:$0xf]
      %v3020 = vld [vmem:[%s3 + $0x1d4] sm:$0xf]
      %v3021 = vld [vmem:[%s3 + $0x1d8] sm:$0xf]
      %v3022 = vld [vmem:[%s3 + $0x1dc] sm:$0xf]
      %v3023 = vld [vmem:[%s3 + $0x1e0] sm:$0xf]
      %v3024 = vld [vmem:[%s3 + $0x1e4] sm:$0xf]
      %v3025 = vld [vmem:[%s3 + $0x1e8] sm:$0xf]
      %v3026 = vld [vmem:[%s3 + $0x1ec] sm:$0xf]
      %v3027 = vld [vmem:[%s3 + $0x1f0] sm:$0xf]
      %v3028 = vld [vmem:[%s3 + $0x1f4] sm:$0xf]
      %v3029 = vld [vmem:[%s3 + $0x1f8] sm:$0xf]
      %v3030 = vld [vmem:[%s3 + $0x1fc] sm:$0xf]
      %v3031 = vld [vmem:[%s3 + $0x200] sm:$0xf]
      %v3032 = vld [vmem:[%s3 + $0x204] sm:$0xf]
      %v3033 = vld [vmem:[%s3 + $0x208] sm:$0xf]
      %v3034 = vld [vmem:[%s3 + $0x20c] sm:$0xf]
      %v3035 = vld [vmem:[%s3 + $0x210] sm:$0xf]
      %v3036 = vld [vmem:[%s3 + $0x214] sm:$0xf]
      %v3037 = vld [vmem:[%s3 + $0x218] sm:$0xf]
      %v3038 = vld [vmem:[%s3 + $0x21c] sm:$0xf]
      %v3039 = vld [vmem:[%s3 + $0x220] sm:$0xf]
      %v3040 = vld [vmem:[%s3 + $0x224] sm:$0xf]
      %v3041 = vld [vmem:[%s3 + $0x228] sm:$0xf]
      %v3042 = vld [vmem:[%s3 + $0x22c] sm:$0xf]
      %v3043 = vld [vmem:[%s3 + $0x230] sm:$0xf]
      %v3044 = vld [vmem:[%s3 + $0x234] sm:$0xf]
      %v3045 = vld [vmem:[%s3 + $0x238] sm:$0xf]
      %v3046 = vld [vmem:[%s3 + $0x23c] sm:$0xf]
      %v3047 = vld [vmem:[%s3 + $0x240] sm:$0xf]
      %v3048 = vld [vmem:[%s3 + $0x244] sm:$0xf]
      %v3049 = vld [vmem:[%s3 + $0x248] sm:$0xf]
      %v3050 = vld [vmem:[%s3 + $0x24c] sm:$0xf]
      %v3051 = vld [vmem:[%s3 + $0x250] sm:$0xf]
      %v3052 = vld [vmem:[%s3 + $0x254] sm:$0xf]
      %v3053 = vld [vmem:[%s3 + $0x258] sm:$0xf]
      %v3054 = vld [vmem:[%s3 + $0x25c] sm:$0xf]
      %v3055 = vld [vmem:[%s3 + $0x260] sm:$0xf]
      %v3056 = vld [vmem:[%s3 + $0x264] sm:$0xf]
      %v3057 = vld [vmem:[%s3 + $0x268] sm:$0xf]
      %v3058 = vld [vmem:[%s3 + $0x26c] sm:$0xf]
      %v3059 = vld [vmem:[%s3 + $0x270] sm:$0xf]
      %v3060 = vld [vmem:[%s3 + $0x274] sm:$0xf]
      %v3061 = vld [vmem:[%s3 + $0x278] sm:$0xf]
      %v3062 = vld [vmem:[%s3 + $0x27c] sm:$0xf]
      %v3063 = vld [vmem:[%s3 + $0x280] sm:$0xf]
      %v3064 = vld [vmem:[%s3 + $0x284] sm:$0xf]
      %v3065 = vld [vmem:[%s3 + $0x288] sm:$0xf]
      %v3066 = vld [vmem:[%s3 + $0x28c] sm:$0xf]
      %v3067 = vld [vmem:[%s3 + $0x290] sm:$0xf]
      %v3068 = vld [vmem:[%s3 + $0x294] sm:$0xf]
      %v3069 = vld [vmem:[%s3 + $0x298] sm:$0xf]
      %v3070 = vld [vmem:[%s3 + $0x29c] sm:$0xf]
      %v3071 = vld [vmem:[%s3 + $0x2a0] sm:$0xf]
      %v3072 = vld [vmem:[%s3 + $0x2a4] sm:$0xf]
      %v3073 = vld [vmem:[%s3 + $0x2a8] sm:$0xf]
      %v3074 = vld [vmem:[%s3 + $0x2ac] sm:$0xf]
      %v3075 = vld [vmem:[%s3 + $0x2b0] sm:$0xf]
      %v3076 = vld [vmem:[%s3 + $0x2b4] sm:$0xf]
      %v3077 = vld [vmem:[%s3 + $0x2b8] sm:$0xf]
      %v3078 = vld [vmem:[%s3 + $0x2bc] sm:$0xf]
      %v3079 = vld [vmem:[%s3 + $0x2c0] sm:$0xf]
      %v3080 = vld [vmem:[%s3 + $0x2c4] sm:$0xf]
      %v3081 = vld [vmem:[%s3 + $0x2c8] sm:$0xf]
      %v3082 = vld [vmem:[%s3 + $0x2cc] sm:$0xf]
      %v3083 = vld [vmem:[%s3 + $0x2d0] sm:$0xf]
      %v3084 = vld [vmem:[%s3 + $0x2d4] sm:$0xf]
      %v3085 = vld [vmem:[%s3 + $0x2d8] sm:$0xf]
      %v3086 = vld [vmem:[%s3 + $0x2dc] sm:$0xf]
      %v3087 = vld [vmem:[%s3 + $0x2e0] sm:$0xf]
      %v3088 = vld [vmem:[%s3 + $0x2e4] sm:$0xf]
      %v3089 = vld [vmem:[%s3 + $0x2e8] sm:$0xf]
      %v3090 = vld [vmem:[%s3 + $0x2ec] sm:$0xf]
      %v3091 = vld [vmem:[%s3 + $0x2f0] sm:$0xf]
      %v3092 = vld [vmem:[%s3 + $0x2f4] sm:$0xf]
      %v3093 = vld [vmem:[%s3 + $0x2f8] sm:$0xf]
      %v3094 = vld [vmem:[%s3 + $0x2fc] sm:$0xf]
      %v3095 = vld [vmem:[%s3 + $0x300] sm:$0xf]
      %v3096 = vld [vmem:[%s3 + $0x304] sm:$0xf]
      %v3097 = vld [vmem:[%s3 + $0x308] sm:$0xf]
      %v3098 = vld [vmem:[%s3 + $0x30c] sm:$0xf]
      %v3099 = vld [vmem:[%s3 + $0x310] sm:$0xf]
      %v3100 = vld [vmem:[%s3 + $0x314] sm:$0xf]
      %v3101 = vld [vmem:[%s3 + $0x318] sm:$0xf]
      %v3102 = vld [vmem:[%s3 + $0x31c] sm:$0xf]
      %v3103 = vld [vmem:[%s3 + $0x320] sm:$0xf]
      %v3104 = vld [vmem:[%s3 + $0x324] sm:$0xf]
      %v3105 = vld [vmem:[%s3 + $0x328] sm:$0xf]
      %v3106 = vld [vmem:[%s3 + $0x32c] sm:$0xf]
      %v3107 = vld [vmem:[%s3 + $0x330] sm:$0xf]
      %v3108 = vld [vmem:[%s3 + $0x334] sm:$0xf]
      %v3109 = vld [vmem:[%s3 + $0x338] sm:$0xf]
      %v3110 = vld [vmem:[%s3 + $0x33c] sm:$0xf]
      %v3111 = vld [vmem:[%s3 + $0x340] sm:$0xf]
      %v3112 = vld [vmem:[%s3 + $0x344] sm:$0xf]
      %v3113 = vld [vmem:[%s3 + $0x348] sm:$0xf]
      %v3114 = vld [vmem:[%s3 + $0x34c] sm:$0xf]
      %v3115 = vld [vmem:[%s3 + $0x350] sm:$0xf]
      %v3116 = vld [vmem:[%s3 + $0x354] sm:$0xf]
      %v3117 = vld [vmem:[%s3 + $0x358] sm:$0xf]
      %v3118 = vld [vmem:[%s3 + $0x35c] sm:$0xf]
      %v3119 = vld [vmem:[%s3 + $0x360] sm:$0xf]
      %v3120 = vld [vmem:[%s3 + $0x364] sm:$0xf]
      %v3121 = vld [vmem:[%s3 + $0x368] sm:$0xf]
      %v3122 = vld [vmem:[%s3 + $0x36c] sm:$0xf]
      %v3123 = vld [vmem:[%s3 + $0x370] sm:$0xf]
      %v3124 = vld [vmem:[%s3 + $0x374] sm:$0xf]
      %v3125 = vld [vmem:[%s3 + $0x378] sm:$0xf]
      %v3126 = vld [vmem:[%s3 + $0x37c] sm:$0xf]
      %v3127 = vld [vmem:[%s3 + $0x380] sm:$0xf]
      %v3128 = vld [vmem:[%s3 + $0x384] sm:$0xf]
      %v3129 = vld [vmem:[%s3 + $0x388] sm:$0xf]
      %v3130 = vld [vmem:[%s3 + $0x38c] sm:$0xf]
      %v3131 = vld [vmem:[%s3 + $0x390] sm:$0xf]
      %v3132 = vld [vmem:[%s3 + $0x394] sm:$0xf]
      %v3133 = vld [vmem:[%s3 + $0x398] sm:$0xf]
      %v3134 = vld [vmem:[%s3 + $0x39c] sm:$0xf]
      %v3135 = vld [vmem:[%s3 + $0x3a0] sm:$0xf]
      %v3136 = vld [vmem:[%s3 + $0x3a4] sm:$0xf]
      %v3137 = vld [vmem:[%s3 + $0x3a8] sm:$0xf]
      %v3138 = vld [vmem:[%s3 + $0x3ac] sm:$0xf]
      %v3139 = vld [vmem:[%s3 + $0x3b0] sm:$0xf]
      %v3140 = vld [vmem:[%s3 + $0x3b4] sm:$0xf]
      %v3141 = vld [vmem:[%s3 + $0x3b8] sm:$0xf]
      %v3142 = vld [vmem:[%s3 + $0x3bc] sm:$0xf]
      %v3143 = vld [vmem:[%s3 + $0x3c0] sm:$0xf]
      %v3144 = vld [vmem:[%s3 + $0x3c4] sm:$0xf]
      %v3145 = vld [vmem:[%s3 + $0x3c8] sm:$0xf]
      %v3146 = vld [vmem:[%s3 + $0x3cc] sm:$0xf]
      %v3147 = vld [vmem:[%s3 + $0x3d0] sm:$0xf]
      %v3148 = vld [vmem:[%s3 + $0x3d4] sm:$0xf]
      %v3149 = vld [vmem:[%s3 + $0x3d8] sm:$0xf]
      %v3150 = vld [vmem:[%s3 + $0x3dc] sm:$0xf]
      %v3151 = vld [vmem:[%s3 + $0x3e0] sm:$0xf]
      %v3152 = vld [vmem:[%s3 + $0x3e4] sm:$0xf]
      %v3153 = vld [vmem:[%s3 + $0x3e8] sm:$0xf]
      %v3154 = vld [vmem:[%s3 + $0x3ec] sm:$0xf]
      %v3155 = vld [vmem:[%s3 + $0x3f0] sm:$0xf]
      %v3156 = vld [vmem:[%s3 + $0x3f4] sm:$0xf]
      %v3157 = vld [vmem:[%s3 + $0x3f8] sm:$0xf]
      %v3158 = vld [vmem:[%s3 + $0x3fc] sm:$0xf]
      %v3159 = vld [vmem:[%s3 + $0x400] sm:$0xf]
      %v3160 = vld [vmem:[%s3 + $0x404] sm:$0xf]
      %v3161 = vld [vmem:[%s3 + $0x408] sm:$0xf]
      %v3162 = vld [vmem:[%s3 + $0x40c] sm:$0xf]
      %v3163 = vld [vmem:[%s3 + $0x410] sm:$0xf]
      %v3164 = vld [vmem:[%s3 + $0x414] sm:$0xf]
      %v3165 = vld [vmem:[%s3 + $0x418] sm:$0xf]
      %v3166 = vld [vmem:[%s3 + $0x41c] sm:$0xf]
      %v3167 = vld [vmem:[%s3 + $0x420] sm:$0xf]
      %v3168 = vld [vmem:[%s3 + $0x424] sm:$0xf]
      %v3169 = vld [vmem:[%s3 + $0x428] sm:$0xf]
      %v3170 = vld [vmem:[%s3 + $0x42c] sm:$0xf]
      %v3171 = vld [vmem:[%s3 + $0x430] sm:$0xf]
      %v3172 = vld [vmem:[%s3 + $0x434] sm:$0xf]
      %v3173 = vld [vmem:[%s3 + $0x438] sm:$0xf]
      %v3174 = vld [vmem:[%s3 + $0x43c] sm:$0xf]
      %v3175 = vld [vmem:[%s3 + $0x440] sm:$0xf]
      %v3176 = vld [vmem:[%s3 + $0x444] sm:$0xf]
      %v3177 = vld [vmem:[%s3 + $0x448] sm:$0xf]
      %v3178 = vld [vmem:[%s3 + $0x44c] sm:$0xf]
      %v3179 = vld [vmem:[%s3 + $0x450] sm:$0xf]
      %v3180 = vld [vmem:[%s3 + $0x454] sm:$0xf]
      %v3181 = vld [vmem:[%s3 + $0x458] sm:$0xf]
      %v3182 = vld [vmem:[%s3 + $0x45c] sm:$0xf]
      %v3183 = vld [vmem:[%s3 + $0x460] sm:$0xf]
      %v3184 = vld [vmem:[%s3 + $0x464] sm:$0xf]
      %v3185 = vld [vmem:[%s3 + $0x468] sm:$0xf]
      %v3186 = vld [vmem:[%s3 + $0x46c] sm:$0xf]
      %v3187 = vld [vmem:[%s3 + $0x470] sm:$0xf]
      %v3188 = vld [vmem:[%s3 + $0x474] sm:$0xf]
      %v3189 = vld [vmem:[%s3 + $0x478] sm:$0xf]
      %v3190 = vld [vmem:[%s3 + $0x47c] sm:$0xf]
      %v3191 = vld [vmem:[%s3 + $0x480] sm:$0xf]
      %v3192 = vld [vmem:[%s3 + $0x484] sm:$0xf]
      %v3193 = vld [vmem:[%s3 + $0x488] sm:$0xf]
      %v3194 = vld [vmem:[%s3 + $0x48c] sm:$0xf]
      %v3195 = vld [vmem:[%s3 + $0x490] sm:$0xf]
      %v3196 = vld [vmem:[%s3 + $0x494] sm:$0xf]
      %v3197 = vld [vmem:[%s3 + $0x498] sm:$0xf]
      %v3198 = vld [vmem:[%s3 + $0x49c] sm:$0xf]
      %v3199 = vld [vmem:[%s3 + $0x4a0] sm:$0xf]
      %v3200 = vld [vmem:[%s3 + $0x4a4] sm:$0xf]
      %v3201 = vld [vmem:[%s3 + $0x4a8] sm:$0xf]
      %v3202 = vld [vmem:[%s3 + $0x4ac] sm:$0xf]
      %v3203 = vld [vmem:[%s3 + $0x4b0] sm:$0xf]
      %v3204 = vld [vmem:[%s3 + $0x4b4] sm:$0xf]
      %v3205 = vld [vmem:[%s3 + $0x4b8] sm:$0xf]
      %v3206 = vld [vmem:[%s3 + $0x4bc] sm:$0xf]
      %v3207 = vld [vmem:[%s3 + $0x4c0] sm:$0xf]
      %v3208 = vld [vmem:[%s3 + $0x4c4] sm:$0xf]
      %v3209 = vld [vmem:[%s3 + $0x4c8] sm:$0xf]
      %v3210 = vld [vmem:[%s3 + $0x4cc] sm:$0xf]
      %v3211 = vld [vmem:[%s3 + $0x4d0] sm:$0xf]
      %v3212 = vld [vmem:[%s3 + $0x4d4] sm:$0xf]
      %v3213 = vld [vmem:[%s3 + $0x4d8] sm:$0xf]
      %v3214 = vld [vmem:[%s3 + $0x4dc] sm:$0xf]
      %v3215 = vld [vmem:[%s3 + $0x4e0] sm:$0xf]
      %v3216 = vld [vmem:[%s3 + $0x4e4] sm:$0xf]
      %v3217 = vld [vmem:[%s3 + $0x4e8] sm:$0xf]
      %v3218 = vld [vmem:[%s3 + $0x4ec] sm:$0xf]
      %v3219 = vld [vmem:[%s3 + $0x4f0] sm:$0xf]
      %v3220 = vld [vmem:[%s3 + $0x4f4] sm:$0xf]
      %v3221 = vld [vmem:[%s3 + $0x4f8] sm:$0xf]
      %v3222 = vld [vmem:[%s3 + $0x4fc] sm:$0xf]
      %v3223 = vld [vmem:[%s3 + $0x500] sm:$0xf]
      %v3224 = vld [vmem:[%s3 + $0x504] sm:$0xf]
      %v3225 = vld [vmem:[%s3 + $0x508] sm:$0xf]
      %v3226 = vld [vmem:[%s3 + $0x50c] sm:$0xf]
      %v3227 = vld [vmem:[%s3 + $0x510] sm:$0xf]
      %v3228 = vld [vmem:[%s3 + $0x514] sm:$0xf]
      %v3229 = vld [vmem:[%s3 + $0x518] sm:$0xf]
      %v3230 = vld [vmem:[%s3 + $0x51c] sm:$0xf]
      %v3231 = vld [vmem:[%s3 + $0x520] sm:$0xf]
      %v3232 = vld [vmem:[%s3 + $0x524] sm:$0xf]
      %v3233 = vld [vmem:[%s3 + $0x528] sm:$0xf]
      %v3234 = vld [vmem:[%s3 + $0x52c] sm:$0xf]
      %v3235 = vld [vmem:[%s3 + $0x530] sm:$0xf]
      %v3236 = vld [vmem:[%s3 + $0x534] sm:$0xf]
      %v3237 = vld [vmem:[%s3 + $0x538] sm:$0xf]
      %v3238 = vld [vmem:[%s3 + $0x53c] sm:$0xf]
      %v3239 = vld [vmem:[%s3 + $0x540] sm:$0xf]
      %v3240 = vld [vmem:[%s3 + $0x544] sm:$0xf]
      %v3241 = vld [vmem:[%s3 + $0x548] sm:$0xf]
      %v3242 = vld [vmem:[%s3 + $0x54c] sm:$0xf]
      %v3243 = vld [vmem:[%s3 + $0x550] sm:$0xf]
      %v3244 = vld [vmem:[%s3 + $0x554] sm:$0xf]
      %v3245 = vld [vmem:[%s3 + $0x558] sm:$0xf]
      %v3246 = vld [vmem:[%s3 + $0x55c] sm:$0xf]
      %v3247 = vld [vmem:[%s3 + $0x560] sm:$0xf]
      %v3248 = vld [vmem:[%s3 + $0x564] sm:$0xf]
      %v3249 = vld [vmem:[%s3 + $0x568] sm:$0xf]
      %v3250 = vld [vmem:[%s3 + $0x56c] sm:$0xf]
      %v3251 = vld [vmem:[%s3 + $0x570] sm:$0xf]
      %v3252 = vld [vmem:[%s3 + $0x574] sm:$0xf]
      %v3253 = vld [vmem:[%s3 + $0x578] sm:$0xf]
      %v3254 = vld [vmem:[%s3 + $0x57c] sm:$0xf]
      %v3255 = vld [vmem:[%s3 + $0x580] sm:$0xf]
      %v3256 = vld [vmem:[%s3 + $0x584] sm:$0xf]
      %v3257 = vld [vmem:[%s3 + $0x588] sm:$0xf]
      %v3258 = vld [vmem:[%s3 + $0x58c] sm:$0xf]
      %v3259 = vld [vmem:[%s3 + $0x590] sm:$0xf]
      %v3260 = vld [vmem:[%s3 + $0x594] sm:$0xf]
      %v3261 = vld [vmem:[%s3 + $0x598] sm:$0xf]
      %v3262 = vld [vmem:[%s3 + $0x59c] sm:$0xf]
      %v3263 = vld [vmem:[%s3 + $0x5a0] sm:$0xf]
      %v3264 = vld [vmem:[%s3 + $0x5a4] sm:$0xf]
      %v3265 = vld [vmem:[%s3 + $0x5a8] sm:$0xf]
      %v3266 = vld [vmem:[%s3 + $0x5ac] sm:$0xf]
      %v3267 = vld [vmem:[%s3 + $0x5b0] sm:$0xf]
      %v3268 = vld [vmem:[%s3 + $0x5b4] sm:$0xf]
      %v3269 = vld [vmem:[%s3 + $0x5b8] sm:$0xf]
      %v3270 = vld [vmem:[%s3 + $0x5bc] sm:$0xf]
      %v3271 = vld [vmem:[%s3 + $0x5c0] sm:$0xf]
      %v3272 = vld [vmem:[%s3 + $0x5c4] sm:$0xf]
      %v3273 = vld [vmem:[%s3 + $0x5c8] sm:$0xf]
      %v3274 = vld [vmem:[%s3 + $0x5cc] sm:$0xf]
      %v3275 = vld [vmem:[%s3 + $0x5d0] sm:$0xf]
      %v3276 = vld [vmem:[%s3 + $0x5d4] sm:$0xf]
      %v3277 = vld [vmem:[%s3 + $0x5d8] sm:$0xf]
      %v3278 = vld [vmem:[%s3 + $0x5dc] sm:$0xf]
      %v3279 = vld [vmem:[%s3 + $0x5e0] sm:$0xf]
      %v3280 = vld [vmem:[%s3 + $0x5e4] sm:$0xf]
      %v3281 = vld [vmem:[%s3 + $0x5e8] sm:$0xf]
      %v3282 = vld [vmem:[%s3 + $0x5ec] sm:$0xf]
      %v3283 = vld [vmem:[%s3 + $0x5f0] sm:$0xf]
      %v3284 = vld [vmem:[%s3 + $0x5f4] sm:$0xf]
      %v3285 = vld [vmem:[%s3 + $0x5f8] sm:$0xf]
      %v3286 = vld [vmem:[%s3 + $0x5fc] sm:$0xf]
      %v3287 = vld [vmem:[%s3 + $0x600] sm:$0xf]
      %v3288 = vld [vmem:[%s3 + $0x604] sm:$0xf]
      %v3289 = vld [vmem:[%s3 + $0x608] sm:$0xf]
      %v3290 = vld [vmem:[%s3 + $0x60c] sm:$0xf]
      %v3291 = vld [vmem:[%s3 + $0x610] sm:$0xf]
      %v3292 = vld [vmem:[%s3 + $0x614] sm:$0xf]
      %v3293 = vld [vmem:[%s3 + $0x618] sm:$0xf]
      %v3294 = vld [vmem:[%s3 + $0x61c] sm:$0xf]
      %v3295 = vld [vmem:[%s3 + $0x620] sm:$0xf]
      %v3296 = vld [vmem:[%s3 + $0x624] sm:$0xf]
      %v3297 = vld [vmem:[%s3 + $0x628] sm:$0xf]
      %v3298 = vld [vmem:[%s3 + $0x62c] sm:$0xf]
      %v3299 = vld [vmem:[%s3 + $0x630] sm:$0xf]
      %v3300 = vld [vmem:[%s3 + $0x634] sm:$0xf]
      %v3301 = vld [vmem:[%s3 + $0x638] sm:$0xf]
      %v3302 = vld [vmem:[%s3 + $0x63c] sm:$0xf]
      %v3303 = vld [vmem:[%s3 + $0x640] sm:$0xf]
      %v3304 = vld [vmem:[%s3 + $0x644] sm:$0xf]
      %v3305 = vld [vmem:[%s3 + $0x648] sm:$0xf]
      %v3306 = vld [vmem:[%s3 + $0x64c] sm:$0xf]
      %v3307 = vld [vmem:[%s3 + $0x650] sm:$0xf]
      %v3308 = vld [vmem:[%s3 + $0x654] sm:$0xf]
      %v3309 = vld [vmem:[%s3 + $0x658] sm:$0xf]
      %v3310 = vld [vmem:[%s3 + $0x65c] sm:$0xf]
      %v3311 = vld [vmem:[%s3 + $0x660] sm:$0xf]
      %v3312 = vld [vmem:[%s3 + $0x664] sm:$0xf]
      %v3313 = vld [vmem:[%s3 + $0x668] sm:$0xf]
      %v3314 = vld [vmem:[%s3 + $0x66c] sm:$0xf]
      %v3315 = vld [vmem:[%s3 + $0x670] sm:$0xf]
      %v3316 = vld [vmem:[%s3 + $0x674] sm:$0xf]
      %v3317 = vld [vmem:[%s3 + $0x678] sm:$0xf]
      %v3318 = vld [vmem:[%s3 + $0x67c] sm:$0xf]
      %v3319 = vld [vmem:[%s3 + $0x680] sm:$0xf]
      %v3320 = vld [vmem:[%s3 + $0x684] sm:$0xf]
      %v3321 = vld [vmem:[%s3 + $0x688] sm:$0xf]
      %v3322 = vld [vmem:[%s3 + $0x68c] sm:$0xf]
      %v3323 = vld [vmem:[%s3 + $0x690] sm:$0xf]
      %v3324 = vld [vmem:[%s3 + $0x694] sm:$0xf]
      %v3325 = vld [vmem:[%s3 + $0x698] sm:$0xf]
      %v3326 = vld [vmem:[%s3 + $0x69c] sm:$0xf]
      %v3327 = vld [vmem:[%s3 + $0x6a0] sm:$0xf]
      %v3328 = vld [vmem:[%s3 + $0x6a4] sm:$0xf]
      %v3329 = vld [vmem:[%s3 + $0x6a8] sm:$0xf]
      %v3330 = vld [vmem:[%s3 + $0x6ac] sm:$0xf]
      %v3331 = vld [vmem:[%s3 + $0x6b0] sm:$0xf]
      %v3332 = vld [vmem:[%s3 + $0x6b4] sm:$0xf]
      %v3333 = vld [vmem:[%s3 + $0x6b8] sm:$0xf]
      %v3334 = vld [vmem:[%s3 + $0x6bc] sm:$0xf]
      %v3335 = vld [vmem:[%s3 + $0x6c0] sm:$0xf]
      %v3336 = vld [vmem:[%s3 + $0x6c4] sm:$0xf]
      %v3337 = vld [vmem:[%s3 + $0x6c8] sm:$0xf]
      %v3338 = vld [vmem:[%s3 + $0x6cc] sm:$0xf]
      %v3339 = vld [vmem:[%s3 + $0x6d0] sm:$0xf]
      %v3340 = vld [vmem:[%s3 + $0x6d4] sm:$0xf]
      %v3341 = vld [vmem:[%s3 + $0x6d8] sm:$0xf]
      %v3342 = vld [vmem:[%s3 + $0x6dc] sm:$0xf]
      %v3343 = vld [vmem:[%s3 + $0x6e0] sm:$0xf]
      %v3344 = vld [vmem:[%s3 + $0x6e4] sm:$0xf]
      %v3345 = vld [vmem:[%s3 + $0x6e8] sm:$0xf]
      %v3346 = vld [vmem:[%s3 + $0x6ec] sm:$0xf]
      %v3347 = vld [vmem:[%s3 + $0x6f0] sm:$0xf]
      %v3348 = vld [vmem:[%s3 + $0x6f4] sm:$0xf]
      %v3349 = vld [vmem:[%s3 + $0x6f8] sm:$0xf]
      %v3350 = vld [vmem:[%s3 + $0x6fc] sm:$0xf]
      %v3351 = vld [vmem:[%s3 + $0x700] sm:$0xf]
      %v3352 = vld [vmem:[%s3 + $0x704] sm:$0xf]
      %v3353 = vld [vmem:[%s3 + $0x708] sm:$0xf]
      %v3354 = vld [vmem:[%s3 + $0x70c] sm:$0xf]
      %v3355 = vld [vmem:[%s3 + $0x710] sm:$0xf]
      %v3356 = vld [vmem:[%s3 + $0x714] sm:$0xf]
      %v3357 = vld [vmem:[%s3 + $0x718] sm:$0xf]
      %v3358 = vld [vmem:[%s3 + $0x71c] sm:$0xf]
      %v3359 = vld [vmem:[%s3 + $0x720] sm:$0xf]
      %v3360 = vld [vmem:[%s3 + $0x724] sm:$0xf]
      %v3361 = vld [vmem:[%s3 + $0x728] sm:$0xf]
      %v3362 = vld [vmem:[%s3 + $0x72c] sm:$0xf]
      %v3363 = vld [vmem:[%s3 + $0x730] sm:$0xf]
      %v3364 = vld [vmem:[%s3 + $0x734] sm:$0xf]
      %v3365 = vld [vmem:[%s3 + $0x738] sm:$0xf]
      %v3366 = vld [vmem:[%s3 + $0x73c] sm:$0xf]
      %v3367 = vld [vmem:[%s3 + $0x740] sm:$0xf]
      %v3368 = vld [vmem:[%s3 + $0x744] sm:$0xf]
      %v3369 = vld [vmem:[%s3 + $0x748] sm:$0xf]
      %v3370 = vld [vmem:[%s3 + $0x74c] sm:$0xf]
      %v3371 = vld [vmem:[%s3 + $0x750] sm:$0xf]
      %v3372 = vld [vmem:[%s3 + $0x754] sm:$0xf]
      %v3373 = vld [vmem:[%s3 + $0x758] sm:$0xf]
      %v3374 = vld [vmem:[%s3 + $0x75c] sm:$0xf]
      %v3375 = vld [vmem:[%s3 + $0x760] sm:$0xf]
      %v3376 = vld [vmem:[%s3 + $0x764] sm:$0xf]
      %v3377 = vld [vmem:[%s3 + $0x768] sm:$0xf]
      %v3378 = vld [vmem:[%s3 + $0x76c] sm:$0xf]
      %v3379 = vld [vmem:[%s3 + $0x770] sm:$0xf]
      %v3380 = vld [vmem:[%s3 + $0x774] sm:$0xf]
      %v3381 = vld [vmem:[%s3 + $0x778] sm:$0xf]
      %v3382 = vld [vmem:[%s3 + $0x77c] sm:$0xf]
      %v3383 = vld [vmem:[%s3 + $0x780] sm:$0xf]
      %v3384 = vld [vmem:[%s3 + $0x784] sm:$0xf]
      %v3385 = vld [vmem:[%s3 + $0x788] sm:$0xf]
      %v3386 = vld [vmem:[%s3 + $0x78c] sm:$0xf]
      %v3387 = vld [vmem:[%s3 + $0x790] sm:$0xf]
      %v3388 = vld [vmem:[%s3 + $0x794] sm:$0xf]
      %v3389 = vld [vmem:[%s3 + $0x798] sm:$0xf]
      %v3390 = vld [vmem:[%s3 + $0x79c] sm:$0xf]
      %v3391 = vld [vmem:[%s3 + $0x7a0] sm:$0xf]
      %v3392 = vld [vmem:[%s3 + $0x7a4] sm:$0xf]
      %v3393 = vld [vmem:[%s3 + $0x7a8] sm:$0xf]
      %v3394 = vld [vmem:[%s3 + $0x7ac] sm:$0xf]
      %v3395 = vld [vmem:[%s3 + $0x7b0] sm:$0xf]
      %v3396 = vld [vmem:[%s3 + $0x7b4] sm:$0xf]
      %v3397 = vld [vmem:[%s3 + $0x7b8] sm:$0xf]
      %v3398 = vld [vmem:[%s3 + $0x7bc] sm:$0xf]
      %v3399 = vld [vmem:[%s3 + $0x7c0] sm:$0xf]
      %v3400 = vld [vmem:[%s3 + $0x7c4] sm:$0xf]
      %v3401 = vld [vmem:[%s3 + $0x7c8] sm:$0xf]
      %v3402 = vld [vmem:[%s3 + $0x7cc] sm:$0xf]
      %v3403 = vld [vmem:[%s3 + $0x7d0] sm:$0xf]
      %v3404 = vld [vmem:[%s3 + $0x7d4] sm:$0xf]
      %v3405 = vld [vmem:[%s3 + $0x7d8] sm:$0xf]
      %v3406 = vld [vmem:[%s3 + $0x7dc] sm:$0xf]
      %v3407 = vld [vmem:[%s3 + $0x7e0] sm:$0xf]
      %v3408 = vld [vmem:[%s3 + $0x7e4] sm:$0xf]
      %v3409 = vld [vmem:[%s3 + $0x7e8] sm:$0xf]
      %v3410 = vld [vmem:[%s3 + $0x7ec] sm:$0xf]
      %v3411 = vld [vmem:[%s3 + $0x7f0] sm:$0xf]
      %v3412 = vld [vmem:[%s3 + $0x7f4] sm:$0xf]
      %v3413 = vld [vmem:[%s3 + $0x7f8] sm:$0xf]
      %v3414 = vld [vmem:[%s3 + $0x7fc] sm:$0xf]
      %v3415 = vld [vmem:[%s3 + $0x800] sm:$0xf]
      %v3416 = vld [vmem:[%s3 + $0x804] sm:$0xf]
      %v3417 = vld [vmem:[%s3 + $0x808] sm:$0xf]
      %v3418 = vld [vmem:[%s3 + $0x80c] sm:$0xf]
      %v3419 = vld [vmem:[%s3 + $0x810] sm:$0xf]
      %v3420 = vld [vmem:[%s3 + $0x814] sm:$0xf]
      %v3421 = vld [vmem:[%s3 + $0x818] sm:$0xf]
      %v3422 = vld [vmem:[%s3 + $0x81c] sm:$0xf]
      %v3423 = vld [vmem:[%s3 + $0x820] sm:$0xf]
      %v3424 = vld [vmem:[%s3 + $0x824] sm:$0xf]
      %v3425 = vld [vmem:[%s3 + $0x828] sm:$0xf]
      %v3426 = vld [vmem:[%s3 + $0x82c] sm:$0xf]
      %v3427 = vld [vmem:[%s3 + $0x830] sm:$0xf]
      %v3428 = vld [vmem:[%s3 + $0x834] sm:$0xf]
      %v3429 = vld [vmem:[%s3 + $0x838] sm:$0xf]
      %v3430 = vld [vmem:[%s3 + $0x83c] sm:$0xf]
      %v3431 = vld [vmem:[%s3 + $0x840] sm:$0xf]
      %v3432 = vld [vmem:[%s3 + $0x844] sm:$0xf]
      %v3433 = vld [vmem:[%s3 + $0x848] sm:$0xf]
      %v3434 = vld [vmem:[%s3 + $0x84c] sm:$0xf]
      %v3435 = vld [vmem:[%s3 + $0x850] sm:$0xf]
      %v3436 = vld [vmem:[%s3 + $0x854] sm:$0xf]
      %v3437 = vld [vmem:[%s3 + $0x858] sm:$0xf]
      %v3438 = vld [vmem:[%s3 + $0x85c] sm:$0xf]
      %v3439 = vld [vmem:[%s3 + $0x860] sm:$0xf]
      %v3440 = vld [vmem:[%s3 + $0x864] sm:$0xf]
      %v3441 = vld [vmem:[%s3 + $0x868] sm:$0xf]
      %v3442 = vld [vmem:[%s3 + $0x86c] sm:$0xf]
      %v3443 = vld [vmem:[%s3 + $0x870] sm:$0xf]
      %v3444 = vld [vmem:[%s3 + $0x874] sm:$0xf]
      %v3445 = vld [vmem:[%s3 + $0x878] sm:$0xf]
      %v3446 = vld [vmem:[%s3 + $0x87c] sm:$0xf]
      %v3447 = vld [vmem:[%s3 + $0x880] sm:$0xf]
      %v3448 = vld [vmem:[%s3 + $0x884] sm:$0xf]
      %v3449 = vld [vmem:[%s3 + $0x888] sm:$0xf]
      %v3450 = vld [vmem:[%s3 + $0x88c] sm:$0xf]
      %v3451 = vld [vmem:[%s3 + $0x890] sm:$0xf]
      %v3452 = vld [vmem:[%s3 + $0x894] sm:$0xf]
      %v3453 = vld [vmem:[%s3 + $0x898] sm:$0xf]
      %v3454 = vld [vmem:[%s3 + $0x89c] sm:$0xf]
      %v3455 = vld [vmem:[%s3 + $0x8a0] sm:$0xf]
      %v3456 = vld [vmem:[%s3 + $0x8a4] sm:$0xf]
      %v3457 = vld [vmem:[%s3 + $0x8a8] sm:$0xf]
      %v3458 = vld [vmem:[%s3 + $0x8ac] sm:$0xf]
      %v3459 = vld [vmem:[%s3 + $0x8b0] sm:$0xf]
      %v3460 = vld [vmem:[%s3 + $0x8b4] sm:$0xf]
      %v3461 = vld [vmem:[%s3 + $0x8b8] sm:$0xf]
      %v3462 = vld [vmem:[%s3 + $0x8bc] sm:$0xf]
      %v3463 = vld [vmem:[%s3 + $0x8c0] sm:$0xf]
      %v3464 = vld [vmem:[%s3 + $0x8c4] sm:$0xf]
      %v3465 = vld [vmem:[%s3 + $0x8c8] sm:$0xf]
      %v3466 = vld [vmem:[%s3 + $0x8cc] sm:$0xf]
      %v3467 = vld [vmem:[%s3 + $0x8d0] sm:$0xf]
      %v3468 = vld [vmem:[%s3 + $0x8d4] sm:$0xf]
      %v3469 = vld [vmem:[%s3 + $0x8d8] sm:$0xf]
      %v3470 = vld [vmem:[%s3 + $0x8dc] sm:$0xf]
      %v3471 = vld [vmem:[%s3 + $0x8e0] sm:$0xf]
      %v3472 = vld [vmem:[%s3 + $0x8e4] sm:$0xf]
      %v3473 = vld [vmem:[%s3 + $0x8e8] sm:$0xf]
      %v3474 = vld [vmem:[%s3 + $0x8ec] sm:$0xf]
      %v3475 = vld [vmem:[%s3 + $0x8f0] sm:$0xf]
      %v3476 = vld [vmem:[%s3 + $0x8f4] sm:$0xf]
      %v3477 = vld [vmem:[%s3 + $0x8f8] sm:$0xf]
      %v3478 = vld [vmem:[%s3 + $0x8fc] sm:$0xf]
      %v3479 = vld [vmem:[%s3 + $0x900] sm:$0xf]
      %v3480 = vld [vmem:[%s3 + $0x904] sm:$0xf]
      %v3481 = vld [vmem:[%s3 + $0x908] sm:$0xf]
      %v3482 = vld [vmem:[%s3 + $0x90c] sm:$0xf]
      %v3483 = vld [vmem:[%s3 + $0x910] sm:$0xf]
      %v3484 = vld [vmem:[%s3 + $0x914] sm:$0xf]
      %v3485 = vld [vmem:[%s3 + $0x918] sm:$0xf]
      %v3486 = vld [vmem:[%s3 + $0x91c] sm:$0xf]
      %v3487 = vld [vmem:[%s3 + $0x920] sm:$0xf]
      %v3488 = vld [vmem:[%s3 + $0x924] sm:$0xf]
      %v3489 = vld [vmem:[%s3 + $0x928] sm:$0xf]
      %v3490 = vld [vmem:[%s3 + $0x92c] sm:$0xf]
      %v3491 = vld [vmem:[%s3 + $0x930] sm:$0xf]
      %v3492 = vld [vmem:[%s3 + $0x934] sm:$0xf]
      %v3493 = vld [vmem:[%s3 + $0x938] sm:$0xf]
      %v3494 = vld [vmem:[%s3 + $0x93c] sm:$0xf]
      %v3495 = vld [vmem:[%s3 + $0x940] sm:$0xf]
      %v3496 = vld [vmem:[%s3 + $0x944] sm:$0xf]
      %v3497 = vld [vmem:[%s3 + $0x948] sm:$0xf]
      %v3498 = vld [vmem:[%s3 + $0x94c] sm:$0xf]
      %v3499 = vld [vmem:[%s3 + $0x950] sm:$0xf]
      %v3500 = vld [vmem:[%s3 + $0x954] sm:$0xf]
      %v3501 = vld [vmem:[%s3 + $0x958] sm:$0xf]
      %v3502 = vld [vmem:[%s3 + $0x95c] sm:$0xf]
      %v3503 = vld [vmem:[%s3 + $0x960] sm:$0xf]
      %v3504 = vld [vmem:[%s3 + $0x964] sm:$0xf]
      %v3505 = vld [vmem:[%s3 + $0x968] sm:$0xf]
      %v3506 = vld [vmem:[%s3 + $0x96c] sm:$0xf]
      %v3507 = vld [vmem:[%s3 + $0x970] sm:$0xf]
      %v3508 = vld [vmem:[%s3 + $0x974] sm:$0xf]
      %v3509 = vld [vmem:[%s3 + $0x978] sm:$0xf]
      %v3510 = vld [vmem:[%s3 + $0x97c] sm:$0xf]
      %v3511 = vld [vmem:[%s3 + $0x980] sm:$0xf]
      %v3512 = vld [vmem:[%s3 + $0x984] sm:$0xf]
      %v3513 = vld [vmem:[%s3 + $0x988] sm:$0xf]
      %v3514 = vld [vmem:[%s3 + $0x98c] sm:$0xf]
      %v3515 = vld [vmem:[%s3 + $0x990] sm:$0xf]
      %v3516 = vld [vmem:[%s3 + $0x994] sm:$0xf]
      %v3517 = vld [vmem:[%s3 + $0x998] sm:$0xf]
      %v3518 = vld [vmem:[%s3 + $0x99c] sm:$0xf]
      %v3519 = vld [vmem:[%s3 + $0x9a0] sm:$0xf]
      %v3520 = vld [vmem:[%s3 + $0x9a4] sm:$0xf]
      %v3521 = vld [vmem:[%s3 + $0x9a8] sm:$0xf]
      %v3522 = vld [vmem:[%s3 + $0x9ac] sm:$0xf]
      %v3523 = vld [vmem:[%s3 + $0x9b0] sm:$0xf]
      %v3524 = vld [vmem:[%s3 + $0x9b4] sm:$0xf]
      %v3525 = vld [vmem:[%s3 + $0x9b8] sm:$0xf]
      %v3526 = vld [vmem:[%s3 + $0x9bc] sm:$0xf]
      %v3527 = vld [vmem:[%s3 + $0x9c0] sm:$0xf]
      %v3528 = vld [vmem:[%s3 + $0x9c4] sm:$0xf]
      %v3529 = vld [vmem:[%s3 + $0x9c8] sm:$0xf]
      %v3530 = vld [vmem:[%s3 + $0x9cc] sm:$0xf]
      %v3531 = vld [vmem:[%s3 + $0x9d0] sm:$0xf]
      %v3532 = vld [vmem:[%s3 + $0x9d4] sm:$0xf]
      %v3533 = vld [vmem:[%s3 + $0x9d8] sm:$0xf]
      %v3534 = vld [vmem:[%s3 + $0x9dc] sm:$0xf]
      %v3535 = vld [vmem:[%s3 + $0x9e0] sm:$0xf]
      %v3536 = vld [vmem:[%s3 + $0x9e4] sm:$0xf]
      %v3537 = vld [vmem:[%s3 + $0x9e8] sm:$0xf]
      %v3538 = vld [vmem:[%s3 + $0x9ec] sm:$0xf]
      %v3539 = vld [vmem:[%s3 + $0x9f0] sm:$0xf]
      %v3540 = vld [vmem:[%s3 + $0x9f4] sm:$0xf]
      %v3541 = vld [vmem:[%s3 + $0x9f8] sm:$0xf]
      %v3542 = vld [vmem:[%s3 + $0x9fc] sm:$0xf]
      %v3543 = vld [vmem:[%s3 + $0xa00] sm:$0xf]
      %v3544 = vld [vmem:[%s3 + $0xa04] sm:$0xf]
      %v3545 = vld [vmem:[%s3 + $0xa08] sm:$0xf]
      %v3546 = vld [vmem:[%s3 + $0xa0c] sm:$0xf]
      %v3547 = vld [vmem:[%s3 + $0xa10] sm:$0xf]
      %v3548 = vld [vmem:[%s3 + $0xa14] sm:$0xf]
      %v3549 = vld [vmem:[%s3 + $0xa18] sm:$0xf]
      %v3550 = vld [vmem:[%s3 + $0xa1c] sm:$0xf]
      %v3551 = vld [vmem:[%s3 + $0xa20] sm:$0xf]
      %v3552 = vld [vmem:[%s3 + $0xa24] sm:$0xf]
      %v3553 = vld [vmem:[%s3 + $0xa28] sm:$0xf]
      %v3554 = vld [vmem:[%s3 + $0xa2c] sm:$0xf]
      %v3555 = vld [vmem:[%s3 + $0xa30] sm:$0xf]
      %v3556 = vld [vmem:[%s3 + $0xa34] sm:$0xf]
      %v3557 = vld [vmem:[%s3 + $0xa38] sm:$0xf]
      %v3558 = vld [vmem:[%s3 + $0xa3c] sm:$0xf]
      %v3559 = vld [vmem:[%s3 + $0xa40] sm:$0xf]
      %v3560 = vld [vmem:[%s3 + $0xa44] sm:$0xf]
      %v3561 = vld [vmem:[%s3 + $0xa48] sm:$0xf]
      %v3562 = vld [vmem:[%s3 + $0xa4c] sm:$0xf]
      %v3563 = vld [vmem:[%s3 + $0xa50] sm:$0xf]
      %v3564 = vld [vmem:[%s3 + $0xa54] sm:$0xf]
      %v3565 = vld [vmem:[%s3 + $0xa58] sm:$0xf]
      %v3566 = vld [vmem:[%s3 + $0xa5c] sm:$0xf]
      %v3567 = vld [vmem:[%s3 + $0xa60] sm:$0xf]
      %v3568 = vld [vmem:[%s3 + $0xa64] sm:$0xf]
      %v3569 = vld [vmem:[%s3 + $0xa68] sm:$0xf]
      %v3570 = vld [vmem:[%s3 + $0xa6c] sm:$0xf]
      %v3571 = vld [vmem:[%s3 + $0xa70] sm:$0xf]
      %v3572 = vld [vmem:[%s3 + $0xa74] sm:$0xf]
      %v3573 = vld [vmem:[%s3 + $0xa78] sm:$0xf]
      %v3574 = vld [vmem:[%s3 + $0xa7c] sm:$0xf]
      %v3575 = vld [vmem:[%s3 + $0xa80] sm:$0xf]
      %v3576 = vld [vmem:[%s3 + $0xa84] sm:$0xf]
      %v3577 = vld [vmem:[%s3 + $0xa88] sm:$0xf]
      %v3578 = vld [vmem:[%s3 + $0xa8c] sm:$0xf]
      %v3579 = vld [vmem:[%s3 + $0xa90] sm:$0xf]
      %v3580 = vld [vmem:[%s3 + $0xa94] sm:$0xf]
      %v3581 = vld [vmem:[%s3 + $0xa98] sm:$0xf]
      %v3582 = vld [vmem:[%s3 + $0xa9c] sm:$0xf]
      %v3583 = vld [vmem:[%s3 + $0xaa0] sm:$0xf]
      %v3584 = vld [vmem:[%s3 + $0xaa4] sm:$0xf]
      %v3585 = vld [vmem:[%s3 + $0xaa8] sm:$0xf]
      %v3586 = vld [vmem:[%s3 + $0xaac] sm:$0xf]
      %v3587 = vld [vmem:[%s3 + $0xab0] sm:$0xf]
      %v3588 = vld [vmem:[%s3 + $0xab4] sm:$0xf]
      %v3589 = vld [vmem:[%s3 + $0xab8] sm:$0xf]
      %v3590 = vld [vmem:[%s3 + $0xabc] sm:$0xf]
      %v3591 = vld [vmem:[%s3 + $0xac0] sm:$0xf]
      %v3592 = vld [vmem:[%s3 + $0xac4] sm:$0xf]
      %v3593 = vld [vmem:[%s3 + $0xac8] sm:$0xf]
      %v3594 = vld [vmem:[%s3 + $0xacc] sm:$0xf]
      %v3595 = vld [vmem:[%s3 + $0xad0] sm:$0xf]
      %v3596 = vld [vmem:[%s3 + $0xad4] sm:$0xf]
      %v3597 = vld [vmem:[%s3 + $0xad8] sm:$0xf]
      %v3598 = vld [vmem:[%s3 + $0xadc] sm:$0xf]
      %v3599 = vld [vmem:[%s3 + $0xae0] sm:$0xf]
      %v3600 = vld [vmem:[%s3 + $0xae4] sm:$0xf]
      %v3601 = vld [vmem:[%s3 + $0xae8] sm:$0xf]
      %v3602 = vld [vmem:[%s3 + $0xaec] sm:$0xf]
      %v3603 = vld [vmem:[%s3 + $0xaf0] sm:$0xf]
      %v3604 = vld [vmem:[%s3 + $0xaf4] sm:$0xf]
      %v3605 = vld [vmem:[%s3 + $0xaf8] sm:$0xf]
      %v3606 = vld [vmem:[%s3 + $0xafc] sm:$0xf]
      %v3607 = vld [vmem:[%s3 + $0xb00] sm:$0xf]
      %v3608 = vld [vmem:[%s3 + $0xb04] sm:$0xf]
      %v3609 = vld [vmem:[%s3 + $0xb08] sm:$0xf]
      %v3610 = vld [vmem:[%s3 + $0xb0c] sm:$0xf]
      %v3611 = vld [vmem:[%s3 + $0xb10] sm:$0xf]
      %v3612 = vld [vmem:[%s3 + $0xb14] sm:$0xf]
      %v3613 = vld [vmem:[%s3 + $0xb18] sm:$0xf]
      %v3614 = vld [vmem:[%s3 + $0xb1c] sm:$0xf]
      %v3615 = vld [vmem:[%s3 + $0xb20] sm:$0xf]
      %v3616 = vld [vmem:[%s3 + $0xb24] sm:$0xf]
      %v3617 = vld [vmem:[%s3 + $0xb28] sm:$0xf]
      %v3618 = vld [vmem:[%s3 + $0xb2c] sm:$0xf]
      %v3619 = vld [vmem:[%s3 + $0xb30] sm:$0xf]
      %v3620 = vld [vmem:[%s3 + $0xb34] sm:$0xf]
      %v3621 = vld [vmem:[%s3 + $0xb38] sm:$0xf]
      %v3622 = vld [vmem:[%s3 + $0xb3c] sm:$0xf]
      %v3623 = vld [vmem:[%s3 + $0xb40] sm:$0xf]
      %v3624 = vld [vmem:[%s3 + $0xb44] sm:$0xf]
      %v3625 = vld [vmem:[%s3 + $0xb48] sm:$0xf]
      %v3626 = vld [vmem:[%s3 + $0xb4c] sm:$0xf]
      %v3627 = vld [vmem:[%s3 + $0xb50] sm:$0xf]
      %v3628 = vld [vmem:[%s3 + $0xb54] sm:$0xf]
      %v3629 = vld [vmem:[%s3 + $0xb58] sm:$0xf]
      %v3630 = vld [vmem:[%s3 + $0xb5c] sm:$0xf]
      %v3631 = vld [vmem:[%s3 + $0xb60] sm:$0xf]
      %v3632 = vld [vmem:[%s3 + $0xb64] sm:$0xf]
      %v3633 = vld [vmem:[%s3 + $0xb68] sm:$0xf]
      %v3634 = vld [vmem:[%s3 + $0xb6c] sm:$0xf]
      %v3635 = vld [vmem:[%s3 + $0xb70] sm:$0xf]
      %v3636 = vld [vmem:[%s3 + $0xb74] sm:$0xf]
      %v3637 = vld [vmem:[%s3 + $0xb78] sm:$0xf]
      %v3638 = vld [vmem:[%s3 + $0xb7c] sm:$0xf]
      %v3639 = vld [vmem:[%s3 + $0xb80] sm:$0xf]
      %v3640 = vld [vmem:[%s3 + $0xb84] sm:$0xf]
      %v3641 = vld [vmem:[%s3 + $0xb88] sm:$0xf]
      %v3642 = vld [vmem:[%s3 + $0xb8c] sm:$0xf]
      %v3643 = vld [vmem:[%s3 + $0xb90] sm:$0xf]
      %v3644 = vld [vmem:[%s3 + $0xb94] sm:$0xf]
      %v3645 = vld [vmem:[%s3 + $0xb98] sm:$0xf]
      %v3646 = vld [vmem:[%s3 + $0xb9c] sm:$0xf]
      %v3647 = vld [vmem:[%s3 + $0xba0] sm:$0xf]
      %v3648 = vld [vmem:[%s3 + $0xba4] sm:$0xf]
      %v3649 = vld [vmem:[%s3 + $0xba8] sm:$0xf]
      %v3650 = vld [vmem:[%s3 + $0xbac] sm:$0xf]
      %v3651 = vld [vmem:[%s3 + $0xbb0] sm:$0xf]
      %v3652 = vld [vmem:[%s3 + $0xbb4] sm:$0xf]
      %v3653 = vld [vmem:[%s3 + $0xbb8] sm:$0xf]
      %v3654 = vld [vmem:[%s3 + $0xbbc] sm:$0xf]
      %v3655 = vld [vmem:[%s3 + $0xbc0] sm:$0xf]
      %v3656 = vld [vmem:[%s3 + $0xbc4] sm:$0xf]
      %v3657 = vld [vmem:[%s3 + $0xbc8] sm:$0xf]
      %v3658 = vld [vmem:[%s3 + $0xbcc] sm:$0xf]
      %v3659 = vld [vmem:[%s3 + $0xbd0] sm:$0xf]
      %v3660 = vld [vmem:[%s3 + $0xbd4] sm:$0xf]
      %v3661 = vld [vmem:[%s3 + $0xbd8] sm:$0xf]
      %v3662 = vld [vmem:[%s3 + $0xbdc] sm:$0xf]
      %v3663 = vld [vmem:[%s3 + $0xbe0] sm:$0xf]
      %v3664 = vld [vmem:[%s3 + $0xbe4] sm:$0xf]
      %v3665 = vld [vmem:[%s3 + $0xbe8] sm:$0xf]
      %v3666 = vld [vmem:[%s3 + $0xbec] sm:$0xf]
      %v3667 = vld [vmem:[%s3 + $0xbf0] sm:$0xf]
      %v3668 = vld [vmem:[%s3 + $0xbf4] sm:$0xf]
      %v3669 = vld [vmem:[%s3 + $0xbf8] sm:$0xf]
      %v3670 = vld [vmem:[%s3 + $0xbfc] sm:$0xf]
      %v3671 = vld [vmem:[%s3 + $0xc00] sm:$0xf]
      %v3672 = vld [vmem:[%s3 + $0xc04] sm:$0xf]
      %v3673 = vld [vmem:[%s3 + $0xc08] sm:$0xf]
      %v3674 = vld [vmem:[%s3 + $0xc0c] sm:$0xf]
      %v3675 = vld [vmem:[%s3 + $0xc10] sm:$0xf]
      %v3676 = vld [vmem:[%s3 + $0xc14] sm:$0xf]
      %v3677 = vld [vmem:[%s3 + $0xc18] sm:$0xf]
      %v3678 = vld [vmem:[%s3 + $0xc1c] sm:$0xf]
      %v3679 = vld [vmem:[%s3 + $0xc20] sm:$0xf]
      %v3680 = vld [vmem:[%s3 + $0xc24] sm:$0xf]
      %v3681 = vld [vmem:[%s3 + $0xc28] sm:$0xf]
      %v3682 = vld [vmem:[%s3 + $0xc2c] sm:$0xf]
      %v3683 = vld [vmem:[%s3 + $0xc30] sm:$0xf]
      %v3684 = vld [vmem:[%s3 + $0xc34] sm:$0xf]
      %v3685 = vld [vmem:[%s3 + $0xc38] sm:$0xf]
      %v3686 = vld [vmem:[%s3 + $0xc3c] sm:$0xf]
      %v3687 = vld [vmem:[%s3 + $0xc40] sm:$0xf]
      %v3688 = vld [vmem:[%s3 + $0xc44] sm:$0xf]
      %v3689 = vld [vmem:[%s3 + $0xc48] sm:$0xf]
      %v3690 = vld [vmem:[%s3 + $0xc4c] sm:$0xf]
      %v3691 = vld [vmem:[%s3 + $0xc50] sm:$0xf]
      %v3692 = vld [vmem:[%s3 + $0xc54] sm:$0xf]
      %v3693 = vld [vmem:[%s3 + $0xc58] sm:$0xf]
      %v3694 = vld [vmem:[%s3 + $0xc5c] sm:$0xf]
      %v3695 = vld [vmem:[%s3 + $0xc60] sm:$0xf]
      %v3696 = vld [vmem:[%s3 + $0xc64] sm:$0xf]
      %v3697 = vld [vmem:[%s3 + $0xc68] sm:$0xf]
      %v3698 = vld [vmem:[%s3 + $0xc6c] sm:$0xf]
      %v3699 = vld [vmem:[%s3 + $0xc70] sm:$0xf]
      %v3700 = vld [vmem:[%s3 + $0xc74] sm:$0xf]
      %v3701 = vld [vmem:[%s3 + $0xc78] sm:$0xf]
      %v3702 = vld [vmem:[%s3 + $0xc7c] sm:$0xf]
      %v3703 = vld [vmem:[%s3 + $0xc80] sm:$0xf]
      %v3704 = vld [vmem:[%s3 + $0xc84] sm:$0xf]
      %v3705 = vld [vmem:[%s3 + $0xc88] sm:$0xf]
      %v3706 = vld [vmem:[%s3 + $0xc8c] sm:$0xf]
      %v3707 = vld [vmem:[%s3 + $0xc90] sm:$0xf]
      %v3708 = vld [vmem:[%s3 + $0xc94] sm:$0xf]
      %v3709 = vld [vmem:[%s3 + $0xc98] sm:$0xf]
      %v3710 = vld [vmem:[%s3 + $0xc9c] sm:$0xf]
      %v3711 = vld [vmem:[%s3 + $0xca0] sm:$0xf]
      %v3712 = vld [vmem:[%s3 + $0xca4] sm:$0xf]
      %v3713 = vld [vmem:[%s3 + $0xca8] sm:$0xf]
      %v3714 = vld [vmem:[%s3 + $0xcac] sm:$0xf]
      %v3715 = vld [vmem:[%s3 + $0xcb0] sm:$0xf]
      %v3716 = vld [vmem:[%s3 + $0xcb4] sm:$0xf]
      %v3717 = vld [vmem:[%s3 + $0xcb8] sm:$0xf]
      %v3718 = vld [vmem:[%s3 + $0xcbc] sm:$0xf]
      %v3719 = vld [vmem:[%s3 + $0xcc0] sm:$0xf]
      %v3720 = vld [vmem:[%s3 + $0xcc4] sm:$0xf]
      %v3721 = vld [vmem:[%s3 + $0xcc8] sm:$0xf]
      %v3722 = vld [vmem:[%s3 + $0xccc] sm:$0xf]
      %v3723 = vld [vmem:[%s3 + $0xcd0] sm:$0xf]
      %v3724 = vld [vmem:[%s3 + $0xcd4] sm:$0xf]
      %v3725 = vld [vmem:[%s3 + $0xcd8] sm:$0xf]
      %v3726 = vld [vmem:[%s3 + $0xcdc] sm:$0xf]
      %v3727 = vld [vmem:[%s3 + $0xce0] sm:$0xf]
      %v3728 = vld [vmem:[%s3 + $0xce4] sm:$0xf]
      %v3729 = vld [vmem:[%s3 + $0xce8] sm:$0xf]
      %v3730 = vld [vmem:[%s3 + $0xcec] sm:$0xf]
      %v3731 = vld [vmem:[%s3 + $0xcf0] sm:$0xf]
      %v3732 = vld [vmem:[%s3 + $0xcf4] sm:$0xf]
      %v3733 = vld [vmem:[%s3 + $0xcf8] sm:$0xf]
      %v3734 = vld [vmem:[%s3 + $0xcfc] sm:$0xf]
      %v3735 = vld [vmem:[%s3 + $0xd00] sm:$0xf]
      %v3736 = vld [vmem:[%s3 + $0xd04] sm:$0xf]
      %v3737 = vld [vmem:[%s3 + $0xd08] sm:$0xf]
      %v3738 = vld [vmem:[%s3 + $0xd0c] sm:$0xf]
      %v3739 = vld [vmem:[%s3 + $0xd10] sm:$0xf]
      %v3740 = vld [vmem:[%s3 + $0xd14] sm:$0xf]
      %v3741 = vld [vmem:[%s3 + $0xd18] sm:$0xf]
      %v3742 = vld [vmem:[%s3 + $0xd1c] sm:$0xf]
      %v3743 = vld [vmem:[%s3 + $0xd20] sm:$0xf]
      %v3744 = vld [vmem:[%s3 + $0xd24] sm:$0xf]
      %v3745 = vld [vmem:[%s3 + $0xd28] sm:$0xf]
      %v3746 = vld [vmem:[%s3 + $0xd2c] sm:$0xf]
      %v3747 = vld [vmem:[%s3 + $0xd30] sm:$0xf]
      %v3748 = vld [vmem:[%s3 + $0xd34] sm:$0xf]
      %v3749 = vld [vmem:[%s3 + $0xd38] sm:$0xf]
      %v3750 = vld [vmem:[%s3 + $0xd3c] sm:$0xf]
      %v3751 = vld [vmem:[%s3 + $0xd40] sm:$0xf]
      %v3752 = vld [vmem:[%s3 + $0xd44] sm:$0xf]
      %v3753 = vld [vmem:[%s3 + $0xd48] sm:$0xf]
      %v3754 = vld [vmem:[%s3 + $0xd4c] sm:$0xf]
      %v3755 = vld [vmem:[%s3 + $0xd50] sm:$0xf]
      %v3756 = vld [vmem:[%s3 + $0xd54] sm:$0xf]
      %v3757 = vld [vmem:[%s3 + $0xd58] sm:$0xf]
      %v3758 = vld [vmem:[%s3 + $0xd5c] sm:$0xf]
      %v3759 = vld [vmem:[%s3 + $0xd60] sm:$0xf]
      %v3760 = vld [vmem:[%s3 + $0xd64] sm:$0xf]
      %v3761 = vld [vmem:[%s3 + $0xd68] sm:$0xf]
      %v3762 = vld [vmem:[%s3 + $0xd6c] sm:$0xf]
      %v3763 = vld [vmem:[%s3 + $0xd70] sm:$0xf]
      %v3764 = vld [vmem:[%s3 + $0xd74] sm:$0xf]
      %v3765 = vld [vmem:[%s3 + $0xd78] sm:$0xf]
      %v3766 = vld [vmem:[%s3 + $0xd7c] sm:$0xf]
      %v3767 = vld [vmem:[%s3 + $0xd80] sm:$0xf]
      %v3768 = vld [vmem:[%s3 + $0xd84] sm:$0xf]
      %v3769 = vld [vmem:[%s3 + $0xd88] sm:$0xf]
      %v3770 = vld [vmem:[%s3 + $0xd8c] sm:$0xf]
      %v3771 = vld [vmem:[%s3 + $0xd90] sm:$0xf]
      %v3772 = vld [vmem:[%s3 + $0xd94] sm:$0xf]
      %v3773 = vld [vmem:[%s3 + $0xd98] sm:$0xf]
      %v3774 = vld [vmem:[%s3 + $0xd9c] sm:$0xf]
      %v3775 = vld [vmem:[%s3 + $0xda0] sm:$0xf]
      %v3776 = vld [vmem:[%s3 + $0xda4] sm:$0xf]
      %v3777 = vld [vmem:[%s3 + $0xda8] sm:$0xf]
      %v3778 = vld [vmem:[%s3 + $0xdac] sm:$0xf]
      %v3779 = vld [vmem:[%s3 + $0xdb0] sm:$0xf]
      %v3780 = vld [vmem:[%s3 + $0xdb4] sm:$0xf]
      %v3781 = vld [vmem:[%s3 + $0xdb8] sm:$0xf]
      %v3782 = vld [vmem:[%s3 + $0xdbc] sm:$0xf]
      %v3783 = vld [vmem:[%s3 + $0xdc0] sm:$0xf]
      %v3784 = vld [vmem:[%s3 + $0xdc4] sm:$0xf]
      %v3785 = vld [vmem:[%s3 + $0xdc8] sm:$0xf]
      %v3786 = vld [vmem:[%s3 + $0xdcc] sm:$0xf]
      %v3787 = vld [vmem:[%s3 + $0xdd0] sm:$0xf]
      %v3788 = vld [vmem:[%s3 + $0xdd4] sm:$0xf]
      %v3789 = vld [vmem:[%s3 + $0xdd8] sm:$0xf]
      %v3790 = vld [vmem:[%s3 + $0xddc] sm:$0xf]
      %v3791 = vld [vmem:[%s3 + $0xde0] sm:$0xf]
      %v3792 = vld [vmem:[%s3 + $0xde4] sm:$0xf]
      %v3793 = vld [vmem:[%s3 + $0xde8] sm:$0xf]
      %v3794 = vld [vmem:[%s3 + $0xdec] sm:$0xf]
      %v3795 = vld [vmem:[%s3 + $0xdf0] sm:$0xf]
      %v3796 = vld [vmem:[%s3 + $0xdf4] sm:$0xf]
      %v3797 = vld [vmem:[%s3 + $0xdf8] sm:$0xf]
      %v3798 = vld [vmem:[%s3 + $0xdfc] sm:$0xf]
      %v3799 = vld [vmem:[%s3 + $0xe00] sm:$0xf]
      %v3800 = vld [vmem:[%s3 + $0xe04] sm:$0xf]
      %v3801 = vld [vmem:[%s3 + $0xe08] sm:$0xf]
      %v3802 = vld [vmem:[%s3 + $0xe0c] sm:$0xf]
      %v3803 = vld [vmem:[%s3 + $0xe10] sm:$0xf]
      %v3804 = vld [vmem:[%s3 + $0xe14] sm:$0xf]
      %v3805 = vld [vmem:[%s3 + $0xe18] sm:$0xf]
      %v3806 = vld [vmem:[%s3 + $0xe1c] sm:$0xf]
      %v3807 = vld [vmem:[%s3 + $0xe20] sm:$0xf]
      %v3808 = vld [vmem:[%s3 + $0xe24] sm:$0xf]
      %v3809 = vld [vmem:[%s3 + $0xe28] sm:$0xf]
      %v3810 = vld [vmem:[%s3 + $0xe2c] sm:$0xf]
      %v3811 = vld [vmem:[%s3 + $0xe30] sm:$0xf]
      %v3812 = vld [vmem:[%s3 + $0xe34] sm:$0xf]
      %v3813 = vld [vmem:[%s3 + $0xe38] sm:$0xf]
      %v3814 = vld [vmem:[%s3 + $0xe3c] sm:$0xf]
      %v3815 = vld [vmem:[%s3 + $0xe40] sm:$0xf]
      %v3816 = vld [vmem:[%s3 + $0xe44] sm:$0xf]
      %v3817 = vld [vmem:[%s3 + $0xe48] sm:$0xf]
      %v3818 = vld [vmem:[%s3 + $0xe4c] sm:$0xf]
      %v3819 = vld [vmem:[%s3 + $0xe50] sm:$0xf]
      %v3820 = vld [vmem:[%s3 + $0xe54] sm:$0xf]
      %v3821 = vld [vmem:[%s3 + $0xe58] sm:$0xf]
      %v3822 = vld [vmem:[%s3 + $0xe5c] sm:$0xf]
      %v3823 = vld [vmem:[%s3 + $0xe60] sm:$0xf]
      %v3824 = vld [vmem:[%s3 + $0xe64] sm:$0xf]
      %v3825 = vld [vmem:[%s3 + $0xe68] sm:$0xf]
      %v3826 = vld [vmem:[%s3 + $0xe6c] sm:$0xf]
      %v3827 = vld [vmem:[%s3 + $0xe70] sm:$0xf]
      %v3828 = vld [vmem:[%s3 + $0xe74] sm:$0xf]
      %v3829 = vld [vmem:[%s3 + $0xe78] sm:$0xf]
      %v3830 = vld [vmem:[%s3 + $0xe7c] sm:$0xf]
      %v3831 = vld [vmem:[%s3 + $0xe80] sm:$0xf]
      %v3832 = vld [vmem:[%s3 + $0xe84] sm:$0xf]
      %v3833 = vld [vmem:[%s3 + $0xe88] sm:$0xf]
      %v3834 = vld [vmem:[%s3 + $0xe8c] sm:$0xf]
      %v3835 = vld [vmem:[%s3 + $0xe90] sm:$0xf]
      %v3836 = vld [vmem:[%s3 + $0xe94] sm:$0xf]
      %v3837 = vld [vmem:[%s3 + $0xe98] sm:$0xf]
      %v3838 = vld [vmem:[%s3 + $0xe9c] sm:$0xf]
      %v3839 = vld [vmem:[%s3 + $0xea0] sm:$0xf]
      %v3840 = vld [vmem:[%s3 + $0xea4] sm:$0xf]
      %v3841 = vld [vmem:[%s3 + $0xea8] sm:$0xf]
      %v3842 = vld [vmem:[%s3 + $0xeac] sm:$0xf]
      %v3843 = vld [vmem:[%s3 + $0xeb0] sm:$0xf]
      %v3844 = vld [vmem:[%s3 + $0xeb4] sm:$0xf]
      %v3845 = vld [vmem:[%s3 + $0xeb8] sm:$0xf]
      %v3846 = vld [vmem:[%s3 + $0xebc] sm:$0xf]
      %v3847 = vld [vmem:[%s3 + $0xec0] sm:$0xf]
      %v3848 = vld [vmem:[%s3 + $0xec4] sm:$0xf]
      %v3849 = vld [vmem:[%s3 + $0xec8] sm:$0xf]
      %v3850 = vld [vmem:[%s3 + $0xecc] sm:$0xf]
      %v3851 = vld [vmem:[%s3 + $0xed0] sm:$0xf]
      %v3852 = vld [vmem:[%s3 + $0xed4] sm:$0xf]
      %v3853 = vld [vmem:[%s3 + $0xed8] sm:$0xf]
      %v3854 = vld [vmem:[%s3 + $0xedc] sm:$0xf]
      %v3855 = vld [vmem:[%s3 + $0xee0] sm:$0xf]
      %v3856 = vld [vmem:[%s3 + $0xee4] sm:$0xf]
      %v3857 = vld [vmem:[%s3 + $0xee8] sm:$0xf]
      %v3858 = vld [vmem:[%s3 + $0xeec] sm:$0xf]
      %v3859 = vld [vmem:[%s3 + $0xef0] sm:$0xf]
      %v3860 = vld [vmem:[%s3 + $0xef4] sm:$0xf]
      %v3861 = vld [vmem:[%s3 + $0xef8] sm:$0xf]
      %v3862 = vld [vmem:[%s3 + $0xefc] sm:$0xf]
      %v3863 = vld [vmem:[%s3 + $0xf00] sm:$0xf]
      %v3864 = vld [vmem:[%s3 + $0xf04] sm:$0xf]
      %v3865 = vld [vmem:[%s3 + $0xf08] sm:$0xf]
      %v3866 = vld [vmem:[%s3 + $0xf0c] sm:$0xf]
      %v3867 = vld [vmem:[%s3 + $0xf10] sm:$0xf]
      %v3868 = vld [vmem:[%s3 + $0xf14] sm:$0xf]
      %v3869 = vld [vmem:[%s3 + $0xf18] sm:$0xf]
      %v3870 = vld [vmem:[%s3 + $0xf1c] sm:$0xf]
      %v3871 = vld [vmem:[%s3 + $0xf20] sm:$0xf]
      %v3872 = vld [vmem:[%s3 + $0xf24] sm:$0xf]
      %v3873 = vld [vmem:[%s3 + $0xf28] sm:$0xf]
      %v3874 = vld [vmem:[%s3 + $0xf2c] sm:$0xf]
      %v3875 = vld [vmem:[%s3 + $0xf30] sm:$0xf]
      %v3876 = vld [vmem:[%s3 + $0xf34] sm:$0xf]
      %v3877 = vld [vmem:[%s3 + $0xf38] sm:$0xf]
      %v3878 = vld [vmem:[%s3 + $0xf3c] sm:$0xf]
      %v3879 = vld [vmem:[%s3 + $0xf40] sm:$0xf]
      %v3880 = vld [vmem:[%s3 + $0xf44] sm:$0xf]
      %v3881 = vld [vmem:[%s3 + $0xf48] sm:$0xf]
      %v3882 = vld [vmem:[%s3 + $0xf4c] sm:$0xf]
      %v3883 = vld [vmem:[%s3 + $0xf50] sm:$0xf]
      %v3884 = vld [vmem:[%s3 + $0xf54] sm:$0xf]
      %v3885 = vld [vmem:[%s3 + $0xf58] sm:$0xf]
      %v3886 = vld [vmem:[%s3 + $0xf5c] sm:$0xf]
      %v3887 = vld [vmem:[%s3 + $0xf60] sm:$0xf]
      %v3888 = vld [vmem:[%s3 + $0xf64] sm:$0xf]
      %v3889 = vld [vmem:[%s3 + $0xf68] sm:$0xf]
      %v3890 = vld [vmem:[%s3 + $0xf6c] sm:$0xf]
      %v3891 = vld [vmem:[%s3 + $0xf70] sm:$0xf]
      %v3892 = vld [vmem:[%s3 + $0xf74] sm:$0xf]
      %v3893 = vld [vmem:[%s3 + $0xf78] sm:$0xf]
      %v3894 = vld [vmem:[%s3 + $0xf7c] sm:$0xf]
      %v3911 = vunpack.c.l.b16 %v2903
      %v3912 = vunpack.c.l.b16 %v2904
      %v3913 = vunpack.c.l.b16 %v2905
      %v3914 = vunpack.c.l.b16 %v2906
      %v3915 = vunpack.c.l.b16 %v2907
      %v3916 = vunpack.c.l.b16 %v2908
      %v3917 = vunpack.c.l.b16 %v2909
      %v3918 = vunpack.c.l.b16 %v2910
      %v3919 = vunpack.c.l.b16 %v2911
      %v3920 = vunpack.c.l.b16 %v2912
      %v3921 = vunpack.c.l.b16 %v2913
      %v3922 = vunpack.c.l.b16 %v2914
      %v3923 = vunpack.c.l.b16 %v2915
      %v3924 = vunpack.c.l.b16 %v2916
      %v3925 = vunpack.c.l.b16 %v2917
      %v3926 = vunpack.c.l.b16 %v2918
      %v3927 = vpack.c.b16 %v3912, %v3911
      %v3928 = vpack.c.b16 %v3914, %v3913
      %v3929 = vpack.c.b16 %v3916, %v3915
      %v3930 = vpack.c.b16 %v3918, %v3917
      %v3931 = vpack.c.b16 %v3920, %v3919
      %v3932 = vpack.c.b16 %v3922, %v3921
      %v3933 = vpack.c.b16 %v3924, %v3923
      %v3934 = vpack.c.b16 %v3926, %v3925
      %3943 = vmatprep.subr.bf16.mxu0 0
      %3944 = vmatpush1.bf16.msra.mxu0 %v3927
      %3945 = vmatprep.subr.bf16.mxu0 0
      %3946 = vmatpush1.bf16.msra.mxu0 %v3928
      %3947 = vmatprep.subr.bf16.mxu0 0
      %3948 = vmatpush1.bf16.msra.mxu0 %v3929
      %3949 = vmatprep.subr.bf16.mxu0 0
      %3950 = vmatpush1.bf16.msra.mxu0 %v3930
      %3951 = vmatprep.subr.bf16.mxu0 0
      %3952 = vmatpush1.bf16.msra.mxu0 %v3931
      %3953 = vmatprep.subr.bf16.mxu0 0
      %3954 = vmatpush1.bf16.msra.mxu0 %v3932
      %3955 = vmatprep.subr.bf16.mxu0 0
      %3956 = vmatpush1.bf16.msra.mxu0 %v3933
      %3957 = vmatprep.subr.bf16.mxu0 0
      %3958 = vmatpush1.bf16.msra.mxu0 %v3934
      %3959 = vmatprep.subr.bf16.mxu0 0
      %3960 = vmatpush1.bf16.msra.mxu0 0
      %3961 = vmatprep.subr.bf16.mxu0 0
      %3962 = vmatpush1.bf16.msra.mxu0 0
      %3963 = vmatprep.subr.bf16.mxu0 0
      %3964 = vmatpush1.bf16.msra.mxu0 0
      %3965 = vmatprep.subr.bf16.mxu0 0
      %3966 = vmatpush1.bf16.msra.mxu0 0
      %3967 = vmatprep.subr.bf16.mxu0 0
      %3968 = vmatpush1.bf16.msra.mxu0 0
      %3969 = vmatprep.subr.bf16.mxu0 0
      %3970 = vmatpush1.bf16.msra.mxu0 0
      %3971 = vmatprep.subr.bf16.mxu0 0
      %3972 = vmatpush1.bf16.msra.mxu0 0
      %3973 = vmatprep.subr.bf16.mxu0 0
      %3974 = vmatpush1.bf16.msra.mxu0 0
      %3975 = vmatprep.mubr.bf16.mxu0 0
      %3976 = vmatmul.mubr.bf16.gmra.mrb[0].mxu0 %v2779
      %v3977 = vpop.f32.mrb[0].mxu0
      %v3978 = vadd.f32 0.0, %v3977
      %v3979 = vpop.f32.mrb[0].mxu0
      %v3980 = vpop.f32.mrb[0].mxu0
      %v3981 = vadd.f32 0.0, %v3980
      %v3982 = vpop.f32.mrb[0].mxu0
      %3983 = vmatprep.mubr.bf16.mxu0 0
      %3984 = vmatmul.mubr.bf16.gmra.mrb[0].mxu0 %v2780
      %v3985 = vpop.f32.mrb[0].mxu0
      %v3986 = vadd.f32 0.0, %v3985
      %v3987 = vpop.f32.mrb[0].mxu0
      %v3988 = vpop.f32.mrb[0].mxu0
      %v3989 = vadd.f32 0.0, %v3988
      %v3990 = vpop.f32.mrb[0].mxu0
      %3991 = vdwg.mxu0
      %v4008 = vunpack.c.l.b16 %v2919
      %v4009 = vunpack.c.l.b16 %v2920
      %v4010 = vunpack.c.l.b16 %v2921
      %v4011 = vunpack.c.l.b16 %v2922
      %v4012 = vunpack.c.l.b16 %v2923
      %v4013 = vunpack.c.l.b16 %v2924
      %v4014 = vunpack.c.l.b16 %v2925
      %v4015 = vunpack.c.l.b16 %v2926
      %v4016 = vunpack.c.l.b16 %v2927
      %v4017 = vunpack.c.l.b16 %v2928
      %v4018 = vunpack.c.l.b16 %v2929
      %v4019 = vunpack.c.l.b16 %v2930
      %v4020 = vunpack.c.l.b16 %v2931
      %v4021 = vunpack.c.l.b16 %v2932
      %v4022 = vunpack.c.l.b16 %v2933
      %v4023 = vunpack.c.l.b16 %v2934
      %v4024 = vpack.c.b16 %v4009, %v4008
      %v4025 = vpack.c.b16 %v4011, %v4010
      %v4026 = vpack.c.b16 %v4013, %v4012
      %v4027 = vpack.c.b16 %v4015, %v4014
      %v4028 = vpack.c.b16 %v4017, %v4016
      %v4029 = vpack.c.b16 %v4019, %v4018
      %v4030 = vpack.c.b16 %v4021, %v4020
      %v4031 = vpack.c.b16 %v4023, %v4022
      %4040 = vmatprep.subr.bf16.mxu0 0
      %4041 = vmatpush1.bf16.msra.mxu0 %v4024
      %4042 = vmatprep.subr.bf16.mxu0 0
      %4043 = vmatpush1.bf16.msra.mxu0 %v4025
      %4044 = vmatprep.subr.bf16.mxu0 0
      %4045 = vmatpush1.bf16.msra.mxu0 %v4026
      %4046 = vmatprep.subr.bf16.mxu0 0
      %4047 = vmatpush1.bf16.msra.mxu0 %v4027
      %4048 = vmatprep.subr.bf16.mxu0 0
      %4049 = vmatpush1.bf16.msra.mxu0 %v4028
      %4050 = vmatprep.subr.bf16.mxu0 0
      %4051 = vmatpush1.bf16.msra.mxu0 %v4029
      %4052 = vmatprep.subr.bf16.mxu0 0
      %4053 = vmatpush1.bf16.msra.mxu0 %v4030
      %4054 = vmatprep.subr.bf16.mxu0 0
      %4055 = vmatpush1.bf16.msra.mxu0 %v4031
      %4056 = vmatprep.subr.bf16.mxu0 0
      %4057 = vmatpush1.bf16.msra.mxu0 0
      %4058 = vmatprep.subr.bf16.mxu0 0
      %4059 = vmatpush1.bf16.msra.mxu0 0
      %4060 = vmatprep.subr.bf16.mxu0 0
      %4061 = vmatpush1.bf16.msra.mxu0 0
      %4062 = vmatprep.subr.bf16.mxu0 0
      %4063 = vmatpush1.bf16.msra.mxu0 0
      %4064 = vmatprep.subr.bf16.mxu0 0
      %4065 = vmatpush1.bf16.msra.mxu0 0
      %4066 = vmatprep.subr.bf16.mxu0 0
      %4067 = vmatpush1.bf16.msra.mxu0 0
      %4068 = vmatprep.subr.bf16.mxu0 0
      %4069 = vmatpush1.bf16.msra.mxu0 0
      %4070 = vmatprep.subr.bf16.mxu0 0
      %4071 = vmatpush1.bf16.msra.mxu0 0
      %4072 = vmatprep.mubr.bf16.mxu0 0
      %4073 = vmatmul.mubr.bf16.gmra.mrb[0].mxu0 %v2781
      %v4074 = vpop.f32.mrb[0].mxu0
      %v4075 = vadd.f32 0.0, %v4074
      %v4076 = vpop.f32.mrb[0].mxu0
      %v4077 = vpop.f32.mrb[0].mxu0
      %v4078 = vadd.f32 0.0, %v4077
      %v4079 = vpop.f32.mrb[0].mxu0
      %4080 = vmatprep.mubr.bf16.mxu0 0
      %4081 = vmatmul.mubr.bf16.gmra.mrb[0].mxu0 %v2782
      %v4082 = vpop.f32.mrb[0].mxu0
      %v4083 = vadd.f32 0.0, %v4082
      %v4084 = vpop.f32.mrb[0].mxu0
      %v4085 = vpop.f32.mrb[0].mxu0
      %v4086 = vadd.f32 0.0, %v4085
      %v4087 = vpop.f32.mrb[0].mxu0
      %4088 = vdwg.mxu0
      %v4105 = vunpack.c.l.b16 %v2935
      %v4106 = vunpack.c.l.b16 %v2936
      %v4107 = vunpack.c.l.b16 %v2937
      %v4108 = vunpack.c.l.b16 %v2938
      %v4109 = vunpack.c.l.b16 %v2939
      %v4110 = vunpack.c.l.b16 %v2940
      %v4111 = vunpack.c.l.b16 %v2941
      %v4112 = vunpack.c.l.b16 %v2942
      %v4113 = vunpack.c.l.b16 %v2943
      %v4114 = vunpack.c.l.b16 %v2944
      %v4115 = vunpack.c.l.b16 %v2945
      %v4116 = vunpack.c.l.b16 %v2946
      %v4117 = vunpack.c.l.b16 %v2947
      %v4118 = vunpack.c.l.b16 %v2948
      %v4119 = vunpack.c.l.b16 %v2949
      %v4120 = vunpack.c.l.b16 %v2950
      %v4121 = vpack.c.b16 %v4106, %v4105
      %v4122 = vpack.c.b16 %v4108, %v4107
      %v4123 = vpack.c.b16 %v4110, %v4109
      %v4124 = vpack.c.b16 %v4112, %v4111
      %v4125 = vpack.c.b16 %v4114, %v4113
      %v4126 = vpack.c.b16 %v4116, %v4115
      %v4127 = vpack.c.b16 %v4118, %v4117
      %v4128 = vpack.c.b16 %v4120, %v4119
      %4137 = vmatprep.subr.bf16.mxu0 0
      %4138 = vmatpush1.bf16.msra.mxu0 %v4121
      %4139 = vmatprep.subr.bf16.mxu0 0
      %4140 = vmatpush1.bf16.msra.mxu0 %v4122
      %4141 = vmatprep.subr.bf16.mxu0 0
      %4142 = vmatpush1.bf16.msra.mxu0 %v4123
      %4143 = vmatprep.subr.bf16.mxu0 0
      %4144 = vmatpush1.bf16.msra.mxu0 %v4124
      %4145 = vmatprep.subr.bf16.mxu0 0
      %4146 = vmatpush1.bf16.msra.mxu0 %v4125
      %4147 = vmatprep.subr.bf16.mxu0 0
      %4148 = vmatpush1.bf16.msra.mxu0 %v4126
      %4149 = vmatprep.subr.bf16.mxu0 0
      %4150 = vmatpush1.bf16.msra.mxu0 %v4127
      %4151 = vmatprep.subr.bf16.mxu0 0
      %4152 = vmatpush1.bf16.msra.mxu0 %v4128
      %4153 = vmatprep.subr.bf16.mxu0 0
      %4154 = vmatpush1.bf16.msra.mxu0 0
      %4155 = vmatprep.subr.bf16.mxu0 0
      %4156 = vmatpush1.bf16.msra.mxu0 0
      %4157 = vmatprep.subr.bf16.mxu0 0
      %4158 = vmatpush1.bf16.msra.mxu0 0
      %4159 = vmatprep.subr.bf16.mxu0 0
      %4160 = vmatpush1.bf16.msra.mxu0 0
      %4161 = vmatprep.subr.bf16.mxu0 0
      %4162 = vmatpush1.bf16.msra.mxu0 0
      %4163 = vmatprep.subr.bf16.mxu0 0
      %4164 = vmatpush1.bf16.msra.mxu0 0
      %4165 = vmatprep.subr.bf16.mxu0 0
      %4166 = vmatpush1.bf16.msra.mxu0 0
      %4167 = vmatprep.subr.bf16.mxu0 0
      %4168 = vmatpush1.bf16.msra.mxu0 0
      %4169 = vmatprep.mubr.bf16.mxu0 0
      %4170 = vmatmul.mubr.bf16.gmra.mrb[0].mxu0 %v2783
      %v4171 = vpop.f32.mrb[0].mxu0
      %v4172 = vadd.f32 0.0, %v4171
      %v4173 = vpop.f32.mrb[0].mxu0
      %v4174 = vpop.f32.mrb[0].mxu0
      %v4175 = vadd.f32 0.0, %v4174
      %v4176 = vpop.f32.mrb[0].mxu0
      %4177 = vmatprep.mubr.bf16.mxu0 0
      %4178 = vmatmul.mubr.bf16.gmra.mrb[0].mxu0 %v2784
      %v4179 = vpop.f32.mrb[0].mxu0
      %v4180 = vadd.f32 0.0, %v4179
      %v4181 = vpop.f32.mrb[0].mxu0
      %v4182 = vpop.f32.mrb[0].mxu0
      %v4183 = vadd.f32 0.0, %v4182
      %v4184 = vpop.f32.mrb[0].mxu0
      %4185 = vdwg.mxu0
      %v4202 = vunpack.c.l.b16 %v2951
      %v4203 = vunpack.c.l.b16 %v2952
      %v4204 = vunpack.c.l.b16 %v2953
      %v4205 = vunpack.c.l.b16 %v2954
      %v4206 = vunpack.c.l.b16 %v2955
      %v4207 = vunpack.c.l.b16 %v2956
      %v4208 = vunpack.c.l.b16 %v2957
      %v4209 = vunpack.c.l.b16 %v2958
      %v4210 = vunpack.c.l.b16 %v2959
      %v4211 = vunpack.c.l.b16 %v2960
      %v4212 = vunpack.c.l.b16 %v2961
      %v4213 = vunpack.c.l.b16 %v2962
      %v4214 = vunpack.c.l.b16 %v2963
      %v4215 = vunpack.c.l.b16 %v2964
      %v4216 = vunpack.c.l.b16 %v2965
      %v4217 = vunpack.c.l.b16 %v2966
      %v4218 = vpack.c.b16 %v4203, %v4202
      %v4219 = vpack.c.b16 %v4205, %v4204
      %v4220 = vpack.c.b16 %v4207, %v4206
      %v4221 = vpack.c.b16 %v4209, %v4208
      %v4222 = vpack.c.b16 %v4211, %v4210
      %v4223 = vpack.c.b16 %v4213, %v4212
      %v4224 = vpack.c.b16 %v4215, %v4214
      %v4225 = vpack.c.b16 %v4217, %v4216
      %4234 = vmatprep.subr.bf16.mxu0 0
      %4235 = vmatpush1.bf16.msra.mxu0 %v4218
      %4236 = vmatprep.subr.bf16.mxu0 0
      %4237 = vmatpush1.bf16.msra.mxu0 %v4219
      %4238 = vmatprep.subr.bf16.mxu0 0
      %4239 = vmatpush1.bf16.msra.mxu0 %v4220
      %4240 = vmatprep.subr.bf16.mxu0 0
      %4241 = vmatpush1.bf16.msra.mxu0 %v4221
      %4242 = vmatprep.subr.bf16.mxu0 0
      %4243 = vmatpush1.bf16.msra.mxu0 %v4222
      %4244 = vmatprep.subr.bf16.mxu0 0
      %4245 = vmatpush1.bf16.msra.mxu0 %v4223
      %4246 = vmatprep.subr.bf16.mxu0 0
      %4247 = vmatpush1.bf16.msra.mxu0 %v4224
      %4248 = vmatprep.subr.bf16.mxu0 0
      %4249 = vmatpush1.bf16.msra.mxu0 %v4225
      %4250 = vmatprep.subr.bf16.mxu0 0
      %4251 = vmatpush1.bf16.msra.mxu0 0
      %4252 = vmatprep.subr.bf16.mxu0 0
      %4253 = vmatpush1.bf16.msra.mxu0 0
      %4254 = vmatprep.subr.bf16.mxu0 0
      %4255 = vmatpush1.bf16.msra.mxu0 0
      %4256 = vmatprep.subr.bf16.mxu0 0
      %4257 = vmatpush1.bf16.msra.mxu0 0
      %4258 = vmatprep.subr.bf16.mxu0 0
      %4259 = vmatpush1.bf16.msra.mxu0 0
      %4260 = vmatprep.subr.bf16.mxu0 0
      %4261 = vmatpush1.bf16.msra.mxu0 0
      %4262 = vmatprep.subr.bf16.mxu0 0
      %4263 = vmatpush1.bf16.msra.mxu0 0
      %4264 = vmatprep.subr.bf16.mxu0 0
      %4265 = vmatpush1.bf16.msra.mxu0 0
      %4266 = vmatprep.mubr.bf16.mxu0 0
      %4267 = vmatmul.mubr.bf16.gmra.mrb[0].mxu0 %v2785
      %v4268 = vpop.f32.mrb[0].mxu0
      %v4269 = vadd.f32 0.0, %v4268
      %v4270 = vpop.f32.mrb[0].mxu0
      %v4271 = vpop.f32.mrb[0].mxu0
      %v4272 = vadd.f32 0.0, %v4271
      %v4273 = vpop.f32.mrb[0].mxu0
      %4274 = vmatprep.mubr.bf16.mxu0 0
      %4275 = vmatmul.mubr.bf16.gmra.mrb[0].mxu0 %v2786
      %v4276 = vpop.f32.mrb[0].mxu0
      %v4277 = vadd.f32 0.0, %v4276
      %v4278 = vpop.f32.mrb[0].mxu0
      %v4279 = vpop.f32.mrb[0].mxu0
      %v4280 = vadd.f32 0.0, %v4279
      %v4281 = vpop.f32.mrb[0].mxu0
      %4282 = vdwg.mxu0
      %v4299 = vunpack.c.l.b16 %v2967
      %v4300 = vunpack.c.l.b16 %v2968
      %v4301 = vunpack.c.l.b16 %v2969
      %v4302 = vunpack.c.l.b16 %v2970
      %v4303 = vunpack.c.l.b16 %v2971
      %v4304 = vunpack.c.l.b16 %v2972
      %v4305 = vunpack.c.l.b16 %v2973
      %v4306 = vunpack.c.l.b16 %v2974
      %v4307 = vunpack.c.l.b16 %v2975
      %v4308 = vunpack.c.l.b16 %v2976
      %v4309 = vunpack.c.l.b16 %v2977
      %v4310 = vunpack.c.l.b16 %v2978
      %v4311 = vunpack.c.l.b16 %v2979
      %v4312 = vunpack.c.l.b16 %v2980
      %v4313 = vunpack.c.l.b16 %v2981
      %v4314 = vunpack.c.l.b16 %v2982
      %v4315 = vpack.c.b16 %v4300, %v4299
      %v4316 = vpack.c.b16 %v4302, %v4301
      %v4317 = vpack.c.b16 %v4304, %v4303
      %v4318 = vpack.c.b16 %v4306, %v4305
      %v4319 = vpack.c.b16 %v4308, %v4307
      %v4320 = vpack.c.b16 %v4310, %v4309
      %v4321 = vpack.c.b16 %v4312, %v4311
      %v4322 = vpack.c.b16 %v4314, %v4313
      %4331 = vmatprep.subr.bf16.mxu0 0
      %4332 = vmatpush1.bf16.msra.mxu0 %v4315
      %4333 = vmatprep.subr.bf16.mxu0 0
      %4334 = vmatpush1.bf16.msra.mxu0 %v4316
      %4335 = vmatprep.subr.bf16.mxu0 0
      %4336 = vmatpush1.bf16.msra.mxu0 %v4317
      %4337 = vmatprep.subr.bf16.mxu0 0
      %4338 = vmatpush1.bf16.msra.mxu0 %v4318
      %4339 = vmatprep.subr.bf16.mxu0 0
      %4340 = vmatpush1.bf16.msra.mxu0 %v4319
      %4341 = vmatprep.subr.bf16.mxu0 0
      %4342 = vmatpush1.bf16.msra.mxu0 %v4320
      %4343 = vmatprep.subr.bf16.mxu0 0
      %4344 = vmatpush1.bf16.msra.mxu0 %v4321
      %4345 = vmatprep.subr.bf16.mxu0 0
      %4346 = vmatpush1.bf16.msra.mxu0 %v4322
      %4347 = vmatprep.subr.bf16.mxu0 0
      %4348 = vmatpush1.bf16.msra.mxu0 0
      %4349 = vmatprep.subr.bf16.mxu0 0
      %4350 = vmatpush1.bf16.msra.mxu0 0
      %4351 = vmatprep.subr.bf16.mxu0 0
      %4352 = vmatpush1.bf16.msra.mxu0 0
      %4353 = vmatprep.subr.bf16.mxu0 0
      %4354 = vmatpush1.bf16.msra.mxu0 0
      %4355 = vmatprep.subr.bf16.mxu0 0
      %4356 = vmatpush1.bf16.msra.mxu0 0
      %4357 = vmatprep.subr.bf16.mxu0 0
      %4358 = vmatpush1.bf16.msra.mxu0 0
      %4359 = vmatprep.subr.bf16.mxu0 0
      %4360 = vmatpush1.bf16.msra.mxu0 0
      %4361 = vmatprep.subr.bf16.mxu0 0
      %4362 = vmatpush1.bf16.msra.mxu0 0
      %4363 = vmatprep.mubr.bf16.mxu0 0
      %4364 = vmatmul.mubr.bf16.gmra.mrb[0].mxu0 %v2787
      %v4365 = vpop.f32.mrb[0].mxu0
      %v4366 = vadd.f32 0.0, %v4365
      %v4367 = vpop.f32.mrb[0].mxu0
      %v4368 = vpop.f32.mrb[0].mxu0
      %v4369 = vadd.f32 0.0, %v4368
      %v4370 = vpop.f32.mrb[0].mxu0
      %4371 = vmatprep.mubr.bf16.mxu0 0
      %4372 = vmatmul.mubr.bf16.gmra.mrb[0].mxu0 %v2788
      %v4373 = vpop.f32.mrb[0].mxu0
      %v4374 = vadd.f32 0.0, %v4373
      %v4375 = vpop.f32.mrb[0].mxu0
      %v4376 = vpop.f32.mrb[0].mxu0
      %v4377 = vadd.f32 0.0, %v4376
      %v4378 = vpop.f32.mrb[0].mxu0
      %4379 = vdwg.mxu0
      %v4396 = vunpack.c.l.b16 %v2983
      %v4397 = vunpack.c.l.b16 %v2984
      %v4398 = vunpack.c.l.b16 %v2985
      %v4399 = vunpack.c.l.b16 %v2986
      %v4400 = vunpack.c.l.b16 %v2987
      %v4401 = vunpack.c.l.b16 %v2988
      %v4402 = vunpack.c.l.b16 %v2989
      %v4403 = vunpack.c.l.b16 %v2990
      %v4404 = vunpack.c.l.b16 %v2991
      %v4405 = vunpack.c.l.b16 %v2992
      %v4406 = vunpack.c.l.b16 %v2993
      %v4407 = vunpack.c.l.b16 %v2994
      %v4408 = vunpack.c.l.b16 %v2995
      %v4409 = vunpack.c.l.b16 %v2996
      %v4410 = vunpack.c.l.b16 %v2997
      %v4411 = vunpack.c.l.b16 %v2998
      %v4412 = vpack.c.b16 %v4397, %v4396
      %v4413 = vpack.c.b16 %v4399, %v4398
      %v4414 = vpack.c.b16 %v4401, %v4400
      %v4415 = vpack.c.b16 %v4403, %v4402
      %v4416 = vpack.c.b16 %v4405, %v4404
      %v4417 = vpack.c.b16 %v4407, %v4406
      %v4418 = vpack.c.b16 %v4409, %v4408
      %v4419 = vpack.c.b16 %v4411, %v4410
      %4428 = vmatprep.subr.bf16.mxu0 0
      %4429 = vmatpush1.bf16.msra.mxu0 %v4412
      %4430 = vmatprep.subr.bf16.mxu0 0
      %4431 = vmatpush1.bf16.msra.mxu0 %v4413
      %4432 = vmatprep.subr.bf16.mxu0 0
      %4433 = vmatpush1.bf16.msra.mxu0 %v4414
      %4434 = vmatprep.subr.bf16.mxu0 0
      %4435 = vmatpush1.bf16.msra.mxu0 %v4415
      %4436 = vmatprep.subr.bf16.mxu0 0
      %4437 = vmatpush1.bf16.msra.mxu0 %v4416
      %4438 = vmatprep.subr.bf16.mxu0 0
      %4439 = vmatpush1.bf16.msra.mxu0 %v4417
      %4440 = vmatprep.subr.bf16.mxu0 0
      %4441 = vmatpush1.bf16.msra.mxu0 %v4418
      %4442 = vmatprep.subr.bf16.mxu0 0
      %4443 = vmatpush1.bf16.msra.mxu0 %v4419
      %4444 = vmatprep.subr.bf16.mxu0 0
      %4445 = vmatpush1.bf16.msra.mxu0 0
      %4446 = vmatprep.subr.bf16.mxu0 0
      %4447 = vmatpush1.bf16.msra.mxu0 0
      %4448 = vmatprep.subr.bf16.mxu0 0
      %4449 = vmatpush1.bf16.msra.mxu0 0
      %4450 = vmatprep.subr.bf16.mxu0 0
      %4451 = vmatpush1.bf16.msra.mxu0 0
      %4452 = vmatprep.subr.bf16.mxu0 0
      %4453 = vmatpush1.bf16.msra.mxu0 0
      %4454 = vmatprep.subr.bf16.mxu0 0
      %4455 = vmatpush1.bf16.msra.mxu0 0
      %4456 = vmatprep.subr.bf16.mxu0 0
      %4457 = vmatpush1.bf16.msra.mxu0 0
      %4458 = vmatprep.subr.bf16.mxu0 0
      %4459 = vmatpush1.bf16.msra.mxu0 0
      %4460 = vmatprep.mubr.bf16.mxu0 0
      %4461 = vmatmul.mubr.bf16.gmra.mrb[0].mxu0 %v2789
      %v4462 = vpop.f32.mrb[0].mxu0
      %v4463 = vadd.f32 0.0, %v4462
      %v4464 = vpop.f32.mrb[0].mxu0
      %v4465 = vpop.f32.mrb[0].mxu0
      %v4466 = vadd.f32 0.0, %v4465
      %v4467 = vpop.f32.mrb[0].mxu0
      %4468 = vmatprep.mubr.bf16.mxu0 0
      %4469 = vmatmul.mubr.bf16.gmra.mrb[0].mxu0 %v2790
      %v4470 = vpop.f32.mrb[0].mxu0
      %v4471 = vadd.f32 0.0, %v4470
      %v4472 = vpop.f32.mrb[0].mxu0
      %v4473 = vpop.f32.mrb[0].mxu0
      %v4474 = vadd.f32 0.0, %v4473
      %v4475 = vpop.f32.mrb[0].mxu0
      %4476 = vdwg.mxu0
      %v4493 = vunpack.c.l.b16 %v2999
      %v4494 = vunpack.c.l.b16 %v3000
      %v4495 = vunpack.c.l.b16 %v3001
      %v4496 = vunpack.c.l.b16 %v3002
      %v4497 = vunpack.c.l.b16 %v3003
      %v4498 = vunpack.c.l.b16 %v3004
      %v4499 = vunpack.c.l.b16 %v3005
      %v4500 = vunpack.c.l.b16 %v3006
      %v4501 = vunpack.c.l.b16 %v3007
      %v4502 = vunpack.c.l.b16 %v3008
      %v4503 = vunpack.c.l.b16 %v3009
      %v4504 = vunpack.c.l.b16 %v3010
      %v4505 = vunpack.c.l.b16 %v3011
      %v4506 = vunpack.c.l.b16 %v3012
      %v4507 = vunpack.c.l.b16 %v3013
      %v4508 = vunpack.c.l.b16 %v3014
      %v4509 = vpack.c.b16 %v4494, %v4493
      %v4510 = vpack.c.b16 %v4496, %v4495
      %v4511 = vpack.c.b16 %v4498, %v4497
      %v4512 = vpack.c.b16 %v4500, %v4499
      %v4513 = vpack.c.b16 %v4502, %v4501
      %v4514 = vpack.c.b16 %v4504, %v4503
      %v4515 = vpack.c.b16 %v4506, %v4505
      %v4516 = vpack.c.b16 %v4508, %v4507
      %4525 = vmatprep.subr.bf16.mxu0 0
      %4526 = vmatpush1.bf16.msra.mxu0 %v4509
      %4527 = vmatprep.subr.bf16.mxu0 0
      %4528 = vmatpush1.bf16.msra.mxu0 %v4510
      %4529 = vmatprep.subr.bf16.mxu0 0
      %4530 = vmatpush1.bf16.msra.mxu0 %v4511
      %4531 = vmatprep.subr.bf16.mxu0 0
      %4532 = vmatpush1.bf16.msra.mxu0 %v4512
      %4533 = vmatprep.subr.bf16.mxu0 0
      %4534 = vmatpush1.bf16.msra.mxu0 %v4513
      %4535 = vmatprep.subr.bf16.mxu0 0
      %4536 = vmatpush1.bf16.msra.mxu0 %v4514
      %4537 = vmatprep.subr.bf16.mxu0 0
      %4538 = vmatpush1.bf16.msra.mxu0 %v4515
      %4539 = vmatprep.subr.bf16.mxu0 0
      %4540 = vmatpush1.bf16.msra.mxu0 %v4516
      %4541 = vmatprep.subr.bf16.mxu0 0
      %4542 = vmatpush1.bf16.msra.mxu0 0
      %4543 = vmatprep.subr.bf16.mxu0 0
      %4544 = vmatpush1.bf16.msra.mxu0 0
      %4545 = vmatprep.subr.bf16.mxu0 0
      %4546 = vmatpush1.bf16.msra.mxu0 0
      %4547 = vmatprep.subr.bf16.mxu0 0
      %4548 = vmatpush1.bf16.msra.mxu0 0
      %4549 = vmatprep.subr.bf16.mxu0 0
      %4550 = vmatpush1.bf16.msra.mxu0 0
      %4551 = vmatprep.subr.bf16.mxu0 0
      %4552 = vmatpush1.bf16.msra.mxu0 0
      %4553 = vmatprep.subr.bf16.mxu0 0
      %4554 = vmatpush1.bf16.msra.mxu0 0
      %4555 = vmatprep.subr.bf16.mxu0 0
      %4556 = vmatpush1.bf16.msra.mxu0 0
      %4557 = vmatprep.mubr.bf16.mxu0 0
      %4558 = vmatmul.mubr.bf16.gmra.mrb[0].mxu0 %v2791
      %v4559 = vpop.f32.mrb[0].mxu0
      %v4560 = vadd.f32 0.0, %v4559
      %v4561 = vpop.f32.mrb[0].mxu0
      %v4562 = vpop.f32.mrb[0].mxu0
      %v4563 = vadd.f32 0.0, %v4562
      %v4564 = vpop.f32.mrb[0].mxu0
      %4565 = vmatprep.mubr.bf16.mxu0 0
      %4566 = vmatmul.mubr.bf16.gmra.mrb[0].mxu0 %v2792
      %v4567 = vpop.f32.mrb[0].mxu0
      %v4568 = vadd.f32 0.0, %v4567
      %v4569 = vpop.f32.mrb[0].mxu0
      %v4570 = vpop.f32.mrb[0].mxu0
      %v4571 = vadd.f32 0.0, %v4570
      %v4572 = vpop.f32.mrb[0].mxu0
      %4573 = vdwg.mxu0
      %v4590 = vunpack.c.l.b16 %v3015
      %v4591 = vunpack.c.l.b16 %v3016
      %v4592 = vunpack.c.l.b16 %v3017
      %v4593 = vunpack.c.l.b16 %v3018
      %v4594 = vunpack.c.l.b16 %v3019
      %v4595 = vunpack.c.l.b16 %v3020
      %v4596 = vunpack.c.l.b16 %v3021
      %v4597 = vunpack.c.l.b16 %v3022
      %v4598 = vunpack.c.l.b16 %v3023
      %v4599 = vunpack.c.l.b16 %v3024
      %v4600 = vunpack.c.l.b16 %v3025
      %v4601 = vunpack.c.l.b16 %v3026
      %v4602 = vunpack.c.l.b16 %v3027
      %v4603 = vunpack.c.l.b16 %v3028
      %v4604 = vunpack.c.l.b16 %v3029
      %v4605 = vunpack.c.l.b16 %v3030
      %v4606 = vpack.c.b16 %v4591, %v4590
      %v4607 = vpack.c.b16 %v4593, %v4592
      %v4608 = vpack.c.b16 %v4595, %v4594
      %v4609 = vpack.c.b16 %v4597, %v4596
      %v4610 = vpack.c.b16 %v4599, %v4598
      %v4611 = vpack.c.b16 %v4601, %v4600
      %v4612 = vpack.c.b16 %v4603, %v4602
      %v4613 = vpack.c.b16 %v4605, %v4604
      %4622 = vmatprep.subr.bf16.mxu0 0
      %4623 = vmatpush1.bf16.msra.mxu0 %v4606
      %4624 = vmatprep.subr.bf16.mxu0 0
      %4625 = vmatpush1.bf16.msra.mxu0 %v4607
      %4626 = vmatprep.subr.bf16.mxu0 0
      %4627 = vmatpush1.bf16.msra.mxu0 %v4608
      %4628 = vmatprep.subr.bf16.mxu0 0
      %4629 = vmatpush1.bf16.msra.mxu0 %v4609
      %4630 = vmatprep.subr.bf16.mxu0 0
      %4631 = vmatpush1.bf16.msra.mxu0 %v4610
      %4632 = vmatprep.subr.bf16.mxu0 0
      %4633 = vmatpush1.bf16.msra.mxu0 %v4611
      %4634 = vmatprep.subr.bf16.mxu0 0
      %4635 = vmatpush1.bf16.msra.mxu0 %v4612
      %4636 = vmatprep.subr.bf16.mxu0 0
      %4637 = vmatpush1.bf16.msra.mxu0 %v4613
      %4638 = vmatprep.subr.bf16.mxu0 0
      %4639 = vmatpush1.bf16.msra.mxu0 0
      %4640 = vmatprep.subr.bf16.mxu0 0
      %4641 = vmatpush1.bf16.msra.mxu0 0
      %4642 = vmatprep.subr.bf16.mxu0 0
      %4643 = vmatpush1.bf16.msra.mxu0 0
      %4644 = vmatprep.subr.bf16.mxu0 0
      %4645 = vmatpush1.bf16.msra.mxu0 0
      %4646 = vmatprep.subr.bf16.mxu0 0
      %4647 = vmatpush1.bf16.msra.mxu0 0
      %4648 = vmatprep.subr.bf16.mxu0 0
      %4649 = vmatpush1.bf16.msra.mxu0 0
      %4650 = vmatprep.subr.bf16.mxu0 0
      %4651 = vmatpush1.bf16.msra.mxu0 0
      %4652 = vmatprep.subr.bf16.mxu0 0
      %4653 = vmatpush1.bf16.msra.mxu0 0
      %4654 = vmatprep.mubr.bf16.mxu0 0
      %4655 = vmatmul.mubr.bf16.gmra.mrb[0].mxu0 %v2793
      %v4656 = vpop.f32.mrb[0].mxu0
      %v4657 = vadd.f32 0.0, %v4656
      %v4658 = vpop.f32.mrb[0].mxu0
      %v4659 = vpop.f32.mrb[0].mxu0
      %v4660 = vadd.f32 0.0, %v4659
      %v4661 = vpop.f32.mrb[0].mxu0
      %4662 = vmatprep.mubr.bf16.mxu0 0
      %4663 = vmatmul.mubr.bf16.gmra.mrb[0].mxu0 %v2794
      %v4664 = vpop.f32.mrb[0].mxu0
      %v4665 = vadd.f32 0.0, %v4664
      %v4666 = vpop.f32.mrb[0].mxu0
      %v4667 = vpop.f32.mrb[0].mxu0
      %v4668 = vadd.f32 0.0, %v4667
      %v4669 = vpop.f32.mrb[0].mxu0
      %4670 = vdwg.mxu0
      %v4687 = vunpack.c.l.b16 %v3031
      %v4688 = vunpack.c.l.b16 %v3032
      %v4689 = vunpack.c.l.b16 %v3033
      %v4690 = vunpack.c.l.b16 %v3034
      %v4691 = vunpack.c.l.b16 %v3035
      %v4692 = vunpack.c.l.b16 %v3036
      %v4693 = vunpack.c.l.b16 %v3037
      %v4694 = vunpack.c.l.b16 %v3038
      %v4695 = vunpack.c.l.b16 %v3039
      %v4696 = vunpack.c.l.b16 %v3040
      %v4697 = vunpack.c.l.b16 %v3041
      %v4698 = vunpack.c.l.b16 %v3042
      %v4699 = vunpack.c.l.b16 %v3043
      %v4700 = vunpack.c.l.b16 %v3044
      %v4701 = vunpack.c.l.b16 %v3045
      %v4702 = vunpack.c.l.b16 %v3046
      %v4703 = vpack.c.b16 %v4688, %v4687
      %v4704 = vpack.c.b16 %v4690, %v4689
      %v4705 = vpack.c.b16 %v4692, %v4691
      %v4706 = vpack.c.b16 %v4694, %v4693
      %v4707 = vpack.c.b16 %v4696, %v4695
      %v4708 = vpack.c.b16 %v4698, %v4697
      %v4709 = vpack.c.b16 %v4700, %v4699
      %v4710 = vpack.c.b16 %v4702, %v4701
      %4719 = vmatprep.subr.bf16.mxu0 0
      %4720 = vmatpush1.bf16.msra.mxu0 %v4703
      %4721 = vmatprep.subr.bf16.mxu0 0
      %4722 = vmatpush1.bf16.msra.mxu0 %v4704
      %4723 = vmatprep.subr.bf16.mxu0 0
      %4724 = vmatpush1.bf16.msra.mxu0 %v4705
      %4725 = vmatprep.subr.bf16.mxu0 0
      %4726 = vmatpush1.bf16.msra.mxu0 %v4706
      %4727 = vmatprep.subr.bf16.mxu0 0
      %4728 = vmatpush1.bf16.msra.mxu0 %v4707
      %4729 = vmatprep.subr.bf16.mxu0 0
      %4730 = vmatpush1.bf16.msra.mxu0 %v4708
      %4731 = vmatprep.subr.bf16.mxu0 0
      %4732 = vmatpush1.bf16.msra.mxu0 %v4709
      %4733 = vmatprep.subr.bf16.mxu0 0
      %4734 = vmatpush1.bf16.msra.mxu0 %v4710
      %4735 = vmatprep.subr.bf16.mxu0 0
      %4736 = vmatpush1.bf16.msra.mxu0 0
      %4737 = vmatprep.subr.bf16.mxu0 0
      %4738 = vmatpush1.bf16.msra.mxu0 0
      %4739 = vmatprep.subr.bf16.mxu0 0
      %4740 = vmatpush1.bf16.msra.mxu0 0
      %4741 = vmatprep.subr.bf16.mxu0 0
      %4742 = vmatpush1.bf16.msra.mxu0 0
      %4743 = vmatprep.subr.bf16.mxu0 0
      %4744 = vmatpush1.bf16.msra.mxu0 0
      %4745 = vmatprep.subr.bf16.mxu0 0
      %4746 = vmatpush1.bf16.msra.mxu0 0
      %4747 = vmatprep.subr.bf16.mxu0 0
      %4748 = vmatpush1.bf16.msra.mxu0 0
      %4749 = vmatprep.subr.bf16.mxu0 0
      %4750 = vmatpush1.bf16.msra.mxu0 0
      %4751 = vmatprep.mubr.bf16.mxu0 0
      %4752 = vmatmul.mubr.bf16.gmra.mrb[0].mxu0 %v2795
      %v4753 = vpop.f32.mrb[0].mxu0
      %v4754 = vadd.f32 0.0, %v4753
      %v4755 = vpop.f32.mrb[0].mxu0
      %v4756 = vpop.f32.mrb[0].mxu0
      %v4757 = vadd.f32 0.0, %v4756
      %v4758 = vpop.f32.mrb[0].mxu0
      %4759 = vmatprep.mubr.bf16.mxu0 0
      %4760 = vmatmul.mubr.bf16.gmra.mrb[0].mxu0 %v2796
      %v4761 = vpop.f32.mrb[0].mxu0
      %v4762 = vadd.f32 0.0, %v4761
      %v4763 = vpop.f32.mrb[0].mxu0
      %v4764 = vpop.f32.mrb[0].mxu0
      %v4765 = vadd.f32 0.0, %v4764
      %v4766 = vpop.f32.mrb[0].mxu0
      %4767 = vdwg.mxu0
      %v4784 = vunpack.c.l.b16 %v3047
      %v4785 = vunpack.c.l.b16 %v3048
      %v4786 = vunpack.c.l.b16 %v3049
      %v4787 = vunpack.c.l.b16 %v3050
      %v4788 = vunpack.c.l.b16 %v3051
      %v4789 = vunpack.c.l.b16 %v3052
      %v4790 = vunpack.c.l.b16 %v3053
      %v4791 = vunpack.c.l.b16 %v3054
      %v4792 = vunpack.c.l.b16 %v3055
      %v4793 = vunpack.c.l.b16 %v3056
      %v4794 = vunpack.c.l.b16 %v3057
      %v4795 = vunpack.c.l.b16 %v3058
      %v4796 = vunpack.c.l.b16 %v3059
      %v4797 = vunpack.c.l.b16 %v3060
      %v4798 = vunpack.c.l.b16 %v3061
      %v4799 = vunpack.c.l.b16 %v3062
      %v4800 = vpack.c.b16 %v4785, %v4784
      %v4801 = vpack.c.b16 %v4787, %v4786
      %v4802 = vpack.c.b16 %v4789, %v4788
      %v4803 = vpack.c.b16 %v4791, %v4790
      %v4804 = vpack.c.b16 %v4793, %v4792
      %v4805 = vpack.c.b16 %v4795, %v4794
      %v4806 = vpack.c.b16 %v4797, %v4796
      %v4807 = vpack.c.b16 %v4799, %v4798
      %4816 = vmatprep.subr.bf16.mxu0 0
      %4817 = vmatpush1.bf16.msra.mxu0 %v4800
      %4818 = vmatprep.subr.bf16.mxu0 0
      %4819 = vmatpush1.bf16.msra.mxu0 %v4801
      %4820 = vmatprep.subr.bf16.mxu0 0
      %4821 = vmatpush1.bf16.msra.mxu0 %v4802
      %4822 = vmatprep.subr.bf16.mxu0 0
      %4823 = vmatpush1.bf16.msra.mxu0 %v4803
      %4824 = vmatprep.subr.bf16.mxu0 0
      %4825 = vmatpush1.bf16.msra.mxu0 %v4804
      %4826 = vmatprep.subr.bf16.mxu0 0
      %4827 = vmatpush1.bf16.msra.mxu0 %v4805
      %4828 = vmatprep.subr.bf16.mxu0 0
      %4829 = vmatpush1.bf16.msra.mxu0 %v4806
      %4830 = vmatprep.subr.bf16.mxu0 0
      %4831 = vmatpush1.bf16.msra.mxu0 %v4807
      %4832 = vmatprep.subr.bf16.mxu0 0
      %4833 = vmatpush1.bf16.msra.mxu0 0
      %4834 = vmatprep.subr.bf16.mxu0 0
      %4835 = vmatpush1.bf16.msra.mxu0 0
      %4836 = vmatprep.subr.bf16.mxu0 0
      %4837 = vmatpush1.bf16.msra.mxu0 0
      %4838 = vmatprep.subr.bf16.mxu0 0
      %4839 = vmatpush1.bf16.msra.mxu0 0
      %4840 = vmatprep.subr.bf16.mxu0 0
      %4841 = vmatpush1.bf16.msra.mxu0 0
      %4842 = vmatprep.subr.bf16.mxu0 0
      %4843 = vmatpush1.bf16.msra.mxu0 0
      %4844 = vmatprep.subr.bf16.mxu0 0
      %4845 = vmatpush1.bf16.msra.mxu0 0
      %4846 = vmatprep.subr.bf16.mxu0 0
      %4847 = vmatpush1.bf16.msra.mxu0 0
      %4848 = vmatprep.mubr.bf16.mxu0 0
      %4849 = vmatmul.mubr.bf16.gmra.mrb[0].mxu0 %v2797
      %v4850 = vpop.f32.mrb[0].mxu0
      %v4851 = vadd.f32 0.0, %v4850
      %v4852 = vpop.f32.mrb[0].mxu0
      %v4853 = vpop.f32.mrb[0].mxu0
      %v4854 = vadd.f32 0.0, %v4853
      %v4855 = vpop.f32.mrb[0].mxu0
      %4856 = vmatprep.mubr.bf16.mxu0 0
      %4857 = vmatmul.mubr.bf16.gmra.mrb[0].mxu0 %v2798
      %v4858 = vpop.f32.mrb[0].mxu0
      %v4859 = vadd.f32 0.0, %v4858
      %v4860 = vpop.f32.mrb[0].mxu0
      %v4861 = vpop.f32.mrb[0].mxu0
      %v4862 = vadd.f32 0.0, %v4861
      %v4863 = vpop.f32.mrb[0].mxu0
      %4864 = vdwg.mxu0
      %v4881 = vunpack.c.l.b16 %v3063
      %v4882 = vunpack.c.l.b16 %v3064
      %v4883 = vunpack.c.l.b16 %v3065
      %v4884 = vunpack.c.l.b16 %v3066
      %v4885 = vunpack.c.l.b16 %v3067
      %v4886 = vunpack.c.l.b16 %v3068
      %v4887 = vunpack.c.l.b16 %v3069
      %v4888 = vunpack.c.l.b16 %v3070
      %v4889 = vunpack.c.l.b16 %v3071
      %v4890 = vunpack.c.l.b16 %v3072
      %v4891 = vunpack.c.l.b16 %v3073
      %v4892 = vunpack.c.l.b16 %v3074
      %v4893 = vunpack.c.l.b16 %v3075
      %v4894 = vunpack.c.l.b16 %v3076
      %v4895 = vunpack.c.l.b16 %v3077
      %v4896 = vunpack.c.l.b16 %v3078
      %v4897 = vpack.c.b16 %v4882, %v4881
      %v4898 = vpack.c.b16 %v4884, %v4883
      %v4899 = vpack.c.b16 %v4886, %v4885
      %v4900 = vpack.c.b16 %v4888, %v4887
      %v4901 = vpack.c.b16 %v4890, %v4889
      %v4902 = vpack.c.b16 %v4892, %v4891
      %v4903 = vpack.c.b16 %v4894, %v4893
      %v4904 = vpack.c.b16 %v4896, %v4895
      %4913 = vmatprep.subr.bf16.mxu0 0
      %4914 = vmatpush1.bf16.msra.mxu0 %v4897
      %4915 = vmatprep.subr.bf16.mxu0 0
      %4916 = vmatpush1.bf16.msra.mxu0 %v4898
      %4917 = vmatprep.subr.bf16.mxu0 0
      %4918 = vmatpush1.bf16.msra.mxu0 %v4899
      %4919 = vmatprep.subr.bf16.mxu0 0
      %4920 = vmatpush1.bf16.msra.mxu0 %v4900
      %4921 = vmatprep.subr.bf16.mxu0 0
      %4922 = vmatpush1.bf16.msra.mxu0 %v4901
      %4923 = vmatprep.subr.bf16.mxu0 0
      %4924 = vmatpush1.bf16.msra.mxu0 %v4902
      %4925 = vmatprep.subr.bf16.mxu0 0
      %4926 = vmatpush1.bf16.msra.mxu0 %v4903
      %4927 = vmatprep.subr.bf16.mxu0 0
      %4928 = vmatpush1.bf16.msra.mxu0 %v4904
      %4929 = vmatprep.subr.bf16.mxu0 0
      %4930 = vmatpush1.bf16.msra.mxu0 0
      %4931 = vmatprep.subr.bf16.mxu0 0
      %4932 = vmatpush1.bf16.msra.mxu0 0
      %4933 = vmatprep.subr.bf16.mxu0 0
      %4934 = vmatpush1.bf16.msra.mxu0 0
      %4935 = vmatprep.subr.bf16.mxu0 0
      %4936 = vmatpush1.bf16.msra.mxu0 0
      %4937 = vmatprep.subr.bf16.mxu0 0
      %4938 = vmatpush1.bf16.msra.mxu0 0
      %4939 = vmatprep.subr.bf16.mxu0 0
      %4940 = vmatpush1.bf16.msra.mxu0 0
      %4941 = vmatprep.subr.bf16.mxu0 0
      %4942 = vmatpush1.bf16.msra.mxu0 0
      %4943 = vmatprep.subr.bf16.mxu0 0
      %4944 = vmatpush1.bf16.msra.mxu0 0
      %4945 = vmatprep.mubr.bf16.mxu0 0
      %4946 = vmatmul.mubr.bf16.gmra.mrb[0].mxu0 %v2799
      %v4947 = vpop.f32.mrb[0].mxu0
      %v4948 = vadd.f32 0.0, %v4947
      %v4949 = vpop.f32.mrb[0].mxu0
      %v4950 = vpop.f32.mrb[0].mxu0
      %v4951 = vadd.f32 0.0, %v4950
      %v4952 = vpop.f32.mrb[0].mxu0
      %4953 = vmatprep.mubr.bf16.mxu0 0
      %4954 = vmatmul.mubr.bf16.gmra.mrb[0].mxu0 %v2800
      %v4955 = vpop.f32.mrb[0].mxu0
      %v4956 = vadd.f32 0.0, %v4955
      %v4957 = vpop.f32.mrb[0].mxu0
      %v4958 = vpop.f32.mrb[0].mxu0
      %v4959 = vadd.f32 0.0, %v4958
      %v4960 = vpop.f32.mrb[0].mxu0
      %4961 = vdwg.mxu0
      %v4978 = vunpack.c.l.b16 %v3079
      %v4979 = vunpack.c.l.b16 %v3080
      %v4980 = vunpack.c.l.b16 %v3081
      %v4981 = vunpack.c.l.b16 %v3082
      %v4982 = vunpack.c.l.b16 %v3083
      %v4983 = vunpack.c.l.b16 %v3084
      %v4984 = vunpack.c.l.b16 %v3085
      %v4985 = vunpack.c.l.b16 %v3086
      %v4986 = vunpack.c.l.b16 %v3087
      %v4987 = vunpack.c.l.b16 %v3088
      %v4988 = vunpack.c.l.b16 %v3089
      %v4989 = vunpack.c.l.b16 %v3090
      %v4990 = vunpack.c.l.b16 %v3091
      %v4991 = vunpack.c.l.b16 %v3092
      %v4992 = vunpack.c.l.b16 %v3093
      %v4993 = vunpack.c.l.b16 %v3094
      %v4994 = vpack.c.b16 %v4979, %v4978
      %v4995 = vpack.c.b16 %v4981, %v4980
      %v4996 = vpack.c.b16 %v4983, %v4982
      %v4997 = vpack.c.b16 %v4985, %v4984
      %v4998 = vpack.c.b16 %v4987, %v4986
      %v4999 = vpack.c.b16 %v4989, %v4988
      %v5000 = vpack.c.b16 %v4991, %v4990
      %v5001 = vpack.c.b16 %v4993, %v4992
      %5010 = vmatprep.subr.bf16.mxu0 0
      %5011 = vmatpush1.bf16.msra.mxu0 %v4994
      %5012 = vmatprep.subr.bf16.mxu0 0
      %5013 = vmatpush1.bf16.msra.mxu0 %v4995
      %5014 = vmatprep.subr.bf16.mxu0 0
      %5015 = vmatpush1.bf16.msra.mxu0 %v4996
      %5016 = vmatprep.subr.bf16.mxu0 0
      %5017 = vmatpush1.bf16.msra.mxu0 %v4997
      %5018 = vmatprep.subr.bf16.mxu0 0
      %5019 = vmatpush1.bf16.msra.mxu0 %v4998
      %5020 = vmatprep.subr.bf16.mxu0 0
      %5021 = vmatpush1.bf16.msra.mxu0 %v4999
      %5022 = vmatprep.subr.bf16.mxu0 0
      %5023 = vmatpush1.bf16.msra.mxu0 %v5000
      %5024 = vmatprep.subr.bf16.mxu0 0
      %5025 = vmatpush1.bf16.msra.mxu0 %v5001
      %5026 = vmatprep.subr.bf16.mxu0 0
      %5027 = vmatpush1.bf16.msra.mxu0 0
      %5028 = vmatprep.subr.bf16.mxu0 0
      %5029 = vmatpush1.bf16.msra.mxu0 0
      %5030 = vmatprep.subr.bf16.mxu0 0
      %5031 = vmatpush1.bf16.msra.mxu0 0
      %5032 = vmatprep.subr.bf16.mxu0 0
      %5033 = vmatpush1.bf16.msra.mxu0 0
      %5034 = vmatprep.subr.bf16.mxu0 0
      %5035 = vmatpush1.bf16.msra.mxu0 0
      %5036 = vmatprep.subr.bf16.mxu0 0
      %5037 = vmatpush1.bf16.msra.mxu0 0
      %5038 = vmatprep.subr.bf16.mxu0 0
      %5039 = vmatpush1.bf16.msra.mxu0 0
      %5040 = vmatprep.subr.bf16.mxu0 0
      %5041 = vmatpush1.bf16.msra.mxu0 0
      %5042 = vmatprep.mubr.bf16.mxu0 0
      %5043 = vmatmul.mubr.bf16.gmra.mrb[0].mxu0 %v2801
      %v5044 = vpop.f32.mrb[0].mxu0
      %v5045 = vadd.f32 0.0, %v5044
      %v5046 = vpop.f32.mrb[0].mxu0
      %v5047 = vpop.f32.mrb[0].mxu0
      %v5048 = vadd.f32 0.0, %v5047
      %v5049 = vpop.f32.mrb[0].mxu0
      %5050 = vmatprep.mubr.bf16.mxu0 0
      %5051 = vmatmul.mubr.bf16.gmra.mrb[0].mxu0 %v2802
      %v5052 = vpop.f32.mrb[0].mxu0
      %v5053 = vadd.f32 0.0, %v5052
      %v5054 = vpop.f32.mrb[0].mxu0
      %v5055 = vpop.f32.mrb[0].mxu0
      %v5056 = vadd.f32 0.0, %v5055
      %v5057 = vpop.f32.mrb[0].mxu0
      %5058 = vdwg.mxu0
      %v5075 = vunpack.c.l.b16 %v3095
      %v5076 = vunpack.c.l.b16 %v3096
      %v5077 = vunpack.c.l.b16 %v3097
      %v5078 = vunpack.c.l.b16 %v3098
      %v5079 = vunpack.c.l.b16 %v3099
      %v5080 = vunpack.c.l.b16 %v3100
      %v5081 = vunpack.c.l.b16 %v3101
      %v5082 = vunpack.c.l.b16 %v3102
      %v5083 = vunpack.c.l.b16 %v3103
      %v5084 = vunpack.c.l.b16 %v3104
      %v5085 = vunpack.c.l.b16 %v3105
      %v5086 = vunpack.c.l.b16 %v3106
      %v5087 = vunpack.c.l.b16 %v3107
      %v5088 = vunpack.c.l.b16 %v3108
      %v5089 = vunpack.c.l.b16 %v3109
      %v5090 = vunpack.c.l.b16 %v3110
      %v5091 = vpack.c.b16 %v5076, %v5075
      %v5092 = vpack.c.b16 %v5078, %v5077
      %v5093 = vpack.c.b16 %v5080, %v5079
      %v5094 = vpack.c.b16 %v5082, %v5081
      %v5095 = vpack.c.b16 %v5084, %v5083
      %v5096 = vpack.c.b16 %v5086, %v5085
      %v5097 = vpack.c.b16 %v5088, %v5087
      %v5098 = vpack.c.b16 %v5090, %v5089
      %5107 = vmatprep.subr.bf16.mxu0 0
      %5108 = vmatpush1.bf16.msra.mxu0 %v5091
      %5109 = vmatprep.subr.bf16.mxu0 0
      %5110 = vmatpush1.bf16.msra.mxu0 %v5092
      %5111 = vmatprep.subr.bf16.mxu0 0
      %5112 = vmatpush1.bf16.msra.mxu0 %v5093
      %5113 = vmatprep.subr.bf16.mxu0 0
      %5114 = vmatpush1.bf16.msra.mxu0 %v5094
      %5115 = vmatprep.subr.bf16.mxu0 0
      %5116 = vmatpush1.bf16.msra.mxu0 %v5095
      %5117 = vmatprep.subr.bf16.mxu0 0
      %5118 = vmatpush1.bf16.msra.mxu0 %v5096
      %5119 = vmatprep.subr.bf16.mxu0 0
      %5120 = vmatpush1.bf16.msra.mxu0 %v5097
      %5121 = vmatprep.subr.bf16.mxu0 0
      %5122 = vmatpush1.bf16.msra.mxu0 %v5098
      %5123 = vmatprep.subr.bf16.mxu0 0
      %5124 = vmatpush1.bf16.msra.mxu0 0
      %5125 = vmatprep.subr.bf16.mxu0 0
      %5126 = vmatpush1.bf16.msra.mxu0 0
      %5127 = vmatprep.subr.bf16.mxu0 0
      %5128 = vmatpush1.bf16.msra.mxu0 0
      %5129 = vmatprep.subr.bf16.mxu0 0
      %5130 = vmatpush1.bf16.msra.mxu0 0
      %5131 = vmatprep.subr.bf16.mxu0 0
      %5132 = vmatpush1.bf16.msra.mxu0 0
      %5133 = vmatprep.subr.bf16.mxu0 0
      %5134 = vmatpush1.bf16.msra.mxu0 0
      %5135 = vmatprep.subr.bf16.mxu0 0
      %5136 = vmatpush1.bf16.msra.mxu0 0
      %5137 = vmatprep.subr.bf16.mxu0 0
      %5138 = vmatpush1.bf16.msra.mxu0 0
      %5139 = vmatprep.mubr.bf16.mxu0 0
      %5140 = vmatmul.mubr.bf16.gmra.mrb[0].mxu0 %v2803
      %v5141 = vpop.f32.mrb[0].mxu0
      %v5142 = vadd.f32 0.0, %v5141
      %v5143 = vpop.f32.mrb[0].mxu0
      %v5144 = vpop.f32.mrb[0].mxu0
      %v5145 = vadd.f32 0.0, %v5144
      %v5146 = vpop.f32.mrb[0].mxu0
      %5147 = vmatprep.mubr.bf16.mxu0 0
      %5148 = vmatmul.mubr.bf16.gmra.mrb[0].mxu0 %v2804
      %v5149 = vpop.f32.mrb[0].mxu0
      %v5150 = vadd.f32 0.0, %v5149
      %v5151 = vpop.f32.mrb[0].mxu0
      %v5152 = vpop.f32.mrb[0].mxu0
      %v5153 = vadd.f32 0.0, %v5152
      %v5154 = vpop.f32.mrb[0].mxu0
      %5155 = vdwg.mxu0
      %v5172 = vunpack.c.l.b16 %v3111
      %v5173 = vunpack.c.l.b16 %v3112
      %v5174 = vunpack.c.l.b16 %v3113
      %v5175 = vunpack.c.l.b16 %v3114
      %v5176 = vunpack.c.l.b16 %v3115
      %v5177 = vunpack.c.l.b16 %v3116
      %v5178 = vunpack.c.l.b16 %v3117
      %v5179 = vunpack.c.l.b16 %v3118
      %v5180 = vunpack.c.l.b16 %v3119
      %v5181 = vunpack.c.l.b16 %v3120
      %v5182 = vunpack.c.l.b16 %v3121
      %v5183 = vunpack.c.l.b16 %v3122
      %v5184 = vunpack.c.l.b16 %v3123
      %v5185 = vunpack.c.l.b16 %v3124
      %v5186 = vunpack.c.l.b16 %v3125
      %v5187 = vunpack.c.l.b16 %v3126
      %v5188 = vpack.c.b16 %v5173, %v5172
      %v5189 = vpack.c.b16 %v5175, %v5174
      %v5190 = vpack.c.b16 %v5177, %v5176
      %v5191 = vpack.c.b16 %v5179, %v5178
      %v5192 = vpack.c.b16 %v5181, %v5180
      %v5193 = vpack.c.b16 %v5183, %v5182
      %v5194 = vpack.c.b16 %v5185, %v5184
      %v5195 = vpack.c.b16 %v5187, %v5186
      %5204 = vmatprep.subr.bf16.mxu0 0
      %5205 = vmatpush1.bf16.msra.mxu0 %v5188
      %5206 = vmatprep.subr.bf16.mxu0 0
      %5207 = vmatpush1.bf16.msra.mxu0 %v5189
      %5208 = vmatprep.subr.bf16.mxu0 0
      %5209 = vmatpush1.bf16.msra.mxu0 %v5190
      %5210 = vmatprep.subr.bf16.mxu0 0
      %5211 = vmatpush1.bf16.msra.mxu0 %v5191
      %5212 = vmatprep.subr.bf16.mxu0 0
      %5213 = vmatpush1.bf16.msra.mxu0 %v5192
      %5214 = vmatprep.subr.bf16.mxu0 0
      %5215 = vmatpush1.bf16.msra.mxu0 %v5193
      %5216 = vmatprep.subr.bf16.mxu0 0
      %5217 = vmatpush1.bf16.msra.mxu0 %v5194
      %5218 = vmatprep.subr.bf16.mxu0 0
      %5219 = vmatpush1.bf16.msra.mxu0 %v5195
      %5220 = vmatprep.subr.bf16.mxu0 0
      %5221 = vmatpush1.bf16.msra.mxu0 0
      %5222 = vmatprep.subr.bf16.mxu0 0
      %5223 = vmatpush1.bf16.msra.mxu0 0
      %5224 = vmatprep.subr.bf16.mxu0 0
      %5225 = vmatpush1.bf16.msra.mxu0 0
      %5226 = vmatprep.subr.bf16.mxu0 0
      %5227 = vmatpush1.bf16.msra.mxu0 0
      %5228 = vmatprep.subr.bf16.mxu0 0
      %5229 = vmatpush1.bf16.msra.mxu0 0
      %5230 = vmatprep.subr.bf16.mxu0 0
      %5231 = vmatpush1.bf16.msra.mxu0 0
      %5232 = vmatprep.subr.bf16.mxu0 0
      %5233 = vmatpush1.bf16.msra.mxu0 0
      %5234 = vmatprep.subr.bf16.mxu0 0
      %5235 = vmatpush1.bf16.msra.mxu0 0
      %5236 = vmatprep.mubr.bf16.mxu0 0
      %5237 = vmatmul.mubr.bf16.gmra.mrb[0].mxu0 %v2805
      %v5238 = vpop.f32.mrb[0].mxu0
      %v5239 = vadd.f32 0.0, %v5238
      %v5240 = vpop.f32.mrb[0].mxu0
      %v5241 = vpop.f32.mrb[0].mxu0
      %v5242 = vadd.f32 0.0, %v5241
      %v5243 = vpop.f32.mrb[0].mxu0
      %5244 = vmatprep.mubr.bf16.mxu0 0
      %5245 = vmatmul.mubr.bf16.gmra.mrb[0].mxu0 %v2806
      %v5246 = vpop.f32.mrb[0].mxu0
      %v5247 = vadd.f32 0.0, %v5246
      %v5248 = vpop.f32.mrb[0].mxu0
      %v5249 = vpop.f32.mrb[0].mxu0
      %v5250 = vadd.f32 0.0, %v5249
      %v5251 = vpop.f32.mrb[0].mxu0
      %5252 = vdwg.mxu0
      %v5269 = vunpack.c.l.b16 %v3127
      %v5270 = vunpack.c.l.b16 %v3128
      %v5271 = vunpack.c.l.b16 %v3129
      %v5272 = vunpack.c.l.b16 %v3130
      %v5273 = vunpack.c.l.b16 %v3131
      %v5274 = vunpack.c.l.b16 %v3132
      %v5275 = vunpack.c.l.b16 %v3133
      %v5276 = vunpack.c.l.b16 %v3134
      %v5277 = vunpack.c.l.b16 %v3135
      %v5278 = vunpack.c.l.b16 %v3136
      %v5279 = vunpack.c.l.b16 %v3137
      %v5280 = vunpack.c.l.b16 %v3138
      %v5281 = vunpack.c.l.b16 %v3139
      %v5282 = vunpack.c.l.b16 %v3140
      %v5283 = vunpack.c.l.b16 %v3141
      %v5284 = vunpack.c.l.b16 %v3142
      %v5285 = vpack.c.b16 %v5270, %v5269
      %v5286 = vpack.c.b16 %v5272, %v5271
      %v5287 = vpack.c.b16 %v5274, %v5273
      %v5288 = vpack.c.b16 %v5276, %v5275
      %v5289 = vpack.c.b16 %v5278, %v5277
      %v5290 = vpack.c.b16 %v5280, %v5279
      %v5291 = vpack.c.b16 %v5282, %v5281
      %v5292 = vpack.c.b16 %v5284, %v5283
      %5301 = vmatprep.subr.bf16.mxu0 0
      %5302 = vmatpush1.bf16.msra.mxu0 %v5285
      %5303 = vmatprep.subr.bf16.mxu0 0
      %5304 = vmatpush1.bf16.msra.mxu0 %v5286
      %5305 = vmatprep.subr.bf16.mxu0 0
      %5306 = vmatpush1.bf16.msra.mxu0 %v5287
      %5307 = vmatprep.subr.bf16.mxu0 0
      %5308 = vmatpush1.bf16.msra.mxu0 %v5288
      %5309 = vmatprep.subr.bf16.mxu0 0
      %5310 = vmatpush1.bf16.msra.mxu0 %v5289
      %5311 = vmatprep.subr.bf16.mxu0 0
      %5312 = vmatpush1.bf16.msra.mxu0 %v5290
      %5313 = vmatprep.subr.bf16.mxu0 0
      %5314 = vmatpush1.bf16.msra.mxu0 %v5291
      %5315 = vmatprep.subr.bf16.mxu0 0
      %5316 = vmatpush1.bf16.msra.mxu0 %v5292
      %5317 = vmatprep.subr.bf16.mxu0 0
      %5318 = vmatpush1.bf16.msra.mxu0 0
      %5319 = vmatprep.subr.bf16.mxu0 0
      %5320 = vmatpush1.bf16.msra.mxu0 0
      %5321 = vmatprep.subr.bf16.mxu0 0
      %5322 = vmatpush1.bf16.msra.mxu0 0
      %5323 = vmatprep.subr.bf16.mxu0 0
      %5324 = vmatpush1.bf16.msra.mxu0 0
      %5325 = vmatprep.subr.bf16.mxu0 0
      %5326 = vmatpush1.bf16.msra.mxu0 0
      %5327 = vmatprep.subr.bf16.mxu0 0
      %5328 = vmatpush1.bf16.msra.mxu0 0
      %5329 = vmatprep.subr.bf16.mxu0 0
      %5330 = vmatpush1.bf16.msra.mxu0 0
      %5331 = vmatprep.subr.bf16.mxu0 0
      %5332 = vmatpush1.bf16.msra.mxu0 0
      %5333 = vmatprep.mubr.bf16.mxu0 0
      %5334 = vmatmul.mubr.bf16.gmra.mrb[0].mxu0 %v2807
      %v5335 = vpop.f32.mrb[0].mxu0
      %v5336 = vadd.f32 0.0, %v5335
      %v5337 = vpop.f32.mrb[0].mxu0
      %v5338 = vpop.f32.mrb[0].mxu0
      %v5339 = vadd.f32 0.0, %v5338
      %v5340 = vpop.f32.mrb[0].mxu0
      %5341 = vmatprep.mubr.bf16.mxu0 0
      %5342 = vmatmul.mubr.bf16.gmra.mrb[0].mxu0 %v2808
      %v5343 = vpop.f32.mrb[0].mxu0
      %v5344 = vadd.f32 0.0, %v5343
      %v5345 = vpop.f32.mrb[0].mxu0
      %v5346 = vpop.f32.mrb[0].mxu0
      %v5347 = vadd.f32 0.0, %v5346
      %v5348 = vpop.f32.mrb[0].mxu0
      %5349 = vdwg.mxu0
      %v5366 = vunpack.c.l.b16 %v3143
      %v5367 = vunpack.c.l.b16 %v3144
      %v5368 = vunpack.c.l.b16 %v3145
      %v5369 = vunpack.c.l.b16 %v3146
      %v5370 = vunpack.c.l.b16 %v3147
      %v5371 = vunpack.c.l.b16 %v3148
      %v5372 = vunpack.c.l.b16 %v3149
      %v5373 = vunpack.c.l.b16 %v3150
      %v5374 = vunpack.c.l.b16 %v3151
      %v5375 = vunpack.c.l.b16 %v3152
      %v5376 = vunpack.c.l.b16 %v3153
      %v5377 = vunpack.c.l.b16 %v3154
      %v5378 = vunpack.c.l.b16 %v3155
      %v5379 = vunpack.c.l.b16 %v3156
      %v5380 = vunpack.c.l.b16 %v3157
      %v5381 = vunpack.c.l.b16 %v3158
      %v5382 = vpack.c.b16 %v5367, %v5366
      %v5383 = vpack.c.b16 %v5369, %v5368
      %v5384 = vpack.c.b16 %v5371, %v5370
      %v5385 = vpack.c.b16 %v5373, %v5372
      %v5386 = vpack.c.b16 %v5375, %v5374
      %v5387 = vpack.c.b16 %v5377, %v5376
      %v5388 = vpack.c.b16 %v5379, %v5378
      %v5389 = vpack.c.b16 %v5381, %v5380
      %5398 = vmatprep.subr.bf16.mxu0 0
      %5399 = vmatpush1.bf16.msra.mxu0 %v5382
      %5400 = vmatprep.subr.bf16.mxu0 0
      %5401 = vmatpush1.bf16.msra.mxu0 %v5383
      %5402 = vmatprep.subr.bf16.mxu0 0
      %5403 = vmatpush1.bf16.msra.mxu0 %v5384
      %5404 = vmatprep.subr.bf16.mxu0 0
      %5405 = vmatpush1.bf16.msra.mxu0 %v5385
      %5406 = vmatprep.subr.bf16.mxu0 0
      %5407 = vmatpush1.bf16.msra.mxu0 %v5386
      %5408 = vmatprep.subr.bf16.mxu0 0
      %5409 = vmatpush1.bf16.msra.mxu0 %v5387
      %5410 = vmatprep.subr.bf16.mxu0 0
      %5411 = vmatpush1.bf16.msra.mxu0 %v5388
      %5412 = vmatprep.subr.bf16.mxu0 0
      %5413 = vmatpush1.bf16.msra.mxu0 %v5389
      %5414 = vmatprep.subr.bf16.mxu0 0
      %5415 = vmatpush1.bf16.msra.mxu0 0
      %5416 = vmatprep.subr.bf16.mxu0 0
      %5417 = vmatpush1.bf16.msra.mxu0 0
      %5418 = vmatprep.subr.bf16.mxu0 0
      %5419 = vmatpush1.bf16.msra.mxu0 0
      %5420 = vmatprep.subr.bf16.mxu0 0
      %5421 = vmatpush1.bf16.msra.mxu0 0
      %5422 = vmatprep.subr.bf16.mxu0 0
      %5423 = vmatpush1.bf16.msra.mxu0 0
      %5424 = vmatprep.subr.bf16.mxu0 0
      %5425 = vmatpush1.bf16.msra.mxu0 0
      %5426 = vmatprep.subr.bf16.mxu0 0
      %5427 = vmatpush1.bf16.msra.mxu0 0
      %5428 = vmatprep.subr.bf16.mxu0 0
      %5429 = vmatpush1.bf16.msra.mxu0 0
      %5430 = vmatprep.mubr.bf16.mxu0 0
      %5431 = vmatmul.mubr.bf16.gmra.mrb[0].mxu0 %v2809
      %v5432 = vpop.f32.mrb[0].mxu0
      %v5433 = vadd.f32 0.0, %v5432
      %v5434 = vpop.f32.mrb[0].mxu0
      %v5435 = vpop.f32.mrb[0].mxu0
      %v5436 = vadd.f32 0.0, %v5435
      %v5437 = vpop.f32.mrb[0].mxu0
      %5438 = vmatprep.mubr.bf16.mxu0 0
      %5439 = vmatmul.mubr.bf16.gmra.mrb[0].mxu0 %v2810
      %v5440 = vpop.f32.mrb[0].mxu0
      %v5441 = vadd.f32 0.0, %v5440
      %v5442 = vpop.f32.mrb[0].mxu0
      %v5443 = vpop.f32.mrb[0].mxu0
      %v5444 = vadd.f32 0.0, %v5443
      %v5445 = vpop.f32.mrb[0].mxu0
      %5446 = vdwg.mxu0
      %v5463 = vunpack.c.l.b16 %v3159
      %v5464 = vunpack.c.l.b16 %v3160
      %v5465 = vunpack.c.l.b16 %v3161
      %v5466 = vunpack.c.l.b16 %v3162
      %v5467 = vunpack.c.l.b16 %v3163
      %v5468 = vunpack.c.l.b16 %v3164
      %v5469 = vunpack.c.l.b16 %v3165
      %v5470 = vunpack.c.l.b16 %v3166
      %v5471 = vunpack.c.l.b16 %v3167
      %v5472 = vunpack.c.l.b16 %v3168
      %v5473 = vunpack.c.l.b16 %v3169
      %v5474 = vunpack.c.l.b16 %v3170
      %v5475 = vunpack.c.l.b16 %v3171
      %v5476 = vunpack.c.l.b16 %v3172
      %v5477 = vunpack.c.l.b16 %v3173
      %v5478 = vunpack.c.l.b16 %v3174
      %v5479 = vpack.c.b16 %v5464, %v5463
      %v5480 = vpack.c.b16 %v5466, %v5465
      %v5481 = vpack.c.b16 %v5468, %v5467
      %v5482 = vpack.c.b16 %v5470, %v5469
      %v5483 = vpack.c.b16 %v5472, %v5471
      %v5484 = vpack.c.b16 %v5474, %v5473
      %v5485 = vpack.c.b16 %v5476, %v5475
      %v5486 = vpack.c.b16 %v5478, %v5477
      %5495 = vmatprep.subr.bf16.mxu0 0
      %5496 = vmatpush1.bf16.msra.mxu0 %v5479
      %5497 = vmatprep.subr.bf16.mxu0 0
      %5498 = vmatpush1.bf16.msra.mxu0 %v5480
      %5499 = vmatprep.subr.bf16.mxu0 0
      %5500 = vmatpush1.bf16.msra.mxu0 %v5481
      %5501 = vmatprep.subr.bf16.mxu0 0
      %5502 = vmatpush1.bf16.msra.mxu0 %v5482
      %5503 = vmatprep.subr.bf16.mxu0 0
      %5504 = vmatpush1.bf16.msra.mxu0 %v5483
      %5505 = vmatprep.subr.bf16.mxu0 0
      %5506 = vmatpush1.bf16.msra.mxu0 %v5484
      %5507 = vmatprep.subr.bf16.mxu0 0
      %5508 = vmatpush1.bf16.msra.mxu0 %v5485
      %5509 = vmatprep.subr.bf16.mxu0 0
      %5510 = vmatpush1.bf16.msra.mxu0 %v5486
      %5511 = vmatprep.subr.bf16.mxu0 0
      %5512 = vmatpush1.bf16.msra.mxu0 0
      %5513 = vmatprep.subr.bf16.mxu0 0
      %5514 = vmatpush1.bf16.msra.mxu0 0
      %5515 = vmatprep.subr.bf16.mxu0 0
      %5516 = vmatpush1.bf16.msra.mxu0 0
      %5517 = vmatprep.subr.bf16.mxu0 0
      %5518 = vmatpush1.bf16.msra.mxu0 0
      %5519 = vmatprep.subr.bf16.mxu0 0
      %5520 = vmatpush1.bf16.msra.mxu0 0
      %5521 = vmatprep.subr.bf16.mxu0 0
      %5522 = vmatpush1.bf16.msra.mxu0 0
      %5523 = vmatprep.subr.bf16.mxu0 0
      %5524 = vmatpush1.bf16.msra.mxu0 0
      %5525 = vmatprep.subr.bf16.mxu0 0
      %5526 = vmatpush1.bf16.msra.mxu0 0
      %5527 = vmatprep.mubr.bf16.mxu0 0
      %5528 = vmatmul.mubr.bf16.gmra.mrb[0].mxu0 %v2811
      %v5529 = vpop.f32.mrb[0].mxu0
      %v5530 = vadd.f32 0.0, %v5529
      %v5531 = vpop.f32.mrb[0].mxu0
      %v5532 = vpop.f32.mrb[0].mxu0
      %v5533 = vadd.f32 0.0, %v5532
      %v5534 = vpop.f32.mrb[0].mxu0
      %5535 = vmatprep.mubr.bf16.mxu0 0
      %5536 = vmatmul.mubr.bf16.gmra.mrb[0].mxu0 %v2812
      %v5537 = vpop.f32.mrb[0].mxu0
      %v5538 = vadd.f32 0.0, %v5537
      %v5539 = vpop.f32.mrb[0].mxu0
      %v5540 = vpop.f32.mrb[0].mxu0
      %v5541 = vadd.f32 0.0, %v5540
      %v5542 = vpop.f32.mrb[0].mxu0
      %5543 = vdwg.mxu0
      %v5560 = vunpack.c.l.b16 %v3175
      %v5561 = vunpack.c.l.b16 %v3176
      %v5562 = vunpack.c.l.b16 %v3177
      %v5563 = vunpack.c.l.b16 %v3178
      %v5564 = vunpack.c.l.b16 %v3179
      %v5565 = vunpack.c.l.b16 %v3180
      %v5566 = vunpack.c.l.b16 %v3181
      %v5567 = vunpack.c.l.b16 %v3182
      %v5568 = vunpack.c.l.b16 %v3183
      %v5569 = vunpack.c.l.b16 %v3184
      %v5570 = vunpack.c.l.b16 %v3185
      %v5571 = vunpack.c.l.b16 %v3186
      %v5572 = vunpack.c.l.b16 %v3187
      %v5573 = vunpack.c.l.b16 %v3188
      %v5574 = vunpack.c.l.b16 %v3189
      %v5575 = vunpack.c.l.b16 %v3190
      %v5576 = vpack.c.b16 %v5561, %v5560
      %v5577 = vpack.c.b16 %v5563, %v5562
      %v5578 = vpack.c.b16 %v5565, %v5564
      %v5579 = vpack.c.b16 %v5567, %v5566
      %v5580 = vpack.c.b16 %v5569, %v5568
      %v5581 = vpack.c.b16 %v5571, %v5570
      %v5582 = vpack.c.b16 %v5573, %v5572
      %v5583 = vpack.c.b16 %v5575, %v5574
      %5592 = vmatprep.subr.bf16.mxu0 0
      %5593 = vmatpush1.bf16.msra.mxu0 %v5576
      %5594 = vmatprep.subr.bf16.mxu0 0
      %5595 = vmatpush1.bf16.msra.mxu0 %v5577
      %5596 = vmatprep.subr.bf16.mxu0 0
      %5597 = vmatpush1.bf16.msra.mxu0 %v5578
      %5598 = vmatprep.subr.bf16.mxu0 0
      %5599 = vmatpush1.bf16.msra.mxu0 %v5579
      %5600 = vmatprep.subr.bf16.mxu0 0
      %5601 = vmatpush1.bf16.msra.mxu0 %v5580
      %5602 = vmatprep.subr.bf16.mxu0 0
      %5603 = vmatpush1.bf16.msra.mxu0 %v5581
      %5604 = vmatprep.subr.bf16.mxu0 0
      %5605 = vmatpush1.bf16.msra.mxu0 %v5582
      %5606 = vmatprep.subr.bf16.mxu0 0
      %5607 = vmatpush1.bf16.msra.mxu0 %v5583
      %5608 = vmatprep.subr.bf16.mxu0 0
      %5609 = vmatpush1.bf16.msra.mxu0 0
      %5610 = vmatprep.subr.bf16.mxu0 0
      %5611 = vmatpush1.bf16.msra.mxu0 0
      %5612 = vmatprep.subr.bf16.mxu0 0
      %5613 = vmatpush1.bf16.msra.mxu0 0
      %5614 = vmatprep.subr.bf16.mxu0 0
      %5615 = vmatpush1.bf16.msra.mxu0 0
      %5616 = vmatprep.subr.bf16.mxu0 0
      %5617 = vmatpush1.bf16.msra.mxu0 0
      %5618 = vmatprep.subr.bf16.mxu0 0
      %5619 = vmatpush1.bf16.msra.mxu0 0
      %5620 = vmatprep.subr.bf16.mxu0 0
      %5621 = vmatpush1.bf16.msra.mxu0 0
      %5622 = vmatprep.subr.bf16.mxu0 0
      %5623 = vmatpush1.bf16.msra.mxu0 0
      %5624 = vmatprep.mubr.bf16.mxu0 0
      %5625 = vmatmul.mubr.bf16.gmra.mrb[0].mxu0 %v2813
      %v5626 = vpop.f32.mrb[0].mxu0
      %v5627 = vadd.f32 0.0, %v5626
      %v5628 = vpop.f32.mrb[0].mxu0
      %v5629 = vpop.f32.mrb[0].mxu0
      %v5630 = vadd.f32 0.0, %v5629
      %v5631 = vpop.f32.mrb[0].mxu0
      %5632 = vmatprep.mubr.bf16.mxu0 0
      %5633 = vmatmul.mubr.bf16.gmra.mrb[0].mxu0 %v2814
      %v5634 = vpop.f32.mrb[0].mxu0
      %v5635 = vadd.f32 0.0, %v5634
      %v5636 = vpop.f32.mrb[0].mxu0
      %v5637 = vpop.f32.mrb[0].mxu0
      %v5638 = vadd.f32 0.0, %v5637
      %v5639 = vpop.f32.mrb[0].mxu0
      %5640 = vdwg.mxu0
      %v5657 = vunpack.c.l.b16 %v3191
      %v5658 = vunpack.c.l.b16 %v3192
      %v5659 = vunpack.c.l.b16 %v3193
      %v5660 = vunpack.c.l.b16 %v3194
      %v5661 = vunpack.c.l.b16 %v3195
      %v5662 = vunpack.c.l.b16 %v3196
      %v5663 = vunpack.c.l.b16 %v3197
      %v5664 = vunpack.c.l.b16 %v3198
      %v5665 = vunpack.c.l.b16 %v3199
      %v5666 = vunpack.c.l.b16 %v3200
      %v5667 = vunpack.c.l.b16 %v3201
      %v5668 = vunpack.c.l.b16 %v3202
      %v5669 = vunpack.c.l.b16 %v3203
      %v5670 = vunpack.c.l.b16 %v3204
      %v5671 = vunpack.c.l.b16 %v3205
      %v5672 = vunpack.c.l.b16 %v3206
      %v5673 = vpack.c.b16 %v5658, %v5657
      %v5674 = vpack.c.b16 %v5660, %v5659
      %v5675 = vpack.c.b16 %v5662, %v5661
      %v5676 = vpack.c.b16 %v5664, %v5663
      %v5677 = vpack.c.b16 %v5666, %v5665
      %v5678 = vpack.c.b16 %v5668, %v5667
      %v5679 = vpack.c.b16 %v5670, %v5669
      %v5680 = vpack.c.b16 %v5672, %v5671
      %5689 = vmatprep.subr.bf16.mxu0 0
      %5690 = vmatpush1.bf16.msra.mxu0 %v5673
      %5691 = vmatprep.subr.bf16.mxu0 0
      %5692 = vmatpush1.bf16.msra.mxu0 %v5674
      %5693 = vmatprep.subr.bf16.mxu0 0
      %5694 = vmatpush1.bf16.msra.mxu0 %v5675
      %5695 = vmatprep.subr.bf16.mxu0 0
      %5696 = vmatpush1.bf16.msra.mxu0 %v5676
      %5697 = vmatprep.subr.bf16.mxu0 0
      %5698 = vmatpush1.bf16.msra.mxu0 %v5677
      %5699 = vmatprep.subr.bf16.mxu0 0
      %5700 = vmatpush1.bf16.msra.mxu0 %v5678
      %5701 = vmatprep.subr.bf16.mxu0 0
      %5702 = vmatpush1.bf16.msra.mxu0 %v5679
      %5703 = vmatprep.subr.bf16.mxu0 0
      %5704 = vmatpush1.bf16.msra.mxu0 %v5680
      %5705 = vmatprep.subr.bf16.mxu0 0
      %5706 = vmatpush1.bf16.msra.mxu0 0
      %5707 = vmatprep.subr.bf16.mxu0 0
      %5708 = vmatpush1.bf16.msra.mxu0 0
      %5709 = vmatprep.subr.bf16.mxu0 0
      %5710 = vmatpush1.bf16.msra.mxu0 0
      %5711 = vmatprep.subr.bf16.mxu0 0
      %5712 = vmatpush1.bf16.msra.mxu0 0
      %5713 = vmatprep.subr.bf16.mxu0 0
      %5714 = vmatpush1.bf16.msra.mxu0 0
      %5715 = vmatprep.subr.bf16.mxu0 0
      %5716 = vmatpush1.bf16.msra.mxu0 0
      %5717 = vmatprep.subr.bf16.mxu0 0
      %5718 = vmatpush1.bf16.msra.mxu0 0
      %5719 = vmatprep.subr.bf16.mxu0 0
      %5720 = vmatpush1.bf16.msra.mxu0 0
      %5721 = vmatprep.mubr.bf16.mxu0 0
      %5722 = vmatmul.mubr.bf16.gmra.mrb[0].mxu0 %v2815
      %v5723 = vpop.f32.mrb[0].mxu0
      %v5724 = vadd.f32 0.0, %v5723
      %v5725 = vpop.f32.mrb[0].mxu0
      %v5726 = vpop.f32.mrb[0].mxu0
      %v5727 = vadd.f32 0.0, %v5726
      %v5728 = vpop.f32.mrb[0].mxu0
      %5729 = vmatprep.mubr.bf16.mxu0 0
      %5730 = vmatmul.mubr.bf16.gmra.mrb[0].mxu0 %v2816
      %v5731 = vpop.f32.mrb[0].mxu0
      %v5732 = vadd.f32 0.0, %v5731
      %v5733 = vpop.f32.mrb[0].mxu0
      %v5734 = vpop.f32.mrb[0].mxu0
      %v5735 = vadd.f32 0.0, %v5734
      %v5736 = vpop.f32.mrb[0].mxu0
      %5737 = vdwg.mxu0
      %v5754 = vunpack.c.l.b16 %v3207
      %v5755 = vunpack.c.l.b16 %v3208
      %v5756 = vunpack.c.l.b16 %v3209
      %v5757 = vunpack.c.l.b16 %v3210
      %v5758 = vunpack.c.l.b16 %v3211
      %v5759 = vunpack.c.l.b16 %v3212
      %v5760 = vunpack.c.l.b16 %v3213
      %v5761 = vunpack.c.l.b16 %v3214
      %v5762 = vunpack.c.l.b16 %v3215
      %v5763 = vunpack.c.l.b16 %v3216
      %v5764 = vunpack.c.l.b16 %v3217
      %v5765 = vunpack.c.l.b16 %v3218
      %v5766 = vunpack.c.l.b16 %v3219
      %v5767 = vunpack.c.l.b16 %v3220
      %v5768 = vunpack.c.l.b16 %v3221
      %v5769 = vunpack.c.l.b16 %v3222
      %v5770 = vpack.c.b16 %v5755, %v5754
      %v5771 = vpack.c.b16 %v5757, %v5756
      %v5772 = vpack.c.b16 %v5759, %v5758
      %v5773 = vpack.c.b16 %v5761, %v5760
      %v5774 = vpack.c.b16 %v5763, %v5762
      %v5775 = vpack.c.b16 %v5765, %v5764
      %v5776 = vpack.c.b16 %v5767, %v5766
      %v5777 = vpack.c.b16 %v5769, %v5768
      %5786 = vmatprep.subr.bf16.mxu0 0
      %5787 = vmatpush1.bf16.msra.mxu0 %v5770
      %5788 = vmatprep.subr.bf16.mxu0 0
      %5789 = vmatpush1.bf16.msra.mxu0 %v5771
      %5790 = vmatprep.subr.bf16.mxu0 0
      %5791 = vmatpush1.bf16.msra.mxu0 %v5772
      %5792 = vmatprep.subr.bf16.mxu0 0
      %5793 = vmatpush1.bf16.msra.mxu0 %v5773
      %5794 = vmatprep.subr.bf16.mxu0 0
      %5795 = vmatpush1.bf16.msra.mxu0 %v5774
      %5796 = vmatprep.subr.bf16.mxu0 0
      %5797 = vmatpush1.bf16.msra.mxu0 %v5775
      %5798 = vmatprep.subr.bf16.mxu0 0
      %5799 = vmatpush1.bf16.msra.mxu0 %v5776
      %5800 = vmatprep.subr.bf16.mxu0 0
      %5801 = vmatpush1.bf16.msra.mxu0 %v5777
      %5802 = vmatprep.subr.bf16.mxu0 0
      %5803 = vmatpush1.bf16.msra.mxu0 0
      %5804 = vmatprep.subr.bf16.mxu0 0
      %5805 = vmatpush1.bf16.msra.mxu0 0
      %5806 = vmatprep.subr.bf16.mxu0 0
      %5807 = vmatpush1.bf16.msra.mxu0 0
      %5808 = vmatprep.subr.bf16.mxu0 0
      %5809 = vmatpush1.bf16.msra.mxu0 0
      %5810 = vmatprep.subr.bf16.mxu0 0
      %5811 = vmatpush1.bf16.msra.mxu0 0
      %5812 = vmatprep.subr.bf16.mxu0 0
      %5813 = vmatpush1.bf16.msra.mxu0 0
      %5814 = vmatprep.subr.bf16.mxu0 0
      %5815 = vmatpush1.bf16.msra.mxu0 0
      %5816 = vmatprep.subr.bf16.mxu0 0
      %5817 = vmatpush1.bf16.msra.mxu0 0
      %5818 = vmatprep.mubr.bf16.mxu0 0
      %5819 = vmatmul.mubr.bf16.gmra.mrb[0].mxu0 %v2817
      %v5820 = vpop.f32.mrb[0].mxu0
      %v5821 = vadd.f32 0.0, %v5820
      %v5822 = vpop.f32.mrb[0].mxu0
      %v5823 = vpop.f32.mrb[0].mxu0
      %v5824 = vadd.f32 0.0, %v5823
      %v5825 = vpop.f32.mrb[0].mxu0
      %5826 = vmatprep.mubr.bf16.mxu0 0
      %5827 = vmatmul.mubr.bf16.gmra.mrb[0].mxu0 %v2818
      %v5828 = vpop.f32.mrb[0].mxu0
      %v5829 = vadd.f32 0.0, %v5828
      %v5830 = vpop.f32.mrb[0].mxu0
      %v5831 = vpop.f32.mrb[0].mxu0
      %v5832 = vadd.f32 0.0, %v5831
      %v5833 = vpop.f32.mrb[0].mxu0
      %5834 = vdwg.mxu0
      %v5851 = vunpack.c.l.b16 %v3223
      %v5852 = vunpack.c.l.b16 %v3224
      %v5853 = vunpack.c.l.b16 %v3225
      %v5854 = vunpack.c.l.b16 %v3226
      %v5855 = vunpack.c.l.b16 %v3227
      %v5856 = vunpack.c.l.b16 %v3228
      %v5857 = vunpack.c.l.b16 %v3229
      %v5858 = vunpack.c.l.b16 %v3230
      %v5859 = vunpack.c.l.b16 %v3231
      %v5860 = vunpack.c.l.b16 %v3232
      %v5861 = vunpack.c.l.b16 %v3233
      %v5862 = vunpack.c.l.b16 %v3234
      %v5863 = vunpack.c.l.b16 %v3235
      %v5864 = vunpack.c.l.b16 %v3236
      %v5865 = vunpack.c.l.b16 %v3237
      %v5866 = vunpack.c.l.b16 %v3238
      %v5867 = vpack.c.b16 %v5852, %v5851
      %v5868 = vpack.c.b16 %v5854, %v5853
      %v5869 = vpack.c.b16 %v5856, %v5855
      %v5870 = vpack.c.b16 %v5858, %v5857
      %v5871 = vpack.c.b16 %v5860, %v5859
      %v5872 = vpack.c.b16 %v5862, %v5861
      %v5873 = vpack.c.b16 %v5864, %v5863
      %v5874 = vpack.c.b16 %v5866, %v5865
      %5883 = vmatprep.subr.bf16.mxu0 0
      %5884 = vmatpush1.bf16.msra.mxu0 %v5867
      %5885 = vmatprep.subr.bf16.mxu0 0
      %5886 = vmatpush1.bf16.msra.mxu0 %v5868
      %5887 = vmatprep.subr.bf16.mxu0 0
      %5888 = vmatpush1.bf16.msra.mxu0 %v5869
      %5889 = vmatprep.subr.bf16.mxu0 0
      %5890 = vmatpush1.bf16.msra.mxu0 %v5870
      %5891 = vmatprep.subr.bf16.mxu0 0
      %5892 = vmatpush1.bf16.msra.mxu0 %v5871
      %5893 = vmatprep.subr.bf16.mxu0 0
      %5894 = vmatpush1.bf16.msra.mxu0 %v5872
      %5895 = vmatprep.subr.bf16.mxu0 0
      %5896 = vmatpush1.bf16.msra.mxu0 %v5873
      %5897 = vmatprep.subr.bf16.mxu0 0
      %5898 = vmatpush1.bf16.msra.mxu0 %v5874
      %5899 = vmatprep.subr.bf16.mxu0 0
      %5900 = vmatpush1.bf16.msra.mxu0 0
      %5901 = vmatprep.subr.bf16.mxu0 0
      %5902 = vmatpush1.bf16.msra.mxu0 0
      %5903 = vmatprep.subr.bf16.mxu0 0
      %5904 = vmatpush1.bf16.msra.mxu0 0
      %5905 = vmatprep.subr.bf16.mxu0 0
      %5906 = vmatpush1.bf16.msra.mxu0 0
      %5907 = vmatprep.subr.bf16.mxu0 0
      %5908 = vmatpush1.bf16.msra.mxu0 0
      %5909 = vmatprep.subr.bf16.mxu0 0
      %5910 = vmatpush1.bf16.msra.mxu0 0
      %5911 = vmatprep.subr.bf16.mxu0 0
      %5912 = vmatpush1.bf16.msra.mxu0 0
      %5913 = vmatprep.subr.bf16.mxu0 0
      %5914 = vmatpush1.bf16.msra.mxu0 0
      %5915 = vmatprep.mubr.bf16.mxu0 0
      %5916 = vmatmul.mubr.bf16.gmra.mrb[0].mxu0 %v2819
      %v5917 = vpop.f32.mrb[0].mxu0
      %v5918 = vadd.f32 0.0, %v5917
      %v5919 = vpop.f32.mrb[0].mxu0
      %v5920 = vpop.f32.mrb[0].mxu0
      %v5921 = vadd.f32 0.0, %v5920
      %v5922 = vpop.f32.mrb[0].mxu0
      %5923 = vmatprep.mubr.bf16.mxu0 0
      %5924 = vmatmul.mubr.bf16.gmra.mrb[0].mxu0 %v2820
      %v5925 = vpop.f32.mrb[0].mxu0
      %v5926 = vadd.f32 0.0, %v5925
      %v5927 = vpop.f32.mrb[0].mxu0
      %v5928 = vpop.f32.mrb[0].mxu0
      %v5929 = vadd.f32 0.0, %v5928
      %v5930 = vpop.f32.mrb[0].mxu0
      %5931 = vdwg.mxu0
      %v5948 = vunpack.c.l.b16 %v3239
      %v5949 = vunpack.c.l.b16 %v3240
      %v5950 = vunpack.c.l.b16 %v3241
      %v5951 = vunpack.c.l.b16 %v3242
      %v5952 = vunpack.c.l.b16 %v3243
      %v5953 = vunpack.c.l.b16 %v3244
      %v5954 = vunpack.c.l.b16 %v3245
      %v5955 = vunpack.c.l.b16 %v3246
      %v5956 = vunpack.c.l.b16 %v3247
      %v5957 = vunpack.c.l.b16 %v3248
      %v5958 = vunpack.c.l.b16 %v3249
      %v5959 = vunpack.c.l.b16 %v3250
      %v5960 = vunpack.c.l.b16 %v3251
      %v5961 = vunpack.c.l.b16 %v3252
      %v5962 = vunpack.c.l.b16 %v3253
      %v5963 = vunpack.c.l.b16 %v3254
      %v5964 = vpack.c.b16 %v5949, %v5948
      %v5965 = vpack.c.b16 %v5951, %v5950
      %v5966 = vpack.c.b16 %v5953, %v5952
      %v5967 = vpack.c.b16 %v5955, %v5954
      %v5968 = vpack.c.b16 %v5957, %v5956
      %v5969 = vpack.c.b16 %v5959, %v5958
      %v5970 = vpack.c.b16 %v5961, %v5960
      %v5971 = vpack.c.b16 %v5963, %v5962
      %5980 = vmatprep.subr.bf16.mxu0 0
      %5981 = vmatpush1.bf16.msra.mxu0 %v5964
      %5982 = vmatprep.subr.bf16.mxu0 0
      %5983 = vmatpush1.bf16.msra.mxu0 %v5965
      %5984 = vmatprep.subr.bf16.mxu0 0
      %5985 = vmatpush1.bf16.msra.mxu0 %v5966
      %5986 = vmatprep.subr.bf16.mxu0 0
      %5987 = vmatpush1.bf16.msra.mxu0 %v5967
      %5988 = vmatprep.subr.bf16.mxu0 0
      %5989 = vmatpush1.bf16.msra.mxu0 %v5968
      %5990 = vmatprep.subr.bf16.mxu0 0
      %5991 = vmatpush1.bf16.msra.mxu0 %v5969
      %5992 = vmatprep.subr.bf16.mxu0 0
      %5993 = vmatpush1.bf16.msra.mxu0 %v5970
      %5994 = vmatprep.subr.bf16.mxu0 0
      %5995 = vmatpush1.bf16.msra.mxu0 %v5971
      %5996 = vmatprep.subr.bf16.mxu0 0
      %5997 = vmatpush1.bf16.msra.mxu0 0
      %5998 = vmatprep.subr.bf16.mxu0 0
      %5999 = vmatpush1.bf16.msra.mxu0 0
      %6000 = vmatprep.subr.bf16.mxu0 0
      %6001 = vmatpush1.bf16.msra.mxu0 0
      %6002 = vmatprep.subr.bf16.mxu0 0
      %6003 = vmatpush1.bf16.msra.mxu0 0
      %6004 = vmatprep.subr.bf16.mxu0 0
      %6005 = vmatpush1.bf16.msra.mxu0 0
      %6006 = vmatprep.subr.bf16.mxu0 0
      %6007 = vmatpush1.bf16.msra.mxu0 0
      %6008 = vmatprep.subr.bf16.mxu0 0
      %6009 = vmatpush1.bf16.msra.mxu0 0
      %6010 = vmatprep.subr.bf16.mxu0 0
      %6011 = vmatpush1.bf16.msra.mxu0 0
      %6012 = vmatprep.mubr.bf16.mxu0 0
      %6013 = vmatmul.mubr.bf16.gmra.mrb[0].mxu0 %v2821
      %v6014 = vpop.f32.mrb[0].mxu0
      %v6015 = vadd.f32 0.0, %v6014
      %v6016 = vpop.f32.mrb[0].mxu0
      %v6017 = vpop.f32.mrb[0].mxu0
      %v6018 = vadd.f32 0.0, %v6017
      %v6019 = vpop.f32.mrb[0].mxu0
      %6020 = vmatprep.mubr.bf16.mxu0 0
      %6021 = vmatmul.mubr.bf16.gmra.mrb[0].mxu0 %v2822
      %v6022 = vpop.f32.mrb[0].mxu0
      %v6023 = vadd.f32 0.0, %v6022
      %v6024 = vpop.f32.mrb[0].mxu0
      %v6025 = vpop.f32.mrb[0].mxu0
      %v6026 = vadd.f32 0.0, %v6025
      %v6027 = vpop.f32.mrb[0].mxu0
      %6028 = vdwg.mxu0
      %v6045 = vunpack.c.l.b16 %v3255
      %v6046 = vunpack.c.l.b16 %v3256
      %v6047 = vunpack.c.l.b16 %v3257
      %v6048 = vunpack.c.l.b16 %v3258
      %v6049 = vunpack.c.l.b16 %v3259
      %v6050 = vunpack.c.l.b16 %v3260
      %v6051 = vunpack.c.l.b16 %v3261
      %v6052 = vunpack.c.l.b16 %v3262
      %v6053 = vunpack.c.l.b16 %v3263
      %v6054 = vunpack.c.l.b16 %v3264
      %v6055 = vunpack.c.l.b16 %v3265
      %v6056 = vunpack.c.l.b16 %v3266
      %v6057 = vunpack.c.l.b16 %v3267
      %v6058 = vunpack.c.l.b16 %v3268
      %v6059 = vunpack.c.l.b16 %v3269
      %v6060 = vunpack.c.l.b16 %v3270
      %v6061 = vpack.c.b16 %v6046, %v6045
      %v6062 = vpack.c.b16 %v6048, %v6047
      %v6063 = vpack.c.b16 %v6050, %v6049
      %v6064 = vpack.c.b16 %v6052, %v6051
      %v6065 = vpack.c.b16 %v6054, %v6053
      %v6066 = vpack.c.b16 %v6056, %v6055
      %v6067 = vpack.c.b16 %v6058, %v6057
      %v6068 = vpack.c.b16 %v6060, %v6059
      %6077 = vmatprep.subr.bf16.mxu0 0
      %6078 = vmatpush1.bf16.msra.mxu0 %v6061
      %6079 = vmatprep.subr.bf16.mxu0 0
      %6080 = vmatpush1.bf16.msra.mxu0 %v6062
      %6081 = vmatprep.subr.bf16.mxu0 0
      %6082 = vmatpush1.bf16.msra.mxu0 %v6063
      %6083 = vmatprep.subr.bf16.mxu0 0
      %6084 = vmatpush1.bf16.msra.mxu0 %v6064
      %6085 = vmatprep.subr.bf16.mxu0 0
      %6086 = vmatpush1.bf16.msra.mxu0 %v6065
      %6087 = vmatprep.subr.bf16.mxu0 0
      %6088 = vmatpush1.bf16.msra.mxu0 %v6066
      %6089 = vmatprep.subr.bf16.mxu0 0
      %6090 = vmatpush1.bf16.msra.mxu0 %v6067
      %6091 = vmatprep.subr.bf16.mxu0 0
      %6092 = vmatpush1.bf16.msra.mxu0 %v6068
      %6093 = vmatprep.subr.bf16.mxu0 0
      %6094 = vmatpush1.bf16.msra.mxu0 0
      %6095 = vmatprep.subr.bf16.mxu0 0
      %6096 = vmatpush1.bf16.msra.mxu0 0
      %6097 = vmatprep.subr.bf16.mxu0 0
      %6098 = vmatpush1.bf16.msra.mxu0 0
      %6099 = vmatprep.subr.bf16.mxu0 0
      %6100 = vmatpush1.bf16.msra.mxu0 0
      %6101 = vmatprep.subr.bf16.mxu0 0
      %6102 = vmatpush1.bf16.msra.mxu0 0
      %6103 = vmatprep.subr.bf16.mxu0 0
      %6104 = vmatpush1.bf16.msra.mxu0 0
      %6105 = vmatprep.subr.bf16.mxu0 0
      %6106 = vmatpush1.bf16.msra.mxu0 0
      %6107 = vmatprep.subr.bf16.mxu0 0
      %6108 = vmatpush1.bf16.msra.mxu0 0
      %6109 = vmatprep.mubr.bf16.mxu0 0
      %6110 = vmatmul.mubr.bf16.gmra.mrb[0].mxu0 %v2823
      %v6111 = vpop.f32.mrb[0].mxu0
      %v6112 = vadd.f32 0.0, %v6111
      %v6113 = vpop.f32.mrb[0].mxu0
      %v6114 = vpop.f32.mrb[0].mxu0
      %v6115 = vadd.f32 0.0, %v6114
      %v6116 = vpop.f32.mrb[0].mxu0
      %6117 = vmatprep.mubr.bf16.mxu0 0
      %6118 = vmatmul.mubr.bf16.gmra.mrb[0].mxu0 %v2824
      %v6119 = vpop.f32.mrb[0].mxu0
      %v6120 = vadd.f32 0.0, %v6119
      %v6121 = vpop.f32.mrb[0].mxu0
      %v6122 = vpop.f32.mrb[0].mxu0
      %v6123 = vadd.f32 0.0, %v6122
      %v6124 = vpop.f32.mrb[0].mxu0
      %6125 = vdwg.mxu0
      %v6142 = vunpack.c.l.b16 %v3271
      %v6143 = vunpack.c.l.b16 %v3272
      %v6144 = vunpack.c.l.b16 %v3273
      %v6145 = vunpack.c.l.b16 %v3274
      %v6146 = vunpack.c.l.b16 %v3275
      %v6147 = vunpack.c.l.b16 %v3276
      %v6148 = vunpack.c.l.b16 %v3277
      %v6149 = vunpack.c.l.b16 %v3278
      %v6150 = vunpack.c.l.b16 %v3279
      %v6151 = vunpack.c.l.b16 %v3280
      %v6152 = vunpack.c.l.b16 %v3281
      %v6153 = vunpack.c.l.b16 %v3282
      %v6154 = vunpack.c.l.b16 %v3283
      %v6155 = vunpack.c.l.b16 %v3284
      %v6156 = vunpack.c.l.b16 %v3285
      %v6157 = vunpack.c.l.b16 %v3286
      %v6158 = vpack.c.b16 %v6143, %v6142
      %v6159 = vpack.c.b16 %v6145, %v6144
      %v6160 = vpack.c.b16 %v6147, %v6146
      %v6161 = vpack.c.b16 %v6149, %v6148
      %v6162 = vpack.c.b16 %v6151, %v6150
      %v6163 = vpack.c.b16 %v6153, %v6152
      %v6164 = vpack.c.b16 %v6155, %v6154
      %v6165 = vpack.c.b16 %v6157, %v6156
      %6174 = vmatprep.subr.bf16.mxu0 0
      %6175 = vmatpush1.bf16.msra.mxu0 %v6158
      %6176 = vmatprep.subr.bf16.mxu0 0
      %6177 = vmatpush1.bf16.msra.mxu0 %v6159
      %6178 = vmatprep.subr.bf16.mxu0 0
      %6179 = vmatpush1.bf16.msra.mxu0 %v6160
      %6180 = vmatprep.subr.bf16.mxu0 0
      %6181 = vmatpush1.bf16.msra.mxu0 %v6161
      %6182 = vmatprep.subr.bf16.mxu0 0
      %6183 = vmatpush1.bf16.msra.mxu0 %v6162
      %6184 = vmatprep.subr.bf16.mxu0 0
      %6185 = vmatpush1.bf16.msra.mxu0 %v6163
      %6186 = vmatprep.subr.bf16.mxu0 0
      %6187 = vmatpush1.bf16.msra.mxu0 %v6164
      %6188 = vmatprep.subr.bf16.mxu0 0
      %6189 = vmatpush1.bf16.msra.mxu0 %v6165
      %6190 = vmatprep.subr.bf16.mxu0 0
      %6191 = vmatpush1.bf16.msra.mxu0 0
      %6192 = vmatprep.subr.bf16.mxu0 0
      %6193 = vmatpush1.bf16.msra.mxu0 0
      %6194 = vmatprep.subr.bf16.mxu0 0
      %6195 = vmatpush1.bf16.msra.mxu0 0
      %6196 = vmatprep.subr.bf16.mxu0 0
      %6197 = vmatpush1.bf16.msra.mxu0 0
      %6198 = vmatprep.subr.bf16.mxu0 0
      %6199 = vmatpush1.bf16.msra.mxu0 0
      %6200 = vmatprep.subr.bf16.mxu0 0
      %6201 = vmatpush1.bf16.msra.mxu0 0
      %6202 = vmatprep.subr.bf16.mxu0 0
      %6203 = vmatpush1.bf16.msra.mxu0 0
      %6204 = vmatprep.subr.bf16.mxu0 0
      %6205 = vmatpush1.bf16.msra.mxu0 0
      %6206 = vmatprep.mubr.bf16.mxu0 0
      %6207 = vmatmul.mubr.bf16.gmra.mrb[0].mxu0 %v2825
      %v6208 = vpop.f32.mrb[0].mxu0
      %v6209 = vadd.f32 0.0, %v6208
      %v6210 = vpop.f32.mrb[0].mxu0
      %v6211 = vpop.f32.mrb[0].mxu0
      %v6212 = vadd.f32 0.0, %v6211
      %v6213 = vpop.f32.mrb[0].mxu0
      %6214 = vmatprep.mubr.bf16.mxu0 0
      %6215 = vmatmul.mubr.bf16.gmra.mrb[0].mxu0 %v2826
      %v6216 = vpop.f32.mrb[0].mxu0
      %v6217 = vadd.f32 0.0, %v6216
      %v6218 = vpop.f32.mrb[0].mxu0
      %v6219 = vpop.f32.mrb[0].mxu0
      %v6220 = vadd.f32 0.0, %v6219
      %v6221 = vpop.f32.mrb[0].mxu0
      %6222 = vdwg.mxu0
      %v6239 = vunpack.c.l.b16 %v3287
      %v6240 = vunpack.c.l.b16 %v3288
      %v6241 = vunpack.c.l.b16 %v3289
      %v6242 = vunpack.c.l.b16 %v3290
      %v6243 = vunpack.c.l.b16 %v3291
      %v6244 = vunpack.c.l.b16 %v3292
      %v6245 = vunpack.c.l.b16 %v3293
      %v6246 = vunpack.c.l.b16 %v3294
      %v6247 = vunpack.c.l.b16 %v3295
      %v6248 = vunpack.c.l.b16 %v3296
      %v6249 = vunpack.c.l.b16 %v3297
      %v6250 = vunpack.c.l.b16 %v3298
      %v6251 = vunpack.c.l.b16 %v3299
      %v6252 = vunpack.c.l.b16 %v3300
      %v6253 = vunpack.c.l.b16 %v3301
      %v6254 = vunpack.c.l.b16 %v3302
      %v6255 = vpack.c.b16 %v6240, %v6239
      %v6256 = vpack.c.b16 %v6242, %v6241
      %v6257 = vpack.c.b16 %v6244, %v6243
      %v6258 = vpack.c.b16 %v6246, %v6245
      %v6259 = vpack.c.b16 %v6248, %v6247
      %v6260 = vpack.c.b16 %v6250, %v6249
      %v6261 = vpack.c.b16 %v6252, %v6251
      %v6262 = vpack.c.b16 %v6254, %v6253
      %6271 = vmatprep.subr.bf16.mxu0 0
      %6272 = vmatpush1.bf16.msra.mxu0 %v6255
      %6273 = vmatprep.subr.bf16.mxu0 0
      %6274 = vmatpush1.bf16.msra.mxu0 %v6256
      %6275 = vmatprep.subr.bf16.mxu0 0
      %6276 = vmatpush1.bf16.msra.mxu0 %v6257
      %6277 = vmatprep.subr.bf16.mxu0 0
      %6278 = vmatpush1.bf16.msra.mxu0 %v6258
      %6279 = vmatprep.subr.bf16.mxu0 0
      %6280 = vmatpush1.bf16.msra.mxu0 %v6259
      %6281 = vmatprep.subr.bf16.mxu0 0
      %6282 = vmatpush1.bf16.msra.mxu0 %v6260
      %6283 = vmatprep.subr.bf16.mxu0 0
      %6284 = vmatpush1.bf16.msra.mxu0 %v6261
      %6285 = vmatprep.subr.bf16.mxu0 0
      %6286 = vmatpush1.bf16.msra.mxu0 %v6262
      %6287 = vmatprep.subr.bf16.mxu0 0
      %6288 = vmatpush1.bf16.msra.mxu0 0
      %6289 = vmatprep.subr.bf16.mxu0 0
      %6290 = vmatpush1.bf16.msra.mxu0 0
      %6291 = vmatprep.subr.bf16.mxu0 0
      %6292 = vmatpush1.bf16.msra.mxu0 0
      %6293 = vmatprep.subr.bf16.mxu0 0
      %6294 = vmatpush1.bf16.msra.mxu0 0
      %6295 = vmatprep.subr.bf16.mxu0 0
      %6296 = vmatpush1.bf16.msra.mxu0 0
      %6297 = vmatprep.subr.bf16.mxu0 0
      %6298 = vmatpush1.bf16.msra.mxu0 0
      %6299 = vmatprep.subr.bf16.mxu0 0
      %6300 = vmatpush1.bf16.msra.mxu0 0
      %6301 = vmatprep.subr.bf16.mxu0 0
      %6302 = vmatpush1.bf16.msra.mxu0 0
      %6303 = vmatprep.mubr.bf16.mxu0 0
      %6304 = vmatmul.mubr.bf16.gmra.mrb[0].mxu0 %v2827
      %v6305 = vpop.f32.mrb[0].mxu0
      %v6306 = vadd.f32 0.0, %v6305
      %v6307 = vpop.f32.mrb[0].mxu0
      %v6308 = vpop.f32.mrb[0].mxu0
      %v6309 = vadd.f32 0.0, %v6308
      %v6310 = vpop.f32.mrb[0].mxu0
      %6311 = vmatprep.mubr.bf16.mxu0 0
      %6312 = vmatmul.mubr.bf16.gmra.mrb[0].mxu0 %v2828
      %v6313 = vpop.f32.mrb[0].mxu0
      %v6314 = vadd.f32 0.0, %v6313
      %v6315 = vpop.f32.mrb[0].mxu0
      %v6316 = vpop.f32.mrb[0].mxu0
      %v6317 = vadd.f32 0.0, %v6316
      %v6318 = vpop.f32.mrb[0].mxu0
      %6319 = vdwg.mxu0
      %v6336 = vunpack.c.l.b16 %v3303
      %v6337 = vunpack.c.l.b16 %v3304
      %v6338 = vunpack.c.l.b16 %v3305
      %v6339 = vunpack.c.l.b16 %v3306
      %v6340 = vunpack.c.l.b16 %v3307
      %v6341 = vunpack.c.l.b16 %v3308
      %v6342 = vunpack.c.l.b16 %v3309
      %v6343 = vunpack.c.l.b16 %v3310
      %v6344 = vunpack.c.l.b16 %v3311
      %v6345 = vunpack.c.l.b16 %v3312
      %v6346 = vunpack.c.l.b16 %v3313
      %v6347 = vunpack.c.l.b16 %v3314
      %v6348 = vunpack.c.l.b16 %v3315
      %v6349 = vunpack.c.l.b16 %v3316
      %v6350 = vunpack.c.l.b16 %v3317
      %v6351 = vunpack.c.l.b16 %v3318
      %v6352 = vpack.c.b16 %v6337, %v6336
      %v6353 = vpack.c.b16 %v6339, %v6338
      %v6354 = vpack.c.b16 %v6341, %v6340
      %v6355 = vpack.c.b16 %v6343, %v6342
      %v6356 = vpack.c.b16 %v6345, %v6344
      %v6357 = vpack.c.b16 %v6347, %v6346
      %v6358 = vpack.c.b16 %v6349, %v6348
      %v6359 = vpack.c.b16 %v6351, %v6350
      %6368 = vmatprep.subr.bf16.mxu0 0
      %6369 = vmatpush1.bf16.msra.mxu0 %v6352
      %6370 = vmatprep.subr.bf16.mxu0 0
      %6371 = vmatpush1.bf16.msra.mxu0 %v6353
      %6372 = vmatprep.subr.bf16.mxu0 0
      %6373 = vmatpush1.bf16.msra.mxu0 %v6354
      %6374 = vmatprep.subr.bf16.mxu0 0
      %6375 = vmatpush1.bf16.msra.mxu0 %v6355
      %6376 = vmatprep.subr.bf16.mxu0 0
      %6377 = vmatpush1.bf16.msra.mxu0 %v6356
      %6378 = vmatprep.subr.bf16.mxu0 0
      %6379 = vmatpush1.bf16.msra.mxu0 %v6357
      %6380 = vmatprep.subr.bf16.mxu0 0
      %6381 = vmatpush1.bf16.msra.mxu0 %v6358
      %6382 = vmatprep.subr.bf16.mxu0 0
      %6383 = vmatpush1.bf16.msra.mxu0 %v6359
      %6384 = vmatprep.subr.bf16.mxu0 0
      %6385 = vmatpush1.bf16.msra.mxu0 0
      %6386 = vmatprep.subr.bf16.mxu0 0
      %6387 = vmatpush1.bf16.msra.mxu0 0
      %6388 = vmatprep.subr.bf16.mxu0 0
      %6389 = vmatpush1.bf16.msra.mxu0 0
      %6390 = vmatprep.subr.bf16.mxu0 0
      %6391 = vmatpush1.bf16.msra.mxu0 0
      %6392 = vmatprep.subr.bf16.mxu0 0
      %6393 = vmatpush1.bf16.msra.mxu0 0
      %6394 = vmatprep.subr.bf16.mxu0 0
      %6395 = vmatpush1.bf16.msra.mxu0 0
      %6396 = vmatprep.subr.bf16.mxu0 0
      %6397 = vmatpush1.bf16.msra.mxu0 0
      %6398 = vmatprep.subr.bf16.mxu0 0
      %6399 = vmatpush1.bf16.msra.mxu0 0
      %6400 = vmatprep.mubr.bf16.mxu0 0
      %6401 = vmatmul.mubr.bf16.gmra.mrb[0].mxu0 %v2829
      %v6402 = vpop.f32.mrb[0].mxu0
      %v6403 = vadd.f32 0.0, %v6402
      %v6404 = vpop.f32.mrb[0].mxu0
      %v6405 = vpop.f32.mrb[0].mxu0
      %v6406 = vadd.f32 0.0, %v6405
      %v6407 = vpop.f32.mrb[0].mxu0
      %6408 = vmatprep.mubr.bf16.mxu0 0
      %6409 = vmatmul.mubr.bf16.gmra.mrb[0].mxu0 %v2830
      %v6410 = vpop.f32.mrb[0].mxu0
      %v6411 = vadd.f32 0.0, %v6410
      %v6412 = vpop.f32.mrb[0].mxu0
      %v6413 = vpop.f32.mrb[0].mxu0
      %v6414 = vadd.f32 0.0, %v6413
      %v6415 = vpop.f32.mrb[0].mxu0
      %6416 = vdwg.mxu0
      %v6433 = vunpack.c.l.b16 %v3319
      %v6434 = vunpack.c.l.b16 %v3320
      %v6435 = vunpack.c.l.b16 %v3321
      %v6436 = vunpack.c.l.b16 %v3322
      %v6437 = vunpack.c.l.b16 %v3323
      %v6438 = vunpack.c.l.b16 %v3324
      %v6439 = vunpack.c.l.b16 %v3325
      %v6440 = vunpack.c.l.b16 %v3326
      %v6441 = vunpack.c.l.b16 %v3327
      %v6442 = vunpack.c.l.b16 %v3328
      %v6443 = vunpack.c.l.b16 %v3329
      %v6444 = vunpack.c.l.b16 %v3330
      %v6445 = vunpack.c.l.b16 %v3331
      %v6446 = vunpack.c.l.b16 %v3332
      %v6447 = vunpack.c.l.b16 %v3333
      %v6448 = vunpack.c.l.b16 %v3334
      %v6449 = vpack.c.b16 %v6434, %v6433
      %v6450 = vpack.c.b16 %v6436, %v6435
      %v6451 = vpack.c.b16 %v6438, %v6437
      %v6452 = vpack.c.b16 %v6440, %v6439
      %v6453 = vpack.c.b16 %v6442, %v6441
      %v6454 = vpack.c.b16 %v6444, %v6443
      %v6455 = vpack.c.b16 %v6446, %v6445
      %v6456 = vpack.c.b16 %v6448, %v6447
      %6465 = vmatprep.subr.bf16.mxu0 0
      %6466 = vmatpush1.bf16.msra.mxu0 %v6449
      %6467 = vmatprep.subr.bf16.mxu0 0
      %6468 = vmatpush1.bf16.msra.mxu0 %v6450
      %6469 = vmatprep.subr.bf16.mxu0 0
      %6470 = vmatpush1.bf16.msra.mxu0 %v6451
      %6471 = vmatprep.subr.bf16.mxu0 0
      %6472 = vmatpush1.bf16.msra.mxu0 %v6452
      %6473 = vmatprep.subr.bf16.mxu0 0
      %6474 = vmatpush1.bf16.msra.mxu0 %v6453
      %6475 = vmatprep.subr.bf16.mxu0 0
      %6476 = vmatpush1.bf16.msra.mxu0 %v6454
      %6477 = vmatprep.subr.bf16.mxu0 0
      %6478 = vmatpush1.bf16.msra.mxu0 %v6455
      %6479 = vmatprep.subr.bf16.mxu0 0
      %6480 = vmatpush1.bf16.msra.mxu0 %v6456
      %6481 = vmatprep.subr.bf16.mxu0 0
      %6482 = vmatpush1.bf16.msra.mxu0 0
      %6483 = vmatprep.subr.bf16.mxu0 0
      %6484 = vmatpush1.bf16.msra.mxu0 0
      %6485 = vmatprep.subr.bf16.mxu0 0
      %6486 = vmatpush1.bf16.msra.mxu0 0
      %6487 = vmatprep.subr.bf16.mxu0 0
      %6488 = vmatpush1.bf16.msra.mxu0 0
      %6489 = vmatprep.subr.bf16.mxu0 0
      %6490 = vmatpush1.bf16.msra.mxu0 0
      %6491 = vmatprep.subr.bf16.mxu0 0
      %6492 = vmatpush1.bf16.msra.mxu0 0
      %6493 = vmatprep.subr.bf16.mxu0 0
      %6494 = vmatpush1.bf16.msra.mxu0 0
      %6495 = vmatprep.subr.bf16.mxu0 0
      %6496 = vmatpush1.bf16.msra.mxu0 0
      %6497 = vmatprep.mubr.bf16.mxu0 0
      %6498 = vmatmul.mubr.bf16.gmra.mrb[0].mxu0 %v2831
      %v6499 = vpop.f32.mrb[0].mxu0
      %v6500 = vadd.f32 0.0, %v6499
      %v6501 = vpop.f32.mrb[0].mxu0
      %v6502 = vpop.f32.mrb[0].mxu0
      %v6503 = vadd.f32 0.0, %v6502
      %v6504 = vpop.f32.mrb[0].mxu0
      %6505 = vmatprep.mubr.bf16.mxu0 0
      %6506 = vmatmul.mubr.bf16.gmra.mrb[0].mxu0 %v2832
      %v6507 = vpop.f32.mrb[0].mxu0
      %v6508 = vadd.f32 0.0, %v6507
      %v6509 = vpop.f32.mrb[0].mxu0
      %v6510 = vpop.f32.mrb[0].mxu0
      %v6511 = vadd.f32 0.0, %v6510
      %v6512 = vpop.f32.mrb[0].mxu0
      %6513 = vdwg.mxu0
      %v6530 = vunpack.c.l.b16 %v3335
      %v6531 = vunpack.c.l.b16 %v3336
      %v6532 = vunpack.c.l.b16 %v3337
      %v6533 = vunpack.c.l.b16 %v3338
      %v6534 = vunpack.c.l.b16 %v3339
      %v6535 = vunpack.c.l.b16 %v3340
      %v6536 = vunpack.c.l.b16 %v3341
      %v6537 = vunpack.c.l.b16 %v3342
      %v6538 = vunpack.c.l.b16 %v3343
      %v6539 = vunpack.c.l.b16 %v3344
      %v6540 = vunpack.c.l.b16 %v3345
      %v6541 = vunpack.c.l.b16 %v3346
      %v6542 = vunpack.c.l.b16 %v3347
      %v6543 = vunpack.c.l.b16 %v3348
      %v6544 = vunpack.c.l.b16 %v3349
      %v6545 = vunpack.c.l.b16 %v3350
      %v6546 = vpack.c.b16 %v6531, %v6530
      %v6547 = vpack.c.b16 %v6533, %v6532
      %v6548 = vpack.c.b16 %v6535, %v6534
      %v6549 = vpack.c.b16 %v6537, %v6536
      %v6550 = vpack.c.b16 %v6539, %v6538
      %v6551 = vpack.c.b16 %v6541, %v6540
      %v6552 = vpack.c.b16 %v6543, %v6542
      %v6553 = vpack.c.b16 %v6545, %v6544
      %6562 = vmatprep.subr.bf16.mxu0 0
      %6563 = vmatpush1.bf16.msra.mxu0 %v6546
      %6564 = vmatprep.subr.bf16.mxu0 0
      %6565 = vmatpush1.bf16.msra.mxu0 %v6547
      %6566 = vmatprep.subr.bf16.mxu0 0
      %6567 = vmatpush1.bf16.msra.mxu0 %v6548
      %6568 = vmatprep.subr.bf16.mxu0 0
      %6569 = vmatpush1.bf16.msra.mxu0 %v6549
      %6570 = vmatprep.subr.bf16.mxu0 0
      %6571 = vmatpush1.bf16.msra.mxu0 %v6550
      %6572 = vmatprep.subr.bf16.mxu0 0
      %6573 = vmatpush1.bf16.msra.mxu0 %v6551
      %6574 = vmatprep.subr.bf16.mxu0 0
      %6575 = vmatpush1.bf16.msra.mxu0 %v6552
      %6576 = vmatprep.subr.bf16.mxu0 0
      %6577 = vmatpush1.bf16.msra.mxu0 %v6553
      %6578 = vmatprep.subr.bf16.mxu0 0
      %6579 = vmatpush1.bf16.msra.mxu0 0
      %6580 = vmatprep.subr.bf16.mxu0 0
      %6581 = vmatpush1.bf16.msra.mxu0 0
      %6582 = vmatprep.subr.bf16.mxu0 0
      %6583 = vmatpush1.bf16.msra.mxu0 0
      %6584 = vmatprep.subr.bf16.mxu0 0
      %6585 = vmatpush1.bf16.msra.mxu0 0
      %6586 = vmatprep.subr.bf16.mxu0 0
      %6587 = vmatpush1.bf16.msra.mxu0 0
      %6588 = vmatprep.subr.bf16.mxu0 0
      %6589 = vmatpush1.bf16.msra.mxu0 0
      %6590 = vmatprep.subr.bf16.mxu0 0
      %6591 = vmatpush1.bf16.msra.mxu0 0
      %6592 = vmatprep.subr.bf16.mxu0 0
      %6593 = vmatpush1.bf16.msra.mxu0 0
      %6594 = vmatprep.mubr.bf16.mxu0 0
      %6595 = vmatmul.mubr.bf16.gmra.mrb[0].mxu0 %v2833
      %v6596 = vpop.f32.mrb[0].mxu0
      %v6597 = vadd.f32 0.0, %v6596
      %v6598 = vpop.f32.mrb[0].mxu0
      %v6599 = vpop.f32.mrb[0].mxu0
      %v6600 = vadd.f32 0.0, %v6599
      %v6601 = vpop.f32.mrb[0].mxu0
      %6602 = vmatprep.mubr.bf16.mxu0 0
      %6603 = vmatmul.mubr.bf16.gmra.mrb[0].mxu0 %v2834
      %v6604 = vpop.f32.mrb[0].mxu0
      %v6605 = vadd.f32 0.0, %v6604
      %v6606 = vpop.f32.mrb[0].mxu0
      %v6607 = vpop.f32.mrb[0].mxu0
      %v6608 = vadd.f32 0.0, %v6607
      %v6609 = vpop.f32.mrb[0].mxu0
      %6610 = vdwg.mxu0
      %v6627 = vunpack.c.l.b16 %v3351
      %v6628 = vunpack.c.l.b16 %v3352
      %v6629 = vunpack.c.l.b16 %v3353
      %v6630 = vunpack.c.l.b16 %v3354
      %v6631 = vunpack.c.l.b16 %v3355
      %v6632 = vunpack.c.l.b16 %v3356
      %v6633 = vunpack.c.l.b16 %v3357
      %v6634 = vunpack.c.l.b16 %v3358
      %v6635 = vunpack.c.l.b16 %v3359
      %v6636 = vunpack.c.l.b16 %v3360
      %v6637 = vunpack.c.l.b16 %v3361
      %v6638 = vunpack.c.l.b16 %v3362
      %v6639 = vunpack.c.l.b16 %v3363
      %v6640 = vunpack.c.l.b16 %v3364
      %v6641 = vunpack.c.l.b16 %v3365
      %v6642 = vunpack.c.l.b16 %v3366
      %v6643 = vpack.c.b16 %v6628, %v6627
      %v6644 = vpack.c.b16 %v6630, %v6629
      %v6645 = vpack.c.b16 %v6632, %v6631
      %v6646 = vpack.c.b16 %v6634, %v6633
      %v6647 = vpack.c.b16 %v6636, %v6635
      %v6648 = vpack.c.b16 %v6638, %v6637
      %v6649 = vpack.c.b16 %v6640, %v6639
      %v6650 = vpack.c.b16 %v6642, %v6641
      %6659 = vmatprep.subr.bf16.mxu0 0
      %6660 = vmatpush1.bf16.msra.mxu0 %v6643
      %6661 = vmatprep.subr.bf16.mxu0 0
      %6662 = vmatpush1.bf16.msra.mxu0 %v6644
      %6663 = vmatprep.subr.bf16.mxu0 0
      %6664 = vmatpush1.bf16.msra.mxu0 %v6645
      %6665 = vmatprep.subr.bf16.mxu0 0
      %6666 = vmatpush1.bf16.msra.mxu0 %v6646
      %6667 = vmatprep.subr.bf16.mxu0 0
      %6668 = vmatpush1.bf16.msra.mxu0 %v6647
      %6669 = vmatprep.subr.bf16.mxu0 0
      %6670 = vmatpush1.bf16.msra.mxu0 %v6648
      %6671 = vmatprep.subr.bf16.mxu0 0
      %6672 = vmatpush1.bf16.msra.mxu0 %v6649
      %6673 = vmatprep.subr.bf16.mxu0 0
      %6674 = vmatpush1.bf16.msra.mxu0 %v6650
      %6675 = vmatprep.subr.bf16.mxu0 0
      %6676 = vmatpush1.bf16.msra.mxu0 0
      %6677 = vmatprep.subr.bf16.mxu0 0
      %6678 = vmatpush1.bf16.msra.mxu0 0
      %6679 = vmatprep.subr.bf16.mxu0 0
      %6680 = vmatpush1.bf16.msra.mxu0 0
      %6681 = vmatprep.subr.bf16.mxu0 0
      %6682 = vmatpush1.bf16.msra.mxu0 0
      %6683 = vmatprep.subr.bf16.mxu0 0
      %6684 = vmatpush1.bf16.msra.mxu0 0
      %6685 = vmatprep.subr.bf16.mxu0 0
      %6686 = vmatpush1.bf16.msra.mxu0 0
      %6687 = vmatprep.subr.bf16.mxu0 0
      %6688 = vmatpush1.bf16.msra.mxu0 0
      %6689 = vmatprep.subr.bf16.mxu0 0
      %6690 = vmatpush1.bf16.msra.mxu0 0
      %6691 = vmatprep.mubr.bf16.mxu0 0
      %6692 = vmatmul.mubr.bf16.gmra.mrb[0].mxu0 %v2835
      %v6693 = vpop.f32.mrb[0].mxu0
      %v6694 = vadd.f32 0.0, %v6693
      %v6695 = vpop.f32.mrb[0].mxu0
      %v6696 = vpop.f32.mrb[0].mxu0
      %v6697 = vadd.f32 0.0, %v6696
      %v6698 = vpop.f32.mrb[0].mxu0
      %6699 = vmatprep.mubr.bf16.mxu0 0
      %6700 = vmatmul.mubr.bf16.gmra.mrb[0].mxu0 %v2836
      %v6701 = vpop.f32.mrb[0].mxu0
      %v6702 = vadd.f32 0.0, %v6701
      %v6703 = vpop.f32.mrb[0].mxu0
      %v6704 = vpop.f32.mrb[0].mxu0
      %v6705 = vadd.f32 0.0, %v6704
      %v6706 = vpop.f32.mrb[0].mxu0
      %6707 = vdwg.mxu0
      %v6724 = vunpack.c.l.b16 %v3367
      %v6725 = vunpack.c.l.b16 %v3368
      %v6726 = vunpack.c.l.b16 %v3369
      %v6727 = vunpack.c.l.b16 %v3370
      %v6728 = vunpack.c.l.b16 %v3371
      %v6729 = vunpack.c.l.b16 %v3372
      %v6730 = vunpack.c.l.b16 %v3373
      %v6731 = vunpack.c.l.b16 %v3374
      %v6732 = vunpack.c.l.b16 %v3375
      %v6733 = vunpack.c.l.b16 %v3376
      %v6734 = vunpack.c.l.b16 %v3377
      %v6735 = vunpack.c.l.b16 %v3378
      %v6736 = vunpack.c.l.b16 %v3379
      %v6737 = vunpack.c.l.b16 %v3380
      %v6738 = vunpack.c.l.b16 %v3381
      %v6739 = vunpack.c.l.b16 %v3382
      %v6740 = vpack.c.b16 %v6725, %v6724
      %v6741 = vpack.c.b16 %v6727, %v6726
      %v6742 = vpack.c.b16 %v6729, %v6728
      %v6743 = vpack.c.b16 %v6731, %v6730
      %v6744 = vpack.c.b16 %v6733, %v6732
      %v6745 = vpack.c.b16 %v6735, %v6734
      %v6746 = vpack.c.b16 %v6737, %v6736
      %v6747 = vpack.c.b16 %v6739, %v6738
      %6756 = vmatprep.subr.bf16.mxu0 0
      %6757 = vmatpush1.bf16.msra.mxu0 %v6740
      %6758 = vmatprep.subr.bf16.mxu0 0
      %6759 = vmatpush1.bf16.msra.mxu0 %v6741
      %6760 = vmatprep.subr.bf16.mxu0 0
      %6761 = vmatpush1.bf16.msra.mxu0 %v6742
      %6762 = vmatprep.subr.bf16.mxu0 0
      %6763 = vmatpush1.bf16.msra.mxu0 %v6743
      %6764 = vmatprep.subr.bf16.mxu0 0
      %6765 = vmatpush1.bf16.msra.mxu0 %v6744
      %6766 = vmatprep.subr.bf16.mxu0 0
      %6767 = vmatpush1.bf16.msra.mxu0 %v6745
      %6768 = vmatprep.subr.bf16.mxu0 0
      %6769 = vmatpush1.bf16.msra.mxu0 %v6746
      %6770 = vmatprep.subr.bf16.mxu0 0
      %6771 = vmatpush1.bf16.msra.mxu0 %v6747
      %6772 = vmatprep.subr.bf16.mxu0 0
      %6773 = vmatpush1.bf16.msra.mxu0 0
      %6774 = vmatprep.subr.bf16.mxu0 0
      %6775 = vmatpush1.bf16.msra.mxu0 0
      %6776 = vmatprep.subr.bf16.mxu0 0
      %6777 = vmatpush1.bf16.msra.mxu0 0
      %6778 = vmatprep.subr.bf16.mxu0 0
      %6779 = vmatpush1.bf16.msra.mxu0 0
      %6780 = vmatprep.subr.bf16.mxu0 0
      %6781 = vmatpush1.bf16.msra.mxu0 0
      %6782 = vmatprep.subr.bf16.mxu0 0
      %6783 = vmatpush1.bf16.msra.mxu0 0
      %6784 = vmatprep.subr.bf16.mxu0 0
      %6785 = vmatpush1.bf16.msra.mxu0 0
      %6786 = vmatprep.subr.bf16.mxu0 0
      %6787 = vmatpush1.bf16.msra.mxu0 0
      %6788 = vmatprep.mubr.bf16.mxu0 0
      %6789 = vmatmul.mubr.bf16.gmra.mrb[0].mxu0 %v2837
      %v6790 = vpop.f32.mrb[0].mxu0
      %v6791 = vadd.f32 0.0, %v6790
      %v6792 = vpop.f32.mrb[0].mxu0
      %v6793 = vpop.f32.mrb[0].mxu0
      %v6794 = vadd.f32 0.0, %v6793
      %v6795 = vpop.f32.mrb[0].mxu0
      %6796 = vmatprep.mubr.bf16.mxu0 0
      %6797 = vmatmul.mubr.bf16.gmra.mrb[0].mxu0 %v2838
      %v6798 = vpop.f32.mrb[0].mxu0
      %v6799 = vadd.f32 0.0, %v6798
      %v6800 = vpop.f32.mrb[0].mxu0
      %v6801 = vpop.f32.mrb[0].mxu0
      %v6802 = vadd.f32 0.0, %v6801
      %v6803 = vpop.f32.mrb[0].mxu0
      %6804 = vdwg.mxu0
      %v6821 = vunpack.c.l.b16 %v3383
      %v6822 = vunpack.c.l.b16 %v3384
      %v6823 = vunpack.c.l.b16 %v3385
      %v6824 = vunpack.c.l.b16 %v3386
      %v6825 = vunpack.c.l.b16 %v3387
      %v6826 = vunpack.c.l.b16 %v3388
      %v6827 = vunpack.c.l.b16 %v3389
      %v6828 = vunpack.c.l.b16 %v3390
      %v6829 = vunpack.c.l.b16 %v3391
      %v6830 = vunpack.c.l.b16 %v3392
      %v6831 = vunpack.c.l.b16 %v3393
      %v6832 = vunpack.c.l.b16 %v3394
      %v6833 = vunpack.c.l.b16 %v3395
      %v6834 = vunpack.c.l.b16 %v3396
      %v6835 = vunpack.c.l.b16 %v3397
      %v6836 = vunpack.c.l.b16 %v3398
      %v6837 = vpack.c.b16 %v6822, %v6821
      %v6838 = vpack.c.b16 %v6824, %v6823
      %v6839 = vpack.c.b16 %v6826, %v6825
      %v6840 = vpack.c.b16 %v6828, %v6827
      %v6841 = vpack.c.b16 %v6830, %v6829
      %v6842 = vpack.c.b16 %v6832, %v6831
      %v6843 = vpack.c.b16 %v6834, %v6833
      %v6844 = vpack.c.b16 %v6836, %v6835
      %6853 = vmatprep.subr.bf16.mxu0 0
      %6854 = vmatpush1.bf16.msra.mxu0 %v6837
      %6855 = vmatprep.subr.bf16.mxu0 0
      %6856 = vmatpush1.bf16.msra.mxu0 %v6838
      %6857 = vmatprep.subr.bf16.mxu0 0
      %6858 = vmatpush1.bf16.msra.mxu0 %v6839
      %6859 = vmatprep.subr.bf16.mxu0 0
      %6860 = vmatpush1.bf16.msra.mxu0 %v6840
      %6861 = vmatprep.subr.bf16.mxu0 0
      %6862 = vmatpush1.bf16.msra.mxu0 %v6841
      %6863 = vmatprep.subr.bf16.mxu0 0
      %6864 = vmatpush1.bf16.msra.mxu0 %v6842
      %6865 = vmatprep.subr.bf16.mxu0 0
      %6866 = vmatpush1.bf16.msra.mxu0 %v6843
      %6867 = vmatprep.subr.bf16.mxu0 0
      %6868 = vmatpush1.bf16.msra.mxu0 %v6844
      %6869 = vmatprep.subr.bf16.mxu0 0
      %6870 = vmatpush1.bf16.msra.mxu0 0
      %6871 = vmatprep.subr.bf16.mxu0 0
      %6872 = vmatpush1.bf16.msra.mxu0 0
      %6873 = vmatprep.subr.bf16.mxu0 0
      %6874 = vmatpush1.bf16.msra.mxu0 0
      %6875 = vmatprep.subr.bf16.mxu0 0
      %6876 = vmatpush1.bf16.msra.mxu0 0
      %6877 = vmatprep.subr.bf16.mxu0 0
      %6878 = vmatpush1.bf16.msra.mxu0 0
      %6879 = vmatprep.subr.bf16.mxu0 0
      %6880 = vmatpush1.bf16.msra.mxu0 0
      %6881 = vmatprep.subr.bf16.mxu0 0
      %6882 = vmatpush1.bf16.msra.mxu0 0
      %6883 = vmatprep.subr.bf16.mxu0 0
      %6884 = vmatpush1.bf16.msra.mxu0 0
      %6885 = vmatprep.mubr.bf16.mxu0 0
      %6886 = vmatmul.mubr.bf16.gmra.mrb[0].mxu0 %v2839
      %v6887 = vpop.f32.mrb[0].mxu0
      %v6888 = vadd.f32 0.0, %v6887
      %v6889 = vpop.f32.mrb[0].mxu0
      %v6890 = vpop.f32.mrb[0].mxu0
      %v6891 = vadd.f32 0.0, %v6890
      %v6892 = vpop.f32.mrb[0].mxu0
      %6893 = vmatprep.mubr.bf16.mxu0 0
      %6894 = vmatmul.mubr.bf16.gmra.mrb[0].mxu0 %v2840
      %v6895 = vpop.f32.mrb[0].mxu0
      %v6896 = vadd.f32 0.0, %v6895
      %v6897 = vpop.f32.mrb[0].mxu0
      %v6898 = vpop.f32.mrb[0].mxu0
      %v6899 = vadd.f32 0.0, %v6898
      %v6900 = vpop.f32.mrb[0].mxu0
      %6901 = vdwg.mxu0
      %v6918 = vunpack.c.l.b16 %v3399
      %v6919 = vunpack.c.l.b16 %v3400
      %v6920 = vunpack.c.l.b16 %v3401
      %v6921 = vunpack.c.l.b16 %v3402
      %v6922 = vunpack.c.l.b16 %v3403
      %v6923 = vunpack.c.l.b16 %v3404
      %v6924 = vunpack.c.l.b16 %v3405
      %v6925 = vunpack.c.l.b16 %v3406
      %v6926 = vunpack.c.l.b16 %v3407
      %v6927 = vunpack.c.l.b16 %v3408
      %v6928 = vunpack.c.l.b16 %v3409
      %v6929 = vunpack.c.l.b16 %v3410
      %v6930 = vunpack.c.l.b16 %v3411
      %v6931 = vunpack.c.l.b16 %v3412
      %v6932 = vunpack.c.l.b16 %v3413
      %v6933 = vunpack.c.l.b16 %v3414
      %v6934 = vpack.c.b16 %v6919, %v6918
      %v6935 = vpack.c.b16 %v6921, %v6920
      %v6936 = vpack.c.b16 %v6923, %v6922
      %v6937 = vpack.c.b16 %v6925, %v6924
      %v6938 = vpack.c.b16 %v6927, %v6926
      %v6939 = vpack.c.b16 %v6929, %v6928
      %v6940 = vpack.c.b16 %v6931, %v6930
      %v6941 = vpack.c.b16 %v6933, %v6932
      %6950 = vmatprep.subr.bf16.mxu0 0
      %6951 = vmatpush1.bf16.msra.mxu0 %v6934
      %6952 = vmatprep.subr.bf16.mxu0 0
      %6953 = vmatpush1.bf16.msra.mxu0 %v6935
      %6954 = vmatprep.subr.bf16.mxu0 0
      %6955 = vmatpush1.bf16.msra.mxu0 %v6936
      %6956 = vmatprep.subr.bf16.mxu0 0
      %6957 = vmatpush1.bf16.msra.mxu0 %v6937
      %6958 = vmatprep.subr.bf16.mxu0 0
      %6959 = vmatpush1.bf16.msra.mxu0 %v6938
      %6960 = vmatprep.subr.bf16.mxu0 0
      %6961 = vmatpush1.bf16.msra.mxu0 %v6939
      %6962 = vmatprep.subr.bf16.mxu0 0
      %6963 = vmatpush1.bf16.msra.mxu0 %v6940
      %6964 = vmatprep.subr.bf16.mxu0 0
      %6965 = vmatpush1.bf16.msra.mxu0 %v6941
      %6966 = vmatprep.subr.bf16.mxu0 0
      %6967 = vmatpush1.bf16.msra.mxu0 0
      %6968 = vmatprep.subr.bf16.mxu0 0
      %6969 = vmatpush1.bf16.msra.mxu0 0
      %6970 = vmatprep.subr.bf16.mxu0 0
      %6971 = vmatpush1.bf16.msra.mxu0 0
      %6972 = vmatprep.subr.bf16.mxu0 0
      %6973 = vmatpush1.bf16.msra.mxu0 0
      %6974 = vmatprep.subr.bf16.mxu0 0
      %6975 = vmatpush1.bf16.msra.mxu0 0
      %6976 = vmatprep.subr.bf16.mxu0 0
      %6977 = vmatpush1.bf16.msra.mxu0 0
      %6978 = vmatprep.subr.bf16.mxu0 0
      %6979 = vmatpush1.bf16.msra.mxu0 0
      %6980 = vmatprep.subr.bf16.mxu0 0
      %6981 = vmatpush1.bf16.msra.mxu0 0
      %6982 = vmatprep.mubr.bf16.mxu0 0
      %6983 = vmatmul.mubr.bf16.gmra.mrb[0].mxu0 %v2841
      %v6984 = vpop.f32.mrb[0].mxu0
      %v6985 = vadd.f32 0.0, %v6984
      %v6986 = vpop.f32.mrb[0].mxu0
      %v6987 = vpop.f32.mrb[0].mxu0
      %v6988 = vadd.f32 0.0, %v6987
      %v6989 = vpop.f32.mrb[0].mxu0
      %6990 = vmatprep.mubr.bf16.mxu0 0
      %6991 = vmatmul.mubr.bf16.gmra.mrb[0].mxu0 %v2842
      %v6992 = vpop.f32.mrb[0].mxu0
      %v6993 = vadd.f32 0.0, %v6992
      %v6994 = vpop.f32.mrb[0].mxu0
      %v6995 = vpop.f32.mrb[0].mxu0
      %v6996 = vadd.f32 0.0, %v6995
      %v6997 = vpop.f32.mrb[0].mxu0
      %6998 = vdwg.mxu0
      %v7015 = vunpack.c.l.b16 %v3415
      %v7016 = vunpack.c.l.b16 %v3416
      %v7017 = vunpack.c.l.b16 %v3417
      %v7018 = vunpack.c.l.b16 %v3418
      %v7019 = vunpack.c.l.b16 %v3419
      %v7020 = vunpack.c.l.b16 %v3420
      %v7021 = vunpack.c.l.b16 %v3421
      %v7022 = vunpack.c.l.b16 %v3422
      %v7023 = vunpack.c.l.b16 %v3423
      %v7024 = vunpack.c.l.b16 %v3424
      %v7025 = vunpack.c.l.b16 %v3425
      %v7026 = vunpack.c.l.b16 %v3426
      %v7027 = vunpack.c.l.b16 %v3427
      %v7028 = vunpack.c.l.b16 %v3428
      %v7029 = vunpack.c.l.b16 %v3429
      %v7030 = vunpack.c.l.b16 %v3430
      %v7031 = vpack.c.b16 %v7016, %v7015
      %v7032 = vpack.c.b16 %v7018, %v7017
      %v7033 = vpack.c.b16 %v7020, %v7019
      %v7034 = vpack.c.b16 %v7022, %v7021
      %v7035 = vpack.c.b16 %v7024, %v7023
      %v7036 = vpack.c.b16 %v7026, %v7025
      %v7037 = vpack.c.b16 %v7028, %v7027
      %v7038 = vpack.c.b16 %v7030, %v7029
      %7047 = vmatprep.subr.bf16.mxu0 0
      %7048 = vmatpush1.bf16.msra.mxu0 %v7031
      %7049 = vmatprep.subr.bf16.mxu0 0
      %7050 = vmatpush1.bf16.msra.mxu0 %v7032
      %7051 = vmatprep.subr.bf16.mxu0 0
      %7052 = vmatpush1.bf16.msra.mxu0 %v7033
      %7053 = vmatprep.subr.bf16.mxu0 0
      %7054 = vmatpush1.bf16.msra.mxu0 %v7034
      %7055 = vmatprep.subr.bf16.mxu0 0
      %7056 = vmatpush1.bf16.msra.mxu0 %v7035
      %7057 = vmatprep.subr.bf16.mxu0 0
      %7058 = vmatpush1.bf16.msra.mxu0 %v7036
      %7059 = vmatprep.subr.bf16.mxu0 0
      %7060 = vmatpush1.bf16.msra.mxu0 %v7037
      %7061 = vmatprep.subr.bf16.mxu0 0
      %7062 = vmatpush1.bf16.msra.mxu0 %v7038
      %7063 = vmatprep.subr.bf16.mxu0 0
      %7064 = vmatpush1.bf16.msra.mxu0 0
      %7065 = vmatprep.subr.bf16.mxu0 0
      %7066 = vmatpush1.bf16.msra.mxu0 0
      %7067 = vmatprep.subr.bf16.mxu0 0
      %7068 = vmatpush1.bf16.msra.mxu0 0
      %7069 = vmatprep.subr.bf16.mxu0 0
      %7070 = vmatpush1.bf16.msra.mxu0 0
      %7071 = vmatprep.subr.bf16.mxu0 0
      %7072 = vmatpush1.bf16.msra.mxu0 0
      %7073 = vmatprep.subr.bf16.mxu0 0
      %7074 = vmatpush1.bf16.msra.mxu0 0
      %7075 = vmatprep.subr.bf16.mxu0 0
      %7076 = vmatpush1.bf16.msra.mxu0 0
      %7077 = vmatprep.subr.bf16.mxu0 0
      %7078 = vmatpush1.bf16.msra.mxu0 0
      %7079 = vmatprep.mubr.bf16.mxu0 0
      %7080 = vmatmul.mubr.bf16.gmra.mrb[0].mxu0 %v2843
      %v7081 = vpop.f32.mrb[0].mxu0
      %v7082 = vadd.f32 0.0, %v7081
      %v7083 = vpop.f32.mrb[0].mxu0
      %v7084 = vpop.f32.mrb[0].mxu0
      %v7085 = vadd.f32 0.0, %v7084
      %v7086 = vpop.f32.mrb[0].mxu0
      %7087 = vmatprep.mubr.bf16.mxu0 0
      %7088 = vmatmul.mubr.bf16.gmra.mrb[0].mxu0 %v2844
      %v7089 = vpop.f32.mrb[0].mxu0
      %v7090 = vadd.f32 0.0, %v7089
      %v7091 = vpop.f32.mrb[0].mxu0
      %v7092 = vpop.f32.mrb[0].mxu0
      %v7093 = vadd.f32 0.0, %v7092
      %v7094 = vpop.f32.mrb[0].mxu0
      %7095 = vdwg.mxu0
      %v7112 = vunpack.c.l.b16 %v3431
      %v7113 = vunpack.c.l.b16 %v3432
      %v7114 = vunpack.c.l.b16 %v3433
      %v7115 = vunpack.c.l.b16 %v3434
      %v7116 = vunpack.c.l.b16 %v3435
      %v7117 = vunpack.c.l.b16 %v3436
      %v7118 = vunpack.c.l.b16 %v3437
      %v7119 = vunpack.c.l.b16 %v3438
      %v7120 = vunpack.c.l.b16 %v3439
      %v7121 = vunpack.c.l.b16 %v3440
      %v7122 = vunpack.c.l.b16 %v3441
      %v7123 = vunpack.c.l.b16 %v3442
      %v7124 = vunpack.c.l.b16 %v3443
      %v7125 = vunpack.c.l.b16 %v3444
      %v7126 = vunpack.c.l.b16 %v3445
      %v7127 = vunpack.c.l.b16 %v3446
      %v7128 = vpack.c.b16 %v7113, %v7112
      %v7129 = vpack.c.b16 %v7115, %v7114
      %v7130 = vpack.c.b16 %v7117, %v7116
      %v7131 = vpack.c.b16 %v7119, %v7118
      %v7132 = vpack.c.b16 %v7121, %v7120
      %v7133 = vpack.c.b16 %v7123, %v7122
      %v7134 = vpack.c.b16 %v7125, %v7124
      %v7135 = vpack.c.b16 %v7127, %v7126
      %7144 = vmatprep.subr.bf16.mxu0 0
      %7145 = vmatpush1.bf16.msra.mxu0 %v7128
      %7146 = vmatprep.subr.bf16.mxu0 0
      %7147 = vmatpush1.bf16.msra.mxu0 %v7129
      %7148 = vmatprep.subr.bf16.mxu0 0
      %7149 = vmatpush1.bf16.msra.mxu0 %v7130
      %7150 = vmatprep.subr.bf16.mxu0 0
      %7151 = vmatpush1.bf16.msra.mxu0 %v7131
      %7152 = vmatprep.subr.bf16.mxu0 0
      %7153 = vmatpush1.bf16.msra.mxu0 %v7132
      %7154 = vmatprep.subr.bf16.mxu0 0
      %7155 = vmatpush1.bf16.msra.mxu0 %v7133
      %7156 = vmatprep.subr.bf16.mxu0 0
      %7157 = vmatpush1.bf16.msra.mxu0 %v7134
      %7158 = vmatprep.subr.bf16.mxu0 0
      %7159 = vmatpush1.bf16.msra.mxu0 %v7135
      %7160 = vmatprep.subr.bf16.mxu0 0
      %7161 = vmatpush1.bf16.msra.mxu0 0
      %7162 = vmatprep.subr.bf16.mxu0 0
      %7163 = vmatpush1.bf16.msra.mxu0 0
      %7164 = vmatprep.subr.bf16.mxu0 0
      %7165 = vmatpush1.bf16.msra.mxu0 0
      %7166 = vmatprep.subr.bf16.mxu0 0
      %7167 = vmatpush1.bf16.msra.mxu0 0
      %7168 = vmatprep.subr.bf16.mxu0 0
      %7169 = vmatpush1.bf16.msra.mxu0 0
      %7170 = vmatprep.subr.bf16.mxu0 0
      %7171 = vmatpush1.bf16.msra.mxu0 0
      %7172 = vmatprep.subr.bf16.mxu0 0
      %7173 = vmatpush1.bf16.msra.mxu0 0
      %7174 = vmatprep.subr.bf16.mxu0 0
      %7175 = vmatpush1.bf16.msra.mxu0 0
      %7176 = vmatprep.mubr.bf16.mxu0 0
      %7177 = vmatmul.mubr.bf16.gmra.mrb[0].mxu0 %v2845
      %v7178 = vpop.f32.mrb[0].mxu0
      %v7179 = vadd.f32 0.0, %v7178
      %v7180 = vpop.f32.mrb[0].mxu0
      %v7181 = vpop.f32.mrb[0].mxu0
      %v7182 = vadd.f32 0.0, %v7181
      %v7183 = vpop.f32.mrb[0].mxu0
      %7184 = vmatprep.mubr.bf16.mxu0 0
      %7185 = vmatmul.mubr.bf16.gmra.mrb[0].mxu0 %v2846
      %v7186 = vpop.f32.mrb[0].mxu0
      %v7187 = vadd.f32 0.0, %v7186
      %v7188 = vpop.f32.mrb[0].mxu0
      %v7189 = vpop.f32.mrb[0].mxu0
      %v7190 = vadd.f32 0.0, %v7189
      %v7191 = vpop.f32.mrb[0].mxu0
      %7192 = vdwg.mxu0
      %v7209 = vunpack.c.l.b16 %v3447
      %v7210 = vunpack.c.l.b16 %v3448
      %v7211 = vunpack.c.l.b16 %v3449
      %v7212 = vunpack.c.l.b16 %v3450
      %v7213 = vunpack.c.l.b16 %v3451
      %v7214 = vunpack.c.l.b16 %v3452
      %v7215 = vunpack.c.l.b16 %v3453
      %v7216 = vunpack.c.l.b16 %v3454
      %v7217 = vunpack.c.l.b16 %v3455
      %v7218 = vunpack.c.l.b16 %v3456
      %v7219 = vunpack.c.l.b16 %v3457
      %v7220 = vunpack.c.l.b16 %v3458
      %v7221 = vunpack.c.l.b16 %v3459
      %v7222 = vunpack.c.l.b16 %v3460
      %v7223 = vunpack.c.l.b16 %v3461
      %v7224 = vunpack.c.l.b16 %v3462
      %v7225 = vpack.c.b16 %v7210, %v7209
      %v7226 = vpack.c.b16 %v7212, %v7211
      %v7227 = vpack.c.b16 %v7214, %v7213
      %v7228 = vpack.c.b16 %v7216, %v7215
      %v7229 = vpack.c.b16 %v7218, %v7217
      %v7230 = vpack.c.b16 %v7220, %v7219
      %v7231 = vpack.c.b16 %v7222, %v7221
      %v7232 = vpack.c.b16 %v7224, %v7223
      %7241 = vmatprep.subr.bf16.mxu0 0
      %7242 = vmatpush1.bf16.msra.mxu0 %v7225
      %7243 = vmatprep.subr.bf16.mxu0 0
      %7244 = vmatpush1.bf16.msra.mxu0 %v7226
      %7245 = vmatprep.subr.bf16.mxu0 0
      %7246 = vmatpush1.bf16.msra.mxu0 %v7227
      %7247 = vmatprep.subr.bf16.mxu0 0
      %7248 = vmatpush1.bf16.msra.mxu0 %v7228
      %7249 = vmatprep.subr.bf16.mxu0 0
      %7250 = vmatpush1.bf16.msra.mxu0 %v7229
      %7251 = vmatprep.subr.bf16.mxu0 0
      %7252 = vmatpush1.bf16.msra.mxu0 %v7230
      %7253 = vmatprep.subr.bf16.mxu0 0
      %7254 = vmatpush1.bf16.msra.mxu0 %v7231
      %7255 = vmatprep.subr.bf16.mxu0 0
      %7256 = vmatpush1.bf16.msra.mxu0 %v7232
      %7257 = vmatprep.subr.bf16.mxu0 0
      %7258 = vmatpush1.bf16.msra.mxu0 0
      %7259 = vmatprep.subr.bf16.mxu0 0
      %7260 = vmatpush1.bf16.msra.mxu0 0
      %7261 = vmatprep.subr.bf16.mxu0 0
      %7262 = vmatpush1.bf16.msra.mxu0 0
      %7263 = vmatprep.subr.bf16.mxu0 0
      %7264 = vmatpush1.bf16.msra.mxu0 0
      %7265 = vmatprep.subr.bf16.mxu0 0
      %7266 = vmatpush1.bf16.msra.mxu0 0
      %7267 = vmatprep.subr.bf16.mxu0 0
      %7268 = vmatpush1.bf16.msra.mxu0 0
      %7269 = vmatprep.subr.bf16.mxu0 0
      %7270 = vmatpush1.bf16.msra.mxu0 0
      %7271 = vmatprep.subr.bf16.mxu0 0
      %7272 = vmatpush1.bf16.msra.mxu0 0
      %7273 = vmatprep.mubr.bf16.mxu0 0
      %7274 = vmatmul.mubr.bf16.gmra.mrb[0].mxu0 %v2847
      %v7275 = vpop.f32.mrb[0].mxu0
      %v7276 = vadd.f32 0.0, %v7275
      %v7277 = vpop.f32.mrb[0].mxu0
      %v7278 = vpop.f32.mrb[0].mxu0
      %v7279 = vadd.f32 0.0, %v7278
      %v7280 = vpop.f32.mrb[0].mxu0
      %7281 = vmatprep.mubr.bf16.mxu0 0
      %7282 = vmatmul.mubr.bf16.gmra.mrb[0].mxu0 %v2848
      %v7283 = vpop.f32.mrb[0].mxu0
      %v7284 = vadd.f32 0.0, %v7283
      %v7285 = vpop.f32.mrb[0].mxu0
      %v7286 = vpop.f32.mrb[0].mxu0
      %v7287 = vadd.f32 0.0, %v7286
      %v7288 = vpop.f32.mrb[0].mxu0
      %7289 = vdwg.mxu0
      %v7306 = vunpack.c.l.b16 %v3463
      %v7307 = vunpack.c.l.b16 %v3464
      %v7308 = vunpack.c.l.b16 %v3465
      %v7309 = vunpack.c.l.b16 %v3466
      %v7310 = vunpack.c.l.b16 %v3467
      %v7311 = vunpack.c.l.b16 %v3468
      %v7312 = vunpack.c.l.b16 %v3469
      %v7313 = vunpack.c.l.b16 %v3470
      %v7314 = vunpack.c.l.b16 %v3471
      %v7315 = vunpack.c.l.b16 %v3472
      %v7316 = vunpack.c.l.b16 %v3473
      %v7317 = vunpack.c.l.b16 %v3474
      %v7318 = vunpack.c.l.b16 %v3475
      %v7319 = vunpack.c.l.b16 %v3476
      %v7320 = vunpack.c.l.b16 %v3477
      %v7321 = vunpack.c.l.b16 %v3478
      %v7322 = vpack.c.b16 %v7307, %v7306
      %v7323 = vpack.c.b16 %v7309, %v7308
      %v7324 = vpack.c.b16 %v7311, %v7310
      %v7325 = vpack.c.b16 %v7313, %v7312
      %v7326 = vpack.c.b16 %v7315, %v7314
      %v7327 = vpack.c.b16 %v7317, %v7316
      %v7328 = vpack.c.b16 %v7319, %v7318
      %v7329 = vpack.c.b16 %v7321, %v7320
      %7338 = vmatprep.subr.bf16.mxu0 0
      %7339 = vmatpush1.bf16.msra.mxu0 %v7322
      %7340 = vmatprep.subr.bf16.mxu0 0
      %7341 = vmatpush1.bf16.msra.mxu0 %v7323
      %7342 = vmatprep.subr.bf16.mxu0 0
      %7343 = vmatpush1.bf16.msra.mxu0 %v7324
      %7344 = vmatprep.subr.bf16.mxu0 0
      %7345 = vmatpush1.bf16.msra.mxu0 %v7325
      %7346 = vmatprep.subr.bf16.mxu0 0
      %7347 = vmatpush1.bf16.msra.mxu0 %v7326
      %7348 = vmatprep.subr.bf16.mxu0 0
      %7349 = vmatpush1.bf16.msra.mxu0 %v7327
      %7350 = vmatprep.subr.bf16.mxu0 0
      %7351 = vmatpush1.bf16.msra.mxu0 %v7328
      %7352 = vmatprep.subr.bf16.mxu0 0
      %7353 = vmatpush1.bf16.msra.mxu0 %v7329
      %7354 = vmatprep.subr.bf16.mxu0 0
      %7355 = vmatpush1.bf16.msra.mxu0 0
      %7356 = vmatprep.subr.bf16.mxu0 0
      %7357 = vmatpush1.bf16.msra.mxu0 0
      %7358 = vmatprep.subr.bf16.mxu0 0
      %7359 = vmatpush1.bf16.msra.mxu0 0
      %7360 = vmatprep.subr.bf16.mxu0 0
      %7361 = vmatpush1.bf16.msra.mxu0 0
      %7362 = vmatprep.subr.bf16.mxu0 0
      %7363 = vmatpush1.bf16.msra.mxu0 0
      %7364 = vmatprep.subr.bf16.mxu0 0
      %7365 = vmatpush1.bf16.msra.mxu0 0
      %7366 = vmatprep.subr.bf16.mxu0 0
      %7367 = vmatpush1.bf16.msra.mxu0 0
      %7368 = vmatprep.subr.bf16.mxu0 0
      %7369 = vmatpush1.bf16.msra.mxu0 0
      %7370 = vmatprep.mubr.bf16.mxu0 0
      %7371 = vmatmul.mubr.bf16.gmra.mrb[0].mxu0 %v2849
      %v7372 = vpop.f32.mrb[0].mxu0
      %v7373 = vadd.f32 0.0, %v7372
      %v7374 = vpop.f32.mrb[0].mxu0
      %v7375 = vpop.f32.mrb[0].mxu0
      %v7376 = vadd.f32 0.0, %v7375
      %v7377 = vpop.f32.mrb[0].mxu0
      %7378 = vmatprep.mubr.bf16.mxu0 0
      %7379 = vmatmul.mubr.bf16.gmra.mrb[0].mxu0 %v2850
      %v7380 = vpop.f32.mrb[0].mxu0
      %v7381 = vadd.f32 0.0, %v7380
      %v7382 = vpop.f32.mrb[0].mxu0
      %v7383 = vpop.f32.mrb[0].mxu0
      %v7384 = vadd.f32 0.0, %v7383
      %v7385 = vpop.f32.mrb[0].mxu0
      %7386 = vdwg.mxu0
      %v7403 = vunpack.c.l.b16 %v3479
      %v7404 = vunpack.c.l.b16 %v3480
      %v7405 = vunpack.c.l.b16 %v3481
      %v7406 = vunpack.c.l.b16 %v3482
      %v7407 = vunpack.c.l.b16 %v3483
      %v7408 = vunpack.c.l.b16 %v3484
      %v7409 = vunpack.c.l.b16 %v3485
      %v7410 = vunpack.c.l.b16 %v3486
      %v7411 = vunpack.c.l.b16 %v3487
      %v7412 = vunpack.c.l.b16 %v3488
      %v7413 = vunpack.c.l.b16 %v3489
      %v7414 = vunpack.c.l.b16 %v3490
      %v7415 = vunpack.c.l.b16 %v3491
      %v7416 = vunpack.c.l.b16 %v3492
      %v7417 = vunpack.c.l.b16 %v3493
      %v7418 = vunpack.c.l.b16 %v3494
      %v7419 = vpack.c.b16 %v7404, %v7403
      %v7420 = vpack.c.b16 %v7406, %v7405
      %v7421 = vpack.c.b16 %v7408, %v7407
      %v7422 = vpack.c.b16 %v7410, %v7409
      %v7423 = vpack.c.b16 %v7412, %v7411
      %v7424 = vpack.c.b16 %v7414, %v7413
      %v7425 = vpack.c.b16 %v7416, %v7415
      %v7426 = vpack.c.b16 %v7418, %v7417
      %7435 = vmatprep.subr.bf16.mxu0 0
      %7436 = vmatpush1.bf16.msra.mxu0 %v7419
      %7437 = vmatprep.subr.bf16.mxu0 0
      %7438 = vmatpush1.bf16.msra.mxu0 %v7420
      %7439 = vmatprep.subr.bf16.mxu0 0
      %7440 = vmatpush1.bf16.msra.mxu0 %v7421
      %7441 = vmatprep.subr.bf16.mxu0 0
      %7442 = vmatpush1.bf16.msra.mxu0 %v7422
      %7443 = vmatprep.subr.bf16.mxu0 0
      %7444 = vmatpush1.bf16.msra.mxu0 %v7423
      %7445 = vmatprep.subr.bf16.mxu0 0
      %7446 = vmatpush1.bf16.msra.mxu0 %v7424
      %7447 = vmatprep.subr.bf16.mxu0 0
      %7448 = vmatpush1.bf16.msra.mxu0 %v7425
      %7449 = vmatprep.subr.bf16.mxu0 0
      %7450 = vmatpush1.bf16.msra.mxu0 %v7426
      %7451 = vmatprep.subr.bf16.mxu0 0
      %7452 = vmatpush1.bf16.msra.mxu0 0
      %7453 = vmatprep.subr.bf16.mxu0 0
      %7454 = vmatpush1.bf16.msra.mxu0 0
      %7455 = vmatprep.subr.bf16.mxu0 0
      %7456 = vmatpush1.bf16.msra.mxu0 0
      %7457 = vmatprep.subr.bf16.mxu0 0
      %7458 = vmatpush1.bf16.msra.mxu0 0
      %7459 = vmatprep.subr.bf16.mxu0 0
      %7460 = vmatpush1.bf16.msra.mxu0 0
      %7461 = vmatprep.subr.bf16.mxu0 0
      %7462 = vmatpush1.bf16.msra.mxu0 0
      %7463 = vmatprep.subr.bf16.mxu0 0
      %7464 = vmatpush1.bf16.msra.mxu0 0
      %7465 = vmatprep.subr.bf16.mxu0 0
      %7466 = vmatpush1.bf16.msra.mxu0 0
      %7467 = vmatprep.mubr.bf16.mxu0 0
      %7468 = vmatmul.mubr.bf16.gmra.mrb[0].mxu0 %v2851
      %v7469 = vpop.f32.mrb[0].mxu0
      %v7470 = vadd.f32 0.0, %v7469
      %v7471 = vpop.f32.mrb[0].mxu0
      %v7472 = vpop.f32.mrb[0].mxu0
      %v7473 = vadd.f32 0.0, %v7472
      %v7474 = vpop.f32.mrb[0].mxu0
      %7475 = vmatprep.mubr.bf16.mxu0 0
      %7476 = vmatmul.mubr.bf16.gmra.mrb[0].mxu0 %v2852
      %v7477 = vpop.f32.mrb[0].mxu0
      %v7478 = vadd.f32 0.0, %v7477
      %v7479 = vpop.f32.mrb[0].mxu0
      %v7480 = vpop.f32.mrb[0].mxu0
      %v7481 = vadd.f32 0.0, %v7480
      %v7482 = vpop.f32.mrb[0].mxu0
      %7483 = vdwg.mxu0
      %v7500 = vunpack.c.l.b16 %v3495
      %v7501 = vunpack.c.l.b16 %v3496
      %v7502 = vunpack.c.l.b16 %v3497
      %v7503 = vunpack.c.l.b16 %v3498
      %v7504 = vunpack.c.l.b16 %v3499
      %v7505 = vunpack.c.l.b16 %v3500
      %v7506 = vunpack.c.l.b16 %v3501
      %v7507 = vunpack.c.l.b16 %v3502
      %v7508 = vunpack.c.l.b16 %v3503
      %v7509 = vunpack.c.l.b16 %v3504
      %v7510 = vunpack.c.l.b16 %v3505
      %v7511 = vunpack.c.l.b16 %v3506
      %v7512 = vunpack.c.l.b16 %v3507
      %v7513 = vunpack.c.l.b16 %v3508
      %v7514 = vunpack.c.l.b16 %v3509
      %v7515 = vunpack.c.l.b16 %v3510
      %v7516 = vpack.c.b16 %v7501, %v7500
      %v7517 = vpack.c.b16 %v7503, %v7502
      %v7518 = vpack.c.b16 %v7505, %v7504
      %v7519 = vpack.c.b16 %v7507, %v7506
      %v7520 = vpack.c.b16 %v7509, %v7508
      %v7521 = vpack.c.b16 %v7511, %v7510
      %v7522 = vpack.c.b16 %v7513, %v7512
      %v7523 = vpack.c.b16 %v7515, %v7514
      %7532 = vmatprep.subr.bf16.mxu0 0
      %7533 = vmatpush1.bf16.msra.mxu0 %v7516
      %7534 = vmatprep.subr.bf16.mxu0 0
      %7535 = vmatpush1.bf16.msra.mxu0 %v7517
      %7536 = vmatprep.subr.bf16.mxu0 0
      %7537 = vmatpush1.bf16.msra.mxu0 %v7518
      %7538 = vmatprep.subr.bf16.mxu0 0
      %7539 = vmatpush1.bf16.msra.mxu0 %v7519
      %7540 = vmatprep.subr.bf16.mxu0 0
      %7541 = vmatpush1.bf16.msra.mxu0 %v7520
      %7542 = vmatprep.subr.bf16.mxu0 0
      %7543 = vmatpush1.bf16.msra.mxu0 %v7521
      %7544 = vmatprep.subr.bf16.mxu0 0
      %7545 = vmatpush1.bf16.msra.mxu0 %v7522
      %7546 = vmatprep.subr.bf16.mxu0 0
      %7547 = vmatpush1.bf16.msra.mxu0 %v7523
      %7548 = vmatprep.subr.bf16.mxu0 0
      %7549 = vmatpush1.bf16.msra.mxu0 0
      %7550 = vmatprep.subr.bf16.mxu0 0
      %7551 = vmatpush1.bf16.msra.mxu0 0
      %7552 = vmatprep.subr.bf16.mxu0 0
      %7553 = vmatpush1.bf16.msra.mxu0 0
      %7554 = vmatprep.subr.bf16.mxu0 0
      %7555 = vmatpush1.bf16.msra.mxu0 0
      %7556 = vmatprep.subr.bf16.mxu0 0
      %7557 = vmatpush1.bf16.msra.mxu0 0
      %7558 = vmatprep.subr.bf16.mxu0 0
      %7559 = vmatpush1.bf16.msra.mxu0 0
      %7560 = vmatprep.subr.bf16.mxu0 0
      %7561 = vmatpush1.bf16.msra.mxu0 0
      %7562 = vmatprep.subr.bf16.mxu0 0
      %7563 = vmatpush1.bf16.msra.mxu0 0
      %7564 = vmatprep.mubr.bf16.mxu0 0
      %7565 = vmatmul.mubr.bf16.gmra.mrb[0].mxu0 %v2853
      %v7566 = vpop.f32.mrb[0].mxu0
      %v7567 = vadd.f32 0.0, %v7566
      %v7568 = vpop.f32.mrb[0].mxu0
      %v7569 = vpop.f32.mrb[0].mxu0
      %v7570 = vadd.f32 0.0, %v7569
      %v7571 = vpop.f32.mrb[0].mxu0
      %7572 = vmatprep.mubr.bf16.mxu0 0
      %7573 = vmatmul.mubr.bf16.gmra.mrb[0].mxu0 %v2854
      %v7574 = vpop.f32.mrb[0].mxu0
      %v7575 = vadd.f32 0.0, %v7574
      %v7576 = vpop.f32.mrb[0].mxu0
      %v7577 = vpop.f32.mrb[0].mxu0
      %v7578 = vadd.f32 0.0, %v7577
      %v7579 = vpop.f32.mrb[0].mxu0
      %7580 = vdwg.mxu0
      %v7597 = vunpack.c.l.b16 %v3511
      %v7598 = vunpack.c.l.b16 %v3512
      %v7599 = vunpack.c.l.b16 %v3513
      %v7600 = vunpack.c.l.b16 %v3514
      %v7601 = vunpack.c.l.b16 %v3515
      %v7602 = vunpack.c.l.b16 %v3516
      %v7603 = vunpack.c.l.b16 %v3517
      %v7604 = vunpack.c.l.b16 %v3518
      %v7605 = vunpack.c.l.b16 %v3519
      %v7606 = vunpack.c.l.b16 %v3520
      %v7607 = vunpack.c.l.b16 %v3521
      %v7608 = vunpack.c.l.b16 %v3522
      %v7609 = vunpack.c.l.b16 %v3523
      %v7610 = vunpack.c.l.b16 %v3524
      %v7611 = vunpack.c.l.b16 %v3525
      %v7612 = vunpack.c.l.b16 %v3526
      %v7613 = vpack.c.b16 %v7598, %v7597
      %v7614 = vpack.c.b16 %v7600, %v7599
      %v7615 = vpack.c.b16 %v7602, %v7601
      %v7616 = vpack.c.b16 %v7604, %v7603
      %v7617 = vpack.c.b16 %v7606, %v7605
      %v7618 = vpack.c.b16 %v7608, %v7607
      %v7619 = vpack.c.b16 %v7610, %v7609
      %v7620 = vpack.c.b16 %v7612, %v7611
      %7629 = vmatprep.subr.bf16.mxu0 0
      %7630 = vmatpush1.bf16.msra.mxu0 %v7613
      %7631 = vmatprep.subr.bf16.mxu0 0
      %7632 = vmatpush1.bf16.msra.mxu0 %v7614
      %7633 = vmatprep.subr.bf16.mxu0 0
      %7634 = vmatpush1.bf16.msra.mxu0 %v7615
      %7635 = vmatprep.subr.bf16.mxu0 0
      %7636 = vmatpush1.bf16.msra.mxu0 %v7616
      %7637 = vmatprep.subr.bf16.mxu0 0
      %7638 = vmatpush1.bf16.msra.mxu0 %v7617
      %7639 = vmatprep.subr.bf16.mxu0 0
      %7640 = vmatpush1.bf16.msra.mxu0 %v7618
      %7641 = vmatprep.subr.bf16.mxu0 0
      %7642 = vmatpush1.bf16.msra.mxu0 %v7619
      %7643 = vmatprep.subr.bf16.mxu0 0
      %7644 = vmatpush1.bf16.msra.mxu0 %v7620
      %7645 = vmatprep.subr.bf16.mxu0 0
      %7646 = vmatpush1.bf16.msra.mxu0 0
      %7647 = vmatprep.subr.bf16.mxu0 0
      %7648 = vmatpush1.bf16.msra.mxu0 0
      %7649 = vmatprep.subr.bf16.mxu0 0
      %7650 = vmatpush1.bf16.msra.mxu0 0
      %7651 = vmatprep.subr.bf16.mxu0 0
      %7652 = vmatpush1.bf16.msra.mxu0 0
      %7653 = vmatprep.subr.bf16.mxu0 0
      %7654 = vmatpush1.bf16.msra.mxu0 0
      %7655 = vmatprep.subr.bf16.mxu0 0
      %7656 = vmatpush1.bf16.msra.mxu0 0
      %7657 = vmatprep.subr.bf16.mxu0 0
      %7658 = vmatpush1.bf16.msra.mxu0 0
      %7659 = vmatprep.subr.bf16.mxu0 0
      %7660 = vmatpush1.bf16.msra.mxu0 0
      %7661 = vmatprep.mubr.bf16.mxu0 0
      %7662 = vmatmul.mubr.bf16.gmra.mrb[0].mxu0 %v2855
      %v7663 = vpop.f32.mrb[0].mxu0
      %v7664 = vadd.f32 0.0, %v7663
      %v7665 = vpop.f32.mrb[0].mxu0
      %v7666 = vpop.f32.mrb[0].mxu0
      %v7667 = vadd.f32 0.0, %v7666
      %v7668 = vpop.f32.mrb[0].mxu0
      %7669 = vmatprep.mubr.bf16.mxu0 0
      %7670 = vmatmul.mubr.bf16.gmra.mrb[0].mxu0 %v2856
      %v7671 = vpop.f32.mrb[0].mxu0
      %v7672 = vadd.f32 0.0, %v7671
      %v7673 = vpop.f32.mrb[0].mxu0
      %v7674 = vpop.f32.mrb[0].mxu0
      %v7675 = vadd.f32 0.0, %v7674
      %v7676 = vpop.f32.mrb[0].mxu0
      %7677 = vdwg.mxu0
      %v7694 = vunpack.c.l.b16 %v3527
      %v7695 = vunpack.c.l.b16 %v3528
      %v7696 = vunpack.c.l.b16 %v3529
      %v7697 = vunpack.c.l.b16 %v3530
      %v7698 = vunpack.c.l.b16 %v3531
      %v7699 = vunpack.c.l.b16 %v3532
      %v7700 = vunpack.c.l.b16 %v3533
      %v7701 = vunpack.c.l.b16 %v3534
      %v7702 = vunpack.c.l.b16 %v3535
      %v7703 = vunpack.c.l.b16 %v3536
      %v7704 = vunpack.c.l.b16 %v3537
      %v7705 = vunpack.c.l.b16 %v3538
      %v7706 = vunpack.c.l.b16 %v3539
      %v7707 = vunpack.c.l.b16 %v3540
      %v7708 = vunpack.c.l.b16 %v3541
      %v7709 = vunpack.c.l.b16 %v3542
      %v7710 = vpack.c.b16 %v7695, %v7694
      %v7711 = vpack.c.b16 %v7697, %v7696
      %v7712 = vpack.c.b16 %v7699, %v7698
      %v7713 = vpack.c.b16 %v7701, %v7700
      %v7714 = vpack.c.b16 %v7703, %v7702
      %v7715 = vpack.c.b16 %v7705, %v7704
      %v7716 = vpack.c.b16 %v7707, %v7706
      %v7717 = vpack.c.b16 %v7709, %v7708
      %7726 = vmatprep.subr.bf16.mxu0 0
      %7727 = vmatpush1.bf16.msra.mxu0 %v7710
      %7728 = vmatprep.subr.bf16.mxu0 0
      %7729 = vmatpush1.bf16.msra.mxu0 %v7711
      %7730 = vmatprep.subr.bf16.mxu0 0
      %7731 = vmatpush1.bf16.msra.mxu0 %v7712
      %7732 = vmatprep.subr.bf16.mxu0 0
      %7733 = vmatpush1.bf16.msra.mxu0 %v7713
      %7734 = vmatprep.subr.bf16.mxu0 0
      %7735 = vmatpush1.bf16.msra.mxu0 %v7714
      %7736 = vmatprep.subr.bf16.mxu0 0
      %7737 = vmatpush1.bf16.msra.mxu0 %v7715
      %7738 = vmatprep.subr.bf16.mxu0 0
      %7739 = vmatpush1.bf16.msra.mxu0 %v7716
      %7740 = vmatprep.subr.bf16.mxu0 0
      %7741 = vmatpush1.bf16.msra.mxu0 %v7717
      %7742 = vmatprep.subr.bf16.mxu0 0
      %7743 = vmatpush1.bf16.msra.mxu0 0
      %7744 = vmatprep.subr.bf16.mxu0 0
      %7745 = vmatpush1.bf16.msra.mxu0 0
      %7746 = vmatprep.subr.bf16.mxu0 0
      %7747 = vmatpush1.bf16.msra.mxu0 0
      %7748 = vmatprep.subr.bf16.mxu0 0
      %7749 = vmatpush1.bf16.msra.mxu0 0
      %7750 = vmatprep.subr.bf16.mxu0 0
      %7751 = vmatpush1.bf16.msra.mxu0 0
      %7752 = vmatprep.subr.bf16.mxu0 0
      %7753 = vmatpush1.bf16.msra.mxu0 0
      %7754 = vmatprep.subr.bf16.mxu0 0
      %7755 = vmatpush1.bf16.msra.mxu0 0
      %7756 = vmatprep.subr.bf16.mxu0 0
      %7757 = vmatpush1.bf16.msra.mxu0 0
      %7758 = vmatprep.mubr.bf16.mxu0 0
      %7759 = vmatmul.mubr.bf16.gmra.mrb[0].mxu0 %v2857
      %v7760 = vpop.f32.mrb[0].mxu0
      %v7761 = vadd.f32 0.0, %v7760
      %v7762 = vpop.f32.mrb[0].mxu0
      %v7763 = vpop.f32.mrb[0].mxu0
      %v7764 = vadd.f32 0.0, %v7763
      %v7765 = vpop.f32.mrb[0].mxu0
      %7766 = vmatprep.mubr.bf16.mxu0 0
      %7767 = vmatmul.mubr.bf16.gmra.mrb[0].mxu0 %v2858
      %v7768 = vpop.f32.mrb[0].mxu0
      %v7769 = vadd.f32 0.0, %v7768
      %v7770 = vpop.f32.mrb[0].mxu0
      %v7771 = vpop.f32.mrb[0].mxu0
      %v7772 = vadd.f32 0.0, %v7771
      %v7773 = vpop.f32.mrb[0].mxu0
      %7774 = vdwg.mxu0
      %v7791 = vunpack.c.l.b16 %v3543
      %v7792 = vunpack.c.l.b16 %v3544
      %v7793 = vunpack.c.l.b16 %v3545
      %v7794 = vunpack.c.l.b16 %v3546
      %v7795 = vunpack.c.l.b16 %v3547
      %v7796 = vunpack.c.l.b16 %v3548
      %v7797 = vunpack.c.l.b16 %v3549
      %v7798 = vunpack.c.l.b16 %v3550
      %v7799 = vunpack.c.l.b16 %v3551
      %v7800 = vunpack.c.l.b16 %v3552
      %v7801 = vunpack.c.l.b16 %v3553
      %v7802 = vunpack.c.l.b16 %v3554
      %v7803 = vunpack.c.l.b16 %v3555
      %v7804 = vunpack.c.l.b16 %v3556
      %v7805 = vunpack.c.l.b16 %v3557
      %v7806 = vunpack.c.l.b16 %v3558
      %v7807 = vpack.c.b16 %v7792, %v7791
      %v7808 = vpack.c.b16 %v7794, %v7793
      %v7809 = vpack.c.b16 %v7796, %v7795
      %v7810 = vpack.c.b16 %v7798, %v7797
      %v7811 = vpack.c.b16 %v7800, %v7799
      %v7812 = vpack.c.b16 %v7802, %v7801
      %v7813 = vpack.c.b16 %v7804, %v7803
      %v7814 = vpack.c.b16 %v7806, %v7805
      %7823 = vmatprep.subr.bf16.mxu0 0
      %7824 = vmatpush1.bf16.msra.mxu0 %v7807
      %7825 = vmatprep.subr.bf16.mxu0 0
      %7826 = vmatpush1.bf16.msra.mxu0 %v7808
      %7827 = vmatprep.subr.bf16.mxu0 0
      %7828 = vmatpush1.bf16.msra.mxu0 %v7809
      %7829 = vmatprep.subr.bf16.mxu0 0
      %7830 = vmatpush1.bf16.msra.mxu0 %v7810
      %7831 = vmatprep.subr.bf16.mxu0 0
      %7832 = vmatpush1.bf16.msra.mxu0 %v7811
      %7833 = vmatprep.subr.bf16.mxu0 0
      %7834 = vmatpush1.bf16.msra.mxu0 %v7812
      %7835 = vmatprep.subr.bf16.mxu0 0
      %7836 = vmatpush1.bf16.msra.mxu0 %v7813
      %7837 = vmatprep.subr.bf16.mxu0 0
      %7838 = vmatpush1.bf16.msra.mxu0 %v7814
      %7839 = vmatprep.subr.bf16.mxu0 0
      %7840 = vmatpush1.bf16.msra.mxu0 0
      %7841 = vmatprep.subr.bf16.mxu0 0
      %7842 = vmatpush1.bf16.msra.mxu0 0
      %7843 = vmatprep.subr.bf16.mxu0 0
      %7844 = vmatpush1.bf16.msra.mxu0 0
      %7845 = vmatprep.subr.bf16.mxu0 0
      %7846 = vmatpush1.bf16.msra.mxu0 0
      %7847 = vmatprep.subr.bf16.mxu0 0
      %7848 = vmatpush1.bf16.msra.mxu0 0
      %7849 = vmatprep.subr.bf16.mxu0 0
      %7850 = vmatpush1.bf16.msra.mxu0 0
      %7851 = vmatprep.subr.bf16.mxu0 0
      %7852 = vmatpush1.bf16.msra.mxu0 0
      %7853 = vmatprep.subr.bf16.mxu0 0
      %7854 = vmatpush1.bf16.msra.mxu0 0
      %7855 = vmatprep.mubr.bf16.mxu0 0
      %7856 = vmatmul.mubr.bf16.gmra.mrb[0].mxu0 %v2859
      %v7857 = vpop.f32.mrb[0].mxu0
      %v7858 = vadd.f32 0.0, %v7857
      %v7859 = vpop.f32.mrb[0].mxu0
      %v7860 = vpop.f32.mrb[0].mxu0
      %v7861 = vadd.f32 0.0, %v7860
      %v7862 = vpop.f32.mrb[0].mxu0
      %7863 = vmatprep.mubr.bf16.mxu0 0
      %7864 = vmatmul.mubr.bf16.gmra.mrb[0].mxu0 %v2860
      %v7865 = vpop.f32.mrb[0].mxu0
      %v7866 = vadd.f32 0.0, %v7865
      %v7867 = vpop.f32.mrb[0].mxu0
      %v7868 = vpop.f32.mrb[0].mxu0
      %v7869 = vadd.f32 0.0, %v7868
      %v7870 = vpop.f32.mrb[0].mxu0
      %7871 = vdwg.mxu0
      %v7888 = vunpack.c.l.b16 %v3559
      %v7889 = vunpack.c.l.b16 %v3560
      %v7890 = vunpack.c.l.b16 %v3561
      %v7891 = vunpack.c.l.b16 %v3562
      %v7892 = vunpack.c.l.b16 %v3563
      %v7893 = vunpack.c.l.b16 %v3564
      %v7894 = vunpack.c.l.b16 %v3565
      %v7895 = vunpack.c.l.b16 %v3566
      %v7896 = vunpack.c.l.b16 %v3567
      %v7897 = vunpack.c.l.b16 %v3568
      %v7898 = vunpack.c.l.b16 %v3569
      %v7899 = vunpack.c.l.b16 %v3570
      %v7900 = vunpack.c.l.b16 %v3571
      %v7901 = vunpack.c.l.b16 %v3572
      %v7902 = vunpack.c.l.b16 %v3573
      %v7903 = vunpack.c.l.b16 %v3574
      %v7904 = vpack.c.b16 %v7889, %v7888
      %v7905 = vpack.c.b16 %v7891, %v7890
      %v7906 = vpack.c.b16 %v7893, %v7892
      %v7907 = vpack.c.b16 %v7895, %v7894
      %v7908 = vpack.c.b16 %v7897, %v7896
      %v7909 = vpack.c.b16 %v7899, %v7898
      %v7910 = vpack.c.b16 %v7901, %v7900
      %v7911 = vpack.c.b16 %v7903, %v7902
      %7920 = vmatprep.subr.bf16.mxu0 0
      %7921 = vmatpush1.bf16.msra.mxu0 %v7904
      %7922 = vmatprep.subr.bf16.mxu0 0
      %7923 = vmatpush1.bf16.msra.mxu0 %v7905
      %7924 = vmatprep.subr.bf16.mxu0 0
      %7925 = vmatpush1.bf16.msra.mxu0 %v7906
      %7926 = vmatprep.subr.bf16.mxu0 0
      %7927 = vmatpush1.bf16.msra.mxu0 %v7907
      %7928 = vmatprep.subr.bf16.mxu0 0
      %7929 = vmatpush1.bf16.msra.mxu0 %v7908
      %7930 = vmatprep.subr.bf16.mxu0 0
      %7931 = vmatpush1.bf16.msra.mxu0 %v7909
      %7932 = vmatprep.subr.bf16.mxu0 0
      %7933 = vmatpush1.bf16.msra.mxu0 %v7910
      %7934 = vmatprep.subr.bf16.mxu0 0
      %7935 = vmatpush1.bf16.msra.mxu0 %v7911
      %7936 = vmatprep.subr.bf16.mxu0 0
      %7937 = vmatpush1.bf16.msra.mxu0 0
      %7938 = vmatprep.subr.bf16.mxu0 0
      %7939 = vmatpush1.bf16.msra.mxu0 0
      %7940 = vmatprep.subr.bf16.mxu0 0
      %7941 = vmatpush1.bf16.msra.mxu0 0
      %7942 = vmatprep.subr.bf16.mxu0 0
      %7943 = vmatpush1.bf16.msra.mxu0 0
      %7944 = vmatprep.subr.bf16.mxu0 0
      %7945 = vmatpush1.bf16.msra.mxu0 0
      %7946 = vmatprep.subr.bf16.mxu0 0
      %7947 = vmatpush1.bf16.msra.mxu0 0
      %7948 = vmatprep.subr.bf16.mxu0 0
      %7949 = vmatpush1.bf16.msra.mxu0 0
      %7950 = vmatprep.subr.bf16.mxu0 0
      %7951 = vmatpush1.bf16.msra.mxu0 0
      %7952 = vmatprep.mubr.bf16.mxu0 0
      %7953 = vmatmul.mubr.bf16.gmra.mrb[0].mxu0 %v2861
      %v7954 = vpop.f32.mrb[0].mxu0
      %v7955 = vadd.f32 0.0, %v7954
      %v7956 = vpop.f32.mrb[0].mxu0
      %v7957 = vpop.f32.mrb[0].mxu0
      %v7958 = vadd.f32 0.0, %v7957
      %v7959 = vpop.f32.mrb[0].mxu0
      %7960 = vmatprep.mubr.bf16.mxu0 0
      %7961 = vmatmul.mubr.bf16.gmra.mrb[0].mxu0 %v2862
      %v7962 = vpop.f32.mrb[0].mxu0
      %v7963 = vadd.f32 0.0, %v7962
      %v7964 = vpop.f32.mrb[0].mxu0
      %v7965 = vpop.f32.mrb[0].mxu0
      %v7966 = vadd.f32 0.0, %v7965
      %v7967 = vpop.f32.mrb[0].mxu0
      %7968 = vdwg.mxu0
      %v7985 = vunpack.c.l.b16 %v3575
      %v7986 = vunpack.c.l.b16 %v3576
      %v7987 = vunpack.c.l.b16 %v3577
      %v7988 = vunpack.c.l.b16 %v3578
      %v7989 = vunpack.c.l.b16 %v3579
      %v7990 = vunpack.c.l.b16 %v3580
      %v7991 = vunpack.c.l.b16 %v3581
      %v7992 = vunpack.c.l.b16 %v3582
      %v7993 = vunpack.c.l.b16 %v3583
      %v7994 = vunpack.c.l.b16 %v3584
      %v7995 = vunpack.c.l.b16 %v3585
      %v7996 = vunpack.c.l.b16 %v3586
      %v7997 = vunpack.c.l.b16 %v3587
      %v7998 = vunpack.c.l.b16 %v3588
      %v7999 = vunpack.c.l.b16 %v3589
      %v8000 = vunpack.c.l.b16 %v3590
      %v8001 = vpack.c.b16 %v7986, %v7985
      %v8002 = vpack.c.b16 %v7988, %v7987
      %v8003 = vpack.c.b16 %v7990, %v7989
      %v8004 = vpack.c.b16 %v7992, %v7991
      %v8005 = vpack.c.b16 %v7994, %v7993
      %v8006 = vpack.c.b16 %v7996, %v7995
      %v8007 = vpack.c.b16 %v7998, %v7997
      %v8008 = vpack.c.b16 %v8000, %v7999
      %8017 = vmatprep.subr.bf16.mxu0 0
      %8018 = vmatpush1.bf16.msra.mxu0 %v8001
      %8019 = vmatprep.subr.bf16.mxu0 0
      %8020 = vmatpush1.bf16.msra.mxu0 %v8002
      %8021 = vmatprep.subr.bf16.mxu0 0
      %8022 = vmatpush1.bf16.msra.mxu0 %v8003
      %8023 = vmatprep.subr.bf16.mxu0 0
      %8024 = vmatpush1.bf16.msra.mxu0 %v8004
      %8025 = vmatprep.subr.bf16.mxu0 0
      %8026 = vmatpush1.bf16.msra.mxu0 %v8005
      %8027 = vmatprep.subr.bf16.mxu0 0
      %8028 = vmatpush1.bf16.msra.mxu0 %v8006
      %8029 = vmatprep.subr.bf16.mxu0 0
      %8030 = vmatpush1.bf16.msra.mxu0 %v8007
      %8031 = vmatprep.subr.bf16.mxu0 0
      %8032 = vmatpush1.bf16.msra.mxu0 %v8008
      %8033 = vmatprep.subr.bf16.mxu0 0
      %8034 = vmatpush1.bf16.msra.mxu0 0
      %8035 = vmatprep.subr.bf16.mxu0 0
      %8036 = vmatpush1.bf16.msra.mxu0 0
      %8037 = vmatprep.subr.bf16.mxu0 0
      %8038 = vmatpush1.bf16.msra.mxu0 0
      %8039 = vmatprep.subr.bf16.mxu0 0
      %8040 = vmatpush1.bf16.msra.mxu0 0
      %8041 = vmatprep.subr.bf16.mxu0 0
      %8042 = vmatpush1.bf16.msra.mxu0 0
      %8043 = vmatprep.subr.bf16.mxu0 0
      %8044 = vmatpush1.bf16.msra.mxu0 0
      %8045 = vmatprep.subr.bf16.mxu0 0
      %8046 = vmatpush1.bf16.msra.mxu0 0
      %8047 = vmatprep.subr.bf16.mxu0 0
      %8048 = vmatpush1.bf16.msra.mxu0 0
      %8049 = vmatprep.mubr.bf16.mxu0 0
      %8050 = vmatmul.mubr.bf16.gmra.mrb[0].mxu0 %v2863
      %v8051 = vpop.f32.mrb[0].mxu0
      %v8052 = vadd.f32 0.0, %v8051
      %v8053 = vpop.f32.mrb[0].mxu0
      %v8054 = vpop.f32.mrb[0].mxu0
      %v8055 = vadd.f32 0.0, %v8054
      %v8056 = vpop.f32.mrb[0].mxu0
      %8057 = vmatprep.mubr.bf16.mxu0 0
      %8058 = vmatmul.mubr.bf16.gmra.mrb[0].mxu0 %v2864
      %v8059 = vpop.f32.mrb[0].mxu0
      %v8060 = vadd.f32 0.0, %v8059
      %v8061 = vpop.f32.mrb[0].mxu0
      %v8062 = vpop.f32.mrb[0].mxu0
      %v8063 = vadd.f32 0.0, %v8062
      %v8064 = vpop.f32.mrb[0].mxu0
      %8065 = vdwg.mxu0
      %v8082 = vunpack.c.l.b16 %v3591
      %v8083 = vunpack.c.l.b16 %v3592
      %v8084 = vunpack.c.l.b16 %v3593
      %v8085 = vunpack.c.l.b16 %v3594
      %v8086 = vunpack.c.l.b16 %v3595
      %v8087 = vunpack.c.l.b16 %v3596
      %v8088 = vunpack.c.l.b16 %v3597
      %v8089 = vunpack.c.l.b16 %v3598
      %v8090 = vunpack.c.l.b16 %v3599
      %v8091 = vunpack.c.l.b16 %v3600
      %v8092 = vunpack.c.l.b16 %v3601
      %v8093 = vunpack.c.l.b16 %v3602
      %v8094 = vunpack.c.l.b16 %v3603
      %v8095 = vunpack.c.l.b16 %v3604
      %v8096 = vunpack.c.l.b16 %v3605
      %v8097 = vunpack.c.l.b16 %v3606
      %v8098 = vpack.c.b16 %v8083, %v8082
      %v8099 = vpack.c.b16 %v8085, %v8084
      %v8100 = vpack.c.b16 %v8087, %v8086
      %v8101 = vpack.c.b16 %v8089, %v8088
      %v8102 = vpack.c.b16 %v8091, %v8090
      %v8103 = vpack.c.b16 %v8093, %v8092
      %v8104 = vpack.c.b16 %v8095, %v8094
      %v8105 = vpack.c.b16 %v8097, %v8096
      %8114 = vmatprep.subr.bf16.mxu0 0
      %8115 = vmatpush1.bf16.msra.mxu0 %v8098
      %8116 = vmatprep.subr.bf16.mxu0 0
      %8117 = vmatpush1.bf16.msra.mxu0 %v8099
      %8118 = vmatprep.subr.bf16.mxu0 0
      %8119 = vmatpush1.bf16.msra.mxu0 %v8100
      %8120 = vmatprep.subr.bf16.mxu0 0
      %8121 = vmatpush1.bf16.msra.mxu0 %v8101
      %8122 = vmatprep.subr.bf16.mxu0 0
      %8123 = vmatpush1.bf16.msra.mxu0 %v8102
      %8124 = vmatprep.subr.bf16.mxu0 0
      %8125 = vmatpush1.bf16.msra.mxu0 %v8103
      %8126 = vmatprep.subr.bf16.mxu0 0
      %8127 = vmatpush1.bf16.msra.mxu0 %v8104
      %8128 = vmatprep.subr.bf16.mxu0 0
      %8129 = vmatpush1.bf16.msra.mxu0 %v8105
      %8130 = vmatprep.subr.bf16.mxu0 0
      %8131 = vmatpush1.bf16.msra.mxu0 0
      %8132 = vmatprep.subr.bf16.mxu0 0
      %8133 = vmatpush1.bf16.msra.mxu0 0
      %8134 = vmatprep.subr.bf16.mxu0 0
      %8135 = vmatpush1.bf16.msra.mxu0 0
      %8136 = vmatprep.subr.bf16.mxu0 0
      %8137 = vmatpush1.bf16.msra.mxu0 0
      %8138 = vmatprep.subr.bf16.mxu0 0
      %8139 = vmatpush1.bf16.msra.mxu0 0
      %8140 = vmatprep.subr.bf16.mxu0 0
      %8141 = vmatpush1.bf16.msra.mxu0 0
      %8142 = vmatprep.subr.bf16.mxu0 0
      %8143 = vmatpush1.bf16.msra.mxu0 0
      %8144 = vmatprep.subr.bf16.mxu0 0
      %8145 = vmatpush1.bf16.msra.mxu0 0
      %8146 = vmatprep.mubr.bf16.mxu0 0
      %8147 = vmatmul.mubr.bf16.gmra.mrb[0].mxu0 %v2865
      %v8148 = vpop.f32.mrb[0].mxu0
      %v8149 = vadd.f32 0.0, %v8148
      %v8150 = vpop.f32.mrb[0].mxu0
      %v8151 = vpop.f32.mrb[0].mxu0
      %v8152 = vadd.f32 0.0, %v8151
      %v8153 = vpop.f32.mrb[0].mxu0
      %8154 = vmatprep.mubr.bf16.mxu0 0
      %8155 = vmatmul.mubr.bf16.gmra.mrb[0].mxu0 %v2866
      %v8156 = vpop.f32.mrb[0].mxu0
      %v8157 = vadd.f32 0.0, %v8156
      %v8158 = vpop.f32.mrb[0].mxu0
      %v8159 = vpop.f32.mrb[0].mxu0
      %v8160 = vadd.f32 0.0, %v8159
      %v8161 = vpop.f32.mrb[0].mxu0
      %8162 = vdwg.mxu0
      %v8179 = vunpack.c.l.b16 %v3607
      %v8180 = vunpack.c.l.b16 %v3608
      %v8181 = vunpack.c.l.b16 %v3609
      %v8182 = vunpack.c.l.b16 %v3610
      %v8183 = vunpack.c.l.b16 %v3611
      %v8184 = vunpack.c.l.b16 %v3612
      %v8185 = vunpack.c.l.b16 %v3613
      %v8186 = vunpack.c.l.b16 %v3614
      %v8187 = vunpack.c.l.b16 %v3615
      %v8188 = vunpack.c.l.b16 %v3616
      %v8189 = vunpack.c.l.b16 %v3617
      %v8190 = vunpack.c.l.b16 %v3618
      %v8191 = vunpack.c.l.b16 %v3619
      %v8192 = vunpack.c.l.b16 %v3620
      %v8193 = vunpack.c.l.b16 %v3621
      %v8194 = vunpack.c.l.b16 %v3622
      %v8195 = vpack.c.b16 %v8180, %v8179
      %v8196 = vpack.c.b16 %v8182, %v8181
      %v8197 = vpack.c.b16 %v8184, %v8183
      %v8198 = vpack.c.b16 %v8186, %v8185
      %v8199 = vpack.c.b16 %v8188, %v8187
      %v8200 = vpack.c.b16 %v8190, %v8189
      %v8201 = vpack.c.b16 %v8192, %v8191
      %v8202 = vpack.c.b16 %v8194, %v8193
      %8211 = vmatprep.subr.bf16.mxu0 0
      %8212 = vmatpush1.bf16.msra.mxu0 %v8195
      %8213 = vmatprep.subr.bf16.mxu0 0
      %8214 = vmatpush1.bf16.msra.mxu0 %v8196
      %8215 = vmatprep.subr.bf16.mxu0 0
      %8216 = vmatpush1.bf16.msra.mxu0 %v8197
      %8217 = vmatprep.subr.bf16.mxu0 0
      %8218 = vmatpush1.bf16.msra.mxu0 %v8198
      %8219 = vmatprep.subr.bf16.mxu0 0
      %8220 = vmatpush1.bf16.msra.mxu0 %v8199
      %8221 = vmatprep.subr.bf16.mxu0 0
      %8222 = vmatpush1.bf16.msra.mxu0 %v8200
      %8223 = vmatprep.subr.bf16.mxu0 0
      %8224 = vmatpush1.bf16.msra.mxu0 %v8201
      %8225 = vmatprep.subr.bf16.mxu0 0
      %8226 = vmatpush1.bf16.msra.mxu0 %v8202
      %8227 = vmatprep.subr.bf16.mxu0 0
      %8228 = vmatpush1.bf16.msra.mxu0 0
      %8229 = vmatprep.subr.bf16.mxu0 0
      %8230 = vmatpush1.bf16.msra.mxu0 0
      %8231 = vmatprep.subr.bf16.mxu0 0
      %8232 = vmatpush1.bf16.msra.mxu0 0
      %8233 = vmatprep.subr.bf16.mxu0 0
      %8234 = vmatpush1.bf16.msra.mxu0 0
      %8235 = vmatprep.subr.bf16.mxu0 0
      %8236 = vmatpush1.bf16.msra.mxu0 0
      %8237 = vmatprep.subr.bf16.mxu0 0
      %8238 = vmatpush1.bf16.msra.mxu0 0
      %8239 = vmatprep.subr.bf16.mxu0 0
      %8240 = vmatpush1.bf16.msra.mxu0 0
      %8241 = vmatprep.subr.bf16.mxu0 0
      %8242 = vmatpush1.bf16.msra.mxu0 0
      %8243 = vmatprep.mubr.bf16.mxu0 0
      %8244 = vmatmul.mubr.bf16.gmra.mrb[0].mxu0 %v2867
      %v8245 = vpop.f32.mrb[0].mxu0
      %v8246 = vadd.f32 0.0, %v8245
      %v8247 = vpop.f32.mrb[0].mxu0
      %v8248 = vpop.f32.mrb[0].mxu0
      %v8249 = vadd.f32 0.0, %v8248
      %v8250 = vpop.f32.mrb[0].mxu0
      %8251 = vmatprep.mubr.bf16.mxu0 0
      %8252 = vmatmul.mubr.bf16.gmra.mrb[0].mxu0 %v2868
      %v8253 = vpop.f32.mrb[0].mxu0
      %v8254 = vadd.f32 0.0, %v8253
      %v8255 = vpop.f32.mrb[0].mxu0
      %v8256 = vpop.f32.mrb[0].mxu0
      %v8257 = vadd.f32 0.0, %v8256
      %v8258 = vpop.f32.mrb[0].mxu0
      %8259 = vdwg.mxu0
      %v8276 = vunpack.c.l.b16 %v3623
      %v8277 = vunpack.c.l.b16 %v3624
      %v8278 = vunpack.c.l.b16 %v3625
      %v8279 = vunpack.c.l.b16 %v3626
      %v8280 = vunpack.c.l.b16 %v3627
      %v8281 = vunpack.c.l.b16 %v3628
      %v8282 = vunpack.c.l.b16 %v3629
      %v8283 = vunpack.c.l.b16 %v3630
      %v8284 = vunpack.c.l.b16 %v3631
      %v8285 = vunpack.c.l.b16 %v3632
      %v8286 = vunpack.c.l.b16 %v3633
      %v8287 = vunpack.c.l.b16 %v3634
      %v8288 = vunpack.c.l.b16 %v3635
      %v8289 = vunpack.c.l.b16 %v3636
      %v8290 = vunpack.c.l.b16 %v3637
      %v8291 = vunpack.c.l.b16 %v3638
      %v8292 = vpack.c.b16 %v8277, %v8276
      %v8293 = vpack.c.b16 %v8279, %v8278
      %v8294 = vpack.c.b16 %v8281, %v8280
      %v8295 = vpack.c.b16 %v8283, %v8282
      %v8296 = vpack.c.b16 %v8285, %v8284
      %v8297 = vpack.c.b16 %v8287, %v8286
      %v8298 = vpack.c.b16 %v8289, %v8288
      %v8299 = vpack.c.b16 %v8291, %v8290
      %8308 = vmatprep.subr.bf16.mxu0 0
      %8309 = vmatpush1.bf16.msra.mxu0 %v8292
      %8310 = vmatprep.subr.bf16.mxu0 0
      %8311 = vmatpush1.bf16.msra.mxu0 %v8293
      %8312 = vmatprep.subr.bf16.mxu0 0
      %8313 = vmatpush1.bf16.msra.mxu0 %v8294
      %8314 = vmatprep.subr.bf16.mxu0 0
      %8315 = vmatpush1.bf16.msra.mxu0 %v8295
      %8316 = vmatprep.subr.bf16.mxu0 0
      %8317 = vmatpush1.bf16.msra.mxu0 %v8296
      %8318 = vmatprep.subr.bf16.mxu0 0
      %8319 = vmatpush1.bf16.msra.mxu0 %v8297
      %8320 = vmatprep.subr.bf16.mxu0 0
      %8321 = vmatpush1.bf16.msra.mxu0 %v8298
      %8322 = vmatprep.subr.bf16.mxu0 0
      %8323 = vmatpush1.bf16.msra.mxu0 %v8299
      %8324 = vmatprep.subr.bf16.mxu0 0
      %8325 = vmatpush1.bf16.msra.mxu0 0
      %8326 = vmatprep.subr.bf16.mxu0 0
      %8327 = vmatpush1.bf16.msra.mxu0 0
      %8328 = vmatprep.subr.bf16.mxu0 0
      %8329 = vmatpush1.bf16.msra.mxu0 0
      %8330 = vmatprep.subr.bf16.mxu0 0
      %8331 = vmatpush1.bf16.msra.mxu0 0
      %8332 = vmatprep.subr.bf16.mxu0 0
      %8333 = vmatpush1.bf16.msra.mxu0 0
      %8334 = vmatprep.subr.bf16.mxu0 0
      %8335 = vmatpush1.bf16.msra.mxu0 0
      %8336 = vmatprep.subr.bf16.mxu0 0
      %8337 = vmatpush1.bf16.msra.mxu0 0
      %8338 = vmatprep.subr.bf16.mxu0 0
      %8339 = vmatpush1.bf16.msra.mxu0 0
      %8340 = vmatprep.mubr.bf16.mxu0 0
      %8341 = vmatmul.mubr.bf16.gmra.mrb[0].mxu0 %v2869
      %v8342 = vpop.f32.mrb[0].mxu0
      %v8343 = vadd.f32 0.0, %v8342
      %v8344 = vpop.f32.mrb[0].mxu0
      %v8345 = vpop.f32.mrb[0].mxu0
      %v8346 = vadd.f32 0.0, %v8345
      %v8347 = vpop.f32.mrb[0].mxu0
      %8348 = vmatprep.mubr.bf16.mxu0 0
      %8349 = vmatmul.mubr.bf16.gmra.mrb[0].mxu0 %v2870
      %v8350 = vpop.f32.mrb[0].mxu0
      %v8351 = vadd.f32 0.0, %v8350
      %v8352 = vpop.f32.mrb[0].mxu0
      %v8353 = vpop.f32.mrb[0].mxu0
      %v8354 = vadd.f32 0.0, %v8353
      %v8355 = vpop.f32.mrb[0].mxu0
      %8356 = vdwg.mxu0
      %v8373 = vunpack.c.l.b16 %v3639
      %v8374 = vunpack.c.l.b16 %v3640
      %v8375 = vunpack.c.l.b16 %v3641
      %v8376 = vunpack.c.l.b16 %v3642
      %v8377 = vunpack.c.l.b16 %v3643
      %v8378 = vunpack.c.l.b16 %v3644
      %v8379 = vunpack.c.l.b16 %v3645
      %v8380 = vunpack.c.l.b16 %v3646
      %v8381 = vunpack.c.l.b16 %v3647
      %v8382 = vunpack.c.l.b16 %v3648
      %v8383 = vunpack.c.l.b16 %v3649
      %v8384 = vunpack.c.l.b16 %v3650
      %v8385 = vunpack.c.l.b16 %v3651
      %v8386 = vunpack.c.l.b16 %v3652
      %v8387 = vunpack.c.l.b16 %v3653
      %v8388 = vunpack.c.l.b16 %v3654
      %v8389 = vpack.c.b16 %v8374, %v8373
      %v8390 = vpack.c.b16 %v8376, %v8375
      %v8391 = vpack.c.b16 %v8378, %v8377
      %v8392 = vpack.c.b16 %v8380, %v8379
      %v8393 = vpack.c.b16 %v8382, %v8381
      %v8394 = vpack.c.b16 %v8384, %v8383
      %v8395 = vpack.c.b16 %v8386, %v8385
      %v8396 = vpack.c.b16 %v8388, %v8387
      %8405 = vmatprep.subr.bf16.mxu0 0
      %8406 = vmatpush1.bf16.msra.mxu0 %v8389
      %8407 = vmatprep.subr.bf16.mxu0 0
      %8408 = vmatpush1.bf16.msra.mxu0 %v8390
      %8409 = vmatprep.subr.bf16.mxu0 0
      %8410 = vmatpush1.bf16.msra.mxu0 %v8391
      %8411 = vmatprep.subr.bf16.mxu0 0
      %8412 = vmatpush1.bf16.msra.mxu0 %v8392
      %8413 = vmatprep.subr.bf16.mxu0 0
      %8414 = vmatpush1.bf16.msra.mxu0 %v8393
      %8415 = vmatprep.subr.bf16.mxu0 0
      %8416 = vmatpush1.bf16.msra.mxu0 %v8394
      %8417 = vmatprep.subr.bf16.mxu0 0
      %8418 = vmatpush1.bf16.msra.mxu0 %v8395
      %8419 = vmatprep.subr.bf16.mxu0 0
      %8420 = vmatpush1.bf16.msra.mxu0 %v8396
      %8421 = vmatprep.subr.bf16.mxu0 0
      %8422 = vmatpush1.bf16.msra.mxu0 0
      %8423 = vmatprep.subr.bf16.mxu0 0
      %8424 = vmatpush1.bf16.msra.mxu0 0
      %8425 = vmatprep.subr.bf16.mxu0 0
      %8426 = vmatpush1.bf16.msra.mxu0 0
      %8427 = vmatprep.subr.bf16.mxu0 0
      %8428 = vmatpush1.bf16.msra.mxu0 0
      %8429 = vmatprep.subr.bf16.mxu0 0
      %8430 = vmatpush1.bf16.msra.mxu0 0
      %8431 = vmatprep.subr.bf16.mxu0 0
      %8432 = vmatpush1.bf16.msra.mxu0 0
      %8433 = vmatprep.subr.bf16.mxu0 0
      %8434 = vmatpush1.bf16.msra.mxu0 0
      %8435 = vmatprep.subr.bf16.mxu0 0
      %8436 = vmatpush1.bf16.msra.mxu0 0
      %8437 = vmatprep.mubr.bf16.mxu0 0
      %8438 = vmatmul.mubr.bf16.gmra.mrb[0].mxu0 %v2871
      %v8439 = vpop.f32.mrb[0].mxu0
      %v8440 = vadd.f32 0.0, %v8439
      %v8441 = vpop.f32.mrb[0].mxu0
      %v8442 = vpop.f32.mrb[0].mxu0
      %v8443 = vadd.f32 0.0, %v8442
      %v8444 = vpop.f32.mrb[0].mxu0
      %8445 = vmatprep.mubr.bf16.mxu0 0
      %8446 = vmatmul.mubr.bf16.gmra.mrb[0].mxu0 %v2872
      %v8447 = vpop.f32.mrb[0].mxu0
      %v8448 = vadd.f32 0.0, %v8447
      %v8449 = vpop.f32.mrb[0].mxu0
      %v8450 = vpop.f32.mrb[0].mxu0
      %v8451 = vadd.f32 0.0, %v8450
      %v8452 = vpop.f32.mrb[0].mxu0
      %8453 = vdwg.mxu0
      %v8470 = vunpack.c.l.b16 %v3655
      %v8471 = vunpack.c.l.b16 %v3656
      %v8472 = vunpack.c.l.b16 %v3657
      %v8473 = vunpack.c.l.b16 %v3658
      %v8474 = vunpack.c.l.b16 %v3659
      %v8475 = vunpack.c.l.b16 %v3660
      %v8476 = vunpack.c.l.b16 %v3661
      %v8477 = vunpack.c.l.b16 %v3662
      %v8478 = vunpack.c.l.b16 %v3663
      %v8479 = vunpack.c.l.b16 %v3664
      %v8480 = vunpack.c.l.b16 %v3665
      %v8481 = vunpack.c.l.b16 %v3666
      %v8482 = vunpack.c.l.b16 %v3667
      %v8483 = vunpack.c.l.b16 %v3668
      %v8484 = vunpack.c.l.b16 %v3669
      %v8485 = vunpack.c.l.b16 %v3670
      %v8486 = vpack.c.b16 %v8471, %v8470
      %v8487 = vpack.c.b16 %v8473, %v8472
      %v8488 = vpack.c.b16 %v8475, %v8474
      %v8489 = vpack.c.b16 %v8477, %v8476
      %v8490 = vpack.c.b16 %v8479, %v8478
      %v8491 = vpack.c.b16 %v8481, %v8480
      %v8492 = vpack.c.b16 %v8483, %v8482
      %v8493 = vpack.c.b16 %v8485, %v8484
      %8502 = vmatprep.subr.bf16.mxu0 0
      %8503 = vmatpush1.bf16.msra.mxu0 %v8486
      %8504 = vmatprep.subr.bf16.mxu0 0
      %8505 = vmatpush1.bf16.msra.mxu0 %v8487
      %8506 = vmatprep.subr.bf16.mxu0 0
      %8507 = vmatpush1.bf16.msra.mxu0 %v8488
      %8508 = vmatprep.subr.bf16.mxu0 0
      %8509 = vmatpush1.bf16.msra.mxu0 %v8489
      %8510 = vmatprep.subr.bf16.mxu0 0
      %8511 = vmatpush1.bf16.msra.mxu0 %v8490
      %8512 = vmatprep.subr.bf16.mxu0 0
      %8513 = vmatpush1.bf16.msra.mxu0 %v8491
      %8514 = vmatprep.subr.bf16.mxu0 0
      %8515 = vmatpush1.bf16.msra.mxu0 %v8492
      %8516 = vmatprep.subr.bf16.mxu0 0
      %8517 = vmatpush1.bf16.msra.mxu0 %v8493
      %8518 = vmatprep.subr.bf16.mxu0 0
      %8519 = vmatpush1.bf16.msra.mxu0 0
      %8520 = vmatprep.subr.bf16.mxu0 0
      %8521 = vmatpush1.bf16.msra.mxu0 0
      %8522 = vmatprep.subr.bf16.mxu0 0
      %8523 = vmatpush1.bf16.msra.mxu0 0
      %8524 = vmatprep.subr.bf16.mxu0 0
      %8525 = vmatpush1.bf16.msra.mxu0 0
      %8526 = vmatprep.subr.bf16.mxu0 0
      %8527 = vmatpush1.bf16.msra.mxu0 0
      %8528 = vmatprep.subr.bf16.mxu0 0
      %8529 = vmatpush1.bf16.msra.mxu0 0
      %8530 = vmatprep.subr.bf16.mxu0 0
      %8531 = vmatpush1.bf16.msra.mxu0 0
      %8532 = vmatprep.subr.bf16.mxu0 0
      %8533 = vmatpush1.bf16.msra.mxu0 0
      %8534 = vmatprep.mubr.bf16.mxu0 0
      %8535 = vmatmul.mubr.bf16.gmra.mrb[0].mxu0 %v2873
      %v8536 = vpop.f32.mrb[0].mxu0
      %v8537 = vadd.f32 0.0, %v8536
      %v8538 = vpop.f32.mrb[0].mxu0
      %v8539 = vpop.f32.mrb[0].mxu0
      %v8540 = vadd.f32 0.0, %v8539
      %v8541 = vpop.f32.mrb[0].mxu0
      %8542 = vmatprep.mubr.bf16.mxu0 0
      %8543 = vmatmul.mubr.bf16.gmra.mrb[0].mxu0 %v2874
      %v8544 = vpop.f32.mrb[0].mxu0
      %v8545 = vadd.f32 0.0, %v8544
      %v8546 = vpop.f32.mrb[0].mxu0
      %v8547 = vpop.f32.mrb[0].mxu0
      %v8548 = vadd.f32 0.0, %v8547
      %v8549 = vpop.f32.mrb[0].mxu0
      %8550 = vdwg.mxu0
      %v8567 = vunpack.c.l.b16 %v3671
      %v8568 = vunpack.c.l.b16 %v3672
      %v8569 = vunpack.c.l.b16 %v3673
      %v8570 = vunpack.c.l.b16 %v3674
      %v8571 = vunpack.c.l.b16 %v3675
      %v8572 = vunpack.c.l.b16 %v3676
      %v8573 = vunpack.c.l.b16 %v3677
      %v8574 = vunpack.c.l.b16 %v3678
      %v8575 = vunpack.c.l.b16 %v3679
      %v8576 = vunpack.c.l.b16 %v3680
      %v8577 = vunpack.c.l.b16 %v3681
      %v8578 = vunpack.c.l.b16 %v3682
      %v8579 = vunpack.c.l.b16 %v3683
      %v8580 = vunpack.c.l.b16 %v3684
      %v8581 = vunpack.c.l.b16 %v3685
      %v8582 = vunpack.c.l.b16 %v3686
      %v8583 = vpack.c.b16 %v8568, %v8567
      %v8584 = vpack.c.b16 %v8570, %v8569
      %v8585 = vpack.c.b16 %v8572, %v8571
      %v8586 = vpack.c.b16 %v8574, %v8573
      %v8587 = vpack.c.b16 %v8576, %v8575
      %v8588 = vpack.c.b16 %v8578, %v8577
      %v8589 = vpack.c.b16 %v8580, %v8579
      %v8590 = vpack.c.b16 %v8582, %v8581
      %8599 = vmatprep.subr.bf16.mxu0 0
      %8600 = vmatpush1.bf16.msra.mxu0 %v8583
      %8601 = vmatprep.subr.bf16.mxu0 0
      %8602 = vmatpush1.bf16.msra.mxu0 %v8584
      %8603 = vmatprep.subr.bf16.mxu0 0
      %8604 = vmatpush1.bf16.msra.mxu0 %v8585
      %8605 = vmatprep.subr.bf16.mxu0 0
      %8606 = vmatpush1.bf16.msra.mxu0 %v8586
      %8607 = vmatprep.subr.bf16.mxu0 0
      %8608 = vmatpush1.bf16.msra.mxu0 %v8587
      %8609 = vmatprep.subr.bf16.mxu0 0
      %8610 = vmatpush1.bf16.msra.mxu0 %v8588
      %8611 = vmatprep.subr.bf16.mxu0 0
      %8612 = vmatpush1.bf16.msra.mxu0 %v8589
      %8613 = vmatprep.subr.bf16.mxu0 0
      %8614 = vmatpush1.bf16.msra.mxu0 %v8590
      %8615 = vmatprep.subr.bf16.mxu0 0
      %8616 = vmatpush1.bf16.msra.mxu0 0
      %8617 = vmatprep.subr.bf16.mxu0 0
      %8618 = vmatpush1.bf16.msra.mxu0 0
      %8619 = vmatprep.subr.bf16.mxu0 0
      %8620 = vmatpush1.bf16.msra.mxu0 0
      %8621 = vmatprep.subr.bf16.mxu0 0
      %8622 = vmatpush1.bf16.msra.mxu0 0
      %8623 = vmatprep.subr.bf16.mxu0 0
      %8624 = vmatpush1.bf16.msra.mxu0 0
      %8625 = vmatprep.subr.bf16.mxu0 0
      %8626 = vmatpush1.bf16.msra.mxu0 0
      %8627 = vmatprep.subr.bf16.mxu0 0
      %8628 = vmatpush1.bf16.msra.mxu0 0
      %8629 = vmatprep.subr.bf16.mxu0 0
      %8630 = vmatpush1.bf16.msra.mxu0 0
      %8631 = vmatprep.mubr.bf16.mxu0 0
      %8632 = vmatmul.mubr.bf16.gmra.mrb[0].mxu0 %v2875
      %v8633 = vpop.f32.mrb[0].mxu0
      %v8634 = vadd.f32 0.0, %v8633
      %v8635 = vpop.f32.mrb[0].mxu0
      %v8636 = vpop.f32.mrb[0].mxu0
      %v8637 = vadd.f32 0.0, %v8636
      %v8638 = vpop.f32.mrb[0].mxu0
      %8639 = vmatprep.mubr.bf16.mxu0 0
      %8640 = vmatmul.mubr.bf16.gmra.mrb[0].mxu0 %v2876
      %v8641 = vpop.f32.mrb[0].mxu0
      %v8642 = vadd.f32 0.0, %v8641
      %v8643 = vpop.f32.mrb[0].mxu0
      %v8644 = vpop.f32.mrb[0].mxu0
      %v8645 = vadd.f32 0.0, %v8644
      %v8646 = vpop.f32.mrb[0].mxu0
      %8647 = vdwg.mxu0
      %v8664 = vunpack.c.l.b16 %v3687
      %v8665 = vunpack.c.l.b16 %v3688
      %v8666 = vunpack.c.l.b16 %v3689
      %v8667 = vunpack.c.l.b16 %v3690
      %v8668 = vunpack.c.l.b16 %v3691
      %v8669 = vunpack.c.l.b16 %v3692
      %v8670 = vunpack.c.l.b16 %v3693
      %v8671 = vunpack.c.l.b16 %v3694
      %v8672 = vunpack.c.l.b16 %v3695
      %v8673 = vunpack.c.l.b16 %v3696
      %v8674 = vunpack.c.l.b16 %v3697
      %v8675 = vunpack.c.l.b16 %v3698
      %v8676 = vunpack.c.l.b16 %v3699
      %v8677 = vunpack.c.l.b16 %v3700
      %v8678 = vunpack.c.l.b16 %v3701
      %v8679 = vunpack.c.l.b16 %v3702
      %v8680 = vpack.c.b16 %v8665, %v8664
      %v8681 = vpack.c.b16 %v8667, %v8666
      %v8682 = vpack.c.b16 %v8669, %v8668
      %v8683 = vpack.c.b16 %v8671, %v8670
      %v8684 = vpack.c.b16 %v8673, %v8672
      %v8685 = vpack.c.b16 %v8675, %v8674
      %v8686 = vpack.c.b16 %v8677, %v8676
      %v8687 = vpack.c.b16 %v8679, %v8678
      %8696 = vmatprep.subr.bf16.mxu0 0
      %8697 = vmatpush1.bf16.msra.mxu0 %v8680
      %8698 = vmatprep.subr.bf16.mxu0 0
      %8699 = vmatpush1.bf16.msra.mxu0 %v8681
      %8700 = vmatprep.subr.bf16.mxu0 0
      %8701 = vmatpush1.bf16.msra.mxu0 %v8682
      %8702 = vmatprep.subr.bf16.mxu0 0
      %8703 = vmatpush1.bf16.msra.mxu0 %v8683
      %8704 = vmatprep.subr.bf16.mxu0 0
      %8705 = vmatpush1.bf16.msra.mxu0 %v8684
      %8706 = vmatprep.subr.bf16.mxu0 0
      %8707 = vmatpush1.bf16.msra.mxu0 %v8685
      %8708 = vmatprep.subr.bf16.mxu0 0
      %8709 = vmatpush1.bf16.msra.mxu0 %v8686
      %8710 = vmatprep.subr.bf16.mxu0 0
      %8711 = vmatpush1.bf16.msra.mxu0 %v8687
      %8712 = vmatprep.subr.bf16.mxu0 0
      %8713 = vmatpush1.bf16.msra.mxu0 0
      %8714 = vmatprep.subr.bf16.mxu0 0
      %8715 = vmatpush1.bf16.msra.mxu0 0
      %8716 = vmatprep.subr.bf16.mxu0 0
      %8717 = vmatpush1.bf16.msra.mxu0 0
      %8718 = vmatprep.subr.bf16.mxu0 0
      %8719 = vmatpush1.bf16.msra.mxu0 0
      %8720 = vmatprep.subr.bf16.mxu0 0
      %8721 = vmatpush1.bf16.msra.mxu0 0
      %8722 = vmatprep.subr.bf16.mxu0 0
      %8723 = vmatpush1.bf16.msra.mxu0 0
      %8724 = vmatprep.subr.bf16.mxu0 0
      %8725 = vmatpush1.bf16.msra.mxu0 0
      %8726 = vmatprep.subr.bf16.mxu0 0
      %8727 = vmatpush1.bf16.msra.mxu0 0
      %8728 = vmatprep.mubr.bf16.mxu0 0
      %8729 = vmatmul.mubr.bf16.gmra.mrb[0].mxu0 %v2877
      %v8730 = vpop.f32.mrb[0].mxu0
      %v8731 = vadd.f32 0.0, %v8730
      %v8732 = vpop.f32.mrb[0].mxu0
      %v8733 = vpop.f32.mrb[0].mxu0
      %v8734 = vadd.f32 0.0, %v8733
      %v8735 = vpop.f32.mrb[0].mxu0
      %8736 = vmatprep.mubr.bf16.mxu0 0
      %8737 = vmatmul.mubr.bf16.gmra.mrb[0].mxu0 %v2878
      %v8738 = vpop.f32.mrb[0].mxu0
      %v8739 = vadd.f32 0.0, %v8738
      %v8740 = vpop.f32.mrb[0].mxu0
      %v8741 = vpop.f32.mrb[0].mxu0
      %v8742 = vadd.f32 0.0, %v8741
      %v8743 = vpop.f32.mrb[0].mxu0
      %8744 = vdwg.mxu0
      %v8761 = vunpack.c.l.b16 %v3703
      %v8762 = vunpack.c.l.b16 %v3704
      %v8763 = vunpack.c.l.b16 %v3705
      %v8764 = vunpack.c.l.b16 %v3706
      %v8765 = vunpack.c.l.b16 %v3707
      %v8766 = vunpack.c.l.b16 %v3708
      %v8767 = vunpack.c.l.b16 %v3709
      %v8768 = vunpack.c.l.b16 %v3710
      %v8769 = vunpack.c.l.b16 %v3711
      %v8770 = vunpack.c.l.b16 %v3712
      %v8771 = vunpack.c.l.b16 %v3713
      %v8772 = vunpack.c.l.b16 %v3714
      %v8773 = vunpack.c.l.b16 %v3715
      %v8774 = vunpack.c.l.b16 %v3716
      %v8775 = vunpack.c.l.b16 %v3717
      %v8776 = vunpack.c.l.b16 %v3718
      %v8777 = vpack.c.b16 %v8762, %v8761
      %v8778 = vpack.c.b16 %v8764, %v8763
      %v8779 = vpack.c.b16 %v8766, %v8765
      %v8780 = vpack.c.b16 %v8768, %v8767
      %v8781 = vpack.c.b16 %v8770, %v8769
      %v8782 = vpack.c.b16 %v8772, %v8771
      %v8783 = vpack.c.b16 %v8774, %v8773
      %v8784 = vpack.c.b16 %v8776, %v8775
      %8793 = vmatprep.subr.bf16.mxu0 0
      %8794 = vmatpush1.bf16.msra.mxu0 %v8777
      %8795 = vmatprep.subr.bf16.mxu0 0
      %8796 = vmatpush1.bf16.msra.mxu0 %v8778
      %8797 = vmatprep.subr.bf16.mxu0 0
      %8798 = vmatpush1.bf16.msra.mxu0 %v8779
      %8799 = vmatprep.subr.bf16.mxu0 0
      %8800 = vmatpush1.bf16.msra.mxu0 %v8780
      %8801 = vmatprep.subr.bf16.mxu0 0
      %8802 = vmatpush1.bf16.msra.mxu0 %v8781
      %8803 = vmatprep.subr.bf16.mxu0 0
      %8804 = vmatpush1.bf16.msra.mxu0 %v8782
      %8805 = vmatprep.subr.bf16.mxu0 0
      %8806 = vmatpush1.bf16.msra.mxu0 %v8783
      %8807 = vmatprep.subr.bf16.mxu0 0
      %8808 = vmatpush1.bf16.msra.mxu0 %v8784
      %8809 = vmatprep.subr.bf16.mxu0 0
      %8810 = vmatpush1.bf16.msra.mxu0 0
      %8811 = vmatprep.subr.bf16.mxu0 0
      %8812 = vmatpush1.bf16.msra.mxu0 0
      %8813 = vmatprep.subr.bf16.mxu0 0
      %8814 = vmatpush1.bf16.msra.mxu0 0
      %8815 = vmatprep.subr.bf16.mxu0 0
      %8816 = vmatpush1.bf16.msra.mxu0 0
      %8817 = vmatprep.subr.bf16.mxu0 0
      %8818 = vmatpush1.bf16.msra.mxu0 0
      %8819 = vmatprep.subr.bf16.mxu0 0
      %8820 = vmatpush1.bf16.msra.mxu0 0
      %8821 = vmatprep.subr.bf16.mxu0 0
      %8822 = vmatpush1.bf16.msra.mxu0 0
      %8823 = vmatprep.subr.bf16.mxu0 0
      %8824 = vmatpush1.bf16.msra.mxu0 0
      %8825 = vmatprep.mubr.bf16.mxu0 0
      %8826 = vmatmul.mubr.bf16.gmra.mrb[0].mxu0 %v2879
      %v8827 = vpop.f32.mrb[0].mxu0
      %v8828 = vadd.f32 0.0, %v8827
      %v8829 = vpop.f32.mrb[0].mxu0
      %v8830 = vpop.f32.mrb[0].mxu0
      %v8831 = vadd.f32 0.0, %v8830
      %v8832 = vpop.f32.mrb[0].mxu0
      %8833 = vmatprep.mubr.bf16.mxu0 0
      %8834 = vmatmul.mubr.bf16.gmra.mrb[0].mxu0 %v2880
      %v8835 = vpop.f32.mrb[0].mxu0
      %v8836 = vadd.f32 0.0, %v8835
      %v8837 = vpop.f32.mrb[0].mxu0
      %v8838 = vpop.f32.mrb[0].mxu0
      %v8839 = vadd.f32 0.0, %v8838
      %v8840 = vpop.f32.mrb[0].mxu0
      %8841 = vdwg.mxu0
      %v8858 = vunpack.c.l.b16 %v3719
      %v8859 = vunpack.c.l.b16 %v3720
      %v8860 = vunpack.c.l.b16 %v3721
      %v8861 = vunpack.c.l.b16 %v3722
      %v8862 = vunpack.c.l.b16 %v3723
      %v8863 = vunpack.c.l.b16 %v3724
      %v8864 = vunpack.c.l.b16 %v3725
      %v8865 = vunpack.c.l.b16 %v3726
      %v8866 = vunpack.c.l.b16 %v3727
      %v8867 = vunpack.c.l.b16 %v3728
      %v8868 = vunpack.c.l.b16 %v3729
      %v8869 = vunpack.c.l.b16 %v3730
      %v8870 = vunpack.c.l.b16 %v3731
      %v8871 = vunpack.c.l.b16 %v3732
      %v8872 = vunpack.c.l.b16 %v3733
      %v8873 = vunpack.c.l.b16 %v3734
      %v8874 = vpack.c.b16 %v8859, %v8858
      %v8875 = vpack.c.b16 %v8861, %v8860
      %v8876 = vpack.c.b16 %v8863, %v8862
      %v8877 = vpack.c.b16 %v8865, %v8864
      %v8878 = vpack.c.b16 %v8867, %v8866
      %v8879 = vpack.c.b16 %v8869, %v8868
      %v8880 = vpack.c.b16 %v8871, %v8870
      %v8881 = vpack.c.b16 %v8873, %v8872
      %8890 = vmatprep.subr.bf16.mxu0 0
      %8891 = vmatpush1.bf16.msra.mxu0 %v8874
      %8892 = vmatprep.subr.bf16.mxu0 0
      %8893 = vmatpush1.bf16.msra.mxu0 %v8875
      %8894 = vmatprep.subr.bf16.mxu0 0
      %8895 = vmatpush1.bf16.msra.mxu0 %v8876
      %8896 = vmatprep.subr.bf16.mxu0 0
      %8897 = vmatpush1.bf16.msra.mxu0 %v8877
      %8898 = vmatprep.subr.bf16.mxu0 0
      %8899 = vmatpush1.bf16.msra.mxu0 %v8878
      %8900 = vmatprep.subr.bf16.mxu0 0
      %8901 = vmatpush1.bf16.msra.mxu0 %v8879
      %8902 = vmatprep.subr.bf16.mxu0 0
      %8903 = vmatpush1.bf16.msra.mxu0 %v8880
      %8904 = vmatprep.subr.bf16.mxu0 0
      %8905 = vmatpush1.bf16.msra.mxu0 %v8881
      %8906 = vmatprep.subr.bf16.mxu0 0
      %8907 = vmatpush1.bf16.msra.mxu0 0
      %8908 = vmatprep.subr.bf16.mxu0 0
      %8909 = vmatpush1.bf16.msra.mxu0 0
      %8910 = vmatprep.subr.bf16.mxu0 0
      %8911 = vmatpush1.bf16.msra.mxu0 0
      %8912 = vmatprep.subr.bf16.mxu0 0
      %8913 = vmatpush1.bf16.msra.mxu0 0
      %8914 = vmatprep.subr.bf16.mxu0 0
      %8915 = vmatpush1.bf16.msra.mxu0 0
      %8916 = vmatprep.subr.bf16.mxu0 0
      %8917 = vmatpush1.bf16.msra.mxu0 0
      %8918 = vmatprep.subr.bf16.mxu0 0
      %8919 = vmatpush1.bf16.msra.mxu0 0
      %8920 = vmatprep.subr.bf16.mxu0 0
      %8921 = vmatpush1.bf16.msra.mxu0 0
      %8922 = vmatprep.mubr.bf16.mxu0 0
      %8923 = vmatmul.mubr.bf16.gmra.mrb[0].mxu0 %v2881
      %v8924 = vpop.f32.mrb[0].mxu0
      %v8925 = vadd.f32 0.0, %v8924
      %v8926 = vpop.f32.mrb[0].mxu0
      %v8927 = vpop.f32.mrb[0].mxu0
      %v8928 = vadd.f32 0.0, %v8927
      %v8929 = vpop.f32.mrb[0].mxu0
      %8930 = vmatprep.mubr.bf16.mxu0 0
      %8931 = vmatmul.mubr.bf16.gmra.mrb[0].mxu0 %v2882
      %v8932 = vpop.f32.mrb[0].mxu0
      %v8933 = vadd.f32 0.0, %v8932
      %v8934 = vpop.f32.mrb[0].mxu0
      %v8935 = vpop.f32.mrb[0].mxu0
      %v8936 = vadd.f32 0.0, %v8935
      %v8937 = vpop.f32.mrb[0].mxu0
      %8938 = vdwg.mxu0
      %v8955 = vunpack.c.l.b16 %v3735
      %v8956 = vunpack.c.l.b16 %v3736
      %v8957 = vunpack.c.l.b16 %v3737
      %v8958 = vunpack.c.l.b16 %v3738
      %v8959 = vunpack.c.l.b16 %v3739
      %v8960 = vunpack.c.l.b16 %v3740
      %v8961 = vunpack.c.l.b16 %v3741
      %v8962 = vunpack.c.l.b16 %v3742
      %v8963 = vunpack.c.l.b16 %v3743
      %v8964 = vunpack.c.l.b16 %v3744
      %v8965 = vunpack.c.l.b16 %v3745
      %v8966 = vunpack.c.l.b16 %v3746
      %v8967 = vunpack.c.l.b16 %v3747
      %v8968 = vunpack.c.l.b16 %v3748
      %v8969 = vunpack.c.l.b16 %v3749
      %v8970 = vunpack.c.l.b16 %v3750
      %v8971 = vpack.c.b16 %v8956, %v8955
      %v8972 = vpack.c.b16 %v8958, %v8957
      %v8973 = vpack.c.b16 %v8960, %v8959
      %v8974 = vpack.c.b16 %v8962, %v8961
      %v8975 = vpack.c.b16 %v8964, %v8963
      %v8976 = vpack.c.b16 %v8966, %v8965
      %v8977 = vpack.c.b16 %v8968, %v8967
      %v8978 = vpack.c.b16 %v8970, %v8969
      %8987 = vmatprep.subr.bf16.mxu0 0
      %8988 = vmatpush1.bf16.msra.mxu0 %v8971
      %8989 = vmatprep.subr.bf16.mxu0 0
      %8990 = vmatpush1.bf16.msra.mxu0 %v8972
      %8991 = vmatprep.subr.bf16.mxu0 0
      %8992 = vmatpush1.bf16.msra.mxu0 %v8973
      %8993 = vmatprep.subr.bf16.mxu0 0
      %8994 = vmatpush1.bf16.msra.mxu0 %v8974
      %8995 = vmatprep.subr.bf16.mxu0 0
      %8996 = vmatpush1.bf16.msra.mxu0 %v8975
      %8997 = vmatprep.subr.bf16.mxu0 0
      %8998 = vmatpush1.bf16.msra.mxu0 %v8976
      %8999 = vmatprep.subr.bf16.mxu0 0
      %9000 = vmatpush1.bf16.msra.mxu0 %v8977
      %9001 = vmatprep.subr.bf16.mxu0 0
      %9002 = vmatpush1.bf16.msra.mxu0 %v8978
      %9003 = vmatprep.subr.bf16.mxu0 0
      %9004 = vmatpush1.bf16.msra.mxu0 0
      %9005 = vmatprep.subr.bf16.mxu0 0
      %9006 = vmatpush1.bf16.msra.mxu0 0
      %9007 = vmatprep.subr.bf16.mxu0 0
      %9008 = vmatpush1.bf16.msra.mxu0 0
      %9009 = vmatprep.subr.bf16.mxu0 0
      %9010 = vmatpush1.bf16.msra.mxu0 0
      %9011 = vmatprep.subr.bf16.mxu0 0
      %9012 = vmatpush1.bf16.msra.mxu0 0
      %9013 = vmatprep.subr.bf16.mxu0 0
      %9014 = vmatpush1.bf16.msra.mxu0 0
      %9015 = vmatprep.subr.bf16.mxu0 0
      %9016 = vmatpush1.bf16.msra.mxu0 0
      %9017 = vmatprep.subr.bf16.mxu0 0
      %9018 = vmatpush1.bf16.msra.mxu0 0
      %9019 = vmatprep.mubr.bf16.mxu0 0
      %9020 = vmatmul.mubr.bf16.gmra.mrb[0].mxu0 %v2883
      %v9021 = vpop.f32.mrb[0].mxu0
      %v9022 = vadd.f32 0.0, %v9021
      %v9023 = vpop.f32.mrb[0].mxu0
      %v9024 = vpop.f32.mrb[0].mxu0
      %v9025 = vadd.f32 0.0, %v9024
      %v9026 = vpop.f32.mrb[0].mxu0
      %9027 = vmatprep.mubr.bf16.mxu0 0
      %9028 = vmatmul.mubr.bf16.gmra.mrb[0].mxu0 %v2884
      %v9029 = vpop.f32.mrb[0].mxu0
      %v9030 = vadd.f32 0.0, %v9029
      %v9031 = vpop.f32.mrb[0].mxu0
      %v9032 = vpop.f32.mrb[0].mxu0
      %v9033 = vadd.f32 0.0, %v9032
      %v9034 = vpop.f32.mrb[0].mxu0
      %9035 = vdwg.mxu0
      %v9052 = vunpack.c.l.b16 %v3751
      %v9053 = vunpack.c.l.b16 %v3752
      %v9054 = vunpack.c.l.b16 %v3753
      %v9055 = vunpack.c.l.b16 %v3754
      %v9056 = vunpack.c.l.b16 %v3755
      %v9057 = vunpack.c.l.b16 %v3756
      %v9058 = vunpack.c.l.b16 %v3757
      %v9059 = vunpack.c.l.b16 %v3758
      %v9060 = vunpack.c.l.b16 %v3759
      %v9061 = vunpack.c.l.b16 %v3760
      %v9062 = vunpack.c.l.b16 %v3761
      %v9063 = vunpack.c.l.b16 %v3762
      %v9064 = vunpack.c.l.b16 %v3763
      %v9065 = vunpack.c.l.b16 %v3764
      %v9066 = vunpack.c.l.b16 %v3765
      %v9067 = vunpack.c.l.b16 %v3766
      %v9068 = vpack.c.b16 %v9053, %v9052
      %v9069 = vpack.c.b16 %v9055, %v9054
      %v9070 = vpack.c.b16 %v9057, %v9056
      %v9071 = vpack.c.b16 %v9059, %v9058
      %v9072 = vpack.c.b16 %v9061, %v9060
      %v9073 = vpack.c.b16 %v9063, %v9062
      %v9074 = vpack.c.b16 %v9065, %v9064
      %v9075 = vpack.c.b16 %v9067, %v9066
      %9084 = vmatprep.subr.bf16.mxu0 0
      %9085 = vmatpush1.bf16.msra.mxu0 %v9068
      %9086 = vmatprep.subr.bf16.mxu0 0
      %9087 = vmatpush1.bf16.msra.mxu0 %v9069
      %9088 = vmatprep.subr.bf16.mxu0 0
      %9089 = vmatpush1.bf16.msra.mxu0 %v9070
      %9090 = vmatprep.subr.bf16.mxu0 0
      %9091 = vmatpush1.bf16.msra.mxu0 %v9071
      %9092 = vmatprep.subr.bf16.mxu0 0
      %9093 = vmatpush1.bf16.msra.mxu0 %v9072
      %9094 = vmatprep.subr.bf16.mxu0 0
      %9095 = vmatpush1.bf16.msra.mxu0 %v9073
      %9096 = vmatprep.subr.bf16.mxu0 0
      %9097 = vmatpush1.bf16.msra.mxu0 %v9074
      %9098 = vmatprep.subr.bf16.mxu0 0
      %9099 = vmatpush1.bf16.msra.mxu0 %v9075
      %9100 = vmatprep.subr.bf16.mxu0 0
      %9101 = vmatpush1.bf16.msra.mxu0 0
      %9102 = vmatprep.subr.bf16.mxu0 0
      %9103 = vmatpush1.bf16.msra.mxu0 0
      %9104 = vmatprep.subr.bf16.mxu0 0
      %9105 = vmatpush1.bf16.msra.mxu0 0
      %9106 = vmatprep.subr.bf16.mxu0 0
      %9107 = vmatpush1.bf16.msra.mxu0 0
      %9108 = vmatprep.subr.bf16.mxu0 0
      %9109 = vmatpush1.bf16.msra.mxu0 0
      %9110 = vmatprep.subr.bf16.mxu0 0
      %9111 = vmatpush1.bf16.msra.mxu0 0
      %9112 = vmatprep.subr.bf16.mxu0 0
      %9113 = vmatpush1.bf16.msra.mxu0 0
      %9114 = vmatprep.subr.bf16.mxu0 0
      %9115 = vmatpush1.bf16.msra.mxu0 0
      %9116 = vmatprep.mubr.bf16.mxu0 0
      %9117 = vmatmul.mubr.bf16.gmra.mrb[0].mxu0 %v2885
      %v9118 = vpop.f32.mrb[0].mxu0
      %v9119 = vadd.f32 0.0, %v9118
      %v9120 = vpop.f32.mrb[0].mxu0
      %v9121 = vpop.f32.mrb[0].mxu0
      %v9122 = vadd.f32 0.0, %v9121
      %v9123 = vpop.f32.mrb[0].mxu0
      %9124 = vmatprep.mubr.bf16.mxu0 0
      %9125 = vmatmul.mubr.bf16.gmra.mrb[0].mxu0 %v2886
      %v9126 = vpop.f32.mrb[0].mxu0
      %v9127 = vadd.f32 0.0, %v9126
      %v9128 = vpop.f32.mrb[0].mxu0
      %v9129 = vpop.f32.mrb[0].mxu0
      %v9130 = vadd.f32 0.0, %v9129
      %v9131 = vpop.f32.mrb[0].mxu0
      %9132 = vdwg.mxu0
      %v9149 = vunpack.c.l.b16 %v3767
      %v9150 = vunpack.c.l.b16 %v3768
      %v9151 = vunpack.c.l.b16 %v3769
      %v9152 = vunpack.c.l.b16 %v3770
      %v9153 = vunpack.c.l.b16 %v3771
      %v9154 = vunpack.c.l.b16 %v3772
      %v9155 = vunpack.c.l.b16 %v3773
      %v9156 = vunpack.c.l.b16 %v3774
      %v9157 = vunpack.c.l.b16 %v3775
      %v9158 = vunpack.c.l.b16 %v3776
      %v9159 = vunpack.c.l.b16 %v3777
      %v9160 = vunpack.c.l.b16 %v3778
      %v9161 = vunpack.c.l.b16 %v3779
      %v9162 = vunpack.c.l.b16 %v3780
      %v9163 = vunpack.c.l.b16 %v3781
      %v9164 = vunpack.c.l.b16 %v3782
      %v9165 = vpack.c.b16 %v9150, %v9149
      %v9166 = vpack.c.b16 %v9152, %v9151
      %v9167 = vpack.c.b16 %v9154, %v9153
      %v9168 = vpack.c.b16 %v9156, %v9155
      %v9169 = vpack.c.b16 %v9158, %v9157
      %v9170 = vpack.c.b16 %v9160, %v9159
      %v9171 = vpack.c.b16 %v9162, %v9161
      %v9172 = vpack.c.b16 %v9164, %v9163
      %9181 = vmatprep.subr.bf16.mxu0 0
      %9182 = vmatpush1.bf16.msra.mxu0 %v9165
      %9183 = vmatprep.subr.bf16.mxu0 0
      %9184 = vmatpush1.bf16.msra.mxu0 %v9166
      %9185 = vmatprep.subr.bf16.mxu0 0
      %9186 = vmatpush1.bf16.msra.mxu0 %v9167
      %9187 = vmatprep.subr.bf16.mxu0 0
      %9188 = vmatpush1.bf16.msra.mxu0 %v9168
      %9189 = vmatprep.subr.bf16.mxu0 0
      %9190 = vmatpush1.bf16.msra.mxu0 %v9169
      %9191 = vmatprep.subr.bf16.mxu0 0
      %9192 = vmatpush1.bf16.msra.mxu0 %v9170
      %9193 = vmatprep.subr.bf16.mxu0 0
      %9194 = vmatpush1.bf16.msra.mxu0 %v9171
      %9195 = vmatprep.subr.bf16.mxu0 0
      %9196 = vmatpush1.bf16.msra.mxu0 %v9172
      %9197 = vmatprep.subr.bf16.mxu0 0
      %9198 = vmatpush1.bf16.msra.mxu0 0
      %9199 = vmatprep.subr.bf16.mxu0 0
      %9200 = vmatpush1.bf16.msra.mxu0 0
      %9201 = vmatprep.subr.bf16.mxu0 0
      %9202 = vmatpush1.bf16.msra.mxu0 0
      %9203 = vmatprep.subr.bf16.mxu0 0
      %9204 = vmatpush1.bf16.msra.mxu0 0
      %9205 = vmatprep.subr.bf16.mxu0 0
      %9206 = vmatpush1.bf16.msra.mxu0 0
      %9207 = vmatprep.subr.bf16.mxu0 0
      %9208 = vmatpush1.bf16.msra.mxu0 0
      %9209 = vmatprep.subr.bf16.mxu0 0
      %9210 = vmatpush1.bf16.msra.mxu0 0
      %9211 = vmatprep.subr.bf16.mxu0 0
      %9212 = vmatpush1.bf16.msra.mxu0 0
      %9213 = vmatprep.mubr.bf16.mxu0 0
      %9214 = vmatmul.mubr.bf16.gmra.mrb[0].mxu0 %v2887
      %v9215 = vpop.f32.mrb[0].mxu0
      %v9216 = vadd.f32 0.0, %v9215
      %v9217 = vpop.f32.mrb[0].mxu0
      %v9218 = vpop.f32.mrb[0].mxu0
      %v9219 = vadd.f32 0.0, %v9218
      %v9220 = vpop.f32.mrb[0].mxu0
      %9221 = vmatprep.mubr.bf16.mxu0 0
      %9222 = vmatmul.mubr.bf16.gmra.mrb[0].mxu0 %v2888
      %v9223 = vpop.f32.mrb[0].mxu0
      %v9224 = vadd.f32 0.0, %v9223
      %v9225 = vpop.f32.mrb[0].mxu0
      %v9226 = vpop.f32.mrb[0].mxu0
      %v9227 = vadd.f32 0.0, %v9226
      %v9228 = vpop.f32.mrb[0].mxu0
      %9229 = vdwg.mxu0
      %v9246 = vunpack.c.l.b16 %v3783
      %v9247 = vunpack.c.l.b16 %v3784
      %v9248 = vunpack.c.l.b16 %v3785
      %v9249 = vunpack.c.l.b16 %v3786
      %v9250 = vunpack.c.l.b16 %v3787
      %v9251 = vunpack.c.l.b16 %v3788
      %v9252 = vunpack.c.l.b16 %v3789
      %v9253 = vunpack.c.l.b16 %v3790
      %v9254 = vunpack.c.l.b16 %v3791
      %v9255 = vunpack.c.l.b16 %v3792
      %v9256 = vunpack.c.l.b16 %v3793
      %v9257 = vunpack.c.l.b16 %v3794
      %v9258 = vunpack.c.l.b16 %v3795
      %v9259 = vunpack.c.l.b16 %v3796
      %v9260 = vunpack.c.l.b16 %v3797
      %v9261 = vunpack.c.l.b16 %v3798
      %v9262 = vpack.c.b16 %v9247, %v9246
      %v9263 = vpack.c.b16 %v9249, %v9248
      %v9264 = vpack.c.b16 %v9251, %v9250
      %v9265 = vpack.c.b16 %v9253, %v9252
      %v9266 = vpack.c.b16 %v9255, %v9254
      %v9267 = vpack.c.b16 %v9257, %v9256
      %v9268 = vpack.c.b16 %v9259, %v9258
      %v9269 = vpack.c.b16 %v9261, %v9260
      %9278 = vmatprep.subr.bf16.mxu0 0
      %9279 = vmatpush1.bf16.msra.mxu0 %v9262
      %9280 = vmatprep.subr.bf16.mxu0 0
      %9281 = vmatpush1.bf16.msra.mxu0 %v9263
      %9282 = vmatprep.subr.bf16.mxu0 0
      %9283 = vmatpush1.bf16.msra.mxu0 %v9264
      %9284 = vmatprep.subr.bf16.mxu0 0
      %9285 = vmatpush1.bf16.msra.mxu0 %v9265
      %9286 = vmatprep.subr.bf16.mxu0 0
      %9287 = vmatpush1.bf16.msra.mxu0 %v9266
      %9288 = vmatprep.subr.bf16.mxu0 0
      %9289 = vmatpush1.bf16.msra.mxu0 %v9267
      %9290 = vmatprep.subr.bf16.mxu0 0
      %9291 = vmatpush1.bf16.msra.mxu0 %v9268
      %9292 = vmatprep.subr.bf16.mxu0 0
      %9293 = vmatpush1.bf16.msra.mxu0 %v9269
      %9294 = vmatprep.subr.bf16.mxu0 0
      %9295 = vmatpush1.bf16.msra.mxu0 0
      %9296 = vmatprep.subr.bf16.mxu0 0
      %9297 = vmatpush1.bf16.msra.mxu0 0
      %9298 = vmatprep.subr.bf16.mxu0 0
      %9299 = vmatpush1.bf16.msra.mxu0 0
      %9300 = vmatprep.subr.bf16.mxu0 0
      %9301 = vmatpush1.bf16.msra.mxu0 0
      %9302 = vmatprep.subr.bf16.mxu0 0
      %9303 = vmatpush1.bf16.msra.mxu0 0
      %9304 = vmatprep.subr.bf16.mxu0 0
      %9305 = vmatpush1.bf16.msra.mxu0 0
      %9306 = vmatprep.subr.bf16.mxu0 0
      %9307 = vmatpush1.bf16.msra.mxu0 0
      %9308 = vmatprep.subr.bf16.mxu0 0
      %9309 = vmatpush1.bf16.msra.mxu0 0
      %9310 = vmatprep.mubr.bf16.mxu0 0
      %9311 = vmatmul.mubr.bf16.gmra.mrb[0].mxu0 %v2889
      %v9312 = vpop.f32.mrb[0].mxu0
      %v9313 = vadd.f32 0.0, %v9312
      %v9314 = vpop.f32.mrb[0].mxu0
      %v9315 = vpop.f32.mrb[0].mxu0
      %v9316 = vadd.f32 0.0, %v9315
      %v9317 = vpop.f32.mrb[0].mxu0
      %9318 = vmatprep.mubr.bf16.mxu0 0
      %9319 = vmatmul.mubr.bf16.gmra.mrb[0].mxu0 %v2890
      %v9320 = vpop.f32.mrb[0].mxu0
      %v9321 = vadd.f32 0.0, %v9320
      %v9322 = vpop.f32.mrb[0].mxu0
      %v9323 = vpop.f32.mrb[0].mxu0
      %v9324 = vadd.f32 0.0, %v9323
      %v9325 = vpop.f32.mrb[0].mxu0
      %9326 = vdwg.mxu0
      %v9343 = vunpack.c.l.b16 %v3799
      %v9344 = vunpack.c.l.b16 %v3800
      %v9345 = vunpack.c.l.b16 %v3801
      %v9346 = vunpack.c.l.b16 %v3802
      %v9347 = vunpack.c.l.b16 %v3803
      %v9348 = vunpack.c.l.b16 %v3804
      %v9349 = vunpack.c.l.b16 %v3805
      %v9350 = vunpack.c.l.b16 %v3806
      %v9351 = vunpack.c.l.b16 %v3807
      %v9352 = vunpack.c.l.b16 %v3808
      %v9353 = vunpack.c.l.b16 %v3809
      %v9354 = vunpack.c.l.b16 %v3810
      %v9355 = vunpack.c.l.b16 %v3811
      %v9356 = vunpack.c.l.b16 %v3812
      %v9357 = vunpack.c.l.b16 %v3813
      %v9358 = vunpack.c.l.b16 %v3814
      %v9359 = vpack.c.b16 %v9344, %v9343
      %v9360 = vpack.c.b16 %v9346, %v9345
      %v9361 = vpack.c.b16 %v9348, %v9347
      %v9362 = vpack.c.b16 %v9350, %v9349
      %v9363 = vpack.c.b16 %v9352, %v9351
      %v9364 = vpack.c.b16 %v9354, %v9353
      %v9365 = vpack.c.b16 %v9356, %v9355
      %v9366 = vpack.c.b16 %v9358, %v9357
      %9375 = vmatprep.subr.bf16.mxu0 0
      %9376 = vmatpush1.bf16.msra.mxu0 %v9359
      %9377 = vmatprep.subr.bf16.mxu0 0
      %9378 = vmatpush1.bf16.msra.mxu0 %v9360
      %9379 = vmatprep.subr.bf16.mxu0 0
      %9380 = vmatpush1.bf16.msra.mxu0 %v9361
      %9381 = vmatprep.subr.bf16.mxu0 0
      %9382 = vmatpush1.bf16.msra.mxu0 %v9362
      %9383 = vmatprep.subr.bf16.mxu0 0
      %9384 = vmatpush1.bf16.msra.mxu0 %v9363
      %9385 = vmatprep.subr.bf16.mxu0 0
      %9386 = vmatpush1.bf16.msra.mxu0 %v9364
      %9387 = vmatprep.subr.bf16.mxu0 0
      %9388 = vmatpush1.bf16.msra.mxu0 %v9365
      %9389 = vmatprep.subr.bf16.mxu0 0
      %9390 = vmatpush1.bf16.msra.mxu0 %v9366
      %9391 = vmatprep.subr.bf16.mxu0 0
      %9392 = vmatpush1.bf16.msra.mxu0 0
      %9393 = vmatprep.subr.bf16.mxu0 0
      %9394 = vmatpush1.bf16.msra.mxu0 0
      %9395 = vmatprep.subr.bf16.mxu0 0
      %9396 = vmatpush1.bf16.msra.mxu0 0
      %9397 = vmatprep.subr.bf16.mxu0 0
      %9398 = vmatpush1.bf16.msra.mxu0 0
      %9399 = vmatprep.subr.bf16.mxu0 0
      %9400 = vmatpush1.bf16.msra.mxu0 0
      %9401 = vmatprep.subr.bf16.mxu0 0
      %9402 = vmatpush1.bf16.msra.mxu0 0
      %9403 = vmatprep.subr.bf16.mxu0 0
      %9404 = vmatpush1.bf16.msra.mxu0 0
      %9405 = vmatprep.subr.bf16.mxu0 0
      %9406 = vmatpush1.bf16.msra.mxu0 0
      %9407 = vmatprep.mubr.bf16.mxu0 0
      %9408 = vmatmul.mubr.bf16.gmra.mrb[0].mxu0 %v2891
      %v9409 = vpop.f32.mrb[0].mxu0
      %v9410 = vadd.f32 0.0, %v9409
      %v9411 = vpop.f32.mrb[0].mxu0
      %v9412 = vpop.f32.mrb[0].mxu0
      %v9413 = vadd.f32 0.0, %v9412
      %v9414 = vpop.f32.mrb[0].mxu0
      %9415 = vmatprep.mubr.bf16.mxu0 0
      %9416 = vmatmul.mubr.bf16.gmra.mrb[0].mxu0 %v2892
      %v9417 = vpop.f32.mrb[0].mxu0
      %v9418 = vadd.f32 0.0, %v9417
      %v9419 = vpop.f32.mrb[0].mxu0
      %v9420 = vpop.f32.mrb[0].mxu0
      %v9421 = vadd.f32 0.0, %v9420
      %v9422 = vpop.f32.mrb[0].mxu0
      %9423 = vdwg.mxu0
      %v9440 = vunpack.c.l.b16 %v3815
      %v9441 = vunpack.c.l.b16 %v3816
      %v9442 = vunpack.c.l.b16 %v3817
      %v9443 = vunpack.c.l.b16 %v3818
      %v9444 = vunpack.c.l.b16 %v3819
      %v9445 = vunpack.c.l.b16 %v3820
      %v9446 = vunpack.c.l.b16 %v3821
      %v9447 = vunpack.c.l.b16 %v3822
      %v9448 = vunpack.c.l.b16 %v3823
      %v9449 = vunpack.c.l.b16 %v3824
      %v9450 = vunpack.c.l.b16 %v3825
      %v9451 = vunpack.c.l.b16 %v3826
      %v9452 = vunpack.c.l.b16 %v3827
      %v9453 = vunpack.c.l.b16 %v3828
      %v9454 = vunpack.c.l.b16 %v3829
      %v9455 = vunpack.c.l.b16 %v3830
      %v9456 = vpack.c.b16 %v9441, %v9440
      %v9457 = vpack.c.b16 %v9443, %v9442
      %v9458 = vpack.c.b16 %v9445, %v9444
      %v9459 = vpack.c.b16 %v9447, %v9446
      %v9460 = vpack.c.b16 %v9449, %v9448
      %v9461 = vpack.c.b16 %v9451, %v9450
      %v9462 = vpack.c.b16 %v9453, %v9452
      %v9463 = vpack.c.b16 %v9455, %v9454
      %9472 = vmatprep.subr.bf16.mxu0 0
      %9473 = vmatpush1.bf16.msra.mxu0 %v9456
      %9474 = vmatprep.subr.bf16.mxu0 0
      %9475 = vmatpush1.bf16.msra.mxu0 %v9457
      %9476 = vmatprep.subr.bf16.mxu0 0
      %9477 = vmatpush1.bf16.msra.mxu0 %v9458
      %9478 = vmatprep.subr.bf16.mxu0 0
      %9479 = vmatpush1.bf16.msra.mxu0 %v9459
      %9480 = vmatprep.subr.bf16.mxu0 0
      %9481 = vmatpush1.bf16.msra.mxu0 %v9460
      %9482 = vmatprep.subr.bf16.mxu0 0
      %9483 = vmatpush1.bf16.msra.mxu0 %v9461
      %9484 = vmatprep.subr.bf16.mxu0 0
      %9485 = vmatpush1.bf16.msra.mxu0 %v9462
      %9486 = vmatprep.subr.bf16.mxu0 0
      %9487 = vmatpush1.bf16.msra.mxu0 %v9463
      %9488 = vmatprep.subr.bf16.mxu0 0
      %9489 = vmatpush1.bf16.msra.mxu0 0
      %9490 = vmatprep.subr.bf16.mxu0 0
      %9491 = vmatpush1.bf16.msra.mxu0 0
      %9492 = vmatprep.subr.bf16.mxu0 0
      %9493 = vmatpush1.bf16.msra.mxu0 0
      %9494 = vmatprep.subr.bf16.mxu0 0
      %9495 = vmatpush1.bf16.msra.mxu0 0
      %9496 = vmatprep.subr.bf16.mxu0 0
      %9497 = vmatpush1.bf16.msra.mxu0 0
      %9498 = vmatprep.subr.bf16.mxu0 0
      %9499 = vmatpush1.bf16.msra.mxu0 0
      %9500 = vmatprep.subr.bf16.mxu0 0
      %9501 = vmatpush1.bf16.msra.mxu0 0
      %9502 = vmatprep.subr.bf16.mxu0 0
      %9503 = vmatpush1.bf16.msra.mxu0 0
      %9504 = vmatprep.mubr.bf16.mxu0 0
      %9505 = vmatmul.mubr.bf16.gmra.mrb[0].mxu0 %v2893
      %v9506 = vpop.f32.mrb[0].mxu0
      %v9507 = vadd.f32 0.0, %v9506
      %v9508 = vpop.f32.mrb[0].mxu0
      %v9509 = vpop.f32.mrb[0].mxu0
      %v9510 = vadd.f32 0.0, %v9509
      %v9511 = vpop.f32.mrb[0].mxu0
      %9512 = vmatprep.mubr.bf16.mxu0 0
      %9513 = vmatmul.mubr.bf16.gmra.mrb[0].mxu0 %v2894
      %v9514 = vpop.f32.mrb[0].mxu0
      %v9515 = vadd.f32 0.0, %v9514
      %v9516 = vpop.f32.mrb[0].mxu0
      %v9517 = vpop.f32.mrb[0].mxu0
      %v9518 = vadd.f32 0.0, %v9517
      %v9519 = vpop.f32.mrb[0].mxu0
      %9520 = vdwg.mxu0
      %v9537 = vunpack.c.l.b16 %v3831
      %v9538 = vunpack.c.l.b16 %v3832
      %v9539 = vunpack.c.l.b16 %v3833
      %v9540 = vunpack.c.l.b16 %v3834
      %v9541 = vunpack.c.l.b16 %v3835
      %v9542 = vunpack.c.l.b16 %v3836
      %v9543 = vunpack.c.l.b16 %v3837
      %v9544 = vunpack.c.l.b16 %v3838
      %v9545 = vunpack.c.l.b16 %v3839
      %v9546 = vunpack.c.l.b16 %v3840
      %v9547 = vunpack.c.l.b16 %v3841
      %v9548 = vunpack.c.l.b16 %v3842
      %v9549 = vunpack.c.l.b16 %v3843
      %v9550 = vunpack.c.l.b16 %v3844
      %v9551 = vunpack.c.l.b16 %v3845
      %v9552 = vunpack.c.l.b16 %v3846
      %v9553 = vpack.c.b16 %v9538, %v9537
      %v9554 = vpack.c.b16 %v9540, %v9539
      %v9555 = vpack.c.b16 %v9542, %v9541
      %v9556 = vpack.c.b16 %v9544, %v9543
      %v9557 = vpack.c.b16 %v9546, %v9545
      %v9558 = vpack.c.b16 %v9548, %v9547
      %v9559 = vpack.c.b16 %v9550, %v9549
      %v9560 = vpack.c.b16 %v9552, %v9551
      %9569 = vmatprep.subr.bf16.mxu0 0
      %9570 = vmatpush1.bf16.msra.mxu0 %v9553
      %9571 = vmatprep.subr.bf16.mxu0 0
      %9572 = vmatpush1.bf16.msra.mxu0 %v9554
      %9573 = vmatprep.subr.bf16.mxu0 0
      %9574 = vmatpush1.bf16.msra.mxu0 %v9555
      %9575 = vmatprep.subr.bf16.mxu0 0
      %9576 = vmatpush1.bf16.msra.mxu0 %v9556
      %9577 = vmatprep.subr.bf16.mxu0 0
      %9578 = vmatpush1.bf16.msra.mxu0 %v9557
      %9579 = vmatprep.subr.bf16.mxu0 0
      %9580 = vmatpush1.bf16.msra.mxu0 %v9558
      %9581 = vmatprep.subr.bf16.mxu0 0
      %9582 = vmatpush1.bf16.msra.mxu0 %v9559
      %9583 = vmatprep.subr.bf16.mxu0 0
      %9584 = vmatpush1.bf16.msra.mxu0 %v9560
      %9585 = vmatprep.subr.bf16.mxu0 0
      %9586 = vmatpush1.bf16.msra.mxu0 0
      %9587 = vmatprep.subr.bf16.mxu0 0
      %9588 = vmatpush1.bf16.msra.mxu0 0
      %9589 = vmatprep.subr.bf16.mxu0 0
      %9590 = vmatpush1.bf16.msra.mxu0 0
      %9591 = vmatprep.subr.bf16.mxu0 0
      %9592 = vmatpush1.bf16.msra.mxu0 0
      %9593 = vmatprep.subr.bf16.mxu0 0
      %9594 = vmatpush1.bf16.msra.mxu0 0
      %9595 = vmatprep.subr.bf16.mxu0 0
      %9596 = vmatpush1.bf16.msra.mxu0 0
      %9597 = vmatprep.subr.bf16.mxu0 0
      %9598 = vmatpush1.bf16.msra.mxu0 0
      %9599 = vmatprep.subr.bf16.mxu0 0
      %9600 = vmatpush1.bf16.msra.mxu0 0
      %9601 = vmatprep.mubr.bf16.mxu0 0
      %9602 = vmatmul.mubr.bf16.gmra.mrb[0].mxu0 %v2895
      %v9603 = vpop.f32.mrb[0].mxu0
      %v9604 = vadd.f32 0.0, %v9603
      %v9605 = vpop.f32.mrb[0].mxu0
      %v9606 = vpop.f32.mrb[0].mxu0
      %v9607 = vadd.f32 0.0, %v9606
      %v9608 = vpop.f32.mrb[0].mxu0
      %9609 = vmatprep.mubr.bf16.mxu0 0
      %9610 = vmatmul.mubr.bf16.gmra.mrb[0].mxu0 %v2896
      %v9611 = vpop.f32.mrb[0].mxu0
      %v9612 = vadd.f32 0.0, %v9611
      %v9613 = vpop.f32.mrb[0].mxu0
      %v9614 = vpop.f32.mrb[0].mxu0
      %v9615 = vadd.f32 0.0, %v9614
      %v9616 = vpop.f32.mrb[0].mxu0
      %9617 = vdwg.mxu0
      %v9634 = vunpack.c.l.b16 %v3847
      %v9635 = vunpack.c.l.b16 %v3848
      %v9636 = vunpack.c.l.b16 %v3849
      %v9637 = vunpack.c.l.b16 %v3850
      %v9638 = vunpack.c.l.b16 %v3851
      %v9639 = vunpack.c.l.b16 %v3852
      %v9640 = vunpack.c.l.b16 %v3853
      %v9641 = vunpack.c.l.b16 %v3854
      %v9642 = vunpack.c.l.b16 %v3855
      %v9643 = vunpack.c.l.b16 %v3856
      %v9644 = vunpack.c.l.b16 %v3857
      %v9645 = vunpack.c.l.b16 %v3858
      %v9646 = vunpack.c.l.b16 %v3859
      %v9647 = vunpack.c.l.b16 %v3860
      %v9648 = vunpack.c.l.b16 %v3861
      %v9649 = vunpack.c.l.b16 %v3862
      %v9650 = vpack.c.b16 %v9635, %v9634
      %v9651 = vpack.c.b16 %v9637, %v9636
      %v9652 = vpack.c.b16 %v9639, %v9638
      %v9653 = vpack.c.b16 %v9641, %v9640
      %v9654 = vpack.c.b16 %v9643, %v9642
      %v9655 = vpack.c.b16 %v9645, %v9644
      %v9656 = vpack.c.b16 %v9647, %v9646
      %v9657 = vpack.c.b16 %v9649, %v9648
      %9666 = vmatprep.subr.bf16.mxu0 0
      %9667 = vmatpush1.bf16.msra.mxu0 %v9650
      %9668 = vmatprep.subr.bf16.mxu0 0
      %9669 = vmatpush1.bf16.msra.mxu0 %v9651
      %9670 = vmatprep.subr.bf16.mxu0 0
      %9671 = vmatpush1.bf16.msra.mxu0 %v9652
      %9672 = vmatprep.subr.bf16.mxu0 0
      %9673 = vmatpush1.bf16.msra.mxu0 %v9653
      %9674 = vmatprep.subr.bf16.mxu0 0
      %9675 = vmatpush1.bf16.msra.mxu0 %v9654
      %9676 = vmatprep.subr.bf16.mxu0 0
      %9677 = vmatpush1.bf16.msra.mxu0 %v9655
      %9678 = vmatprep.subr.bf16.mxu0 0
      %9679 = vmatpush1.bf16.msra.mxu0 %v9656
      %9680 = vmatprep.subr.bf16.mxu0 0
      %9681 = vmatpush1.bf16.msra.mxu0 %v9657
      %9682 = vmatprep.subr.bf16.mxu0 0
      %9683 = vmatpush1.bf16.msra.mxu0 0
      %9684 = vmatprep.subr.bf16.mxu0 0
      %9685 = vmatpush1.bf16.msra.mxu0 0
      %9686 = vmatprep.subr.bf16.mxu0 0
      %9687 = vmatpush1.bf16.msra.mxu0 0
      %9688 = vmatprep.subr.bf16.mxu0 0
      %9689 = vmatpush1.bf16.msra.mxu0 0
      %9690 = vmatprep.subr.bf16.mxu0 0
      %9691 = vmatpush1.bf16.msra.mxu0 0
      %9692 = vmatprep.subr.bf16.mxu0 0
      %9693 = vmatpush1.bf16.msra.mxu0 0
      %9694 = vmatprep.subr.bf16.mxu0 0
      %9695 = vmatpush1.bf16.msra.mxu0 0
      %9696 = vmatprep.subr.bf16.mxu0 0
      %9697 = vmatpush1.bf16.msra.mxu0 0
      %9698 = vmatprep.mubr.bf16.mxu0 0
      %9699 = vmatmul.mubr.bf16.gmra.mrb[0].mxu0 %v2897
      %v9700 = vpop.f32.mrb[0].mxu0
      %v9701 = vadd.f32 0.0, %v9700
      %v9702 = vpop.f32.mrb[0].mxu0
      %v9703 = vpop.f32.mrb[0].mxu0
      %v9704 = vadd.f32 0.0, %v9703
      %v9705 = vpop.f32.mrb[0].mxu0
      %9706 = vmatprep.mubr.bf16.mxu0 0
      %9707 = vmatmul.mubr.bf16.gmra.mrb[0].mxu0 %v2898
      %v9708 = vpop.f32.mrb[0].mxu0
      %v9709 = vadd.f32 0.0, %v9708
      %v9710 = vpop.f32.mrb[0].mxu0
      %v9711 = vpop.f32.mrb[0].mxu0
      %v9712 = vadd.f32 0.0, %v9711
      %v9713 = vpop.f32.mrb[0].mxu0
      %9714 = vdwg.mxu0
      %v9731 = vunpack.c.l.b16 %v3863
      %v9732 = vunpack.c.l.b16 %v3864
      %v9733 = vunpack.c.l.b16 %v3865
      %v9734 = vunpack.c.l.b16 %v3866
      %v9735 = vunpack.c.l.b16 %v3867
      %v9736 = vunpack.c.l.b16 %v3868
      %v9737 = vunpack.c.l.b16 %v3869
      %v9738 = vunpack.c.l.b16 %v3870
      %v9739 = vunpack.c.l.b16 %v3871
      %v9740 = vunpack.c.l.b16 %v3872
      %v9741 = vunpack.c.l.b16 %v3873
      %v9742 = vunpack.c.l.b16 %v3874
      %v9743 = vunpack.c.l.b16 %v3875
      %v9744 = vunpack.c.l.b16 %v3876
      %v9745 = vunpack.c.l.b16 %v3877
      %v9746 = vunpack.c.l.b16 %v3878
      %v9747 = vpack.c.b16 %v9732, %v9731
      %v9748 = vpack.c.b16 %v9734, %v9733
      %v9749 = vpack.c.b16 %v9736, %v9735
      %v9750 = vpack.c.b16 %v9738, %v9737
      %v9751 = vpack.c.b16 %v9740, %v9739
      %v9752 = vpack.c.b16 %v9742, %v9741
      %v9753 = vpack.c.b16 %v9744, %v9743
      %v9754 = vpack.c.b16 %v9746, %v9745
      %9763 = vmatprep.subr.bf16.mxu0 0
      %9764 = vmatpush1.bf16.msra.mxu0 %v9747
      %9765 = vmatprep.subr.bf16.mxu0 0
      %9766 = vmatpush1.bf16.msra.mxu0 %v9748
      %9767 = vmatprep.subr.bf16.mxu0 0
      %9768 = vmatpush1.bf16.msra.mxu0 %v9749
      %9769 = vmatprep.subr.bf16.mxu0 0
      %9770 = vmatpush1.bf16.msra.mxu0 %v9750
      %9771 = vmatprep.subr.bf16.mxu0 0
      %9772 = vmatpush1.bf16.msra.mxu0 %v9751
      %9773 = vmatprep.subr.bf16.mxu0 0
      %9774 = vmatpush1.bf16.msra.mxu0 %v9752
      %9775 = vmatprep.subr.bf16.mxu0 0
      %9776 = vmatpush1.bf16.msra.mxu0 %v9753
      %9777 = vmatprep.subr.bf16.mxu0 0
      %9778 = vmatpush1.bf16.msra.mxu0 %v9754
      %9779 = vmatprep.subr.bf16.mxu0 0
      %9780 = vmatpush1.bf16.msra.mxu0 0
      %9781 = vmatprep.subr.bf16.mxu0 0
      %9782 = vmatpush1.bf16.msra.mxu0 0
      %9783 = vmatprep.subr.bf16.mxu0 0
      %9784 = vmatpush1.bf16.msra.mxu0 0
      %9785 = vmatprep.subr.bf16.mxu0 0
      %9786 = vmatpush1.bf16.msra.mxu0 0
      %9787 = vmatprep.subr.bf16.mxu0 0
      %9788 = vmatpush1.bf16.msra.mxu0 0
      %9789 = vmatprep.subr.bf16.mxu0 0
      %9790 = vmatpush1.bf16.msra.mxu0 0
      %9791 = vmatprep.subr.bf16.mxu0 0
      %9792 = vmatpush1.bf16.msra.mxu0 0
      %9793 = vmatprep.subr.bf16.mxu0 0
      %9794 = vmatpush1.bf16.msra.mxu0 0
      %9795 = vmatprep.mubr.bf16.mxu0 0
      %9796 = vmatmul.mubr.bf16.gmra.mrb[0].mxu0 %v2899
      %v9797 = vpop.f32.mrb[0].mxu0
      %v9798 = vadd.f32 0.0, %v9797
      %v9799 = vpop.f32.mrb[0].mxu0
      %v9800 = vpop.f32.mrb[0].mxu0
      %v9801 = vadd.f32 0.0, %v9800
      %v9802 = vpop.f32.mrb[0].mxu0
      %9803 = vmatprep.mubr.bf16.mxu0 0
      %9804 = vmatmul.mubr.bf16.gmra.mrb[0].mxu0 %v2900
      %v9805 = vpop.f32.mrb[0].mxu0
      %v9806 = vadd.f32 0.0, %v9805
      %v9807 = vpop.f32.mrb[0].mxu0
      %v9808 = vpop.f32.mrb[0].mxu0
      %v9809 = vadd.f32 0.0, %v9808
      %v9810 = vpop.f32.mrb[0].mxu0
      %9811 = vdwg.mxu0
      %v9828 = vunpack.c.l.b16 %v3879
      %v9829 = vunpack.c.l.b16 %v3880
      %v9830 = vunpack.c.l.b16 %v3881
      %v9831 = vunpack.c.l.b16 %v3882
      %v9832 = vunpack.c.l.b16 %v3883
      %v9833 = vunpack.c.l.b16 %v3884
      %v9834 = vunpack.c.l.b16 %v3885
      %v9835 = vunpack.c.l.b16 %v3886
      %v9836 = vunpack.c.l.b16 %v3887
      %v9837 = vunpack.c.l.b16 %v3888
      %v9838 = vunpack.c.l.b16 %v3889
      %v9839 = vunpack.c.l.b16 %v3890
      %v9840 = vunpack.c.l.b16 %v3891
      %v9841 = vunpack.c.l.b16 %v3892
      %v9842 = vunpack.c.l.b16 %v3893
      %v9843 = vunpack.c.l.b16 %v3894
      %v9844 = vpack.c.b16 %v9829, %v9828
      %v9845 = vpack.c.b16 %v9831, %v9830
      %v9846 = vpack.c.b16 %v9833, %v9832
      %v9847 = vpack.c.b16 %v9835, %v9834
      %v9848 = vpack.c.b16 %v9837, %v9836
      %v9849 = vpack.c.b16 %v9839, %v9838
      %v9850 = vpack.c.b16 %v9841, %v9840
      %v9851 = vpack.c.b16 %v9843, %v9842
      %9860 = vmatprep.subr.bf16.mxu0 0
      %9861 = vmatpush1.bf16.msra.mxu0 %v9844
      %9862 = vmatprep.subr.bf16.mxu0 0
      %9863 = vmatpush1.bf16.msra.mxu0 %v9845
      %9864 = vmatprep.subr.bf16.mxu0 0
      %9865 = vmatpush1.bf16.msra.mxu0 %v9846
      %9866 = vmatprep.subr.bf16.mxu0 0
      %9867 = vmatpush1.bf16.msra.mxu0 %v9847
      %9868 = vmatprep.subr.bf16.mxu0 0
      %9869 = vmatpush1.bf16.msra.mxu0 %v9848
      %9870 = vmatprep.subr.bf16.mxu0 0
      %9871 = vmatpush1.bf16.msra.mxu0 %v9849
      %9872 = vmatprep.subr.bf16.mxu0 0
      %9873 = vmatpush1.bf16.msra.mxu0 %v9850
      %9874 = vmatprep.subr.bf16.mxu0 0
      %9875 = vmatpush1.bf16.msra.mxu0 %v9851
      %9876 = vmatprep.subr.bf16.mxu0 0
      %9877 = vmatpush1.bf16.msra.mxu0 0
      %9878 = vmatprep.subr.bf16.mxu0 0
      %9879 = vmatpush1.bf16.msra.mxu0 0
      %9880 = vmatprep.subr.bf16.mxu0 0
      %9881 = vmatpush1.bf16.msra.mxu0 0
      %9882 = vmatprep.subr.bf16.mxu0 0
      %9883 = vmatpush1.bf16.msra.mxu0 0
      %9884 = vmatprep.subr.bf16.mxu0 0
      %9885 = vmatpush1.bf16.msra.mxu0 0
      %9886 = vmatprep.subr.bf16.mxu0 0
      %9887 = vmatpush1.bf16.msra.mxu0 0
      %9888 = vmatprep.subr.bf16.mxu0 0
      %9889 = vmatpush1.bf16.msra.mxu0 0
      %9890 = vmatprep.subr.bf16.mxu0 0
      %9891 = vmatpush1.bf16.msra.mxu0 0
      %9892 = vmatprep.mubr.bf16.mxu0 0
      %9893 = vmatmul.mubr.bf16.gmra.mrb[0].mxu0 %v2901
      %v9894 = vpop.f32.mrb[0].mxu0
      %v9895 = vadd.f32 0.0, %v9894
      %v9896 = vpop.f32.mrb[0].mxu0
      %v9897 = vpop.f32.mrb[0].mxu0
      %v9898 = vadd.f32 0.0, %v9897
      %v9899 = vpop.f32.mrb[0].mxu0
      %9900 = vmatprep.mubr.bf16.mxu0 0
      %9901 = vmatmul.mubr.bf16.gmra.mrb[0].mxu0 %v2902
      %v9902 = vpop.f32.mrb[0].mxu0
      %v9903 = vadd.f32 0.0, %v9902
      %v9904 = vpop.f32.mrb[0].mxu0
      %v9905 = vpop.f32.mrb[0].mxu0
      %v9906 = vadd.f32 0.0, %v9905
      %v9907 = vpop.f32.mrb[0].mxu0
      %9908 = vdwg.mxu0
      %vm9909 = vcmask 64512
      %v9910 = vsel %vm9909, %v3978, 0.0
      %v9911 = vsel %vm9909, %v4075, 0.0
      %v9912 = vadd.f32 %v9910, %v9911
      %v9913 = vsel %vm9909, %v4172, 0.0
      %v9914 = vadd.f32 %v9912, %v9913
      %v9915 = vsel %vm9909, %v4269, 0.0
      %v9916 = vadd.f32 %v9914, %v9915
      %v9917 = vsel %vm9909, %v4366, 0.0
      %v9918 = vadd.f32 %v9916, %v9917
      %v9919 = vsel %vm9909, %v4463, 0.0
      %v9920 = vadd.f32 %v9918, %v9919
      %v9921 = vsel %vm9909, %v4560, 0.0
      %v9922 = vadd.f32 %v9920, %v9921
      %v9923 = vsel %vm9909, %v4657, 0.0
      %v9924 = vadd.f32 %v9922, %v9923
      %v9925 = vsel %vm9909, %v4754, 0.0
      %v9926 = vadd.f32 %v9924, %v9925
      %v9927 = vsel %vm9909, %v4851, 0.0
      %v9928 = vadd.f32 %v9926, %v9927
      %v9929 = vsel %vm9909, %v4948, 0.0
      %v9930 = vadd.f32 %v9928, %v9929
      %v9931 = vsel %vm9909, %v5045, 0.0
      %v9932 = vadd.f32 %v9930, %v9931
      %v9933 = vsel %vm9909, %v5142, 0.0
      %v9934 = vadd.f32 %v9932, %v9933
      %v9935 = vsel %vm9909, %v5239, 0.0
      %v9936 = vadd.f32 %v9934, %v9935
      %v9937 = vsel %vm9909, %v5336, 0.0
      %v9938 = vadd.f32 %v9936, %v9937
      %v9939 = vsel %vm9909, %v5433, 0.0
      %v9940 = vadd.f32 %v9938, %v9939
      %v9941 = vsel %vm9909, %v5530, 0.0
      %v9942 = vadd.f32 %v9940, %v9941
      %v9943 = vsel %vm9909, %v5627, 0.0
      %v9944 = vadd.f32 %v9942, %v9943
      %v9945 = vsel %vm9909, %v5724, 0.0
      %v9946 = vadd.f32 %v9944, %v9945
      %v9947 = vsel %vm9909, %v5821, 0.0
      %v9948 = vadd.f32 %v9946, %v9947
      %v9949 = vsel %vm9909, %v5918, 0.0
      %v9950 = vadd.f32 %v9948, %v9949
      %v9951 = vsel %vm9909, %v6015, 0.0
      %v9952 = vadd.f32 %v9950, %v9951
      %v9953 = vsel %vm9909, %v6112, 0.0
      %v9954 = vadd.f32 %v9952, %v9953
      %v9955 = vsel %vm9909, %v6209, 0.0
      %v9956 = vadd.f32 %v9954, %v9955
      %v9957 = vsel %vm9909, %v6306, 0.0
      %v9958 = vadd.f32 %v9956, %v9957
      %v9959 = vsel %vm9909, %v6403, 0.0
      %v9960 = vadd.f32 %v9958, %v9959
      %v9961 = vsel %vm9909, %v6500, 0.0
      %v9962 = vadd.f32 %v9960, %v9961
      %v9963 = vsel %vm9909, %v6597, 0.0
      %v9964 = vadd.f32 %v9962, %v9963
      %v9965 = vsel %vm9909, %v6694, 0.0
      %v9966 = vadd.f32 %v9964, %v9965
      %v9967 = vsel %vm9909, %v6791, 0.0
      %v9968 = vadd.f32 %v9966, %v9967
      %v9969 = vsel %vm9909, %v6888, 0.0
      %v9970 = vadd.f32 %v9968, %v9969
      %v9971 = vsel %vm9909, %v6985, 0.0
      %v9972 = vadd.f32 %v9970, %v9971
      %v9973 = vsel %vm9909, %v7082, 0.0
      %v9974 = vadd.f32 %v9972, %v9973
      %v9975 = vsel %vm9909, %v7179, 0.0
      %v9976 = vadd.f32 %v9974, %v9975
      %v9977 = vsel %vm9909, %v7276, 0.0
      %v9978 = vadd.f32 %v9976, %v9977
      %v9979 = vsel %vm9909, %v7373, 0.0
      %v9980 = vadd.f32 %v9978, %v9979
      %v9981 = vsel %vm9909, %v7470, 0.0
      %v9982 = vadd.f32 %v9980, %v9981
      %v9983 = vsel %vm9909, %v7567, 0.0
      %v9984 = vadd.f32 %v9982, %v9983
      %v9985 = vsel %vm9909, %v7664, 0.0
      %v9986 = vadd.f32 %v9984, %v9985
      %v9987 = vsel %vm9909, %v7761, 0.0
      %v9988 = vadd.f32 %v9986, %v9987
      %v9989 = vsel %vm9909, %v7858, 0.0
      %v9990 = vadd.f32 %v9988, %v9989
      %v9991 = vsel %vm9909, %v7955, 0.0
      %v9992 = vadd.f32 %v9990, %v9991
      %v9993 = vsel %vm9909, %v8052, 0.0
      %v9994 = vadd.f32 %v9992, %v9993
      %v9995 = vsel %vm9909, %v8149, 0.0
      %v9996 = vadd.f32 %v9994, %v9995
      %v9997 = vsel %vm9909, %v8246, 0.0
      %v9998 = vadd.f32 %v9996, %v9997
      %v9999 = vsel %vm9909, %v8343, 0.0
      %v10000 = vadd.f32 %v9998, %v9999
      %v10001 = vsel %vm9909, %v8440, 0.0
      %v10002 = vadd.f32 %v10000, %v10001
      %v10003 = vsel %vm9909, %v8537, 0.0
      %v10004 = vadd.f32 %v10002, %v10003
      %v10005 = vsel %vm9909, %v8634, 0.0
      %v10006 = vadd.f32 %v10004, %v10005
      %v10007 = vsel %vm9909, %v8731, 0.0
      %v10008 = vadd.f32 %v10006, %v10007
      %v10009 = vsel %vm9909, %v8828, 0.0
      %v10010 = vadd.f32 %v10008, %v10009
      %v10011 = vsel %vm9909, %v8925, 0.0
      %v10012 = vadd.f32 %v10010, %v10011
      %v10013 = vsel %vm9909, %v9022, 0.0
      %v10014 = vadd.f32 %v10012, %v10013
      %v10015 = vsel %vm9909, %v9119, 0.0
      %v10016 = vadd.f32 %v10014, %v10015
      %v10017 = vsel %vm9909, %v9216, 0.0
      %v10018 = vadd.f32 %v10016, %v10017
      %v10019 = vsel %vm9909, %v9313, 0.0
      %v10020 = vadd.f32 %v10018, %v10019
      %v10021 = vsel %vm9909, %v9410, 0.0
      %v10022 = vadd.f32 %v10020, %v10021
      %v10023 = vsel %vm9909, %v9507, 0.0
      %v10024 = vadd.f32 %v10022, %v10023
      %v10025 = vsel %vm9909, %v9604, 0.0
      %v10026 = vadd.f32 %v10024, %v10025
      %v10027 = vsel %vm9909, %v9701, 0.0
      %v10028 = vadd.f32 %v10026, %v10027
      %v10029 = vsel %vm9909, %v9798, 0.0
      %v10030 = vadd.f32 %v10028, %v10029
      %v10031 = vsel %vm9909, %v9895, 0.0
      %v10032 = vadd.f32 %v10030, %v10031
      %v10033 = vsel %vm9909, %v3981, 0.0
      %v10034 = vsel %vm9909, %v4078, 0.0
      %v10035 = vadd.f32 %v10033, %v10034
      %v10036 = vsel %vm9909, %v4175, 0.0
      %v10037 = vadd.f32 %v10035, %v10036
      %v10038 = vsel %vm9909, %v4272, 0.0
      %v10039 = vadd.f32 %v10037, %v10038
      %v10040 = vsel %vm9909, %v4369, 0.0
      %v10041 = vadd.f32 %v10039, %v10040
      %v10042 = vsel %vm9909, %v4466, 0.0
      %v10043 = vadd.f32 %v10041, %v10042
      %v10044 = vsel %vm9909, %v4563, 0.0
      %v10045 = vadd.f32 %v10043, %v10044
      %v10046 = vsel %vm9909, %v4660, 0.0
      %v10047 = vadd.f32 %v10045, %v10046
      %v10048 = vsel %vm9909, %v4757, 0.0
      %v10049 = vadd.f32 %v10047, %v10048
      %v10050 = vsel %vm9909, %v4854, 0.0
      %v10051 = vadd.f32 %v10049, %v10050
      %v10052 = vsel %vm9909, %v4951, 0.0
      %v10053 = vadd.f32 %v10051, %v10052
      %v10054 = vsel %vm9909, %v5048, 0.0
      %v10055 = vadd.f32 %v10053, %v10054
      %v10056 = vsel %vm9909, %v5145, 0.0
      %v10057 = vadd.f32 %v10055, %v10056
      %v10058 = vsel %vm9909, %v5242, 0.0
      %v10059 = vadd.f32 %v10057, %v10058
      %v10060 = vsel %vm9909, %v5339, 0.0
      %v10061 = vadd.f32 %v10059, %v10060
      %v10062 = vsel %vm9909, %v5436, 0.0
      %v10063 = vadd.f32 %v10061, %v10062
      %v10064 = vsel %vm9909, %v5533, 0.0
      %v10065 = vadd.f32 %v10063, %v10064
      %v10066 = vsel %vm9909, %v5630, 0.0
      %v10067 = vadd.f32 %v10065, %v10066
      %v10068 = vsel %vm9909, %v5727, 0.0
      %v10069 = vadd.f32 %v10067, %v10068
      %v10070 = vsel %vm9909, %v5824, 0.0
      %v10071 = vadd.f32 %v10069, %v10070
      %v10072 = vsel %vm9909, %v5921, 0.0
      %v10073 = vadd.f32 %v10071, %v10072
      %v10074 = vsel %vm9909, %v6018, 0.0
      %v10075 = vadd.f32 %v10073, %v10074
      %v10076 = vsel %vm9909, %v6115, 0.0
      %v10077 = vadd.f32 %v10075, %v10076
      %v10078 = vsel %vm9909, %v6212, 0.0
      %v10079 = vadd.f32 %v10077, %v10078
      %v10080 = vsel %vm9909, %v6309, 0.0
      %v10081 = vadd.f32 %v10079, %v10080
      %v10082 = vsel %vm9909, %v6406, 0.0
      %v10083 = vadd.f32 %v10081, %v10082
      %v10084 = vsel %vm9909, %v6503, 0.0
      %v10085 = vadd.f32 %v10083, %v10084
      %v10086 = vsel %vm9909, %v6600, 0.0
      %v10087 = vadd.f32 %v10085, %v10086
      %v10088 = vsel %vm9909, %v6697, 0.0
      %v10089 = vadd.f32 %v10087, %v10088
      %v10090 = vsel %vm9909, %v6794, 0.0
      %v10091 = vadd.f32 %v10089, %v10090
      %v10092 = vsel %vm9909, %v6891, 0.0
      %v10093 = vadd.f32 %v10091, %v10092
      %v10094 = vsel %vm9909, %v6988, 0.0
      %v10095 = vadd.f32 %v10093, %v10094
      %v10096 = vsel %vm9909, %v7085, 0.0
      %v10097 = vadd.f32 %v10095, %v10096
      %v10098 = vsel %vm9909, %v7182, 0.0
      %v10099 = vadd.f32 %v10097, %v10098
      %v10100 = vsel %vm9909, %v7279, 0.0
      %v10101 = vadd.f32 %v10099, %v10100
      %v10102 = vsel %vm9909, %v7376, 0.0
      %v10103 = vadd.f32 %v10101, %v10102
      %v10104 = vsel %vm9909, %v7473, 0.0
      %v10105 = vadd.f32 %v10103, %v10104
      %v10106 = vsel %vm9909, %v7570, 0.0
      %v10107 = vadd.f32 %v10105, %v10106
      %v10108 = vsel %vm9909, %v7667, 0.0
      %v10109 = vadd.f32 %v10107, %v10108
      %v10110 = vsel %vm9909, %v7764, 0.0
      %v10111 = vadd.f32 %v10109, %v10110
      %v10112 = vsel %vm9909, %v7861, 0.0
      %v10113 = vadd.f32 %v10111, %v10112
      %v10114 = vsel %vm9909, %v7958, 0.0
      %v10115 = vadd.f32 %v10113, %v10114
      %v10116 = vsel %vm9909, %v8055, 0.0
      %v10117 = vadd.f32 %v10115, %v10116
      %v10118 = vsel %vm9909, %v8152, 0.0
      %v10119 = vadd.f32 %v10117, %v10118
      %v10120 = vsel %vm9909, %v8249, 0.0
      %v10121 = vadd.f32 %v10119, %v10120
      %v10122 = vsel %vm9909, %v8346, 0.0
      %v10123 = vadd.f32 %v10121, %v10122
      %v10124 = vsel %vm9909, %v8443, 0.0
      %v10125 = vadd.f32 %v10123, %v10124
      %v10126 = vsel %vm9909, %v8540, 0.0
      %v10127 = vadd.f32 %v10125, %v10126
      %v10128 = vsel %vm9909, %v8637, 0.0
      %v10129 = vadd.f32 %v10127, %v10128
      %v10130 = vsel %vm9909, %v8734, 0.0
      %v10131 = vadd.f32 %v10129, %v10130
      %v10132 = vsel %vm9909, %v8831, 0.0
      %v10133 = vadd.f32 %v10131, %v10132
      %v10134 = vsel %vm9909, %v8928, 0.0
      %v10135 = vadd.f32 %v10133, %v10134
      %v10136 = vsel %vm9909, %v9025, 0.0
      %v10137 = vadd.f32 %v10135, %v10136
      %v10138 = vsel %vm9909, %v9122, 0.0
      %v10139 = vadd.f32 %v10137, %v10138
      %v10140 = vsel %vm9909, %v9219, 0.0
      %v10141 = vadd.f32 %v10139, %v10140
      %v10142 = vsel %vm9909, %v9316, 0.0
      %v10143 = vadd.f32 %v10141, %v10142
      %v10144 = vsel %vm9909, %v9413, 0.0
      %v10145 = vadd.f32 %v10143, %v10144
      %v10146 = vsel %vm9909, %v9510, 0.0
      %v10147 = vadd.f32 %v10145, %v10146
      %v10148 = vsel %vm9909, %v9607, 0.0
      %v10149 = vadd.f32 %v10147, %v10148
      %v10150 = vsel %vm9909, %v9704, 0.0
      %v10151 = vadd.f32 %v10149, %v10150
      %v10152 = vsel %vm9909, %v9801, 0.0
      %v10153 = vadd.f32 %v10151, %v10152
      %v10154 = vsel %vm9909, %v9898, 0.0
      %v10155 = vadd.f32 %v10153, %v10154
      %v10156 = vsel %vm9909, %v3986, 0.0
      %v10157 = vsel %vm9909, %v4083, 0.0
      %v10158 = vadd.f32 %v10156, %v10157
      %v10159 = vsel %vm9909, %v4180, 0.0
      %v10160 = vadd.f32 %v10158, %v10159
      %v10161 = vsel %vm9909, %v4277, 0.0
      %v10162 = vadd.f32 %v10160, %v10161
      %v10163 = vsel %vm9909, %v4374, 0.0
      %v10164 = vadd.f32 %v10162, %v10163
      %v10165 = vsel %vm9909, %v4471, 0.0
      %v10166 = vadd.f32 %v10164, %v10165
      %v10167 = vsel %vm9909, %v4568, 0.0
      %v10168 = vadd.f32 %v10166, %v10167
      %v10169 = vsel %vm9909, %v4665, 0.0
      %v10170 = vadd.f32 %v10168, %v10169
      %v10171 = vsel %vm9909, %v4762, 0.0
      %v10172 = vadd.f32 %v10170, %v10171
      %v10173 = vsel %vm9909, %v4859, 0.0
      %v10174 = vadd.f32 %v10172, %v10173
      %v10175 = vsel %vm9909, %v4956, 0.0
      %v10176 = vadd.f32 %v10174, %v10175
      %v10177 = vsel %vm9909, %v5053, 0.0
      %v10178 = vadd.f32 %v10176, %v10177
      %v10179 = vsel %vm9909, %v5150, 0.0
      %v10180 = vadd.f32 %v10178, %v10179
      %v10181 = vsel %vm9909, %v5247, 0.0
      %v10182 = vadd.f32 %v10180, %v10181
      %v10183 = vsel %vm9909, %v5344, 0.0
      %v10184 = vadd.f32 %v10182, %v10183
      %v10185 = vsel %vm9909, %v5441, 0.0
      %v10186 = vadd.f32 %v10184, %v10185
      %v10187 = vsel %vm9909, %v5538, 0.0
      %v10188 = vadd.f32 %v10186, %v10187
      %v10189 = vsel %vm9909, %v5635, 0.0
      %v10190 = vadd.f32 %v10188, %v10189
      %v10191 = vsel %vm9909, %v5732, 0.0
      %v10192 = vadd.f32 %v10190, %v10191
      %v10193 = vsel %vm9909, %v5829, 0.0
      %v10194 = vadd.f32 %v10192, %v10193
      %v10195 = vsel %vm9909, %v5926, 0.0
      %v10196 = vadd.f32 %v10194, %v10195
      %v10197 = vsel %vm9909, %v6023, 0.0
      %v10198 = vadd.f32 %v10196, %v10197
      %v10199 = vsel %vm9909, %v6120, 0.0
      %v10200 = vadd.f32 %v10198, %v10199
      %v10201 = vsel %vm9909, %v6217, 0.0
      %v10202 = vadd.f32 %v10200, %v10201
      %v10203 = vsel %vm9909, %v6314, 0.0
      %v10204 = vadd.f32 %v10202, %v10203
      %v10205 = vsel %vm9909, %v6411, 0.0
      %v10206 = vadd.f32 %v10204, %v10205
      %v10207 = vsel %vm9909, %v6508, 0.0
      %v10208 = vadd.f32 %v10206, %v10207
      %v10209 = vsel %vm9909, %v6605, 0.0
      %v10210 = vadd.f32 %v10208, %v10209
      %v10211 = vsel %vm9909, %v6702, 0.0
      %v10212 = vadd.f32 %v10210, %v10211
      %v10213 = vsel %vm9909, %v6799, 0.0
      %v10214 = vadd.f32 %v10212, %v10213
      %v10215 = vsel %vm9909, %v6896, 0.0
      %v10216 = vadd.f32 %v10214, %v10215
      %v10217 = vsel %vm9909, %v6993, 0.0
      %v10218 = vadd.f32 %v10216, %v10217
      %v10219 = vsel %vm9909, %v7090, 0.0
      %v10220 = vadd.f32 %v10218, %v10219
      %v10221 = vsel %vm9909, %v7187, 0.0
      %v10222 = vadd.f32 %v10220, %v10221
      %v10223 = vsel %vm9909, %v7284, 0.0
      %v10224 = vadd.f32 %v10222, %v10223
      %v10225 = vsel %vm9909, %v7381, 0.0
      %v10226 = vadd.f32 %v10224, %v10225
      %v10227 = vsel %vm9909, %v7478, 0.0
      %v10228 = vadd.f32 %v10226, %v10227
      %v10229 = vsel %vm9909, %v7575, 0.0
      %v10230 = vadd.f32 %v10228, %v10229
      %v10231 = vsel %vm9909, %v7672, 0.0
      %v10232 = vadd.f32 %v10230, %v10231
      %v10233 = vsel %vm9909, %v7769, 0.0
      %v10234 = vadd.f32 %v10232, %v10233
      %v10235 = vsel %vm9909, %v7866, 0.0
      %v10236 = vadd.f32 %v10234, %v10235
      %v10237 = vsel %vm9909, %v7963, 0.0
      %v10238 = vadd.f32 %v10236, %v10237
      %v10239 = vsel %vm9909, %v8060, 0.0
      %v10240 = vadd.f32 %v10238, %v10239
      %v10241 = vsel %vm9909, %v8157, 0.0
      %v10242 = vadd.f32 %v10240, %v10241
      %v10243 = vsel %vm9909, %v8254, 0.0
      %v10244 = vadd.f32 %v10242, %v10243
      %v10245 = vsel %vm9909, %v8351, 0.0
      %v10246 = vadd.f32 %v10244, %v10245
      %v10247 = vsel %vm9909, %v8448, 0.0
      %v10248 = vadd.f32 %v10246, %v10247
      %v10249 = vsel %vm9909, %v8545, 0.0
      %v10250 = vadd.f32 %v10248, %v10249
      %v10251 = vsel %vm9909, %v8642, 0.0
      %v10252 = vadd.f32 %v10250, %v10251
      %v10253 = vsel %vm9909, %v8739, 0.0
      %v10254 = vadd.f32 %v10252, %v10253
      %v10255 = vsel %vm9909, %v8836, 0.0
      %v10256 = vadd.f32 %v10254, %v10255
      %v10257 = vsel %vm9909, %v8933, 0.0
      %v10258 = vadd.f32 %v10256, %v10257
      %v10259 = vsel %vm9909, %v9030, 0.0
      %v10260 = vadd.f32 %v10258, %v10259
      %v10261 = vsel %vm9909, %v9127, 0.0
      %v10262 = vadd.f32 %v10260, %v10261
      %v10263 = vsel %vm9909, %v9224, 0.0
      %v10264 = vadd.f32 %v10262, %v10263
      %v10265 = vsel %vm9909, %v9321, 0.0
      %v10266 = vadd.f32 %v10264, %v10265
      %v10267 = vsel %vm9909, %v9418, 0.0
      %v10268 = vadd.f32 %v10266, %v10267
      %v10269 = vsel %vm9909, %v9515, 0.0
      %v10270 = vadd.f32 %v10268, %v10269
      %v10271 = vsel %vm9909, %v9612, 0.0
      %v10272 = vadd.f32 %v10270, %v10271
      %v10273 = vsel %vm9909, %v9709, 0.0
      %v10274 = vadd.f32 %v10272, %v10273
      %v10275 = vsel %vm9909, %v9806, 0.0
      %v10276 = vadd.f32 %v10274, %v10275
      %v10277 = vsel %vm9909, %v9903, 0.0
      %v10278 = vadd.f32 %v10276, %v10277
      %v10279 = vsel %vm9909, %v3989, 0.0
      %v10280 = vsel %vm9909, %v4086, 0.0
      %v10281 = vadd.f32 %v10279, %v10280
      %v10282 = vsel %vm9909, %v4183, 0.0
      %v10283 = vadd.f32 %v10281, %v10282
      %v10284 = vsel %vm9909, %v4280, 0.0
      %v10285 = vadd.f32 %v10283, %v10284
      %v10286 = vsel %vm9909, %v4377, 0.0
      %v10287 = vadd.f32 %v10285, %v10286
      %v10288 = vsel %vm9909, %v4474, 0.0
      %v10289 = vadd.f32 %v10287, %v10288
      %v10290 = vsel %vm9909, %v4571, 0.0
      %v10291 = vadd.f32 %v10289, %v10290
      %v10292 = vsel %vm9909, %v4668, 0.0
      %v10293 = vadd.f32 %v10291, %v10292
      %v10294 = vsel %vm9909, %v4765, 0.0
      %v10295 = vadd.f32 %v10293, %v10294
      %v10296 = vsel %vm9909, %v4862, 0.0
      %v10297 = vadd.f32 %v10295, %v10296
      %v10298 = vsel %vm9909, %v4959, 0.0
      %v10299 = vadd.f32 %v10297, %v10298
      %v10300 = vsel %vm9909, %v5056, 0.0
      %v10301 = vadd.f32 %v10299, %v10300
      %v10302 = vsel %vm9909, %v5153, 0.0
      %v10303 = vadd.f32 %v10301, %v10302
      %v10304 = vsel %vm9909, %v5250, 0.0
      %v10305 = vadd.f32 %v10303, %v10304
      %v10306 = vsel %vm9909, %v5347, 0.0
      %v10307 = vadd.f32 %v10305, %v10306
      %v10308 = vsel %vm9909, %v5444, 0.0
      %v10309 = vadd.f32 %v10307, %v10308
      %v10310 = vsel %vm9909, %v5541, 0.0
      %v10311 = vadd.f32 %v10309, %v10310
      %v10312 = vsel %vm9909, %v5638, 0.0
      %v10313 = vadd.f32 %v10311, %v10312
      %v10314 = vsel %vm9909, %v5735, 0.0
      %v10315 = vadd.f32 %v10313, %v10314
      %v10316 = vsel %vm9909, %v5832, 0.0
      %v10317 = vadd.f32 %v10315, %v10316
      %v10318 = vsel %vm9909, %v5929, 0.0
      %v10319 = vadd.f32 %v10317, %v10318
      %v10320 = vsel %vm9909, %v6026, 0.0
      %v10321 = vadd.f32 %v10319, %v10320
      %v10322 = vsel %vm9909, %v6123, 0.0
      %v10323 = vadd.f32 %v10321, %v10322
      %v10324 = vsel %vm9909, %v6220, 0.0
      %v10325 = vadd.f32 %v10323, %v10324
      %v10326 = vsel %vm9909, %v6317, 0.0
      %v10327 = vadd.f32 %v10325, %v10326
      %v10328 = vsel %vm9909, %v6414, 0.0
      %v10329 = vadd.f32 %v10327, %v10328
      %v10330 = vsel %vm9909, %v6511, 0.0
      %v10331 = vadd.f32 %v10329, %v10330
      %v10332 = vsel %vm9909, %v6608, 0.0
      %v10333 = vadd.f32 %v10331, %v10332
      %v10334 = vsel %vm9909, %v6705, 0.0
      %v10335 = vadd.f32 %v10333, %v10334
      %v10336 = vsel %vm9909, %v6802, 0.0
      %v10337 = vadd.f32 %v10335, %v10336
      %v10338 = vsel %vm9909, %v6899, 0.0
      %v10339 = vadd.f32 %v10337, %v10338
      %v10340 = vsel %vm9909, %v6996, 0.0
      %v10341 = vadd.f32 %v10339, %v10340
      %v10342 = vsel %vm9909, %v7093, 0.0
      %v10343 = vadd.f32 %v10341, %v10342
      %v10344 = vsel %vm9909, %v7190, 0.0
      %v10345 = vadd.f32 %v10343, %v10344
      %v10346 = vsel %vm9909, %v7287, 0.0
      %v10347 = vadd.f32 %v10345, %v10346
      %v10348 = vsel %vm9909, %v7384, 0.0
      %v10349 = vadd.f32 %v10347, %v10348
      %v10350 = vsel %vm9909, %v7481, 0.0
      %v10351 = vadd.f32 %v10349, %v10350
      %v10352 = vsel %vm9909, %v7578, 0.0
      %v10353 = vadd.f32 %v10351, %v10352
      %v10354 = vsel %vm9909, %v7675, 0.0
      %v10355 = vadd.f32 %v10353, %v10354
      %v10356 = vsel %vm9909, %v7772, 0.0
      %v10357 = vadd.f32 %v10355, %v10356
      %v10358 = vsel %vm9909, %v7869, 0.0
      %v10359 = vadd.f32 %v10357, %v10358
      %v10360 = vsel %vm9909, %v7966, 0.0
      %v10361 = vadd.f32 %v10359, %v10360
      %v10362 = vsel %vm9909, %v8063, 0.0
      %v10363 = vadd.f32 %v10361, %v10362
      %v10364 = vsel %vm9909, %v8160, 0.0
      %v10365 = vadd.f32 %v10363, %v10364
      %v10366 = vsel %vm9909, %v8257, 0.0
      %v10367 = vadd.f32 %v10365, %v10366
      %v10368 = vsel %vm9909, %v8354, 0.0
      %v10369 = vadd.f32 %v10367, %v10368
      %v10370 = vsel %vm9909, %v8451, 0.0
      %v10371 = vadd.f32 %v10369, %v10370
      %v10372 = vsel %vm9909, %v8548, 0.0
      %v10373 = vadd.f32 %v10371, %v10372
      %v10374 = vsel %vm9909, %v8645, 0.0
      %v10375 = vadd.f32 %v10373, %v10374
      %v10376 = vsel %vm9909, %v8742, 0.0
      %v10377 = vadd.f32 %v10375, %v10376
      %v10378 = vsel %vm9909, %v8839, 0.0
      %v10379 = vadd.f32 %v10377, %v10378
      %v10380 = vsel %vm9909, %v8936, 0.0
      %v10381 = vadd.f32 %v10379, %v10380
      %v10382 = vsel %vm9909, %v9033, 0.0
      %v10383 = vadd.f32 %v10381, %v10382
      %v10384 = vsel %vm9909, %v9130, 0.0
      %v10385 = vadd.f32 %v10383, %v10384
      %v10386 = vsel %vm9909, %v9227, 0.0
      %v10387 = vadd.f32 %v10385, %v10386
      %v10388 = vsel %vm9909, %v9324, 0.0
      %v10389 = vadd.f32 %v10387, %v10388
      %v10390 = vsel %vm9909, %v9421, 0.0
      %v10391 = vadd.f32 %v10389, %v10390
      %v10392 = vsel %vm9909, %v9518, 0.0
      %v10393 = vadd.f32 %v10391, %v10392
      %v10394 = vsel %vm9909, %v9615, 0.0
      %v10395 = vadd.f32 %v10393, %v10394
      %v10396 = vsel %vm9909, %v9712, 0.0
      %v10397 = vadd.f32 %v10395, %v10396
      %v10398 = vsel %vm9909, %v9809, 0.0
      %v10399 = vadd.f32 %v10397, %v10398
      %v10400 = vsel %vm9909, %v9906, 0.0
      %v10401 = vadd.f32 %v10399, %v10400
      %v10402 = vld [vmem:[%s4] sm:$0x1]
      %v10404 = vlaneseq
      %v10405 = vshrl.u32 %v10404, 7
      %v10406 = vsub.s32 0, %v10405
      %v10407 = vrot.slane %v10402, %v10406
      %v10409 = vadd.f32 %v10032, %v10407
      %v10410 = vadd.f32 %v10155, %v10407
      %v10411 = vadd.f32 %v10278, %v10407
      %v10412 = vadd.f32 %v10401, %v10407
      %v10413 = vsel %vm9909, %v10409, -inf
      %10414 = vmax.xlane.f32.xlu0 %v10413
      %v10415 = vpop.xlane.xlu0 %10414
      %v10416 = vsel %vm9909, %v10410, -inf
      %10417 = vmax.xlane.f32.xlu0 %v10416
      %v10418 = vpop.xlane.xlu0 %10417
      %v10419 = vsel %vm9909, %v10411, -inf
      %10420 = vmax.xlane.f32.xlu0 %v10419
      %v10421 = vpop.xlane.xlu0 %10420
      %v10422 = vsel %vm9909, %v10412, -inf
      %10423 = vmax.xlane.f32.xlu0 %v10422
      %v10424 = vpop.xlane.xlu0 %10423
      %v10425 = vsub.f32 %v10409, %v10415
      %v10426 = vsub.f32 %v10410, %v10418
      %v10427 = vsub.f32 %v10411, %v10421
      %v10428 = vsub.f32 %v10412, %v10424
      %v10429 = vmul.f32 %v10425, 1.442695
      %v10430 = vpow.pop %v10429
      %v10431 = vmul.f32 %v10426, 1.442695
      %v10432 = vpow.pop %v10431
      %v10433 = vmul.f32 %v10427, 1.442695
      %v10434 = vpow.pop %v10433
      %v10435 = vmul.f32 %v10428, 1.442695
      %v10436 = vpow.pop %v10435
      %v10437 = vsel %vm9909, %v10430, 0.0
      %10438 = vadd.xlane.f32.xlu0 %v10437
      %v10439 = vpop.xlane.xlu0 %10438
      %v10440 = vsel %vm9909, %v10432, 0.0
      %10441 = vadd.xlane.f32.xlu0 %v10440
      %v10442 = vpop.xlane.xlu0 %10441
      %v10443 = vsel %vm9909, %v10434, 0.0
      %10444 = vadd.xlane.f32.xlu0 %v10443
      %v10445 = vpop.xlane.xlu0 %10444
      %v10446 = vsel %vm9909, %v10436, 0.0
      %10447 = vadd.xlane.f32.xlu0 %v10446
      %v10448 = vpop.xlane.xlu0 %10447
      %v10449 = vrcp.pop %v10439
      %v10450 = vmul.f32 %v10430, %v10449
      %v10451 = vrcp.pop %v10442
      %v10452 = vmul.f32 %v10432, %v10451
      %v10453 = vrcp.pop %v10445
      %v10454 = vmul.f32 %v10434, %v10453
      %v10455 = vrcp.pop %v10448
      %v10456 = vmul.f32 %v10436, %v10455
      %10457 = vst.msk [vmem:[%s224] sm:$0xff] %vm9909, %v10450
      %10458 = vst.msk [vmem:[%s224 + $0x8] sm:$0xff] %vm9909, %v10452
      %10459 = vst.msk [vmem:[%s224 + $0x10] sm:$0xff] %vm9909, %v10454
      %10460 = vst.msk [vmem:[%s224 + $0x18] sm:$0xff] %vm9909, %v10456
      %p10461 = scmp.lt.s32.totalorder %s16, 1
      %s10462 = scalar_select %p10461, %s16, 1
      %s10463 = smul.addr %s10462, 4
      %s10464 = smul.addr %s10463, 8
      %s10465 = scalar_lea.vmem %s5, %s10464
      // Predicated region
      $region41: #{dnn_forward_pallas.1} parent=39 // pred_check
        %p10466 = pneg %p144
      $region42: #{dnn_forward_pallas.1} parent=39 // pred_check_branch
        %10468 = sbr.rel (%p10466) target = $region44
      $region43: #{dnn_forward_pallas.1} parent=39 // pred_region
        _
      $region44: #{dnn_forward_pallas.1} parent=39 // pred_fallthru
        _
    $region40: #{dnn_forward_pallas.1} parent=5 // pred_fallthru
      _
    %p10469 = scmp.le.s32.totalorder 2, %s11
    // Predicated region
    $region45: #{dnn_forward_pallas.1} parent=5 // pred_check
      %p10470 = pneg %p10469
    $region46: #{dnn_forward_pallas.1} parent=5 // pred_check_branch
      %10472 = sbr.rel (%p10470) target = $region48
    $region47: #{dnn_forward_pallas.1} parent=5 // pred_region
      %s10473 = ssub.s32 %s11, 2
      // Predicated region
      $region49: #{dnn_forward_pallas.1} parent=47 // pred_check
        %p10474 = pneg %p150
      $region50: #{dnn_forward_pallas.1} parent=47 // pred_check_branch
        %10476 = sbr.rel (%p10474) target = $region52
      $region51: #{dnn_forward_pallas.1} parent=47 // pred_region
        %p10477 = scmp.lt.s32.totalorder %s17, 1
        %s10478 = scalar_select %p10477, %s17, 1
        %s10479 = smul.addr %s10478, 4
        %s10480 = smul.addr %s10479, 8
        %s10481 = scalar_lea.vmem %s5, %s10480
      $region52: #{dnn_forward_pallas.1} parent=47 // pred_fallthru
        _
    $region48: #{dnn_forward_pallas.1} parent=5 // pred_fallthru
      _
  $region6: #{dnn_forward_pallas.1} parent=0 // loop_footer
    %s15 = sadd.s32 1, %s11
  $region7: #{dnn_forward_pallas.1} parent=0 // loop_footer_branch
    %10 = sbr.rel target = $region3
  $region8: #{dnn_forward_pallas.1} parent=0 // loop_exit
    _

</llo_original>
